<compile_context>
chip_gen: v5e
topology: v5e:2x2
jax: 0.10.0
libtpu: 0.0.40
codegen_flags: <defaults>
</compile_context>

<pallas_src>
import jax
import jax.numpy as jnp
from jax.experimental import pallas as pl
from jax.experimental.pallas import tpu as pltpu


def _round_up(x, m):
    return ((x + m - 1) // m) * m


# ----------------------------------------------------------------------------
# Fused Pallas kernel
# ----------------------------------------------------------------------------
def make_fused_kernel(L, B2, N, H, num_layers):
    """Build the fused biLSTM + head kernel.

    Ref layout (positional):
      x_ref                                : (L*B2, Ep)  time-major, row = t*B2 + b
      per layer, per direction (3 refs)    : wih_t (in_p,4H), whh_t (H,4H), b (1,4H)
      w1_t (10H, MID), b1 (1, MID), w2_t (MID, OUT), b2 (1, OUT)
      out_ref (N, OUT)
      scratch: gx_fwd (L*B2,4H), gx_bwd (L*B2,4H), y_fwd (L*B2,H), y_bwd (L*B2,H)
    H here is the padded hidden size; gate order is [i, f, o, g].
    """
    H3 = 3 * H

    def cell(g, c):
        # Wrapper-permuted gate order [i | f | o | g]: one sigmoid slab + tanh.
        s = jax.nn.sigmoid(g[:, 0:H3])
        gg = jnp.tanh(g[:, H3:4 * H])
        i_g = s[:, 0:H]
        f_g = s[:, H:2 * H]
        o_g = s[:, 2 * H:H3]
        c_new = f_g * c + i_g * gg
        h_new = o_g * jnp.tanh(c_new)
        return h_new, c_new

    def kernel(x_ref, *refs):
        nw = num_layers * 6 + 4
        wrefs = refs[:nw]
        out_ref = refs[nw]
        gxf_ref, gxb_ref, yf_ref, yb_ref = refs[nw + 1:nw + 5]

        def lw(layer, k):
            return wrefs[layer * 6 + k][...]

        w1_t = wrefs[num_layers * 6 + 0][...]
        b1 = wrefs[num_layers * 6 + 1][...]
        w2_t = wrefs[num_layers * 6 + 2][...]
        b2 = wrefs[num_layers * 6 + 3][...]

        zeros = jnp.zeros((B2, H), jnp.float32)

        def scan_bidir(whh_f_t, whh_b_t):
            """Interleaved fwd/bwd recurrence; hiddens stored to VMEM scratch."""
            hf, cf, hb, cb = zeros, zeros, zeros, zeros
            for t in range(L):
                tb = L - 1 - t
                gf = gxf_ref[pl.ds(t * B2, B2), :] + jnp.dot(
                    hf, whh_f_t, preferred_element_type=jnp.float32)
                gb = gxb_ref[pl.ds(tb * B2, B2), :] + jnp.dot(
                    hb, whh_b_t, preferred_element_type=jnp.float32)
                hf, cf = cell(gf, cf)
                hb, cb = cell(gb, cb)
                yf_ref[pl.ds(t * B2, B2), :] = hf
                yb_ref[pl.ds(tb * B2, B2), :] = hb

        def scan_fwd_only(whh_f_t):
            hf, cf = zeros, zeros
            for t in range(L):
                gf = gxf_ref[pl.ds(t * B2, B2), :] + jnp.dot(
                    hf, whh_f_t, preferred_element_type=jnp.float32)
                hf, cf = cell(gf, cf)
            return hf

        # TODO(synk): whh^T is loop-invariant; could stay resident in MXU weight
        # registers (pltpu.matmul_push_rhs / matmul_acc_lhs / matmul_pop).

        # ---- layer 0: hoisted input projections (one big matmul per dir) ----
        x2d = x_ref[...]                                            # (L*B2, Ep)
        gxf_ref[...] = jnp.dot(x2d, lw(0, 0),
                               preferred_element_type=jnp.float32) + lw(0, 2)
        gxb_ref[...] = jnp.dot(x2d, lw(0, 3),
                               preferred_element_type=jnp.float32) + lw(0, 5)

        h_fwd_last = None
        h_bwd_last = None
        for layer in range(num_layers):
            last = layer == num_layers - 1
            if layer > 0:
                # Next-layer input projection from previous fwd/bwd outputs,
                # splitting wih rows [fwd | bwd] to avoid a lane concat.
                wih_f_t = lw(layer, 0)                              # (2H, 4H)
                wih_b_t = lw(layer, 3)
                yf = yf_ref[...]
                yb = yb_ref[...]
                gxf_ref[...] = (
                    jnp.dot(yf, wih_f_t[0:H, :], preferred_element_type=jnp.float32)
                    + jnp.dot(yb, wih_f_t[H:2 * H, :], preferred_element_type=jnp.float32)
                    + lw(layer, 2))
                if not last:
                    gxb_ref[...] = (
                        jnp.dot(yf, wih_b_t[0:H, :], preferred_element_type=jnp.float32)
                        + jnp.dot(yb, wih_b_t[H:2 * H, :], preferred_element_type=jnp.float32)
                        + lw(layer, 5))
                else:
                    # Last layer bwd: output[-1] is ONE cell step on x[L-1] from
                    # zero state -> only that row block of gx_b is needed.
                    yf_l = yf[(L - 1) * B2:L * B2, :]
                    yb_l = yb[(L - 1) * B2:L * B2, :]
                    gb_last = (
                        jnp.dot(yf_l, wih_b_t[0:H, :], preferred_element_type=jnp.float32)
                        + jnp.dot(yb_l, wih_b_t[H:2 * H, :], preferred_element_type=jnp.float32)
                        + lw(layer, 5))
                    h_bwd_last, _ = cell(gb_last, zeros)

            whh_f_t = lw(layer, 1)                                  # (H, 4H)
            whh_b_t = lw(layer, 4)
            if not last:
                scan_bidir(whh_f_t, whh_b_t)
            else:
                if layer == 0:   # single-layer edge case
                    gb_last = gxb_ref[pl.ds((L - 1) * B2, B2), :]
                    h_bwd_last, _ = cell(gb_last, zeros)
                h_fwd_last = scan_fwd_only(whh_f_t)

        # ---- head: feature fusion + 2-layer classifier -----------------------
        o1_f, o2_f = h_fwd_last[0:N, :], h_fwd_last[N:2 * N, :]
        o1_b, o2_b = h_bwd_last[0:N, :], h_bwd_last[N:2 * N, :]

        # Order matches torch.cat((o1, |o1-o2|, o2, o1*o2, (o1+o2)/2), 2) where
        # each 2H chunk is [fwd | bwd]; w1_t is split into 10 H-row blocks.
        feats = [
            o1_f, o1_b,
            jnp.abs(o1_f - o2_f), jnp.abs(o1_b - o2_b),
            o2_f, o2_b,
            o1_f * o2_f, o1_b * o2_b,
            (o1_f + o2_f) * 0.5, (o1_b + o2_b) * 0.5,
        ]
        # Independent per-block dots, summed as a balanced tree (not a serial chain).
        parts = [jnp.dot(fk, w1_t[k * H:(k + 1) * H, :],
                         preferred_element_type=jnp.float32)
                 for k, fk in enumerate(feats)]
        while len(parts) > 1:
            nxt = [parts[i] + parts[i + 1] for i in range(0, len(parts) - 1, 2)]
            if len(parts) % 2:
                nxt.append(parts[-1])
            parts = nxt
        hid = parts[0] + b1
        y = jnp.dot(hid, w2_t, preferred_element_type=jnp.float32) + b2
        out_ref[...] = y.astype(out_ref.dtype)

    return kernel


# ----------------------------------------------------------------------------
# Weight preparation helpers (run once in the wrapper)
# ----------------------------------------------------------------------------
def _prep_gate_cols(w_t, H, Hp):
    """Reorder gate column blocks [i,f,g,o] -> [i,f,o,g]; zero-pad each to Hp."""
    gi = w_t[:, 0 * H:1 * H]
    gf = w_t[:, 1 * H:2 * H]
    gg = w_t[:, 2 * H:3 * H]
    go = w_t[:, 3 * H:4 * H]
    blocks = [gi, gf, go, gg]
    if Hp != H:
        blocks = [jnp.pad(b, ((0, 0), (0, Hp - H))) for b in blocks]
    return jnp.concatenate(blocks, axis=1)


def _pad_row_blocks(w_t, blk, blk_p):
    """Zero-pad the row axis of w_t per block of `blk` rows up to `blk_p`."""
    if blk == blk_p:
        return w_t
    n = w_t.shape[0] // blk
    parts = [jnp.pad(w_t[k * blk:(k + 1) * blk, :], ((0, blk_p - blk), (0, 0)))
             for k in range(n)]
    return jnp.concatenate(parts, axis=0)


def _auto_num_batch_blocks(N):
    """Split the independent batch across the two TensorCores only on v7x."""
    try:
        kind = jax.devices()[0].device_kind.lower()
    except Exception:
        return 1
    if "v7" in kind and N % 2 == 0 and (N // 2) % 8 == 0:
        return 2
    return 1


# ----------------------------------------------------------------------------
# Wrapper
# ----------------------------------------------------------------------------
def lstm_siamese_forward(q1, q2, emb, lstm_params, w1, b1, w2, b2,
                         num_batch_blocks=None):
    """q1, q2: (L, N) int32 token ids (time-major). Returns (N, output_dim)."""
    L, N = q1.shape
    num_layers = len(lstm_params)
    H = lstm_params[0][0][1].shape[1]          # whh: (4H, H)
    E = emb.shape[1]
    Hp = _round_up(H, 8)                       # padded hidden (exact: pads stay 0)
    Ep = _round_up(E, 128)                     # padded contraction dim for layer 0
    out_dim = w2.shape[0]

    G = _auto_num_batch_blocks(N) if num_batch_blocks is None else num_batch_blocks
    assert N % G == 0
    Nblk = N // G
    B2blk = 2 * Nblk
    assert B2blk % 8 == 0, "per-block batch must stay sublane-aligned"

    # Embedding lookup (plain-JAX gather); both sentences batched together,
    # grouped per batch block so each grid step holds matching s1/s2 halves.
    e1 = emb[q1].reshape(L, G, Nblk, E)
    e2 = emb[q2].reshape(L, G, Nblk, E)
    x = jnp.concatenate([e1, e2], axis=2)                  # (L, G, B2blk, E)
    x = jnp.transpose(x, (1, 0, 2, 3)).reshape(G, L * B2blk, E)
    x = jnp.pad(x, ((0, 0), (0, 0), (0, Ep - E)))          # (G, L*B2blk, Ep)

    # Pre-transpose + gate-reorder ([i,f,o,g]) + zero-pad all weights once.
    flat = []
    for layer, (pf, pb) in enumerate(lstm_params):
        in_blk, in_blk_p = (E, Ep) if layer == 0 else (H, Hp)
        for (wih, whh, b) in (pf, pb):
            wih_t = _pad_row_blocks(_prep_gate_cols(wih.T, H, Hp), in_blk, in_blk_p)
            whh_t = _pad_row_blocks(_prep_gate_cols(whh.T, H, Hp), H, Hp)
            bias = _prep_gate_cols(b, H, Hp)
            flat += [wih_t, whh_t, bias]       # (in_p,4Hp), (Hp,4Hp), (1,4Hp)
    w1_t = _pad_row_blocks(w1.T, H, Hp)        # (10*Hp, MID)
    flat += [w1_t, b1, w2.T, b2]               # +(1,MID), (MID,OUT), (1,OUT)

    kernel = make_fused_kernel(L, B2blk, Nblk, Hp, num_layers)
    grid_spec = pltpu.PrefetchScalarGridSpec(
        num_scalar_prefetch=0,
        grid=(G,),
        in_specs=[pl.BlockSpec((None, L * B2blk, Ep), lambda g: (g, 0, 0))]
                 + [pl.BlockSpec(w.shape, lambda g: (0, 0)) for w in flat],
        out_specs=pl.BlockSpec((None, Nblk, out_dim), lambda g: (g, 0, 0)),
        scratch_shapes=[
            pltpu.VMEM((L * B2blk, 4 * Hp), jnp.float32),   # gx fwd
            pltpu.VMEM((L * B2blk, 4 * Hp), jnp.float32),   # gx bwd
            pltpu.VMEM((L * B2blk, Hp), jnp.float32),       # y fwd
            pltpu.VMEM((L * B2blk, Hp), jnp.float32),       # y bwd
        ],
    )
    out = pl.pallas_call(
        kernel,
        out_shape=jax.ShapeDtypeStruct((G, Nblk, out_dim), jnp.float32),
        grid_spec=grid_spec,
        compiler_params=pltpu.CompilerParams(
            dimension_semantics=("parallel",)),
    )(x, *flat)
    return out.reshape(N, out_dim)


# ----------------------------------------------------------------------------
# Pure-JAX reference (correctness check for the Pallas path)
# ----------------------------------------------------------------------------
def _ref_lstm_dir(x, wih, whh, b):
    L, N, _ = x.shape
    H = whh.shape[1]

    def step(carry, x_t):
        h, c = carry
        g = x_t @ wih.T + h @ whh.T + b
        i = jax.nn.sigmoid(g[:, :H])
        f = jax.nn.sigmoid(g[:, H:2 * H])
        gg = jnp.tanh(g[:, 2 * H:3 * H])
        o = jax.nn.sigmoid(g[:, 3 * H:])
        c = f * c + i * gg
        h = o * jnp.tanh(c)
        return (h, c), h

    (_, _), ys = jax.lax.scan(step, (jnp.zeros((N, H)), jnp.zeros((N, H))), x)
    return ys


def _ref_forward(q1, q2, emb, lstm_params, w1, b1, w2, b2):
    def bilstm(x):
        h = x
        for (pf, pb) in lstm_params:
            yf = _ref_lstm_dir(h, *pf)
            yb = _ref_lstm_dir(h[::-1], *pb)[::-1]
            h = jnp.concatenate([yf, yb], axis=-1)
        return h

    o1 = bilstm(emb[q1])[-1]
    o2 = bilstm(emb[q2])[-1]
    feats = jnp.concatenate(
        [o1, jnp.abs(o1 - o2), o2, o1 * o2, (o1 + o2) * 0.5], axis=-1
    )
    return (feats @ w1.T + b1) @ w2.T + b2


# ----------------------------------------------------------------------------
# Main
# ----------------------------------------------------------------------------
if __name__ == "__main__":
    VOCAB = 50
    SEQ = 8          # L
    BATCH = 8        # N
    EMB = 100        # embedding_dim (hardcoded in the module)
    HIDDEN = 30      # hidden_dim (scaled down from 150; non-multiple-of-8 on
                     # purpose so the H->Hp zero-padding path is exercised)
    NUM_LAYERS = 3
    OUT_DIM = 2
    FEAT_DIM = 5 * 2 * HIDDEN          # 300
    MID_DIM = FEAT_DIM // 2            # 150

    key = jax.random.PRNGKey(0)

    def uni(k, shape, scale=0.1):
        return jax.random.uniform(k, shape, jnp.float32, -scale, scale)

    keys = jax.random.split(key, 64)
    kit = iter(keys)

    # Embedding table (stands in for vocab.vectors).
    emb = jax.random.normal(next(kit), (VOCAB, EMB), jnp.float32) * 0.1

    # Bidirectional stacked LSTM parameters (PyTorch layout).
    lstm_params = []
    for layer in range(NUM_LAYERS):
        in_size = EMB if layer == 0 else 2 * HIDDEN
        per_dir = []
        for _direction in range(2):
            wih = uni(next(kit), (4 * HIDDEN, in_size))
            whh = uni(next(kit), (4 * HIDDEN, HIDDEN))
            b_ih = uni(next(kit), (4 * HIDDEN,))
            b_hh = uni(next(kit), (4 * HIDDEN,))
            b = (b_ih + b_hh).reshape(1, 4 * HIDDEN)
            per_dir.append((wih, whh, b))
        lstm_params.append(tuple(per_dir))

    # Classifier parameters.
    w1 = uni(next(kit), (MID_DIM, FEAT_DIM))
    b1 = uni(next(kit), (1, MID_DIM))
    w2 = uni(next(kit), (OUT_DIM, MID_DIM))
    b2 = uni(next(kit), (1, OUT_DIM))

    # Token-id inputs, time-major (L, N).
    kq1, kq2 = jax.random.split(next(kit))
    q1 = jax.random.randint(kq1, (SEQ, BATCH), 0, VOCAB, jnp.int32)
    q2 = jax.random.randint(kq2, (SEQ, BATCH), 0, VOCAB, jnp.int32)

    out = lstm_siamese_forward(q1, q2, emb, lstm_params, w1, b1, w2, b2)
    out = jax.block_until_ready(out)
    assert out.shape == (BATCH, OUT_DIM), out.shape

    ref = _ref_forward(q1, q2, emb, lstm_params, w1, b1, w2, b2)
    assert jnp.allclose(out, ref, atol=2e-4, rtol=2e-4), (out, ref)

    print("KERNEL_OK")
</pallas_src>

<mosaic_0001>
module attributes {stable_mosaic.version = 11 : i64} {
  func.func @kernel(%arg0: i32, %arg1: memref<1x128x128xf32, #tpu.memory_space<vmem>>, %arg2: memref<128x128xf32, #tpu.memory_space<vmem>>, %arg3: memref<32x128xf32, #tpu.memory_space<vmem>>, %arg4: memref<1x128xf32, #tpu.memory_space<vmem>>, %arg5: memref<128x128xf32, #tpu.memory_space<vmem>>, %arg6: memref<32x128xf32, #tpu.memory_space<vmem>>, %arg7: memref<1x128xf32, #tpu.memory_space<vmem>>, %arg8: memref<64x128xf32, #tpu.memory_space<vmem>>, %arg9: memref<32x128xf32, #tpu.memory_space<vmem>>, %arg10: memref<1x128xf32, #tpu.memory_space<vmem>>, %arg11: memref<64x128xf32, #tpu.memory_space<vmem>>, %arg12: memref<32x128xf32, #tpu.memory_space<vmem>>, %arg13: memref<1x128xf32, #tpu.memory_space<vmem>>, %arg14: memref<64x128xf32, #tpu.memory_space<vmem>>, %arg15: memref<32x128xf32, #tpu.memory_space<vmem>>, %arg16: memref<1x128xf32, #tpu.memory_space<vmem>>, %arg17: memref<64x128xf32, #tpu.memory_space<vmem>>, %arg18: memref<32x128xf32, #tpu.memory_space<vmem>>, %arg19: memref<1x128xf32, #tpu.memory_space<vmem>>, %arg20: memref<320x150xf32, #tpu.memory_space<vmem>>, %arg21: memref<1x150xf32, #tpu.memory_space<vmem>>, %arg22: memref<150x2xf32, #tpu.memory_space<vmem>>, %arg23: memref<1x2xf32, #tpu.memory_space<vmem>>, %arg24: memref<1x8x2xf32, #tpu.memory_space<vmem>>, %arg25: memref<128x128xf32, #tpu.memory_space<vmem>>, %arg26: memref<128x128xf32, #tpu.memory_space<vmem>>, %arg27: memref<128x32xf32, #tpu.memory_space<vmem>>, %arg28: memref<128x32xf32, #tpu.memory_space<vmem>>) attributes {dimension_semantics = [#tpu.dimension_semantics<parallel>], iteration_bounds = array<i64: 1>, scalar_prefetch = 0 : i64, scratch_operands = 4 : i64, tpu.core_type = #tpu.core_type<tc>, window_params = [{transform_indices = @transform_0, window_bounds = array<i64: 1, 128, 128>}, {pipeline_mode = #tpu.pipeline_mode<synchronous>, transform_indices = @transform_1, window_bounds = array<i64: 128, 128>}, {pipeline_mode = #tpu.pipeline_mode<synchronous>, transform_indices = @transform_2, window_bounds = array<i64: 32, 128>}, {pipeline_mode = #tpu.pipeline_mode<synchronous>, transform_indices = @transform_3, window_bounds = array<i64: 1, 128>}, {pipeline_mode = #tpu.pipeline_mode<synchronous>, transform_indices = @transform_4, window_bounds = array<i64: 128, 128>}, {pipeline_mode = #tpu.pipeline_mode<synchronous>, transform_indices = @transform_5, window_bounds = array<i64: 32, 128>}, {pipeline_mode = #tpu.pipeline_mode<synchronous>, transform_indices = @transform_6, window_bounds = array<i64: 1, 128>}, {pipeline_mode = #tpu.pipeline_mode<synchronous>, transform_indices = @transform_7, window_bounds = array<i64: 64, 128>}, {pipeline_mode = #tpu.pipeline_mode<synchronous>, transform_indices = @transform_8, window_bounds = array<i64: 32, 128>}, {pipeline_mode = #tpu.pipeline_mode<synchronous>, transform_indices = @transform_9, window_bounds = array<i64: 1, 128>}, {pipeline_mode = #tpu.pipeline_mode<synchronous>, transform_indices = @transform_10, window_bounds = array<i64: 64, 128>}, {pipeline_mode = #tpu.pipeline_mode<synchronous>, transform_indices = @transform_11, window_bounds = array<i64: 32, 128>}, {pipeline_mode = #tpu.pipeline_mode<synchronous>, transform_indices = @transform_12, window_bounds = array<i64: 1, 128>}, {pipeline_mode = #tpu.pipeline_mode<synchronous>, transform_indices = @transform_13, window_bounds = array<i64: 64, 128>}, {pipeline_mode = #tpu.pipeline_mode<synchronous>, transform_indices = @transform_14, window_bounds = array<i64: 32, 128>}, {pipeline_mode = #tpu.pipeline_mode<synchronous>, transform_indices = @transform_15, window_bounds = array<i64: 1, 128>}, {pipeline_mode = #tpu.pipeline_mode<synchronous>, transform_indices = @transform_16, window_bounds = array<i64: 64, 128>}, {pipeline_mode = #tpu.pipeline_mode<synchronous>, transform_indices = @transform_17, window_bounds = array<i64: 32, 128>}, {pipeline_mode = #tpu.pipeline_mode<synchronous>, transform_indices = @transform_18, window_bounds = array<i64: 1, 128>}, {pipeline_mode = #tpu.pipeline_mode<synchronous>, transform_indices = @transform_19, window_bounds = array<i64: 320, 150>}, {pipeline_mode = #tpu.pipeline_mode<synchronous>, transform_indices = @transform_20, window_bounds = array<i64: 1, 150>}, {pipeline_mode = #tpu.pipeline_mode<synchronous>, transform_indices = @transform_21, window_bounds = array<i64: 150, 2>}, {pipeline_mode = #tpu.pipeline_mode<synchronous>, transform_indices = @transform_22, window_bounds = array<i64: 1, 2>}, {transform_indices = @transform_23, window_bounds = array<i64: 1, 8, 2>}]} {
    %c0 = arith.constant 0 : index
    %c0_0 = arith.constant 0 : index
    %0 = vector.load %arg20[%c0, %c0_0] : memref<320x150xf32, #tpu.memory_space<vmem>>, vector<320x150xf32>
    %c0_1 = arith.constant 0 : index
    %c0_2 = arith.constant 0 : index
    %1 = vector.load %arg21[%c0_1, %c0_2] : memref<1x150xf32, #tpu.memory_space<vmem>>, vector<1x150xf32>
    %c0_3 = arith.constant 0 : index
    %c0_4 = arith.constant 0 : index
    %2 = vector.load %arg22[%c0_3, %c0_4] : memref<150x2xf32, #tpu.memory_space<vmem>>, vector<150x2xf32>
    %c0_5 = arith.constant 0 : index
    %c0_6 = arith.constant 0 : index
    %3 = vector.load %arg23[%c0_5, %c0_6] : memref<1x2xf32, #tpu.memory_space<vmem>>, vector<1x2xf32>
    %cst = arith.constant 0.000000e+00 : f32
    %4 = vector.broadcast %cst : f32 to vector<16x32xf32>
    %c0_7 = arith.constant 0 : index
    %c0_8 = arith.constant 0 : index
    %c0_9 = arith.constant 0 : index
    %5 = vector.load %arg1[%c0_7, %c0_8, %c0_9] : memref<1x128x128xf32, #tpu.memory_space<vmem>>, vector<1x128x128xf32>
    %6 = vector.shape_cast %5 : vector<1x128x128xf32> to vector<128x128xf32>
    %c0_10 = arith.constant 0 : index
    %c0_11 = arith.constant 0 : index
    %7 = vector.load %arg2[%c0_10, %c0_11] : memref<128x128xf32, #tpu.memory_space<vmem>>, vector<128x128xf32>
    %cst_12 = arith.constant dense<0.000000e+00> : vector<128x128xf32>
    %8 = tpu.matmul %6, %7, %cst_12 {dimension_numbers = #tpu.dot_dimension_numbers<[1], [0], [0], [1], [0, 0, 1, 1], [], []>} : vector<128x128xf32>, vector<128x128xf32>, vector<128x128xf32> -> vector<128x128xf32>
    %c0_13 = arith.constant 0 : index
    %c0_14 = arith.constant 0 : index
    %9 = vector.load %arg4[%c0_13, %c0_14] : memref<1x128xf32, #tpu.memory_space<vmem>>, vector<1x128xf32>
    %10 = vector.broadcast %9 : vector<1x128xf32> to vector<128x128xf32>
    %11 = arith.addf %8, %10 : vector<128x128xf32>
    %c0_15 = arith.constant 0 : index
    %c0_16 = arith.constant 0 : index
    %12 = vector.load %arg25[%c0_15, %c0_16] : memref<128x128xf32, #tpu.memory_space<vmem>>, vector<128x128xf32>
    tpu.vector_store %arg25[%c0_15, %c0_16], %11 {strides = array<i32>} : memref<128x128xf32, #tpu.memory_space<vmem>>, vector<128x128xf32>,
    %c0_17 = arith.constant 0 : index
    %c0_18 = arith.constant 0 : index
    %13 = vector.load %arg5[%c0_17, %c0_18] : memref<128x128xf32, #tpu.memory_space<vmem>>, vector<128x128xf32>
    %cst_19 = arith.constant dense<0.000000e+00> : vector<128x128xf32>
    %14 = tpu.matmul %6, %13, %cst_19 {dimension_numbers = #tpu.dot_dimension_numbers<[1], [0], [0], [1], [0, 0, 1, 1], [], []>} : vector<128x128xf32>, vector<128x128xf32>, vector<128x128xf32> -> vector<128x128xf32>
    %c0_20 = arith.constant 0 : index
    %c0_21 = arith.constant 0 : index
    %15 = vector.load %arg7[%c0_20, %c0_21] : memref<1x128xf32, #tpu.memory_space<vmem>>, vector<1x128xf32>
    %16 = vector.broadcast %15 : vector<1x128xf32> to vector<128x128xf32>
    %17 = arith.addf %14, %16 : vector<128x128xf32>
    %c0_22 = arith.constant 0 : index
    %c0_23 = arith.constant 0 : index
    %18 = vector.load %arg26[%c0_22, %c0_23] : memref<128x128xf32, #tpu.memory_space<vmem>>, vector<128x128xf32>
    tpu.vector_store %arg26[%c0_22, %c0_23], %17 {strides = array<i32>} : memref<128x128xf32, #tpu.memory_space<vmem>>, vector<128x128xf32>,
    %c0_24 = arith.constant 0 : index
    %c0_25 = arith.constant 0 : index
    %19 = vector.load %arg3[%c0_24, %c0_25] : memref<32x128xf32, #tpu.memory_space<vmem>>, vector<32x128xf32>
    %c0_26 = arith.constant 0 : index
    %c0_27 = arith.constant 0 : index
    %20 = vector.load %arg6[%c0_26, %c0_27] : memref<32x128xf32, #tpu.memory_space<vmem>>, vector<32x128xf32>
    %c0_28 = arith.constant 0 : index
    %c0_29 = arith.constant 0 : index
    %21 = vector.load %arg25[%c0_28, %c0_29] : memref<128x128xf32, #tpu.memory_space<vmem>>, vector<16x128xf32>
    %cst_30 = arith.constant dense<0.000000e+00> : vector<16x128xf32>
    %22 = tpu.matmul %4, %19, %cst_30 {dimension_numbers = #tpu.dot_dimension_numbers<[1], [0], [0], [1], [0, 0, 1, 1], [], []>} : vector<16x32xf32>, vector<32x128xf32>, vector<16x128xf32> -> vector<16x128xf32>
    %23 = arith.addf %21, %22 : vector<16x128xf32>
    %c112 = arith.constant 112 : index
    %c0_31 = arith.constant 0 : index
    %24 = vector.load %arg26[%c112, %c0_31] : memref<128x128xf32, #tpu.memory_space<vmem>>, vector<16x128xf32>
    %cst_32 = arith.constant dense<0.000000e+00> : vector<16x128xf32>
    %25 = tpu.matmul %4, %20, %cst_32 {dimension_numbers = #tpu.dot_dimension_numbers<[1], [0], [0], [1], [0, 0, 1, 1], [], []>} : vector<16x32xf32>, vector<32x128xf32>, vector<16x128xf32> -> vector<16x128xf32>
    %26 = arith.addf %24, %25 : vector<16x128xf32>
    %27 = vector.extract_strided_slice %23 {offsets = [0, 0], sizes = [16, 96], strides = [1, 1]} : vector<16x128xf32> to vector<16x96xf32>
    %28 = arith.negf %27 : vector<16x96xf32>
    %29 = math.exp %28 : vector<16x96xf32>
    %cst_33 = arith.constant 1.000000e+00 : f32
    %30 = vector.broadcast %cst_33 : f32 to vector<16x96xf32>
    %31 = arith.addf %30, %29 : vector<16x96xf32>
    %32 = arith.divf %30, %31 : vector<16x96xf32>
    %33 = vector.extract_strided_slice %23 {offsets = [0, 96], sizes = [16, 32], strides = [1, 1]} : vector<16x128xf32> to vector<16x32xf32>
    %34 = math.tanh %33 : vector<16x32xf32>
    %35 = vector.extract_strided_slice %32 {offsets = [0, 0], sizes = [16, 32], strides = [1, 1]} : vector<16x96xf32> to vector<16x32xf32>
    %36 = vector.extract_strided_slice %32 {offsets = [0, 32], sizes = [16, 32], strides = [1, 1]} : vector<16x96xf32> to vector<16x32xf32>
    %37 = vector.extract_strided_slice %32 {offsets = [0, 64], sizes = [16, 32], strides = [1, 1]} : vector<16x96xf32> to vector<16x32xf32>
    %38 = arith.mulf %36, %4 : vector<16x32xf32>
    %39 = arith.mulf %35, %34 : vector<16x32xf32>
    %40 = arith.addf %38, %39 : vector<16x32xf32>
    %41 = math.tanh %40 : vector<16x32xf32>
    %42 = arith.mulf %37, %41 : vector<16x32xf32>
    %43 = vector.extract_strided_slice %26 {offsets = [0, 0], sizes = [16, 96], strides = [1, 1]} : vector<16x128xf32> to vector<16x96xf32>
    %44 = arith.negf %43 : vector<16x96xf32>
    %45 = math.exp %44 : vector<16x96xf32>
    %cst_34 = arith.constant 1.000000e+00 : f32
    %46 = vector.broadcast %cst_34 : f32 to vector<16x96xf32>
    %47 = arith.addf %46, %45 : vector<16x96xf32>
    %48 = arith.divf %46, %47 : vector<16x96xf32>
    %49 = vector.extract_strided_slice %26 {offsets = [0, 96], sizes = [16, 32], strides = [1, 1]} : vector<16x128xf32> to vector<16x32xf32>
    %50 = math.tanh %49 : vector<16x32xf32>
    %51 = vector.extract_strided_slice %48 {offsets = [0, 0], sizes = [16, 32], strides = [1, 1]} : vector<16x96xf32> to vector<16x32xf32>
    %52 = vector.extract_strided_slice %48 {offsets = [0, 32], sizes = [16, 32], strides = [1, 1]} : vector<16x96xf32> to vector<16x32xf32>
    %53 = vector.extract_strided_slice %48 {offsets = [0, 64], sizes = [16, 32], strides = [1, 1]} : vector<16x96xf32> to vector<16x32xf32>
    %54 = arith.mulf %52, %4 : vector<16x32xf32>
    %55 = arith.mulf %51, %50 : vector<16x32xf32>
    %56 = arith.addf %54, %55 : vector<16x32xf32>
    %57 = math.tanh %56 : vector<16x32xf32>
    %58 = arith.mulf %53, %57 : vector<16x32xf32>
    %c0_35 = arith.constant 0 : index
    %c0_36 = arith.constant 0 : index
    %59 = vector.load %arg27[%c0_35, %c0_36] : memref<128x32xf32, #tpu.memory_space<vmem>>, vector<16x32xf32>
    tpu.vector_store %arg27[%c0_35, %c0_36], %42 {strides = array<i32>} : memref<128x32xf32, #tpu.memory_space<vmem>>, vector<16x32xf32>,
    %c112_37 = arith.constant 112 : index
    %c0_38 = arith.constant 0 : index
    %60 = vector.load %arg28[%c112_37, %c0_38] : memref<128x32xf32, #tpu.memory_space<vmem>>, vector<16x32xf32>
    tpu.vector_store %arg28[%c112_37, %c0_38], %58 {strides = array<i32>} : memref<128x32xf32, #tpu.memory_space<vmem>>, vector<16x32xf32>,
    %c16 = arith.constant 16 : index
    %c0_39 = arith.constant 0 : index
    %61 = vector.load %arg25[%c16, %c0_39] : memref<128x128xf32, #tpu.memory_space<vmem>>, vector<16x128xf32>
    %cst_40 = arith.constant dense<0.000000e+00> : vector<16x128xf32>
    %62 = tpu.matmul %42, %19, %cst_40 {dimension_numbers = #tpu.dot_dimension_numbers<[1], [0], [0], [1], [0, 0, 1, 1], [], []>} : vector<16x32xf32>, vector<32x128xf32>, vector<16x128xf32> -> vector<16x128xf32>
    %63 = arith.addf %61, %62 : vector<16x128xf32>
    %c96 = arith.constant 96 : index
    %c0_41 = arith.constant 0 : index
    %64 = vector.load %arg26[%c96, %c0_41] : memref<128x128xf32, #tpu.memory_space<vmem>>, vector<16x128xf32>
    %cst_42 = arith.constant dense<0.000000e+00> : vector<16x128xf32>
    %65 = tpu.matmul %58, %20, %cst_42 {dimension_numbers = #tpu.dot_dimension_numbers<[1], [0], [0], [1], [0, 0, 1, 1], [], []>} : vector<16x32xf32>, vector<32x128xf32>, vector<16x128xf32> -> vector<16x128xf32>
    %66 = arith.addf %64, %65 : vector<16x128xf32>
    %67 = vector.extract_strided_slice %63 {offsets = [0, 0], sizes = [16, 96], strides = [1, 1]} : vector<16x128xf32> to vector<16x96xf32>
    %68 = arith.negf %67 : vector<16x96xf32>
    %69 = math.exp %68 : vector<16x96xf32>
    %cst_43 = arith.constant 1.000000e+00 : f32
    %70 = vector.broadcast %cst_43 : f32 to vector<16x96xf32>
    %71 = arith.addf %70, %69 : vector<16x96xf32>
    %72 = arith.divf %70, %71 : vector<16x96xf32>
    %73 = vector.extract_strided_slice %63 {offsets = [0, 96], sizes = [16, 32], strides = [1, 1]} : vector<16x128xf32> to vector<16x32xf32>
    %74 = math.tanh %73 : vector<16x32xf32>
    %75 = vector.extract_strided_slice %72 {offsets = [0, 0], sizes = [16, 32], strides = [1, 1]} : vector<16x96xf32> to vector<16x32xf32>
    %76 = vector.extract_strided_slice %72 {offsets = [0, 32], sizes = [16, 32], strides = [1, 1]} : vector<16x96xf32> to vector<16x32xf32>
    %77 = vector.extract_strided_slice %72 {offsets = [0, 64], sizes = [16, 32], strides = [1, 1]} : vector<16x96xf32> to vector<16x32xf32>
    %78 = arith.mulf %76, %40 : vector<16x32xf32>
    %79 = arith.mulf %75, %74 : vector<16x32xf32>
    %80 = arith.addf %78, %79 : vector<16x32xf32>
    %81 = math.tanh %80 : vector<16x32xf32>
    %82 = arith.mulf %77, %81 : vector<16x32xf32>
    %83 = vector.extract_strided_slice %66 {offsets = [0, 0], sizes = [16, 96], strides = [1, 1]} : vector<16x128xf32> to vector<16x96xf32>
    %84 = arith.negf %83 : vector<16x96xf32>
    %85 = math.exp %84 : vector<16x96xf32>
    %cst_44 = arith.constant 1.000000e+00 : f32
    %86 = vector.broadcast %cst_44 : f32 to vector<16x96xf32>
    %87 = arith.addf %86, %85 : vector<16x96xf32>
    %88 = arith.divf %86, %87 : vector<16x96xf32>
    %89 = vector.extract_strided_slice %66 {offsets = [0, 96], sizes = [16, 32], strides = [1, 1]} : vector<16x128xf32> to vector<16x32xf32>
    %90 = math.tanh %89 : vector<16x32xf32>
    %91 = vector.extract_strided_slice %88 {offsets = [0, 0], sizes = [16, 32], strides = [1, 1]} : vector<16x96xf32> to vector<16x32xf32>
    %92 = vector.extract_strided_slice %88 {offsets = [0, 32], sizes = [16, 32], strides = [1, 1]} : vector<16x96xf32> to vector<16x32xf32>
    %93 = vector.extract_strided_slice %88 {offsets = [0, 64], sizes = [16, 32], strides = [1, 1]} : vector<16x96xf32> to vector<16x32xf32>
    %94 = arith.mulf %92, %56 : vector<16x32xf32>
    %95 = arith.mulf %91, %90 : vector<16x32xf32>
    %96 = arith.addf %94, %95 : vector<16x32xf32>
    %97 = math.tanh %96 : vector<16x32xf32>
    %98 = arith.mulf %93, %97 : vector<16x32xf32>
    %c16_45 = arith.constant 16 : index
    %c0_46 = arith.constant 0 : index
    %99 = vector.load %arg27[%c16_45, %c0_46] : memref<128x32xf32, #tpu.memory_space<vmem>>, vector<16x32xf32>
    tpu.vector_store %arg27[%c16_45, %c0_46], %82 {strides = array<i32>} : memref<128x32xf32, #tpu.memory_space<vmem>>, vector<16x32xf32>,
    %c96_47 = arith.constant 96 : index
    %c0_48 = arith.constant 0 : index
    %100 = vector.load %arg28[%c96_47, %c0_48] : memref<128x32xf32, #tpu.memory_space<vmem>>, vector<16x32xf32>
    tpu.vector_store %arg28[%c96_47, %c0_48], %98 {strides = array<i32>} : memref<128x32xf32, #tpu.memory_space<vmem>>, vector<16x32xf32>,
    %c32 = arith.constant 32 : index
    %c0_49 = arith.constant 0 : index
    %101 = vector.load %arg25[%c32, %c0_49] : memref<128x128xf32, #tpu.memory_space<vmem>>, vector<16x128xf32>
    %cst_50 = arith.constant dense<0.000000e+00> : vector<16x128xf32>
    %102 = tpu.matmul %82, %19, %cst_50 {dimension_numbers = #tpu.dot_dimension_numbers<[1], [0], [0], [1], [0, 0, 1, 1], [], []>} : vector<16x32xf32>, vector<32x128xf32>, vector<16x128xf32> -> vector<16x128xf32>
    %103 = arith.addf %101, %102 : vector<16x128xf32>
    %c80 = arith.constant 80 : index
    %c0_51 = arith.constant 0 : index
    %104 = vector.load %arg26[%c80, %c0_51] : memref<128x128xf32, #tpu.memory_space<vmem>>, vector<16x128xf32>
    %cst_52 = arith.constant dense<0.000000e+00> : vector<16x128xf32>
    %105 = tpu.matmul %98, %20, %cst_52 {dimension_numbers = #tpu.dot_dimension_numbers<[1], [0], [0], [1], [0, 0, 1, 1], [], []>} : vector<16x32xf32>, vector<32x128xf32>, vector<16x128xf32> -> vector<16x128xf32>
    %106 = arith.addf %104, %105 : vector<16x128xf32>
    %107 = vector.extract_strided_slice %103 {offsets = [0, 0], sizes = [16, 96], strides = [1, 1]} : vector<16x128xf32> to vector<16x96xf32>
    %108 = arith.negf %107 : vector<16x96xf32>
    %109 = math.exp %108 : vector<16x96xf32>
    %cst_53 = arith.constant 1.000000e+00 : f32
    %110 = vector.broadcast %cst_53 : f32 to vector<16x96xf32>
    %111 = arith.addf %110, %109 : vector<16x96xf32>
    %112 = arith.divf %110, %111 : vector<16x96xf32>
    %113 = vector.extract_strided_slice %103 {offsets = [0, 96], sizes = [16, 32], strides = [1, 1]} : vector<16x128xf32> to vector<16x32xf32>
    %114 = math.tanh %113 : vector<16x32xf32>
    %115 = vector.extract_strided_slice %112 {offsets = [0, 0], sizes = [16, 32], strides = [1, 1]} : vector<16x96xf32> to vector<16x32xf32>
    %116 = vector.extract_strided_slice %112 {offsets = [0, 32], sizes = [16, 32], strides = [1, 1]} : vector<16x96xf32> to vector<16x32xf32>
    %117 = vector.extract_strided_slice %112 {offsets = [0, 64], sizes = [16, 32], strides = [1, 1]} : vector<16x96xf32> to vector<16x32xf32>
    %118 = arith.mulf %116, %80 : vector<16x32xf32>
    %119 = arith.mulf %115, %114 : vector<16x32xf32>
    %120 = arith.addf %118, %119 : vector<16x32xf32>
    %121 = math.tanh %120 : vector<16x32xf32>
    %122 = arith.mulf %117, %121 : vector<16x32xf32>
    %123 = vector.extract_strided_slice %106 {offsets = [0, 0], sizes = [16, 96], strides = [1, 1]} : vector<16x128xf32> to vector<16x96xf32>
    %124 = arith.negf %123 : vector<16x96xf32>
    %125 = math.exp %124 : vector<16x96xf32>
    %cst_54 = arith.constant 1.000000e+00 : f32
    %126 = vector.broadcast %cst_54 : f32 to vector<16x96xf32>
    %127 = arith.addf %126, %125 : vector<16x96xf32>
    %128 = arith.divf %126, %127 : vector<16x96xf32>
    %129 = vector.extract_strided_slice %106 {offsets = [0, 96], sizes = [16, 32], strides = [1, 1]} : vector<16x128xf32> to vector<16x32xf32>
    %130 = math.tanh %129 : vector<16x32xf32>
    %131 = vector.extract_strided_slice %128 {offsets = [0, 0], sizes = [16, 32], strides = [1, 1]} : vector<16x96xf32> to vector<16x32xf32>
    %132 = vector.extract_strided_slice %128 {offsets = [0, 32], sizes = [16, 32], strides = [1, 1]} : vector<16x96xf32> to vector<16x32xf32>
    %133 = vector.extract_strided_slice %128 {offsets = [0, 64], sizes = [16, 32], strides = [1, 1]} : vector<16x96xf32> to vector<16x32xf32>
    %134 = arith.mulf %132, %96 : vector<16x32xf32>
    %135 = arith.mulf %131, %130 : vector<16x32xf32>
    %136 = arith.addf %134, %135 : vector<16x32xf32>
    %137 = math.tanh %136 : vector<16x32xf32>
    %138 = arith.mulf %133, %137 : vector<16x32xf32>
    %c32_55 = arith.constant 32 : index
    %c0_56 = arith.constant 0 : index
    %139 = vector.load %arg27[%c32_55, %c0_56] : memref<128x32xf32, #tpu.memory_space<vmem>>, vector<16x32xf32>
    tpu.vector_store %arg27[%c32_55, %c0_56], %122 {strides = array<i32>} : memref<128x32xf32, #tpu.memory_space<vmem>>, vector<16x32xf32>,
    %c80_57 = arith.constant 80 : index
    %c0_58 = arith.constant 0 : index
    %140 = vector.load %arg28[%c80_57, %c0_58] : memref<128x32xf32, #tpu.memory_space<vmem>>, vector<16x32xf32>
    tpu.vector_store %arg28[%c80_57, %c0_58], %138 {strides = array<i32>} : memref<128x32xf32, #tpu.memory_space<vmem>>, vector<16x32xf32>,
    %c48 = arith.constant 48 : index
    %c0_59 = arith.constant 0 : index
    %141 = vector.load %arg25[%c48, %c0_59] : memref<128x128xf32, #tpu.memory_space<vmem>>, vector<16x128xf32>
    %cst_60 = arith.constant dense<0.000000e+00> : vector<16x128xf32>
    %142 = tpu.matmul %122, %19, %cst_60 {dimension_numbers = #tpu.dot_dimension_numbers<[1], [0], [0], [1], [0, 0, 1, 1], [], []>} : vector<16x32xf32>, vector<32x128xf32>, vector<16x128xf32> -> vector<16x128xf32>
    %143 = arith.addf %141, %142 : vector<16x128xf32>
    %c64 = arith.constant 64 : index
    %c0_61 = arith.constant 0 : index
    %144 = vector.load %arg26[%c64, %c0_61] : memref<128x128xf32, #tpu.memory_space<vmem>>, vector<16x128xf32>
    %cst_62 = arith.constant dense<0.000000e+00> : vector<16x128xf32>
    %145 = tpu.matmul %138, %20, %cst_62 {dimension_numbers = #tpu.dot_dimension_numbers<[1], [0], [0], [1], [0, 0, 1, 1], [], []>} : vector<16x32xf32>, vector<32x128xf32>, vector<16x128xf32> -> vector<16x128xf32>
    %146 = arith.addf %144, %145 : vector<16x128xf32>
    %147 = vector.extract_strided_slice %143 {offsets = [0, 0], sizes = [16, 96], strides = [1, 1]} : vector<16x128xf32> to vector<16x96xf32>
    %148 = arith.negf %147 : vector<16x96xf32>
    %149 = math.exp %148 : vector<16x96xf32>
    %cst_63 = arith.constant 1.000000e+00 : f32
    %150 = vector.broadcast %cst_63 : f32 to vector<16x96xf32>
    %151 = arith.addf %150, %149 : vector<16x96xf32>
    %152 = arith.divf %150, %151 : vector<16x96xf32>
    %153 = vector.extract_strided_slice %143 {offsets = [0, 96], sizes = [16, 32], strides = [1, 1]} : vector<16x128xf32> to vector<16x32xf32>
    %154 = math.tanh %153 : vector<16x32xf32>
    %155 = vector.extract_strided_slice %152 {offsets = [0, 0], sizes = [16, 32], strides = [1, 1]} : vector<16x96xf32> to vector<16x32xf32>
    %156 = vector.extract_strided_slice %152 {offsets = [0, 32], sizes = [16, 32], strides = [1, 1]} : vector<16x96xf32> to vector<16x32xf32>
    %157 = vector.extract_strided_slice %152 {offsets = [0, 64], sizes = [16, 32], strides = [1, 1]} : vector<16x96xf32> to vector<16x32xf32>
    %158 = arith.mulf %156, %120 : vector<16x32xf32>
    %159 = arith.mulf %155, %154 : vector<16x32xf32>
    %160 = arith.addf %158, %159 : vector<16x32xf32>
    %161 = math.tanh %160 : vector<16x32xf32>
    %162 = arith.mulf %157, %161 : vector<16x32xf32>
    %163 = vector.extract_strided_slice %146 {offsets = [0, 0], sizes = [16, 96], strides = [1, 1]} : vector<16x128xf32> to vector<16x96xf32>
    %164 = arith.negf %163 : vector<16x96xf32>
    %165 = math.exp %164 : vector<16x96xf32>
    %cst_64 = arith.constant 1.000000e+00 : f32
    %166 = vector.broadcast %cst_64 : f32 to vector<16x96xf32>
    %167 = arith.addf %166, %165 : vector<16x96xf32>
    %168 = arith.divf %166, %167 : vector<16x96xf32>
    %169 = vector.extract_strided_slice %146 {offsets = [0, 96], sizes = [16, 32], strides = [1, 1]} : vector<16x128xf32> to vector<16x32xf32>
    %170 = math.tanh %169 : vector<16x32xf32>
    %171 = vector.extract_strided_slice %168 {offsets = [0, 0], sizes = [16, 32], strides = [1, 1]} : vector<16x96xf32> to vector<16x32xf32>
    %172 = vector.extract_strided_slice %168 {offsets = [0, 32], sizes = [16, 32], strides = [1, 1]} : vector<16x96xf32> to vector<16x32xf32>
    %173 = vector.extract_strided_slice %168 {offsets = [0, 64], sizes = [16, 32], strides = [1, 1]} : vector<16x96xf32> to vector<16x32xf32>
    %174 = arith.mulf %172, %136 : vector<16x32xf32>
    %175 = arith.mulf %171, %170 : vector<16x32xf32>
    %176 = arith.addf %174, %175 : vector<16x32xf32>
    %177 = math.tanh %176 : vector<16x32xf32>
    %178 = arith.mulf %173, %177 : vector<16x32xf32>
    %c48_65 = arith.constant 48 : index
    %c0_66 = arith.constant 0 : index
    %179 = vector.load %arg27[%c48_65, %c0_66] : memref<128x32xf32, #tpu.memory_space<vmem>>, vector<16x32xf32>
    tpu.vector_store %arg27[%c48_65, %c0_66], %162 {strides = array<i32>} : memref<128x32xf32, #tpu.memory_space<vmem>>, vector<16x32xf32>,
    %c64_67 = arith.constant 64 : index
    %c0_68 = arith.constant 0 : index
    %180 = vector.load %arg28[%c64_67, %c0_68] : memref<128x32xf32, #tpu.memory_space<vmem>>, vector<16x32xf32>
    tpu.vector_store %arg28[%c64_67, %c0_68], %178 {strides = array<i32>} : memref<128x32xf32, #tpu.memory_space<vmem>>, vector<16x32xf32>,
    %c64_69 = arith.constant 64 : index
    %c0_70 = arith.constant 0 : index
    %181 = vector.load %arg25[%c64_69, %c0_70] : memref<128x128xf32, #tpu.memory_space<vmem>>, vector<16x128xf32>
    %cst_71 = arith.constant dense<0.000000e+00> : vector<16x128xf32>
    %182 = tpu.matmul %162, %19, %cst_71 {dimension_numbers = #tpu.dot_dimension_numbers<[1], [0], [0], [1], [0, 0, 1, 1], [], []>} : vector<16x32xf32>, vector<32x128xf32>, vector<16x128xf32> -> vector<16x128xf32>
    %183 = arith.addf %181, %182 : vector<16x128xf32>
    %c48_72 = arith.constant 48 : index
    %c0_73 = arith.constant 0 : index
    %184 = vector.load %arg26[%c48_72, %c0_73] : memref<128x128xf32, #tpu.memory_space<vmem>>, vector<16x128xf32>
    %cst_74 = arith.constant dense<0.000000e+00> : vector<16x128xf32>
    %185 = tpu.matmul %178, %20, %cst_74 {dimension_numbers = #tpu.dot_dimension_numbers<[1], [0], [0], [1], [0, 0, 1, 1], [], []>} : vector<16x32xf32>, vector<32x128xf32>, vector<16x128xf32> -> vector<16x128xf32>
    %186 = arith.addf %184, %185 : vector<16x128xf32>
    %187 = vector.extract_strided_slice %183 {offsets = [0, 0], sizes = [16, 96], strides = [1, 1]} : vector<16x128xf32> to vector<16x96xf32>
    %188 = arith.negf %187 : vector<16x96xf32>
    %189 = math.exp %188 : vector<16x96xf32>
    %cst_75 = arith.constant 1.000000e+00 : f32
    %190 = vector.broadcast %cst_75 : f32 to vector<16x96xf32>
    %191 = arith.addf %190, %189 : vector<16x96xf32>
    %192 = arith.divf %190, %191 : vector<16x96xf32>
    %193 = vector.extract_strided_slice %183 {offsets = [0, 96], sizes = [16, 32], strides = [1, 1]} : vector<16x128xf32> to vector<16x32xf32>
    %194 = math.tanh %193 : vector<16x32xf32>
    %195 = vector.extract_strided_slice %192 {offsets = [0, 0], sizes = [16, 32], strides = [1, 1]} : vector<16x96xf32> to vector<16x32xf32>
    %196 = vector.extract_strided_slice %192 {offsets = [0, 32], sizes = [16, 32], strides = [1, 1]} : vector<16x96xf32> to vector<16x32xf32>
    %197 = vector.extract_strided_slice %192 {offsets = [0, 64], sizes = [16, 32], strides = [1, 1]} : vector<16x96xf32> to vector<16x32xf32>
    %198 = arith.mulf %196, %160 : vector<16x32xf32>
    %199 = arith.mulf %195, %194 : vector<16x32xf32>
    %200 = arith.addf %198, %199 : vector<16x32xf32>
    %201 = math.tanh %200 : vector<16x32xf32>
    %202 = arith.mulf %197, %201 : vector<16x32xf32>
    %203 = vector.extract_strided_slice %186 {offsets = [0, 0], sizes = [16, 96], strides = [1, 1]} : vector<16x128xf32> to vector<16x96xf32>
    %204 = arith.negf %203 : vector<16x96xf32>
    %205 = math.exp %204 : vector<16x96xf32>
    %cst_76 = arith.constant 1.000000e+00 : f32
    %206 = vector.broadcast %cst_76 : f32 to vector<16x96xf32>
    %207 = arith.addf %206, %205 : vector<16x96xf32>
    %208 = arith.divf %206, %207 : vector<16x96xf32>
    %209 = vector.extract_strided_slice %186 {offsets = [0, 96], sizes = [16, 32], strides = [1, 1]} : vector<16x128xf32> to vector<16x32xf32>
    %210 = math.tanh %209 : vector<16x32xf32>
    %211 = vector.extract_strided_slice %208 {offsets = [0, 0], sizes = [16, 32], strides = [1, 1]} : vector<16x96xf32> to vector<16x32xf32>
    %212 = vector.extract_strided_slice %208 {offsets = [0, 32], sizes = [16, 32], strides = [1, 1]} : vector<16x96xf32> to vector<16x32xf32>
    %213 = vector.extract_strided_slice %208 {offsets = [0, 64], sizes = [16, 32], strides = [1, 1]} : vector<16x96xf32> to vector<16x32xf32>
    %214 = arith.mulf %212, %176 : vector<16x32xf32>
    %215 = arith.mulf %211, %210 : vector<16x32xf32>
    %216 = arith.addf %214, %215 : vector<16x32xf32>
    %217 = math.tanh %216 : vector<16x32xf32>
    %218 = arith.mulf %213, %217 : vector<16x32xf32>
    %c64_77 = arith.constant 64 : index
    %c0_78 = arith.constant 0 : index
    %219 = vector.load %arg27[%c64_77, %c0_78] : memref<128x32xf32, #tpu.memory_space<vmem>>, vector<16x32xf32>
    tpu.vector_store %arg27[%c64_77, %c0_78], %202 {strides = array<i32>} : memref<128x32xf32, #tpu.memory_space<vmem>>, vector<16x32xf32>,
    %c48_79 = arith.constant 48 : index
    %c0_80 = arith.constant 0 : index
    %220 = vector.load %arg28[%c48_79, %c0_80] : memref<128x32xf32, #tpu.memory_space<vmem>>, vector<16x32xf32>
    tpu.vector_store %arg28[%c48_79, %c0_80], %218 {strides = array<i32>} : memref<128x32xf32, #tpu.memory_space<vmem>>, vector<16x32xf32>,
    %c80_81 = arith.constant 80 : index
    %c0_82 = arith.constant 0 : index
    %221 = vector.load %arg25[%c80_81, %c0_82] : memref<128x128xf32, #tpu.memory_space<vmem>>, vector<16x128xf32>
    %cst_83 = arith.constant dense<0.000000e+00> : vector<16x128xf32>
    %222 = tpu.matmul %202, %19, %cst_83 {dimension_numbers = #tpu.dot_dimension_numbers<[1], [0], [0], [1], [0, 0, 1, 1], [], []>} : vector<16x32xf32>, vector<32x128xf32>, vector<16x128xf32> -> vector<16x128xf32>
    %223 = arith.addf %221, %222 : vector<16x128xf32>
    %c32_84 = arith.constant 32 : index
    %c0_85 = arith.constant 0 : index
    %224 = vector.load %arg26[%c32_84, %c0_85] : memref<128x128xf32, #tpu.memory_space<vmem>>, vector<16x128xf32>
    %cst_86 = arith.constant dense<0.000000e+00> : vector<16x128xf32>
    %225 = tpu.matmul %218, %20, %cst_86 {dimension_numbers = #tpu.dot_dimension_numbers<[1], [0], [0], [1], [0, 0, 1, 1], [], []>} : vector<16x32xf32>, vector<32x128xf32>, vector<16x128xf32> -> vector<16x128xf32>
    %226 = arith.addf %224, %225 : vector<16x128xf32>
    %227 = vector.extract_strided_slice %223 {offsets = [0, 0], sizes = [16, 96], strides = [1, 1]} : vector<16x128xf32> to vector<16x96xf32>
    %228 = arith.negf %227 : vector<16x96xf32>
    %229 = math.exp %228 : vector<16x96xf32>
    %cst_87 = arith.constant 1.000000e+00 : f32
    %230 = vector.broadcast %cst_87 : f32 to vector<16x96xf32>
    %231 = arith.addf %230, %229 : vector<16x96xf32>
    %232 = arith.divf %230, %231 : vector<16x96xf32>
    %233 = vector.extract_strided_slice %223 {offsets = [0, 96], sizes = [16, 32], strides = [1, 1]} : vector<16x128xf32> to vector<16x32xf32>
    %234 = math.tanh %233 : vector<16x32xf32>
    %235 = vector.extract_strided_slice %232 {offsets = [0, 0], sizes = [16, 32], strides = [1, 1]} : vector<16x96xf32> to vector<16x32xf32>
    %236 = vector.extract_strided_slice %232 {offsets = [0, 32], sizes = [16, 32], strides = [1, 1]} : vector<16x96xf32> to vector<16x32xf32>
    %237 = vector.extract_strided_slice %232 {offsets = [0, 64], sizes = [16, 32], strides = [1, 1]} : vector<16x96xf32> to vector<16x32xf32>
    %238 = arith.mulf %236, %200 : vector<16x32xf32>
    %239 = arith.mulf %235, %234 : vector<16x32xf32>
    %240 = arith.addf %238, %239 : vector<16x32xf32>
    %241 = math.tanh %240 : vector<16x32xf32>
    %242 = arith.mulf %237, %241 : vector<16x32xf32>
    %243 = vector.extract_strided_slice %226 {offsets = [0, 0], sizes = [16, 96], strides = [1, 1]} : vector<16x128xf32> to vector<16x96xf32>
    %244 = arith.negf %243 : vector<16x96xf32>
    %245 = math.exp %244 : vector<16x96xf32>
    %cst_88 = arith.constant 1.000000e+00 : f32
    %246 = vector.broadcast %cst_88 : f32 to vector<16x96xf32>
    %247 = arith.addf %246, %245 : vector<16x96xf32>
    %248 = arith.divf %246, %247 : vector<16x96xf32>
    %249 = vector.extract_strided_slice %226 {offsets = [0, 96], sizes = [16, 32], strides = [1, 1]} : vector<16x128xf32> to vector<16x32xf32>
    %250 = math.tanh %249 : vector<16x32xf32>
    %251 = vector.extract_strided_slice %248 {offsets = [0, 0], sizes = [16, 32], strides = [1, 1]} : vector<16x96xf32> to vector<16x32xf32>
    %252 = vector.extract_strided_slice %248 {offsets = [0, 32], sizes = [16, 32], strides = [1, 1]} : vector<16x96xf32> to vector<16x32xf32>
    %253 = vector.extract_strided_slice %248 {offsets = [0, 64], sizes = [16, 32], strides = [1, 1]} : vector<16x96xf32> to vector<16x32xf32>
    %254 = arith.mulf %252, %216 : vector<16x32xf32>
    %255 = arith.mulf %251, %250 : vector<16x32xf32>
    %256 = arith.addf %254, %255 : vector<16x32xf32>
    %257 = math.tanh %256 : vector<16x32xf32>
    %258 = arith.mulf %253, %257 : vector<16x32xf32>
    %c80_89 = arith.constant 80 : index
    %c0_90 = arith.constant 0 : index
    %259 = vector.load %arg27[%c80_89, %c0_90] : memref<128x32xf32, #tpu.memory_space<vmem>>, vector<16x32xf32>
    tpu.vector_store %arg27[%c80_89, %c0_90], %242 {strides = array<i32>} : memref<128x32xf32, #tpu.memory_space<vmem>>, vector<16x32xf32>,
    %c32_91 = arith.constant 32 : index
    %c0_92 = arith.constant 0 : index
    %260 = vector.load %arg28[%c32_91, %c0_92] : memref<128x32xf32, #tpu.memory_space<vmem>>, vector<16x32xf32>
    tpu.vector_store %arg28[%c32_91, %c0_92], %258 {strides = array<i32>} : memref<128x32xf32, #tpu.memory_space<vmem>>, vector<16x32xf32>,
    %c96_93 = arith.constant 96 : index
    %c0_94 = arith.constant 0 : index
    %261 = vector.load %arg25[%c96_93, %c0_94] : memref<128x128xf32, #tpu.memory_space<vmem>>, vector<16x128xf32>
    %cst_95 = arith.constant dense<0.000000e+00> : vector<16x128xf32>
    %262 = tpu.matmul %242, %19, %cst_95 {dimension_numbers = #tpu.dot_dimension_numbers<[1], [0], [0], [1], [0, 0, 1, 1], [], []>} : vector<16x32xf32>, vector<32x128xf32>, vector<16x128xf32> -> vector<16x128xf32>
    %263 = arith.addf %261, %262 : vector<16x128xf32>
    %c16_96 = arith.constant 16 : index
    %c0_97 = arith.constant 0 : index
    %264 = vector.load %arg26[%c16_96, %c0_97] : memref<128x128xf32, #tpu.memory_space<vmem>>, vector<16x128xf32>
    %cst_98 = arith.constant dense<0.000000e+00> : vector<16x128xf32>
    %265 = tpu.matmul %258, %20, %cst_98 {dimension_numbers = #tpu.dot_dimension_numbers<[1], [0], [0], [1], [0, 0, 1, 1], [], []>} : vector<16x32xf32>, vector<32x128xf32>, vector<16x128xf32> -> vector<16x128xf32>
    %266 = arith.addf %264, %265 : vector<16x128xf32>
    %267 = vector.extract_strided_slice %263 {offsets = [0, 0], sizes = [16, 96], strides = [1, 1]} : vector<16x128xf32> to vector<16x96xf32>
    %268 = arith.negf %267 : vector<16x96xf32>
    %269 = math.exp %268 : vector<16x96xf32>
    %cst_99 = arith.constant 1.000000e+00 : f32
    %270 = vector.broadcast %cst_99 : f32 to vector<16x96xf32>
    %271 = arith.addf %270, %269 : vector<16x96xf32>
    %272 = arith.divf %270, %271 : vector<16x96xf32>
    %273 = vector.extract_strided_slice %263 {offsets = [0, 96], sizes = [16, 32], strides = [1, 1]} : vector<16x128xf32> to vector<16x32xf32>
    %274 = math.tanh %273 : vector<16x32xf32>
    %275 = vector.extract_strided_slice %272 {offsets = [0, 0], sizes = [16, 32], strides = [1, 1]} : vector<16x96xf32> to vector<16x32xf32>
    %276 = vector.extract_strided_slice %272 {offsets = [0, 32], sizes = [16, 32], strides = [1, 1]} : vector<16x96xf32> to vector<16x32xf32>
    %277 = vector.extract_strided_slice %272 {offsets = [0, 64], sizes = [16, 32], strides = [1, 1]} : vector<16x96xf32> to vector<16x32xf32>
    %278 = arith.mulf %276, %240 : vector<16x32xf32>
    %279 = arith.mulf %275, %274 : vector<16x32xf32>
    %280 = arith.addf %278, %279 : vector<16x32xf32>
    %281 = math.tanh %280 : vector<16x32xf32>
    %282 = arith.mulf %277, %281 : vector<16x32xf32>
    %283 = vector.extract_strided_slice %266 {offsets = [0, 0], sizes = [16, 96], strides = [1, 1]} : vector<16x128xf32> to vector<16x96xf32>
    %284 = arith.negf %283 : vector<16x96xf32>
    %285 = math.exp %284 : vector<16x96xf32>
    %cst_100 = arith.constant 1.000000e+00 : f32
    %286 = vector.broadcast %cst_100 : f32 to vector<16x96xf32>
    %287 = arith.addf %286, %285 : vector<16x96xf32>
    %288 = arith.divf %286, %287 : vector<16x96xf32>
    %289 = vector.extract_strided_slice %266 {offsets = [0, 96], sizes = [16, 32], strides = [1, 1]} : vector<16x128xf32> to vector<16x32xf32>
    %290 = math.tanh %289 : vector<16x32xf32>
    %291 = vector.extract_strided_slice %288 {offsets = [0, 0], sizes = [16, 32], strides = [1, 1]} : vector<16x96xf32> to vector<16x32xf32>
    %292 = vector.extract_strided_slice %288 {offsets = [0, 32], sizes = [16, 32], strides = [1, 1]} : vector<16x96xf32> to vector<16x32xf32>
    %293 = vector.extract_strided_slice %288 {offsets = [0, 64], sizes = [16, 32], strides = [1, 1]} : vector<16x96xf32> to vector<16x32xf32>
    %294 = arith.mulf %292, %256 : vector<16x32xf32>
    %295 = arith.mulf %291, %290 : vector<16x32xf32>
    %296 = arith.addf %294, %295 : vector<16x32xf32>
    %297 = math.tanh %296 : vector<16x32xf32>
    %298 = arith.mulf %293, %297 : vector<16x32xf32>
    %c96_101 = arith.constant 96 : index
    %c0_102 = arith.constant 0 : index
    %299 = vector.load %arg27[%c96_101, %c0_102] : memref<128x32xf32, #tpu.memory_space<vmem>>, vector<16x32xf32>
    tpu.vector_store %arg27[%c96_101, %c0_102], %282 {strides = array<i32>} : memref<128x32xf32, #tpu.memory_space<vmem>>, vector<16x32xf32>,
    %c16_103 = arith.constant 16 : index
    %c0_104 = arith.constant 0 : index
    %300 = vector.load %arg28[%c16_103, %c0_104] : memref<128x32xf32, #tpu.memory_space<vmem>>, vector<16x32xf32>
    tpu.vector_store %arg28[%c16_103, %c0_104], %298 {strides = array<i32>} : memref<128x32xf32, #tpu.memory_space<vmem>>, vector<16x32xf32>,
    %c112_105 = arith.constant 112 : index
    %c0_106 = arith.constant 0 : index
    %301 = vector.load %arg25[%c112_105, %c0_106] : memref<128x128xf32, #tpu.memory_space<vmem>>, vector<16x128xf32>
    %cst_107 = arith.constant dense<0.000000e+00> : vector<16x128xf32>
    %302 = tpu.matmul %282, %19, %cst_107 {dimension_numbers = #tpu.dot_dimension_numbers<[1], [0], [0], [1], [0, 0, 1, 1], [], []>} : vector<16x32xf32>, vector<32x128xf32>, vector<16x128xf32> -> vector<16x128xf32>
    %303 = arith.addf %301, %302 : vector<16x128xf32>
    %c0_108 = arith.constant 0 : index
    %c0_109 = arith.constant 0 : index
    %304 = vector.load %arg26[%c0_108, %c0_109] : memref<128x128xf32, #tpu.memory_space<vmem>>, vector<16x128xf32>
    %cst_110 = arith.constant dense<0.000000e+00> : vector<16x128xf32>
    %305 = tpu.matmul %298, %20, %cst_110 {dimension_numbers = #tpu.dot_dimension_numbers<[1], [0], [0], [1], [0, 0, 1, 1], [], []>} : vector<16x32xf32>, vector<32x128xf32>, vector<16x128xf32> -> vector<16x128xf32>
    %306 = arith.addf %304, %305 : vector<16x128xf32>
    %307 = vector.extract_strided_slice %303 {offsets = [0, 0], sizes = [16, 96], strides = [1, 1]} : vector<16x128xf32> to vector<16x96xf32>
    %308 = arith.negf %307 : vector<16x96xf32>
    %309 = math.exp %308 : vector<16x96xf32>
    %cst_111 = arith.constant 1.000000e+00 : f32
    %310 = vector.broadcast %cst_111 : f32 to vector<16x96xf32>
    %311 = arith.addf %310, %309 : vector<16x96xf32>
    %312 = arith.divf %310, %311 : vector<16x96xf32>
    %313 = vector.extract_strided_slice %303 {offsets = [0, 96], sizes = [16, 32], strides = [1, 1]} : vector<16x128xf32> to vector<16x32xf32>
    %314 = math.tanh %313 : vector<16x32xf32>
    %315 = vector.extract_strided_slice %312 {offsets = [0, 0], sizes = [16, 32], strides = [1, 1]} : vector<16x96xf32> to vector<16x32xf32>
    %316 = vector.extract_strided_slice %312 {offsets = [0, 32], sizes = [16, 32], strides = [1, 1]} : vector<16x96xf32> to vector<16x32xf32>
    %317 = vector.extract_strided_slice %312 {offsets = [0, 64], sizes = [16, 32], strides = [1, 1]} : vector<16x96xf32> to vector<16x32xf32>
    %318 = arith.mulf %316, %280 : vector<16x32xf32>
    %319 = arith.mulf %315, %314 : vector<16x32xf32>
    %320 = arith.addf %318, %319 : vector<16x32xf32>
    %321 = math.tanh %320 : vector<16x32xf32>
    %322 = arith.mulf %317, %321 : vector<16x32xf32>
    %323 = vector.extract_strided_slice %306 {offsets = [0, 0], sizes = [16, 96], strides = [1, 1]} : vector<16x128xf32> to vector<16x96xf32>
    %324 = arith.negf %323 : vector<16x96xf32>
    %325 = math.exp %324 : vector<16x96xf32>
    %cst_112 = arith.constant 1.000000e+00 : f32
    %326 = vector.broadcast %cst_112 : f32 to vector<16x96xf32>
    %327 = arith.addf %326, %325 : vector<16x96xf32>
    %328 = arith.divf %326, %327 : vector<16x96xf32>
    %329 = vector.extract_strided_slice %306 {offsets = [0, 96], sizes = [16, 32], strides = [1, 1]} : vector<16x128xf32> to vector<16x32xf32>
    %330 = math.tanh %329 : vector<16x32xf32>
    %331 = vector.extract_strided_slice %328 {offsets = [0, 0], sizes = [16, 32], strides = [1, 1]} : vector<16x96xf32> to vector<16x32xf32>
    %332 = vector.extract_strided_slice %328 {offsets = [0, 32], sizes = [16, 32], strides = [1, 1]} : vector<16x96xf32> to vector<16x32xf32>
    %333 = vector.extract_strided_slice %328 {offsets = [0, 64], sizes = [16, 32], strides = [1, 1]} : vector<16x96xf32> to vector<16x32xf32>
    %334 = arith.mulf %332, %296 : vector<16x32xf32>
    %335 = arith.mulf %331, %330 : vector<16x32xf32>
    %336 = arith.addf %334, %335 : vector<16x32xf32>
    %337 = math.tanh %336 : vector<16x32xf32>
    %338 = arith.mulf %333, %337 : vector<16x32xf32>
    %c112_113 = arith.constant 112 : index
    %c0_114 = arith.constant 0 : index
    %339 = vector.load %arg27[%c112_113, %c0_114] : memref<128x32xf32, #tpu.memory_space<vmem>>, vector<16x32xf32>
    tpu.vector_store %arg27[%c112_113, %c0_114], %322 {strides = array<i32>} : memref<128x32xf32, #tpu.memory_space<vmem>>, vector<16x32xf32>,
    %c0_115 = arith.constant 0 : index
    %c0_116 = arith.constant 0 : index
    %340 = vector.load %arg28[%c0_115, %c0_116] : memref<128x32xf32, #tpu.memory_space<vmem>>, vector<16x32xf32>
    tpu.vector_store %arg28[%c0_115, %c0_116], %338 {strides = array<i32>} : memref<128x32xf32, #tpu.memory_space<vmem>>, vector<16x32xf32>,
    %c0_117 = arith.constant 0 : index
    %c0_118 = arith.constant 0 : index
    %341 = vector.load %arg8[%c0_117, %c0_118] : memref<64x128xf32, #tpu.memory_space<vmem>>, vector<64x128xf32>
    %c0_119 = arith.constant 0 : index
    %c0_120 = arith.constant 0 : index
    %342 = vector.load %arg11[%c0_119, %c0_120] : memref<64x128xf32, #tpu.memory_space<vmem>>, vector<64x128xf32>
    %c0_121 = arith.constant 0 : index
    %c0_122 = arith.constant 0 : index
    %343 = vector.load %arg27[%c0_121, %c0_122] : memref<128x32xf32, #tpu.memory_space<vmem>>, vector<128x32xf32>
    %c0_123 = arith.constant 0 : index
    %c0_124 = arith.constant 0 : index
    %344 = vector.load %arg28[%c0_123, %c0_124] : memref<128x32xf32, #tpu.memory_space<vmem>>, vector<128x32xf32>
    %345 = vector.extract_strided_slice %341 {offsets = [0, 0], sizes = [32, 128], strides = [1, 1]} : vector<64x128xf32> to vector<32x128xf32>
    %cst_125 = arith.constant dense<0.000000e+00> : vector<128x128xf32>
    %346 = tpu.matmul %343, %345, %cst_125 {dimension_numbers = #tpu.dot_dimension_numbers<[1], [0], [0], [1], [0, 0, 1, 1], [], []>} : vector<128x32xf32>, vector<32x128xf32>, vector<128x128xf32> -> vector<128x128xf32>
    %347 = vector.extract_strided_slice %341 {offsets = [32, 0], sizes = [32, 128], strides = [1, 1]} : vector<64x128xf32> to vector<32x128xf32>
    %cst_126 = arith.constant dense<0.000000e+00> : vector<128x128xf32>
    %348 = tpu.matmul %344, %347, %cst_126 {dimension_numbers = #tpu.dot_dimension_numbers<[1], [0], [0], [1], [0, 0, 1, 1], [], []>} : vector<128x32xf32>, vector<32x128xf32>, vector<128x128xf32> -> vector<128x128xf32>
    %349 = arith.addf %346, %348 : vector<128x128xf32>
    %c0_127 = arith.constant 0 : index
    %c0_128 = arith.constant 0 : index
    %350 = vector.load %arg10[%c0_127, %c0_128] : memref<1x128xf32, #tpu.memory_space<vmem>>, vector<1x128xf32>
    %351 = vector.broadcast %350 : vector<1x128xf32> to vector<128x128xf32>
    %352 = arith.addf %349, %351 : vector<128x128xf32>
    %c0_129 = arith.constant 0 : index
    %c0_130 = arith.constant 0 : index
    %353 = vector.load %arg25[%c0_129, %c0_130] : memref<128x128xf32, #tpu.memory_space<vmem>>, vector<128x128xf32>
    tpu.vector_store %arg25[%c0_129, %c0_130], %352 {strides = array<i32>} : memref<128x128xf32, #tpu.memory_space<vmem>>, vector<128x128xf32>,
    %354 = vector.extract_strided_slice %342 {offsets = [0, 0], sizes = [32, 128], strides = [1, 1]} : vector<64x128xf32> to vector<32x128xf32>
    %cst_131 = arith.constant dense<0.000000e+00> : vector<128x128xf32>
    %355 = tpu.matmul %343, %354, %cst_131 {dimension_numbers = #tpu.dot_dimension_numbers<[1], [0], [0], [1], [0, 0, 1, 1], [], []>} : vector<128x32xf32>, vector<32x128xf32>, vector<128x128xf32> -> vector<128x128xf32>
    %356 = vector.extract_strided_slice %342 {offsets = [32, 0], sizes = [32, 128], strides = [1, 1]} : vector<64x128xf32> to vector<32x128xf32>
    %cst_132 = arith.constant dense<0.000000e+00> : vector<128x128xf32>
    %357 = tpu.matmul %344, %356, %cst_132 {dimension_numbers = #tpu.dot_dimension_numbers<[1], [0], [0], [1], [0, 0, 1, 1], [], []>} : vector<128x32xf32>, vector<32x128xf32>, vector<128x128xf32> -> vector<128x128xf32>
    %358 = arith.addf %355, %357 : vector<128x128xf32>
    %c0_133 = arith.constant 0 : index
    %c0_134 = arith.constant 0 : index
    %359 = vector.load %arg13[%c0_133, %c0_134] : memref<1x128xf32, #tpu.memory_space<vmem>>, vector<1x128xf32>
    %360 = vector.broadcast %359 : vector<1x128xf32> to vector<128x128xf32>
    %361 = arith.addf %358, %360 : vector<128x128xf32>
    %c0_135 = arith.constant 0 : index
    %c0_136 = arith.constant 0 : index
    %362 = vector.load %arg26[%c0_135, %c0_136] : memref<128x128xf32, #tpu.memory_space<vmem>>, vector<128x128xf32>
    tpu.vector_store %arg26[%c0_135, %c0_136], %361 {strides = array<i32>} : memref<128x128xf32, #tpu.memory_space<vmem>>, vector<128x128xf32>,
    %c0_137 = arith.constant 0 : index
    %c0_138 = arith.constant 0 : index
    %363 = vector.load %arg9[%c0_137, %c0_138] : memref<32x128xf32, #tpu.memory_space<vmem>>, vector<32x128xf32>
    %c0_139 = arith.constant 0 : index
    %c0_140 = arith.constant 0 : index
    %364 = vector.load %arg12[%c0_139, %c0_140] : memref<32x128xf32, #tpu.memory_space<vmem>>, vector<32x128xf32>
    %c0_141 = arith.constant 0 : index
    %c0_142 = arith.constant 0 : index
    %365 = vector.load %arg25[%c0_141, %c0_142] : memref<128x128xf32, #tpu.memory_space<vmem>>, vector<16x128xf32>
    %cst_143 = arith.constant dense<0.000000e+00> : vector<16x128xf32>
    %366 = tpu.matmul %4, %363, %cst_143 {dimension_numbers = #tpu.dot_dimension_numbers<[1], [0], [0], [1], [0, 0, 1, 1], [], []>} : vector<16x32xf32>, vector<32x128xf32>, vector<16x128xf32> -> vector<16x128xf32>
    %367 = arith.addf %365, %366 : vector<16x128xf32>
    %c112_144 = arith.constant 112 : index
    %c0_145 = arith.constant 0 : index
    %368 = vector.load %arg26[%c112_144, %c0_145] : memref<128x128xf32, #tpu.memory_space<vmem>>, vector<16x128xf32>
    %cst_146 = arith.constant dense<0.000000e+00> : vector<16x128xf32>
    %369 = tpu.matmul %4, %364, %cst_146 {dimension_numbers = #tpu.dot_dimension_numbers<[1], [0], [0], [1], [0, 0, 1, 1], [], []>} : vector<16x32xf32>, vector<32x128xf32>, vector<16x128xf32> -> vector<16x128xf32>
    %370 = arith.addf %368, %369 : vector<16x128xf32>
    %371 = vector.extract_strided_slice %367 {offsets = [0, 0], sizes = [16, 96], strides = [1, 1]} : vector<16x128xf32> to vector<16x96xf32>
    %372 = arith.negf %371 : vector<16x96xf32>
    %373 = math.exp %372 : vector<16x96xf32>
    %cst_147 = arith.constant 1.000000e+00 : f32
    %374 = vector.broadcast %cst_147 : f32 to vector<16x96xf32>
    %375 = arith.addf %374, %373 : vector<16x96xf32>
    %376 = arith.divf %374, %375 : vector<16x96xf32>
    %377 = vector.extract_strided_slice %367 {offsets = [0, 96], sizes = [16, 32], strides = [1, 1]} : vector<16x128xf32> to vector<16x32xf32>
    %378 = math.tanh %377 : vector<16x32xf32>
    %379 = vector.extract_strided_slice %376 {offsets = [0, 0], sizes = [16, 32], strides = [1, 1]} : vector<16x96xf32> to vector<16x32xf32>
    %380 = vector.extract_strided_slice %376 {offsets = [0, 32], sizes = [16, 32], strides = [1, 1]} : vector<16x96xf32> to vector<16x32xf32>
    %381 = vector.extract_strided_slice %376 {offsets = [0, 64], sizes = [16, 32], strides = [1, 1]} : vector<16x96xf32> to vector<16x32xf32>
    %382 = arith.mulf %380, %4 : vector<16x32xf32>
    %383 = arith.mulf %379, %378 : vector<16x32xf32>
    %384 = arith.addf %382, %383 : vector<16x32xf32>
    %385 = math.tanh %384 : vector<16x32xf32>
    %386 = arith.mulf %381, %385 : vector<16x32xf32>
    %387 = vector.extract_strided_slice %370 {offsets = [0, 0], sizes = [16, 96], strides = [1, 1]} : vector<16x128xf32> to vector<16x96xf32>
    %388 = arith.negf %387 : vector<16x96xf32>
    %389 = math.exp %388 : vector<16x96xf32>
    %cst_148 = arith.constant 1.000000e+00 : f32
    %390 = vector.broadcast %cst_148 : f32 to vector<16x96xf32>
    %391 = arith.addf %390, %389 : vector<16x96xf32>
    %392 = arith.divf %390, %391 : vector<16x96xf32>
    %393 = vector.extract_strided_slice %370 {offsets = [0, 96], sizes = [16, 32], strides = [1, 1]} : vector<16x128xf32> to vector<16x32xf32>
    %394 = math.tanh %393 : vector<16x32xf32>
    %395 = vector.extract_strided_slice %392 {offsets = [0, 0], sizes = [16, 32], strides = [1, 1]} : vector<16x96xf32> to vector<16x32xf32>
    %396 = vector.extract_strided_slice %392 {offsets = [0, 32], sizes = [16, 32], strides = [1, 1]} : vector<16x96xf32> to vector<16x32xf32>
    %397 = vector.extract_strided_slice %392 {offsets = [0, 64], sizes = [16, 32], strides = [1, 1]} : vector<16x96xf32> to vector<16x32xf32>
    %398 = arith.mulf %396, %4 : vector<16x32xf32>
    %399 = arith.mulf %395, %394 : vector<16x32xf32>
    %400 = arith.addf %398, %399 : vector<16x32xf32>
    %401 = math.tanh %400 : vector<16x32xf32>
    %402 = arith.mulf %397, %401 : vector<16x32xf32>
    %c0_149 = arith.constant 0 : index
    %c0_150 = arith.constant 0 : index
    %403 = vector.load %arg27[%c0_149, %c0_150] : memref<128x32xf32, #tpu.memory_space<vmem>>, vector<16x32xf32>
    tpu.vector_store %arg27[%c0_149, %c0_150], %386 {strides = array<i32>} : memref<128x32xf32, #tpu.memory_space<vmem>>, vector<16x32xf32>,
    %c112_151 = arith.constant 112 : index
    %c0_152 = arith.constant 0 : index
    %404 = vector.load %arg28[%c112_151, %c0_152] : memref<128x32xf32, #tpu.memory_space<vmem>>, vector<16x32xf32>
    tpu.vector_store %arg28[%c112_151, %c0_152], %402 {strides = array<i32>} : memref<128x32xf32, #tpu.memory_space<vmem>>, vector<16x32xf32>,
    %c16_153 = arith.constant 16 : index
    %c0_154 = arith.constant 0 : index
    %405 = vector.load %arg25[%c16_153, %c0_154] : memref<128x128xf32, #tpu.memory_space<vmem>>, vector<16x128xf32>
    %cst_155 = arith.constant dense<0.000000e+00> : vector<16x128xf32>
    %406 = tpu.matmul %386, %363, %cst_155 {dimension_numbers = #tpu.dot_dimension_numbers<[1], [0], [0], [1], [0, 0, 1, 1], [], []>} : vector<16x32xf32>, vector<32x128xf32>, vector<16x128xf32> -> vector<16x128xf32>
    %407 = arith.addf %405, %406 : vector<16x128xf32>
    %c96_156 = arith.constant 96 : index
    %c0_157 = arith.constant 0 : index
    %408 = vector.load %arg26[%c96_156, %c0_157] : memref<128x128xf32, #tpu.memory_space<vmem>>, vector<16x128xf32>
    %cst_158 = arith.constant dense<0.000000e+00> : vector<16x128xf32>
    %409 = tpu.matmul %402, %364, %cst_158 {dimension_numbers = #tpu.dot_dimension_numbers<[1], [0], [0], [1], [0, 0, 1, 1], [], []>} : vector<16x32xf32>, vector<32x128xf32>, vector<16x128xf32> -> vector<16x128xf32>
    %410 = arith.addf %408, %409 : vector<16x128xf32>
    %411 = vector.extract_strided_slice %407 {offsets = [0, 0], sizes = [16, 96], strides = [1, 1]} : vector<16x128xf32> to vector<16x96xf32>
    %412 = arith.negf %411 : vector<16x96xf32>
    %413 = math.exp %412 : vector<16x96xf32>
    %cst_159 = arith.constant 1.000000e+00 : f32
    %414 = vector.broadcast %cst_159 : f32 to vector<16x96xf32>
    %415 = arith.addf %414, %413 : vector<16x96xf32>
    %416 = arith.divf %414, %415 : vector<16x96xf32>
    %417 = vector.extract_strided_slice %407 {offsets = [0, 96], sizes = [16, 32], strides = [1, 1]} : vector<16x128xf32> to vector<16x32xf32>
    %418 = math.tanh %417 : vector<16x32xf32>
    %419 = vector.extract_strided_slice %416 {offsets = [0, 0], sizes = [16, 32], strides = [1, 1]} : vector<16x96xf32> to vector<16x32xf32>
    %420 = vector.extract_strided_slice %416 {offsets = [0, 32], sizes = [16, 32], strides = [1, 1]} : vector<16x96xf32> to vector<16x32xf32>
    %421 = vector.extract_strided_slice %416 {offsets = [0, 64], sizes = [16, 32], strides = [1, 1]} : vector<16x96xf32> to vector<16x32xf32>
    %422 = arith.mulf %420, %384 : vector<16x32xf32>
    %423 = arith.mulf %419, %418 : vector<16x32xf32>
    %424 = arith.addf %422, %423 : vector<16x32xf32>
    %425 = math.tanh %424 : vector<16x32xf32>
    %426 = arith.mulf %421, %425 : vector<16x32xf32>
    %427 = vector.extract_strided_slice %410 {offsets = [0, 0], sizes = [16, 96], strides = [1, 1]} : vector<16x128xf32> to vector<16x96xf32>
    %428 = arith.negf %427 : vector<16x96xf32>
    %429 = math.exp %428 : vector<16x96xf32>
    %cst_160 = arith.constant 1.000000e+00 : f32
    %430 = vector.broadcast %cst_160 : f32 to vector<16x96xf32>
    %431 = arith.addf %430, %429 : vector<16x96xf32>
    %432 = arith.divf %430, %431 : vector<16x96xf32>
    %433 = vector.extract_strided_slice %410 {offsets = [0, 96], sizes = [16, 32], strides = [1, 1]} : vector<16x128xf32> to vector<16x32xf32>
    %434 = math.tanh %433 : vector<16x32xf32>
    %435 = vector.extract_strided_slice %432 {offsets = [0, 0], sizes = [16, 32], strides = [1, 1]} : vector<16x96xf32> to vector<16x32xf32>
    %436 = vector.extract_strided_slice %432 {offsets = [0, 32], sizes = [16, 32], strides = [1, 1]} : vector<16x96xf32> to vector<16x32xf32>
    %437 = vector.extract_strided_slice %432 {offsets = [0, 64], sizes = [16, 32], strides = [1, 1]} : vector<16x96xf32> to vector<16x32xf32>
    %438 = arith.mulf %436, %400 : vector<16x32xf32>
    %439 = arith.mulf %435, %434 : vector<16x32xf32>
    %440 = arith.addf %438, %439 : vector<16x32xf32>
    %441 = math.tanh %440 : vector<16x32xf32>
    %442 = arith.mulf %437, %441 : vector<16x32xf32>
    %c16_161 = arith.constant 16 : index
    %c0_162 = arith.constant 0 : index
    %443 = vector.load %arg27[%c16_161, %c0_162] : memref<128x32xf32, #tpu.memory_space<vmem>>, vector<16x32xf32>
    tpu.vector_store %arg27[%c16_161, %c0_162], %426 {strides = array<i32>} : memref<128x32xf32, #tpu.memory_space<vmem>>, vector<16x32xf32>,
    %c96_163 = arith.constant 96 : index
    %c0_164 = arith.constant 0 : index
    %444 = vector.load %arg28[%c96_163, %c0_164] : memref<128x32xf32, #tpu.memory_space<vmem>>, vector<16x32xf32>
    tpu.vector_store %arg28[%c96_163, %c0_164], %442 {strides = array<i32>} : memref<128x32xf32, #tpu.memory_space<vmem>>, vector<16x32xf32>,
    %c32_165 = arith.constant 32 : index
    %c0_166 = arith.constant 0 : index
    %445 = vector.load %arg25[%c32_165, %c0_166] : memref<128x128xf32, #tpu.memory_space<vmem>>, vector<16x128xf32>
    %cst_167 = arith.constant dense<0.000000e+00> : vector<16x128xf32>
    %446 = tpu.matmul %426, %363, %cst_167 {dimension_numbers = #tpu.dot_dimension_numbers<[1], [0], [0], [1], [0, 0, 1, 1], [], []>} : vector<16x32xf32>, vector<32x128xf32>, vector<16x128xf32> -> vector<16x128xf32>
    %447 = arith.addf %445, %446 : vector<16x128xf32>
    %c80_168 = arith.constant 80 : index
    %c0_169 = arith.constant 0 : index
    %448 = vector.load %arg26[%c80_168, %c0_169] : memref<128x128xf32, #tpu.memory_space<vmem>>, vector<16x128xf32>
    %cst_170 = arith.constant dense<0.000000e+00> : vector<16x128xf32>
    %449 = tpu.matmul %442, %364, %cst_170 {dimension_numbers = #tpu.dot_dimension_numbers<[1], [0], [0], [1], [0, 0, 1, 1], [], []>} : vector<16x32xf32>, vector<32x128xf32>, vector<16x128xf32> -> vector<16x128xf32>
    %450 = arith.addf %448, %449 : vector<16x128xf32>
    %451 = vector.extract_strided_slice %447 {offsets = [0, 0], sizes = [16, 96], strides = [1, 1]} : vector<16x128xf32> to vector<16x96xf32>
    %452 = arith.negf %451 : vector<16x96xf32>
    %453 = math.exp %452 : vector<16x96xf32>
    %cst_171 = arith.constant 1.000000e+00 : f32
    %454 = vector.broadcast %cst_171 : f32 to vector<16x96xf32>
    %455 = arith.addf %454, %453 : vector<16x96xf32>
    %456 = arith.divf %454, %455 : vector<16x96xf32>
    %457 = vector.extract_strided_slice %447 {offsets = [0, 96], sizes = [16, 32], strides = [1, 1]} : vector<16x128xf32> to vector<16x32xf32>
    %458 = math.tanh %457 : vector<16x32xf32>
    %459 = vector.extract_strided_slice %456 {offsets = [0, 0], sizes = [16, 32], strides = [1, 1]} : vector<16x96xf32> to vector<16x32xf32>
    %460 = vector.extract_strided_slice %456 {offsets = [0, 32], sizes = [16, 32], strides = [1, 1]} : vector<16x96xf32> to vector<16x32xf32>
    %461 = vector.extract_strided_slice %456 {offsets = [0, 64], sizes = [16, 32], strides = [1, 1]} : vector<16x96xf32> to vector<16x32xf32>
    %462 = arith.mulf %460, %424 : vector<16x32xf32>
    %463 = arith.mulf %459, %458 : vector<16x32xf32>
    %464 = arith.addf %462, %463 : vector<16x32xf32>
    %465 = math.tanh %464 : vector<16x32xf32>
    %466 = arith.mulf %461, %465 : vector<16x32xf32>
    %467 = vector.extract_strided_slice %450 {offsets = [0, 0], sizes = [16, 96], strides = [1, 1]} : vector<16x128xf32> to vector<16x96xf32>
    %468 = arith.negf %467 : vector<16x96xf32>
    %469 = math.exp %468 : vector<16x96xf32>
    %cst_172 = arith.constant 1.000000e+00 : f32
    %470 = vector.broadcast %cst_172 : f32 to vector<16x96xf32>
    %471 = arith.addf %470, %469 : vector<16x96xf32>
    %472 = arith.divf %470, %471 : vector<16x96xf32>
    %473 = vector.extract_strided_slice %450 {offsets = [0, 96], sizes = [16, 32], strides = [1, 1]} : vector<16x128xf32> to vector<16x32xf32>
    %474 = math.tanh %473 : vector<16x32xf32>
    %475 = vector.extract_strided_slice %472 {offsets = [0, 0], sizes = [16, 32], strides = [1, 1]} : vector<16x96xf32> to vector<16x32xf32>
    %476 = vector.extract_strided_slice %472 {offsets = [0, 32], sizes = [16, 32], strides = [1, 1]} : vector<16x96xf32> to vector<16x32xf32>
    %477 = vector.extract_strided_slice %472 {offsets = [0, 64], sizes = [16, 32], strides = [1, 1]} : vector<16x96xf32> to vector<16x32xf32>
    %478 = arith.mulf %476, %440 : vector<16x32xf32>
    %479 = arith.mulf %475, %474 : vector<16x32xf32>
    %480 = arith.addf %478, %479 : vector<16x32xf32>
    %481 = math.tanh %480 : vector<16x32xf32>
    %482 = arith.mulf %477, %481 : vector<16x32xf32>
    %c32_173 = arith.constant 32 : index
    %c0_174 = arith.constant 0 : index
    %483 = vector.load %arg27[%c32_173, %c0_174] : memref<128x32xf32, #tpu.memory_space<vmem>>, vector<16x32xf32>
    tpu.vector_store %arg27[%c32_173, %c0_174], %466 {strides = array<i32>} : memref<128x32xf32, #tpu.memory_space<vmem>>, vector<16x32xf32>,
    %c80_175 = arith.constant 80 : index
    %c0_176 = arith.constant 0 : index
    %484 = vector.load %arg28[%c80_175, %c0_176] : memref<128x32xf32, #tpu.memory_space<vmem>>, vector<16x32xf32>
    tpu.vector_store %arg28[%c80_175, %c0_176], %482 {strides = array<i32>} : memref<128x32xf32, #tpu.memory_space<vmem>>, vector<16x32xf32>,
    %c48_177 = arith.constant 48 : index
    %c0_178 = arith.constant 0 : index
    %485 = vector.load %arg25[%c48_177, %c0_178] : memref<128x128xf32, #tpu.memory_space<vmem>>, vector<16x128xf32>
    %cst_179 = arith.constant dense<0.000000e+00> : vector<16x128xf32>
    %486 = tpu.matmul %466, %363, %cst_179 {dimension_numbers = #tpu.dot_dimension_numbers<[1], [0], [0], [1], [0, 0, 1, 1], [], []>} : vector<16x32xf32>, vector<32x128xf32>, vector<16x128xf32> -> vector<16x128xf32>
    %487 = arith.addf %485, %486 : vector<16x128xf32>
    %c64_180 = arith.constant 64 : index
    %c0_181 = arith.constant 0 : index
    %488 = vector.load %arg26[%c64_180, %c0_181] : memref<128x128xf32, #tpu.memory_space<vmem>>, vector<16x128xf32>
    %cst_182 = arith.constant dense<0.000000e+00> : vector<16x128xf32>
    %489 = tpu.matmul %482, %364, %cst_182 {dimension_numbers = #tpu.dot_dimension_numbers<[1], [0], [0], [1], [0, 0, 1, 1], [], []>} : vector<16x32xf32>, vector<32x128xf32>, vector<16x128xf32> -> vector<16x128xf32>
    %490 = arith.addf %488, %489 : vector<16x128xf32>
    %491 = vector.extract_strided_slice %487 {offsets = [0, 0], sizes = [16, 96], strides = [1, 1]} : vector<16x128xf32> to vector<16x96xf32>
    %492 = arith.negf %491 : vector<16x96xf32>
    %493 = math.exp %492 : vector<16x96xf32>
    %cst_183 = arith.constant 1.000000e+00 : f32
    %494 = vector.broadcast %cst_183 : f32 to vector<16x96xf32>
    %495 = arith.addf %494, %493 : vector<16x96xf32>
    %496 = arith.divf %494, %495 : vector<16x96xf32>
    %497 = vector.extract_strided_slice %487 {offsets = [0, 96], sizes = [16, 32], strides = [1, 1]} : vector<16x128xf32> to vector<16x32xf32>
    %498 = math.tanh %497 : vector<16x32xf32>
    %499 = vector.extract_strided_slice %496 {offsets = [0, 0], sizes = [16, 32], strides = [1, 1]} : vector<16x96xf32> to vector<16x32xf32>
    %500 = vector.extract_strided_slice %496 {offsets = [0, 32], sizes = [16, 32], strides = [1, 1]} : vector<16x96xf32> to vector<16x32xf32>
    %501 = vector.extract_strided_slice %496 {offsets = [0, 64], sizes = [16, 32], strides = [1, 1]} : vector<16x96xf32> to vector<16x32xf32>
    %502 = arith.mulf %500, %464 : vector<16x32xf32>
    %503 = arith.mulf %499, %498 : vector<16x32xf32>
    %504 = arith.addf %502, %503 : vector<16x32xf32>
    %505 = math.tanh %504 : vector<16x32xf32>
    %506 = arith.mulf %501, %505 : vector<16x32xf32>
    %507 = vector.extract_strided_slice %490 {offsets = [0, 0], sizes = [16, 96], strides = [1, 1]} : vector<16x128xf32> to vector<16x96xf32>
    %508 = arith.negf %507 : vector<16x96xf32>
    %509 = math.exp %508 : vector<16x96xf32>
    %cst_184 = arith.constant 1.000000e+00 : f32
    %510 = vector.broadcast %cst_184 : f32 to vector<16x96xf32>
    %511 = arith.addf %510, %509 : vector<16x96xf32>
    %512 = arith.divf %510, %511 : vector<16x96xf32>
    %513 = vector.extract_strided_slice %490 {offsets = [0, 96], sizes = [16, 32], strides = [1, 1]} : vector<16x128xf32> to vector<16x32xf32>
    %514 = math.tanh %513 : vector<16x32xf32>
    %515 = vector.extract_strided_slice %512 {offsets = [0, 0], sizes = [16, 32], strides = [1, 1]} : vector<16x96xf32> to vector<16x32xf32>
    %516 = vector.extract_strided_slice %512 {offsets = [0, 32], sizes = [16, 32], strides = [1, 1]} : vector<16x96xf32> to vector<16x32xf32>
    %517 = vector.extract_strided_slice %512 {offsets = [0, 64], sizes = [16, 32], strides = [1, 1]} : vector<16x96xf32> to vector<16x32xf32>
    %518 = arith.mulf %516, %480 : vector<16x32xf32>
    %519 = arith.mulf %515, %514 : vector<16x32xf32>
    %520 = arith.addf %518, %519 : vector<16x32xf32>
    %521 = math.tanh %520 : vector<16x32xf32>
    %522 = arith.mulf %517, %521 : vector<16x32xf32>
    %c48_185 = arith.constant 48 : index
    %c0_186 = arith.constant 0 : index
    %523 = vector.load %arg27[%c48_185, %c0_186] : memref<128x32xf32, #tpu.memory_space<vmem>>, vector<16x32xf32>
    tpu.vector_store %arg27[%c48_185, %c0_186], %506 {strides = array<i32>} : memref<128x32xf32, #tpu.memory_space<vmem>>, vector<16x32xf32>,
    %c64_187 = arith.constant 64 : index
    %c0_188 = arith.constant 0 : index
    %524 = vector.load %arg28[%c64_187, %c0_188] : memref<128x32xf32, #tpu.memory_space<vmem>>, vector<16x32xf32>
    tpu.vector_store %arg28[%c64_187, %c0_188], %522 {strides = array<i32>} : memref<128x32xf32, #tpu.memory_space<vmem>>, vector<16x32xf32>,
    %c64_189 = arith.constant 64 : index
    %c0_190 = arith.constant 0 : index
    %525 = vector.load %arg25[%c64_189, %c0_190] : memref<128x128xf32, #tpu.memory_space<vmem>>, vector<16x128xf32>
    %cst_191 = arith.constant dense<0.000000e+00> : vector<16x128xf32>
    %526 = tpu.matmul %506, %363, %cst_191 {dimension_numbers = #tpu.dot_dimension_numbers<[1], [0], [0], [1], [0, 0, 1, 1], [], []>} : vector<16x32xf32>, vector<32x128xf32>, vector<16x128xf32> -> vector<16x128xf32>
    %527 = arith.addf %525, %526 : vector<16x128xf32>
    %c48_192 = arith.constant 48 : index
    %c0_193 = arith.constant 0 : index
    %528 = vector.load %arg26[%c48_192, %c0_193] : memref<128x128xf32, #tpu.memory_space<vmem>>, vector<16x128xf32>
    %cst_194 = arith.constant dense<0.000000e+00> : vector<16x128xf32>
    %529 = tpu.matmul %522, %364, %cst_194 {dimension_numbers = #tpu.dot_dimension_numbers<[1], [0], [0], [1], [0, 0, 1, 1], [], []>} : vector<16x32xf32>, vector<32x128xf32>, vector<16x128xf32> -> vector<16x128xf32>
    %530 = arith.addf %528, %529 : vector<16x128xf32>
    %531 = vector.extract_strided_slice %527 {offsets = [0, 0], sizes = [16, 96], strides = [1, 1]} : vector<16x128xf32> to vector<16x96xf32>
    %532 = arith.negf %531 : vector<16x96xf32>
    %533 = math.exp %532 : vector<16x96xf32>
    %cst_195 = arith.constant 1.000000e+00 : f32
    %534 = vector.broadcast %cst_195 : f32 to vector<16x96xf32>
    %535 = arith.addf %534, %533 : vector<16x96xf32>
    %536 = arith.divf %534, %535 : vector<16x96xf32>
    %537 = vector.extract_strided_slice %527 {offsets = [0, 96], sizes = [16, 32], strides = [1, 1]} : vector<16x128xf32> to vector<16x32xf32>
    %538 = math.tanh %537 : vector<16x32xf32>
    %539 = vector.extract_strided_slice %536 {offsets = [0, 0], sizes = [16, 32], strides = [1, 1]} : vector<16x96xf32> to vector<16x32xf32>
    %540 = vector.extract_strided_slice %536 {offsets = [0, 32], sizes = [16, 32], strides = [1, 1]} : vector<16x96xf32> to vector<16x32xf32>
    %541 = vector.extract_strided_slice %536 {offsets = [0, 64], sizes = [16, 32], strides = [1, 1]} : vector<16x96xf32> to vector<16x32xf32>
    %542 = arith.mulf %540, %504 : vector<16x32xf32>
    %543 = arith.mulf %539, %538 : vector<16x32xf32>
    %544 = arith.addf %542, %543 : vector<16x32xf32>
    %545 = math.tanh %544 : vector<16x32xf32>
    %546 = arith.mulf %541, %545 : vector<16x32xf32>
    %547 = vector.extract_strided_slice %530 {offsets = [0, 0], sizes = [16, 96], strides = [1, 1]} : vector<16x128xf32> to vector<16x96xf32>
    %548 = arith.negf %547 : vector<16x96xf32>
    %549 = math.exp %548 : vector<16x96xf32>
    %cst_196 = arith.constant 1.000000e+00 : f32
    %550 = vector.broadcast %cst_196 : f32 to vector<16x96xf32>
    %551 = arith.addf %550, %549 : vector<16x96xf32>
    %552 = arith.divf %550, %551 : vector<16x96xf32>
    %553 = vector.extract_strided_slice %530 {offsets = [0, 96], sizes = [16, 32], strides = [1, 1]} : vector<16x128xf32> to vector<16x32xf32>
    %554 = math.tanh %553 : vector<16x32xf32>
    %555 = vector.extract_strided_slice %552 {offsets = [0, 0], sizes = [16, 32], strides = [1, 1]} : vector<16x96xf32> to vector<16x32xf32>
    %556 = vector.extract_strided_slice %552 {offsets = [0, 32], sizes = [16, 32], strides = [1, 1]} : vector<16x96xf32> to vector<16x32xf32>
    %557 = vector.extract_strided_slice %552 {offsets = [0, 64], sizes = [16, 32], strides = [1, 1]} : vector<16x96xf32> to vector<16x32xf32>
    %558 = arith.mulf %556, %520 : vector<16x32xf32>
    %559 = arith.mulf %555, %554 : vector<16x32xf32>
    %560 = arith.addf %558, %559 : vector<16x32xf32>
    %561 = math.tanh %560 : vector<16x32xf32>
    %562 = arith.mulf %557, %561 : vector<16x32xf32>
    %c64_197 = arith.constant 64 : index
    %c0_198 = arith.constant 0 : index
    %563 = vector.load %arg27[%c64_197, %c0_198] : memref<128x32xf32, #tpu.memory_space<vmem>>, vector<16x32xf32>
    tpu.vector_store %arg27[%c64_197, %c0_198], %546 {strides = array<i32>} : memref<128x32xf32, #tpu.memory_space<vmem>>, vector<16x32xf32>,
    %c48_199 = arith.constant 48 : index
    %c0_200 = arith.constant 0 : index
    %564 = vector.load %arg28[%c48_199, %c0_200] : memref<128x32xf32, #tpu.memory_space<vmem>>, vector<16x32xf32>
    tpu.vector_store %arg28[%c48_199, %c0_200], %562 {strides = array<i32>} : memref<128x32xf32, #tpu.memory_space<vmem>>, vector<16x32xf32>,
    %c80_201 = arith.constant 80 : index
    %c0_202 = arith.constant 0 : index
    %565 = vector.load %arg25[%c80_201, %c0_202] : memref<128x128xf32, #tpu.memory_space<vmem>>, vector<16x128xf32>
    %cst_203 = arith.constant dense<0.000000e+00> : vector<16x128xf32>
    %566 = tpu.matmul %546, %363, %cst_203 {dimension_numbers = #tpu.dot_dimension_numbers<[1], [0], [0], [1], [0, 0, 1, 1], [], []>} : vector<16x32xf32>, vector<32x128xf32>, vector<16x128xf32> -> vector<16x128xf32>
    %567 = arith.addf %565, %566 : vector<16x128xf32>
    %c32_204 = arith.constant 32 : index
    %c0_205 = arith.constant 0 : index
    %568 = vector.load %arg26[%c32_204, %c0_205] : memref<128x128xf32, #tpu.memory_space<vmem>>, vector<16x128xf32>
    %cst_206 = arith.constant dense<0.000000e+00> : vector<16x128xf32>
    %569 = tpu.matmul %562, %364, %cst_206 {dimension_numbers = #tpu.dot_dimension_numbers<[1], [0], [0], [1], [0, 0, 1, 1], [], []>} : vector<16x32xf32>, vector<32x128xf32>, vector<16x128xf32> -> vector<16x128xf32>
    %570 = arith.addf %568, %569 : vector<16x128xf32>
    %571 = vector.extract_strided_slice %567 {offsets = [0, 0], sizes = [16, 96], strides = [1, 1]} : vector<16x128xf32> to vector<16x96xf32>
    %572 = arith.negf %571 : vector<16x96xf32>
    %573 = math.exp %572 : vector<16x96xf32>
    %cst_207 = arith.constant 1.000000e+00 : f32
    %574 = vector.broadcast %cst_207 : f32 to vector<16x96xf32>
    %575 = arith.addf %574, %573 : vector<16x96xf32>
    %576 = arith.divf %574, %575 : vector<16x96xf32>
    %577 = vector.extract_strided_slice %567 {offsets = [0, 96], sizes = [16, 32], strides = [1, 1]} : vector<16x128xf32> to vector<16x32xf32>
    %578 = math.tanh %577 : vector<16x32xf32>
    %579 = vector.extract_strided_slice %576 {offsets = [0, 0], sizes = [16, 32], strides = [1, 1]} : vector<16x96xf32> to vector<16x32xf32>
    %580 = vector.extract_strided_slice %576 {offsets = [0, 32], sizes = [16, 32], strides = [1, 1]} : vector<16x96xf32> to vector<16x32xf32>
    %581 = vector.extract_strided_slice %576 {offsets = [0, 64], sizes = [16, 32], strides = [1, 1]} : vector<16x96xf32> to vector<16x32xf32>
    %582 = arith.mulf %580, %544 : vector<16x32xf32>
    %583 = arith.mulf %579, %578 : vector<16x32xf32>
    %584 = arith.addf %582, %583 : vector<16x32xf32>
    %585 = math.tanh %584 : vector<16x32xf32>
    %586 = arith.mulf %581, %585 : vector<16x32xf32>
    %587 = vector.extract_strided_slice %570 {offsets = [0, 0], sizes = [16, 96], strides = [1, 1]} : vector<16x128xf32> to vector<16x96xf32>
    %588 = arith.negf %587 : vector<16x96xf32>
    %589 = math.exp %588 : vector<16x96xf32>
    %cst_208 = arith.constant 1.000000e+00 : f32
    %590 = vector.broadcast %cst_208 : f32 to vector<16x96xf32>
    %591 = arith.addf %590, %589 : vector<16x96xf32>
    %592 = arith.divf %590, %591 : vector<16x96xf32>
    %593 = vector.extract_strided_slice %570 {offsets = [0, 96], sizes = [16, 32], strides = [1, 1]} : vector<16x128xf32> to vector<16x32xf32>
    %594 = math.tanh %593 : vector<16x32xf32>
    %595 = vector.extract_strided_slice %592 {offsets = [0, 0], sizes = [16, 32], strides = [1, 1]} : vector<16x96xf32> to vector<16x32xf32>
    %596 = vector.extract_strided_slice %592 {offsets = [0, 32], sizes = [16, 32], strides = [1, 1]} : vector<16x96xf32> to vector<16x32xf32>
    %597 = vector.extract_strided_slice %592 {offsets = [0, 64], sizes = [16, 32], strides = [1, 1]} : vector<16x96xf32> to vector<16x32xf32>
    %598 = arith.mulf %596, %560 : vector<16x32xf32>
    %599 = arith.mulf %595, %594 : vector<16x32xf32>
    %600 = arith.addf %598, %599 : vector<16x32xf32>
    %601 = math.tanh %600 : vector<16x32xf32>
    %602 = arith.mulf %597, %601 : vector<16x32xf32>
    %c80_209 = arith.constant 80 : index
    %c0_210 = arith.constant 0 : index
    %603 = vector.load %arg27[%c80_209, %c0_210] : memref<128x32xf32, #tpu.memory_space<vmem>>, vector<16x32xf32>
    tpu.vector_store %arg27[%c80_209, %c0_210], %586 {strides = array<i32>} : memref<128x32xf32, #tpu.memory_space<vmem>>, vector<16x32xf32>,
    %c32_211 = arith.constant 32 : index
    %c0_212 = arith.constant 0 : index
    %604 = vector.load %arg28[%c32_211, %c0_212] : memref<128x32xf32, #tpu.memory_space<vmem>>, vector<16x32xf32>
    tpu.vector_store %arg28[%c32_211, %c0_212], %602 {strides = array<i32>} : memref<128x32xf32, #tpu.memory_space<vmem>>, vector<16x32xf32>,
    %c96_213 = arith.constant 96 : index
    %c0_214 = arith.constant 0 : index
    %605 = vector.load %arg25[%c96_213, %c0_214] : memref<128x128xf32, #tpu.memory_space<vmem>>, vector<16x128xf32>
    %cst_215 = arith.constant dense<0.000000e+00> : vector<16x128xf32>
    %606 = tpu.matmul %586, %363, %cst_215 {dimension_numbers = #tpu.dot_dimension_numbers<[1], [0], [0], [1], [0, 0, 1, 1], [], []>} : vector<16x32xf32>, vector<32x128xf32>, vector<16x128xf32> -> vector<16x128xf32>
    %607 = arith.addf %605, %606 : vector<16x128xf32>
    %c16_216 = arith.constant 16 : index
    %c0_217 = arith.constant 0 : index
    %608 = vector.load %arg26[%c16_216, %c0_217] : memref<128x128xf32, #tpu.memory_space<vmem>>, vector<16x128xf32>
    %cst_218 = arith.constant dense<0.000000e+00> : vector<16x128xf32>
    %609 = tpu.matmul %602, %364, %cst_218 {dimension_numbers = #tpu.dot_dimension_numbers<[1], [0], [0], [1], [0, 0, 1, 1], [], []>} : vector<16x32xf32>, vector<32x128xf32>, vector<16x128xf32> -> vector<16x128xf32>
    %610 = arith.addf %608, %609 : vector<16x128xf32>
    %611 = vector.extract_strided_slice %607 {offsets = [0, 0], sizes = [16, 96], strides = [1, 1]} : vector<16x128xf32> to vector<16x96xf32>
    %612 = arith.negf %611 : vector<16x96xf32>
    %613 = math.exp %612 : vector<16x96xf32>
    %cst_219 = arith.constant 1.000000e+00 : f32
    %614 = vector.broadcast %cst_219 : f32 to vector<16x96xf32>
    %615 = arith.addf %614, %613 : vector<16x96xf32>
    %616 = arith.divf %614, %615 : vector<16x96xf32>
    %617 = vector.extract_strided_slice %607 {offsets = [0, 96], sizes = [16, 32], strides = [1, 1]} : vector<16x128xf32> to vector<16x32xf32>
    %618 = math.tanh %617 : vector<16x32xf32>
    %619 = vector.extract_strided_slice %616 {offsets = [0, 0], sizes = [16, 32], strides = [1, 1]} : vector<16x96xf32> to vector<16x32xf32>
    %620 = vector.extract_strided_slice %616 {offsets = [0, 32], sizes = [16, 32], strides = [1, 1]} : vector<16x96xf32> to vector<16x32xf32>
    %621 = vector.extract_strided_slice %616 {offsets = [0, 64], sizes = [16, 32], strides = [1, 1]} : vector<16x96xf32> to vector<16x32xf32>
    %622 = arith.mulf %620, %584 : vector<16x32xf32>
    %623 = arith.mulf %619, %618 : vector<16x32xf32>
    %624 = arith.addf %622, %623 : vector<16x32xf32>
    %625 = math.tanh %624 : vector<16x32xf32>
    %626 = arith.mulf %621, %625 : vector<16x32xf32>
    %627 = vector.extract_strided_slice %610 {offsets = [0, 0], sizes = [16, 96], strides = [1, 1]} : vector<16x128xf32> to vector<16x96xf32>
    %628 = arith.negf %627 : vector<16x96xf32>
    %629 = math.exp %628 : vector<16x96xf32>
    %cst_220 = arith.constant 1.000000e+00 : f32
    %630 = vector.broadcast %cst_220 : f32 to vector<16x96xf32>
    %631 = arith.addf %630, %629 : vector<16x96xf32>
    %632 = arith.divf %630, %631 : vector<16x96xf32>
    %633 = vector.extract_strided_slice %610 {offsets = [0, 96], sizes = [16, 32], strides = [1, 1]} : vector<16x128xf32> to vector<16x32xf32>
    %634 = math.tanh %633 : vector<16x32xf32>
    %635 = vector.extract_strided_slice %632 {offsets = [0, 0], sizes = [16, 32], strides = [1, 1]} : vector<16x96xf32> to vector<16x32xf32>
    %636 = vector.extract_strided_slice %632 {offsets = [0, 32], sizes = [16, 32], strides = [1, 1]} : vector<16x96xf32> to vector<16x32xf32>
    %637 = vector.extract_strided_slice %632 {offsets = [0, 64], sizes = [16, 32], strides = [1, 1]} : vector<16x96xf32> to vector<16x32xf32>
    %638 = arith.mulf %636, %600 : vector<16x32xf32>
    %639 = arith.mulf %635, %634 : vector<16x32xf32>
    %640 = arith.addf %638, %639 : vector<16x32xf32>
    %641 = math.tanh %640 : vector<16x32xf32>
    %642 = arith.mulf %637, %641 : vector<16x32xf32>
    %c96_221 = arith.constant 96 : index
    %c0_222 = arith.constant 0 : index
    %643 = vector.load %arg27[%c96_221, %c0_222] : memref<128x32xf32, #tpu.memory_space<vmem>>, vector<16x32xf32>
    tpu.vector_store %arg27[%c96_221, %c0_222], %626 {strides = array<i32>} : memref<128x32xf32, #tpu.memory_space<vmem>>, vector<16x32xf32>,
    %c16_223 = arith.constant 16 : index
    %c0_224 = arith.constant 0 : index
    %644 = vector.load %arg28[%c16_223, %c0_224] : memref<128x32xf32, #tpu.memory_space<vmem>>, vector<16x32xf32>
    tpu.vector_store %arg28[%c16_223, %c0_224], %642 {strides = array<i32>} : memref<128x32xf32, #tpu.memory_space<vmem>>, vector<16x32xf32>,
    %c112_225 = arith.constant 112 : index
    %c0_226 = arith.constant 0 : index
    %645 = vector.load %arg25[%c112_225, %c0_226] : memref<128x128xf32, #tpu.memory_space<vmem>>, vector<16x128xf32>
    %cst_227 = arith.constant dense<0.000000e+00> : vector<16x128xf32>
    %646 = tpu.matmul %626, %363, %cst_227 {dimension_numbers = #tpu.dot_dimension_numbers<[1], [0], [0], [1], [0, 0, 1, 1], [], []>} : vector<16x32xf32>, vector<32x128xf32>, vector<16x128xf32> -> vector<16x128xf32>
    %647 = arith.addf %645, %646 : vector<16x128xf32>
    %c0_228 = arith.constant 0 : index
    %c0_229 = arith.constant 0 : index
    %648 = vector.load %arg26[%c0_228, %c0_229] : memref<128x128xf32, #tpu.memory_space<vmem>>, vector<16x128xf32>
    %cst_230 = arith.constant dense<0.000000e+00> : vector<16x128xf32>
    %649 = tpu.matmul %642, %364, %cst_230 {dimension_numbers = #tpu.dot_dimension_numbers<[1], [0], [0], [1], [0, 0, 1, 1], [], []>} : vector<16x32xf32>, vector<32x128xf32>, vector<16x128xf32> -> vector<16x128xf32>
    %650 = arith.addf %648, %649 : vector<16x128xf32>
    %651 = vector.extract_strided_slice %647 {offsets = [0, 0], sizes = [16, 96], strides = [1, 1]} : vector<16x128xf32> to vector<16x96xf32>
    %652 = arith.negf %651 : vector<16x96xf32>
    %653 = math.exp %652 : vector<16x96xf32>
    %cst_231 = arith.constant 1.000000e+00 : f32
    %654 = vector.broadcast %cst_231 : f32 to vector<16x96xf32>
    %655 = arith.addf %654, %653 : vector<16x96xf32>
    %656 = arith.divf %654, %655 : vector<16x96xf32>
    %657 = vector.extract_strided_slice %647 {offsets = [0, 96], sizes = [16, 32], strides = [1, 1]} : vector<16x128xf32> to vector<16x32xf32>
    %658 = math.tanh %657 : vector<16x32xf32>
    %659 = vector.extract_strided_slice %656 {offsets = [0, 0], sizes = [16, 32], strides = [1, 1]} : vector<16x96xf32> to vector<16x32xf32>
    %660 = vector.extract_strided_slice %656 {offsets = [0, 32], sizes = [16, 32], strides = [1, 1]} : vector<16x96xf32> to vector<16x32xf32>
    %661 = vector.extract_strided_slice %656 {offsets = [0, 64], sizes = [16, 32], strides = [1, 1]} : vector<16x96xf32> to vector<16x32xf32>
    %662 = arith.mulf %660, %624 : vector<16x32xf32>
    %663 = arith.mulf %659, %658 : vector<16x32xf32>
    %664 = arith.addf %662, %663 : vector<16x32xf32>
    %665 = math.tanh %664 : vector<16x32xf32>
    %666 = arith.mulf %661, %665 : vector<16x32xf32>
    %667 = vector.extract_strided_slice %650 {offsets = [0, 0], sizes = [16, 96], strides = [1, 1]} : vector<16x128xf32> to vector<16x96xf32>
    %668 = arith.negf %667 : vector<16x96xf32>
    %669 = math.exp %668 : vector<16x96xf32>
    %cst_232 = arith.constant 1.000000e+00 : f32
    %670 = vector.broadcast %cst_232 : f32 to vector<16x96xf32>
    %671 = arith.addf %670, %669 : vector<16x96xf32>
    %672 = arith.divf %670, %671 : vector<16x96xf32>
    %673 = vector.extract_strided_slice %650 {offsets = [0, 96], sizes = [16, 32], strides = [1, 1]} : vector<16x128xf32> to vector<16x32xf32>
    %674 = math.tanh %673 : vector<16x32xf32>
    %675 = vector.extract_strided_slice %672 {offsets = [0, 0], sizes = [16, 32], strides = [1, 1]} : vector<16x96xf32> to vector<16x32xf32>
    %676 = vector.extract_strided_slice %672 {offsets = [0, 32], sizes = [16, 32], strides = [1, 1]} : vector<16x96xf32> to vector<16x32xf32>
    %677 = vector.extract_strided_slice %672 {offsets = [0, 64], sizes = [16, 32], strides = [1, 1]} : vector<16x96xf32> to vector<16x32xf32>
    %678 = arith.mulf %676, %640 : vector<16x32xf32>
    %679 = arith.mulf %675, %674 : vector<16x32xf32>
    %680 = arith.addf %678, %679 : vector<16x32xf32>
    %681 = math.tanh %680 : vector<16x32xf32>
    %682 = arith.mulf %677, %681 : vector<16x32xf32>
    %c112_233 = arith.constant 112 : index
    %c0_234 = arith.constant 0 : index
    %683 = vector.load %arg27[%c112_233, %c0_234] : memref<128x32xf32, #tpu.memory_space<vmem>>, vector<16x32xf32>
    tpu.vector_store %arg27[%c112_233, %c0_234], %666 {strides = array<i32>} : memref<128x32xf32, #tpu.memory_space<vmem>>, vector<16x32xf32>,
    %c0_235 = arith.constant 0 : index
    %c0_236 = arith.constant 0 : index
    %684 = vector.load %arg28[%c0_235, %c0_236] : memref<128x32xf32, #tpu.memory_space<vmem>>, vector<16x32xf32>
    tpu.vector_store %arg28[%c0_235, %c0_236], %682 {strides = array<i32>} : memref<128x32xf32, #tpu.memory_space<vmem>>, vector<16x32xf32>,
    %c0_237 = arith.constant 0 : index
    %c0_238 = arith.constant 0 : index
    %685 = vector.load %arg14[%c0_237, %c0_238] : memref<64x128xf32, #tpu.memory_space<vmem>>, vector<64x128xf32>
    %c0_239 = arith.constant 0 : index
    %c0_240 = arith.constant 0 : index
    %686 = vector.load %arg17[%c0_239, %c0_240] : memref<64x128xf32, #tpu.memory_space<vmem>>, vector<64x128xf32>
    %c0_241 = arith.constant 0 : index
    %c0_242 = arith.constant 0 : index
    %687 = vector.load %arg27[%c0_241, %c0_242] : memref<128x32xf32, #tpu.memory_space<vmem>>, vector<128x32xf32>
    %c0_243 = arith.constant 0 : index
    %c0_244 = arith.constant 0 : index
    %688 = vector.load %arg28[%c0_243, %c0_244] : memref<128x32xf32, #tpu.memory_space<vmem>>, vector<128x32xf32>
    %689 = vector.extract_strided_slice %685 {offsets = [0, 0], sizes = [32, 128], strides = [1, 1]} : vector<64x128xf32> to vector<32x128xf32>
    %cst_245 = arith.constant dense<0.000000e+00> : vector<128x128xf32>
    %690 = tpu.matmul %687, %689, %cst_245 {dimension_numbers = #tpu.dot_dimension_numbers<[1], [0], [0], [1], [0, 0, 1, 1], [], []>} : vector<128x32xf32>, vector<32x128xf32>, vector<128x128xf32> -> vector<128x128xf32>
    %691 = vector.extract_strided_slice %685 {offsets = [32, 0], sizes = [32, 128], strides = [1, 1]} : vector<64x128xf32> to vector<32x128xf32>
    %cst_246 = arith.constant dense<0.000000e+00> : vector<128x128xf32>
    %692 = tpu.matmul %688, %691, %cst_246 {dimension_numbers = #tpu.dot_dimension_numbers<[1], [0], [0], [1], [0, 0, 1, 1], [], []>} : vector<128x32xf32>, vector<32x128xf32>, vector<128x128xf32> -> vector<128x128xf32>
    %693 = arith.addf %690, %692 : vector<128x128xf32>
    %c0_247 = arith.constant 0 : index
    %c0_248 = arith.constant 0 : index
    %694 = vector.load %arg16[%c0_247, %c0_248] : memref<1x128xf32, #tpu.memory_space<vmem>>, vector<1x128xf32>
    %695 = vector.broadcast %694 : vector<1x128xf32> to vector<128x128xf32>
    %696 = arith.addf %693, %695 : vector<128x128xf32>
    %c0_249 = arith.constant 0 : index
    %c0_250 = arith.constant 0 : index
    %697 = vector.load %arg25[%c0_249, %c0_250] : memref<128x128xf32, #tpu.memory_space<vmem>>, vector<128x128xf32>
    tpu.vector_store %arg25[%c0_249, %c0_250], %696 {strides = array<i32>} : memref<128x128xf32, #tpu.memory_space<vmem>>, vector<128x128xf32>,
    %698 = vector.extract_strided_slice %687 {offsets = [112, 0], sizes = [16, 32], strides = [1, 1]} : vector<128x32xf32> to vector<16x32xf32>
    %699 = vector.extract_strided_slice %688 {offsets = [112, 0], sizes = [16, 32], strides = [1, 1]} : vector<128x32xf32> to vector<16x32xf32>
    %700 = vector.extract_strided_slice %686 {offsets = [0, 0], sizes = [32, 128], strides = [1, 1]} : vector<64x128xf32> to vector<32x128xf32>
    %cst_251 = arith.constant dense<0.000000e+00> : vector<16x128xf32>
    %701 = tpu.matmul %698, %700, %cst_251 {dimension_numbers = #tpu.dot_dimension_numbers<[1], [0], [0], [1], [0, 0, 1, 1], [], []>} : vector<16x32xf32>, vector<32x128xf32>, vector<16x128xf32> -> vector<16x128xf32>
    %702 = vector.extract_strided_slice %686 {offsets = [32, 0], sizes = [32, 128], strides = [1, 1]} : vector<64x128xf32> to vector<32x128xf32>
    %cst_252 = arith.constant dense<0.000000e+00> : vector<16x128xf32>
    %703 = tpu.matmul %699, %702, %cst_252 {dimension_numbers = #tpu.dot_dimension_numbers<[1], [0], [0], [1], [0, 0, 1, 1], [], []>} : vector<16x32xf32>, vector<32x128xf32>, vector<16x128xf32> -> vector<16x128xf32>
    %704 = arith.addf %701, %703 : vector<16x128xf32>
    %c0_253 = arith.constant 0 : index
    %c0_254 = arith.constant 0 : index
    %705 = vector.load %arg19[%c0_253, %c0_254] : memref<1x128xf32, #tpu.memory_space<vmem>>, vector<1x128xf32>
    %706 = vector.broadcast %705 : vector<1x128xf32> to vector<16x128xf32>
    %707 = arith.addf %704, %706 : vector<16x128xf32>
    %708 = vector.extract_strided_slice %707 {offsets = [0, 0], sizes = [16, 96], strides = [1, 1]} : vector<16x128xf32> to vector<16x96xf32>
    %709 = arith.negf %708 : vector<16x96xf32>
    %710 = math.exp %709 : vector<16x96xf32>
    %cst_255 = arith.constant 1.000000e+00 : f32
    %711 = vector.broadcast %cst_255 : f32 to vector<16x96xf32>
    %712 = arith.addf %711, %710 : vector<16x96xf32>
    %713 = arith.divf %711, %712 : vector<16x96xf32>
    %714 = vector.extract_strided_slice %707 {offsets = [0, 96], sizes = [16, 32], strides = [1, 1]} : vector<16x128xf32> to vector<16x32xf32>
    %715 = math.tanh %714 : vector<16x32xf32>
    %716 = vector.extract_strided_slice %713 {offsets = [0, 0], sizes = [16, 32], strides = [1, 1]} : vector<16x96xf32> to vector<16x32xf32>
    %717 = vector.extract_strided_slice %713 {offsets = [0, 32], sizes = [16, 32], strides = [1, 1]} : vector<16x96xf32> to vector<16x32xf32>
    %718 = vector.extract_strided_slice %713 {offsets = [0, 64], sizes = [16, 32], strides = [1, 1]} : vector<16x96xf32> to vector<16x32xf32>
    %719 = arith.mulf %717, %4 : vector<16x32xf32>
    %720 = arith.mulf %716, %715 : vector<16x32xf32>
    %721 = arith.addf %719, %720 : vector<16x32xf32>
    %722 = math.tanh %721 : vector<16x32xf32>
    %723 = arith.mulf %718, %722 : vector<16x32xf32>
    %c0_256 = arith.constant 0 : index
    %c0_257 = arith.constant 0 : index
    %724 = vector.load %arg15[%c0_256, %c0_257] : memref<32x128xf32, #tpu.memory_space<vmem>>, vector<32x128xf32>
    %c0_258 = arith.constant 0 : index
    %c0_259 = arith.constant 0 : index
    %725 = vector.load %arg25[%c0_258, %c0_259] : memref<128x128xf32, #tpu.memory_space<vmem>>, vector<16x128xf32>
    %cst_260 = arith.constant dense<0.000000e+00> : vector<16x128xf32>
    %726 = tpu.matmul %4, %724, %cst_260 {dimension_numbers = #tpu.dot_dimension_numbers<[1], [0], [0], [1], [0, 0, 1, 1], [], []>} : vector<16x32xf32>, vector<32x128xf32>, vector<16x128xf32> -> vector<16x128xf32>
    %727 = arith.addf %725, %726 : vector<16x128xf32>
    %728 = vector.extract_strided_slice %727 {offsets = [0, 0], sizes = [16, 96], strides = [1, 1]} : vector<16x128xf32> to vector<16x96xf32>
    %729 = arith.negf %728 : vector<16x96xf32>
    %730 = math.exp %729 : vector<16x96xf32>
    %cst_261 = arith.constant 1.000000e+00 : f32
    %731 = vector.broadcast %cst_261 : f32 to vector<16x96xf32>
    %732 = arith.addf %731, %730 : vector<16x96xf32>
    %733 = arith.divf %731, %732 : vector<16x96xf32>
    %734 = vector.extract_strided_slice %727 {offsets = [0, 96], sizes = [16, 32], strides = [1, 1]} : vector<16x128xf32> to vector<16x32xf32>
    %735 = math.tanh %734 : vector<16x32xf32>
    %736 = vector.extract_strided_slice %733 {offsets = [0, 0], sizes = [16, 32], strides = [1, 1]} : vector<16x96xf32> to vector<16x32xf32>
    %737 = vector.extract_strided_slice %733 {offsets = [0, 32], sizes = [16, 32], strides = [1, 1]} : vector<16x96xf32> to vector<16x32xf32>
    %738 = vector.extract_strided_slice %733 {offsets = [0, 64], sizes = [16, 32], strides = [1, 1]} : vector<16x96xf32> to vector<16x32xf32>
    %739 = arith.mulf %737, %4 : vector<16x32xf32>
    %740 = arith.mulf %736, %735 : vector<16x32xf32>
    %741 = arith.addf %739, %740 : vector<16x32xf32>
    %742 = math.tanh %741 : vector<16x32xf32>
    %743 = arith.mulf %738, %742 : vector<16x32xf32>
    %c16_262 = arith.constant 16 : index
    %c0_263 = arith.constant 0 : index
    %744 = vector.load %arg25[%c16_262, %c0_263] : memref<128x128xf32, #tpu.memory_space<vmem>>, vector<16x128xf32>
    %cst_264 = arith.constant dense<0.000000e+00> : vector<16x128xf32>
    %745 = tpu.matmul %743, %724, %cst_264 {dimension_numbers = #tpu.dot_dimension_numbers<[1], [0], [0], [1], [0, 0, 1, 1], [], []>} : vector<16x32xf32>, vector<32x128xf32>, vector<16x128xf32> -> vector<16x128xf32>
    %746 = arith.addf %744, %745 : vector<16x128xf32>
    %747 = vector.extract_strided_slice %746 {offsets = [0, 0], sizes = [16, 96], strides = [1, 1]} : vector<16x128xf32> to vector<16x96xf32>
    %748 = arith.negf %747 : vector<16x96xf32>
    %749 = math.exp %748 : vector<16x96xf32>
    %cst_265 = arith.constant 1.000000e+00 : f32
    %750 = vector.broadcast %cst_265 : f32 to vector<16x96xf32>
    %751 = arith.addf %750, %749 : vector<16x96xf32>
    %752 = arith.divf %750, %751 : vector<16x96xf32>
    %753 = vector.extract_strided_slice %746 {offsets = [0, 96], sizes = [16, 32], strides = [1, 1]} : vector<16x128xf32> to vector<16x32xf32>
    %754 = math.tanh %753 : vector<16x32xf32>
    %755 = vector.extract_strided_slice %752 {offsets = [0, 0], sizes = [16, 32], strides = [1, 1]} : vector<16x96xf32> to vector<16x32xf32>
    %756 = vector.extract_strided_slice %752 {offsets = [0, 32], sizes = [16, 32], strides = [1, 1]} : vector<16x96xf32> to vector<16x32xf32>
    %757 = vector.extract_strided_slice %752 {offsets = [0, 64], sizes = [16, 32], strides = [1, 1]} : vector<16x96xf32> to vector<16x32xf32>
    %758 = arith.mulf %756, %741 : vector<16x32xf32>
    %759 = arith.mulf %755, %754 : vector<16x32xf32>
    %760 = arith.addf %758, %759 : vector<16x32xf32>
    %761 = math.tanh %760 : vector<16x32xf32>
    %762 = arith.mulf %757, %761 : vector<16x32xf32>
    %c32_266 = arith.constant 32 : index
    %c0_267 = arith.constant 0 : index
    %763 = vector.load %arg25[%c32_266, %c0_267] : memref<128x128xf32, #tpu.memory_space<vmem>>, vector<16x128xf32>
    %cst_268 = arith.constant dense<0.000000e+00> : vector<16x128xf32>
    %764 = tpu.matmul %762, %724, %cst_268 {dimension_numbers = #tpu.dot_dimension_numbers<[1], [0], [0], [1], [0, 0, 1, 1], [], []>} : vector<16x32xf32>, vector<32x128xf32>, vector<16x128xf32> -> vector<16x128xf32>
    %765 = arith.addf %763, %764 : vector<16x128xf32>
    %766 = vector.extract_strided_slice %765 {offsets = [0, 0], sizes = [16, 96], strides = [1, 1]} : vector<16x128xf32> to vector<16x96xf32>
    %767 = arith.negf %766 : vector<16x96xf32>
    %768 = math.exp %767 : vector<16x96xf32>
    %cst_269 = arith.constant 1.000000e+00 : f32
    %769 = vector.broadcast %cst_269 : f32 to vector<16x96xf32>
    %770 = arith.addf %769, %768 : vector<16x96xf32>
    %771 = arith.divf %769, %770 : vector<16x96xf32>
    %772 = vector.extract_strided_slice %765 {offsets = [0, 96], sizes = [16, 32], strides = [1, 1]} : vector<16x128xf32> to vector<16x32xf32>
    %773 = math.tanh %772 : vector<16x32xf32>
    %774 = vector.extract_strided_slice %771 {offsets = [0, 0], sizes = [16, 32], strides = [1, 1]} : vector<16x96xf32> to vector<16x32xf32>
    %775 = vector.extract_strided_slice %771 {offsets = [0, 32], sizes = [16, 32], strides = [1, 1]} : vector<16x96xf32> to vector<16x32xf32>
    %776 = vector.extract_strided_slice %771 {offsets = [0, 64], sizes = [16, 32], strides = [1, 1]} : vector<16x96xf32> to vector<16x32xf32>
    %777 = arith.mulf %775, %760 : vector<16x32xf32>
    %778 = arith.mulf %774, %773 : vector<16x32xf32>
    %779 = arith.addf %777, %778 : vector<16x32xf32>
    %780 = math.tanh %779 : vector<16x32xf32>
    %781 = arith.mulf %776, %780 : vector<16x32xf32>
    %c48_270 = arith.constant 48 : index
    %c0_271 = arith.constant 0 : index
    %782 = vector.load %arg25[%c48_270, %c0_271] : memref<128x128xf32, #tpu.memory_space<vmem>>, vector<16x128xf32>
    %cst_272 = arith.constant dense<0.000000e+00> : vector<16x128xf32>
    %783 = tpu.matmul %781, %724, %cst_272 {dimension_numbers = #tpu.dot_dimension_numbers<[1], [0], [0], [1], [0, 0, 1, 1], [], []>} : vector<16x32xf32>, vector<32x128xf32>, vector<16x128xf32> -> vector<16x128xf32>
    %784 = arith.addf %782, %783 : vector<16x128xf32>
    %785 = vector.extract_strided_slice %784 {offsets = [0, 0], sizes = [16, 96], strides = [1, 1]} : vector<16x128xf32> to vector<16x96xf32>
    %786 = arith.negf %785 : vector<16x96xf32>
    %787 = math.exp %786 : vector<16x96xf32>
    %cst_273 = arith.constant 1.000000e+00 : f32
    %788 = vector.broadcast %cst_273 : f32 to vector<16x96xf32>
    %789 = arith.addf %788, %787 : vector<16x96xf32>
    %790 = arith.divf %788, %789 : vector<16x96xf32>
    %791 = vector.extract_strided_slice %784 {offsets = [0, 96], sizes = [16, 32], strides = [1, 1]} : vector<16x128xf32> to vector<16x32xf32>
    %792 = math.tanh %791 : vector<16x32xf32>
    %793 = vector.extract_strided_slice %790 {offsets = [0, 0], sizes = [16, 32], strides = [1, 1]} : vector<16x96xf32> to vector<16x32xf32>
    %794 = vector.extract_strided_slice %790 {offsets = [0, 32], sizes = [16, 32], strides = [1, 1]} : vector<16x96xf32> to vector<16x32xf32>
    %795 = vector.extract_strided_slice %790 {offsets = [0, 64], sizes = [16, 32], strides = [1, 1]} : vector<16x96xf32> to vector<16x32xf32>
    %796 = arith.mulf %794, %779 : vector<16x32xf32>
    %797 = arith.mulf %793, %792 : vector<16x32xf32>
    %798 = arith.addf %796, %797 : vector<16x32xf32>
    %799 = math.tanh %798 : vector<16x32xf32>
    %800 = arith.mulf %795, %799 : vector<16x32xf32>
    %c64_274 = arith.constant 64 : index
    %c0_275 = arith.constant 0 : index
    %801 = vector.load %arg25[%c64_274, %c0_275] : memref<128x128xf32, #tpu.memory_space<vmem>>, vector<16x128xf32>
    %cst_276 = arith.constant dense<0.000000e+00> : vector<16x128xf32>
    %802 = tpu.matmul %800, %724, %cst_276 {dimension_numbers = #tpu.dot_dimension_numbers<[1], [0], [0], [1], [0, 0, 1, 1], [], []>} : vector<16x32xf32>, vector<32x128xf32>, vector<16x128xf32> -> vector<16x128xf32>
    %803 = arith.addf %801, %802 : vector<16x128xf32>
    %804 = vector.extract_strided_slice %803 {offsets = [0, 0], sizes = [16, 96], strides = [1, 1]} : vector<16x128xf32> to vector<16x96xf32>
    %805 = arith.negf %804 : vector<16x96xf32>
    %806 = math.exp %805 : vector<16x96xf32>
    %cst_277 = arith.constant 1.000000e+00 : f32
    %807 = vector.broadcast %cst_277 : f32 to vector<16x96xf32>
    %808 = arith.addf %807, %806 : vector<16x96xf32>
    %809 = arith.divf %807, %808 : vector<16x96xf32>
    %810 = vector.extract_strided_slice %803 {offsets = [0, 96], sizes = [16, 32], strides = [1, 1]} : vector<16x128xf32> to vector<16x32xf32>
    %811 = math.tanh %810 : vector<16x32xf32>
    %812 = vector.extract_strided_slice %809 {offsets = [0, 0], sizes = [16, 32], strides = [1, 1]} : vector<16x96xf32> to vector<16x32xf32>
    %813 = vector.extract_strided_slice %809 {offsets = [0, 32], sizes = [16, 32], strides = [1, 1]} : vector<16x96xf32> to vector<16x32xf32>
    %814 = vector.extract_strided_slice %809 {offsets = [0, 64], sizes = [16, 32], strides = [1, 1]} : vector<16x96xf32> to vector<16x32xf32>
    %815 = arith.mulf %813, %798 : vector<16x32xf32>
    %816 = arith.mulf %812, %811 : vector<16x32xf32>
    %817 = arith.addf %815, %816 : vector<16x32xf32>
    %818 = math.tanh %817 : vector<16x32xf32>
    %819 = arith.mulf %814, %818 : vector<16x32xf32>
    %c80_278 = arith.constant 80 : index
    %c0_279 = arith.constant 0 : index
    %820 = vector.load %arg25[%c80_278, %c0_279] : memref<128x128xf32, #tpu.memory_space<vmem>>, vector<16x128xf32>
    %cst_280 = arith.constant dense<0.000000e+00> : vector<16x128xf32>
    %821 = tpu.matmul %819, %724, %cst_280 {dimension_numbers = #tpu.dot_dimension_numbers<[1], [0], [0], [1], [0, 0, 1, 1], [], []>} : vector<16x32xf32>, vector<32x128xf32>, vector<16x128xf32> -> vector<16x128xf32>
    %822 = arith.addf %820, %821 : vector<16x128xf32>
    %823 = vector.extract_strided_slice %822 {offsets = [0, 0], sizes = [16, 96], strides = [1, 1]} : vector<16x128xf32> to vector<16x96xf32>
    %824 = arith.negf %823 : vector<16x96xf32>
    %825 = math.exp %824 : vector<16x96xf32>
    %cst_281 = arith.constant 1.000000e+00 : f32
    %826 = vector.broadcast %cst_281 : f32 to vector<16x96xf32>
    %827 = arith.addf %826, %825 : vector<16x96xf32>
    %828 = arith.divf %826, %827 : vector<16x96xf32>
    %829 = vector.extract_strided_slice %822 {offsets = [0, 96], sizes = [16, 32], strides = [1, 1]} : vector<16x128xf32> to vector<16x32xf32>
    %830 = math.tanh %829 : vector<16x32xf32>
    %831 = vector.extract_strided_slice %828 {offsets = [0, 0], sizes = [16, 32], strides = [1, 1]} : vector<16x96xf32> to vector<16x32xf32>
    %832 = vector.extract_strided_slice %828 {offsets = [0, 32], sizes = [16, 32], strides = [1, 1]} : vector<16x96xf32> to vector<16x32xf32>
    %833 = vector.extract_strided_slice %828 {offsets = [0, 64], sizes = [16, 32], strides = [1, 1]} : vector<16x96xf32> to vector<16x32xf32>
    %834 = arith.mulf %832, %817 : vector<16x32xf32>
    %835 = arith.mulf %831, %830 : vector<16x32xf32>
    %836 = arith.addf %834, %835 : vector<16x32xf32>
    %837 = math.tanh %836 : vector<16x32xf32>
    %838 = arith.mulf %833, %837 : vector<16x32xf32>
    %c96_282 = arith.constant 96 : index
    %c0_283 = arith.constant 0 : index
    %839 = vector.load %arg25[%c96_282, %c0_283] : memref<128x128xf32, #tpu.memory_space<vmem>>, vector<16x128xf32>
    %cst_284 = arith.constant dense<0.000000e+00> : vector<16x128xf32>
    %840 = tpu.matmul %838, %724, %cst_284 {dimension_numbers = #tpu.dot_dimension_numbers<[1], [0], [0], [1], [0, 0, 1, 1], [], []>} : vector<16x32xf32>, vector<32x128xf32>, vector<16x128xf32> -> vector<16x128xf32>
    %841 = arith.addf %839, %840 : vector<16x128xf32>
    %842 = vector.extract_strided_slice %841 {offsets = [0, 0], sizes = [16, 96], strides = [1, 1]} : vector<16x128xf32> to vector<16x96xf32>
    %843 = arith.negf %842 : vector<16x96xf32>
    %844 = math.exp %843 : vector<16x96xf32>
    %cst_285 = arith.constant 1.000000e+00 : f32
    %845 = vector.broadcast %cst_285 : f32 to vector<16x96xf32>
    %846 = arith.addf %845, %844 : vector<16x96xf32>
    %847 = arith.divf %845, %846 : vector<16x96xf32>
    %848 = vector.extract_strided_slice %841 {offsets = [0, 96], sizes = [16, 32], strides = [1, 1]} : vector<16x128xf32> to vector<16x32xf32>
    %849 = math.tanh %848 : vector<16x32xf32>
    %850 = vector.extract_strided_slice %847 {offsets = [0, 0], sizes = [16, 32], strides = [1, 1]} : vector<16x96xf32> to vector<16x32xf32>
    %851 = vector.extract_strided_slice %847 {offsets = [0, 32], sizes = [16, 32], strides = [1, 1]} : vector<16x96xf32> to vector<16x32xf32>
    %852 = vector.extract_strided_slice %847 {offsets = [0, 64], sizes = [16, 32], strides = [1, 1]} : vector<16x96xf32> to vector<16x32xf32>
    %853 = arith.mulf %851, %836 : vector<16x32xf32>
    %854 = arith.mulf %850, %849 : vector<16x32xf32>
    %855 = arith.addf %853, %854 : vector<16x32xf32>
    %856 = math.tanh %855 : vector<16x32xf32>
    %857 = arith.mulf %852, %856 : vector<16x32xf32>
    %c112_286 = arith.constant 112 : index
    %c0_287 = arith.constant 0 : index
    %858 = vector.load %arg25[%c112_286, %c0_287] : memref<128x128xf32, #tpu.memory_space<vmem>>, vector<16x128xf32>
    %cst_288 = arith.constant dense<0.000000e+00> : vector<16x128xf32>
    %859 = tpu.matmul %857, %724, %cst_288 {dimension_numbers = #tpu.dot_dimension_numbers<[1], [0], [0], [1], [0, 0, 1, 1], [], []>} : vector<16x32xf32>, vector<32x128xf32>, vector<16x128xf32> -> vector<16x128xf32>
    %860 = arith.addf %858, %859 : vector<16x128xf32>
    %861 = vector.extract_strided_slice %860 {offsets = [0, 0], sizes = [16, 96], strides = [1, 1]} : vector<16x128xf32> to vector<16x96xf32>
    %862 = arith.negf %861 : vector<16x96xf32>
    %863 = math.exp %862 : vector<16x96xf32>
    %cst_289 = arith.constant 1.000000e+00 : f32
    %864 = vector.broadcast %cst_289 : f32 to vector<16x96xf32>
    %865 = arith.addf %864, %863 : vector<16x96xf32>
    %866 = arith.divf %864, %865 : vector<16x96xf32>
    %867 = vector.extract_strided_slice %860 {offsets = [0, 96], sizes = [16, 32], strides = [1, 1]} : vector<16x128xf32> to vector<16x32xf32>
    %868 = math.tanh %867 : vector<16x32xf32>
    %869 = vector.extract_strided_slice %866 {offsets = [0, 0], sizes = [16, 32], strides = [1, 1]} : vector<16x96xf32> to vector<16x32xf32>
    %870 = vector.extract_strided_slice %866 {offsets = [0, 32], sizes = [16, 32], strides = [1, 1]} : vector<16x96xf32> to vector<16x32xf32>
    %871 = vector.extract_strided_slice %866 {offsets = [0, 64], sizes = [16, 32], strides = [1, 1]} : vector<16x96xf32> to vector<16x32xf32>
    %872 = arith.mulf %870, %855 : vector<16x32xf32>
    %873 = arith.mulf %869, %868 : vector<16x32xf32>
    %874 = arith.addf %872, %873 : vector<16x32xf32>
    %875 = math.tanh %874 : vector<16x32xf32>
    %876 = arith.mulf %871, %875 : vector<16x32xf32>
    %877 = vector.extract_strided_slice %876 {offsets = [0, 0], sizes = [8, 32], strides = [1, 1]} : vector<16x32xf32> to vector<8x32xf32>
    %878 = vector.extract_strided_slice %876 {offsets = [8, 0], sizes = [8, 32], strides = [1, 1]} : vector<16x32xf32> to vector<8x32xf32>
    %879 = vector.extract_strided_slice %723 {offsets = [0, 0], sizes = [8, 32], strides = [1, 1]} : vector<16x32xf32> to vector<8x32xf32>
    %880 = vector.extract_strided_slice %723 {offsets = [8, 0], sizes = [8, 32], strides = [1, 1]} : vector<16x32xf32> to vector<8x32xf32>
    %881 = arith.subf %877, %878 : vector<8x32xf32>
    %882 = math.absf %881 : vector<8x32xf32>
    %883 = arith.subf %879, %880 : vector<8x32xf32>
    %884 = math.absf %883 : vector<8x32xf32>
    %885 = arith.mulf %877, %878 : vector<8x32xf32>
    %886 = arith.mulf %879, %880 : vector<8x32xf32>
    %887 = arith.addf %877, %878 : vector<8x32xf32>
    %cst_290 = arith.constant 5.000000e-01 : f32
    %888 = vector.broadcast %cst_290 : f32 to vector<8x32xf32>
    %889 = arith.mulf %887, %888 : vector<8x32xf32>
    %890 = arith.addf %879, %880 : vector<8x32xf32>
    %cst_291 = arith.constant 5.000000e-01 : f32
    %891 = vector.broadcast %cst_291 : f32 to vector<8x32xf32>
    %892 = arith.mulf %890, %891 : vector<8x32xf32>
    %893 = vector.extract_strided_slice %0 {offsets = [0, 0], sizes = [32, 150], strides = [1, 1]} : vector<320x150xf32> to vector<32x150xf32>
    %cst_292 = arith.constant dense<0.000000e+00> : vector<8x150xf32>
    %894 = tpu.matmul %877, %893, %cst_292 {dimension_numbers = #tpu.dot_dimension_numbers<[1], [0], [0], [1], [0, 0, 1, 1], [], []>} : vector<8x32xf32>, vector<32x150xf32>, vector<8x150xf32> -> vector<8x150xf32>
    %895 = vector.extract_strided_slice %0 {offsets = [32, 0], sizes = [32, 150], strides = [1, 1]} : vector<320x150xf32> to vector<32x150xf32>
    %cst_293 = arith.constant dense<0.000000e+00> : vector<8x150xf32>
    %896 = tpu.matmul %879, %895, %cst_293 {dimension_numbers = #tpu.dot_dimension_numbers<[1], [0], [0], [1], [0, 0, 1, 1], [], []>} : vector<8x32xf32>, vector<32x150xf32>, vector<8x150xf32> -> vector<8x150xf32>
    %897 = vector.extract_strided_slice %0 {offsets = [64, 0], sizes = [32, 150], strides = [1, 1]} : vector<320x150xf32> to vector<32x150xf32>
    %cst_294 = arith.constant dense<0.000000e+00> : vector<8x150xf32>
    %898 = tpu.matmul %882, %897, %cst_294 {dimension_numbers = #tpu.dot_dimension_numbers<[1], [0], [0], [1], [0, 0, 1, 1], [], []>} : vector<8x32xf32>, vector<32x150xf32>, vector<8x150xf32> -> vector<8x150xf32>
    %899 = vector.extract_strided_slice %0 {offsets = [96, 0], sizes = [32, 150], strides = [1, 1]} : vector<320x150xf32> to vector<32x150xf32>
    %cst_295 = arith.constant dense<0.000000e+00> : vector<8x150xf32>
    %900 = tpu.matmul %884, %899, %cst_295 {dimension_numbers = #tpu.dot_dimension_numbers<[1], [0], [0], [1], [0, 0, 1, 1], [], []>} : vector<8x32xf32>, vector<32x150xf32>, vector<8x150xf32> -> vector<8x150xf32>
    %901 = vector.extract_strided_slice %0 {offsets = [128, 0], sizes = [32, 150], strides = [1, 1]} : vector<320x150xf32> to vector<32x150xf32>
    %cst_296 = arith.constant dense<0.000000e+00> : vector<8x150xf32>
    %902 = tpu.matmul %878, %901, %cst_296 {dimension_numbers = #tpu.dot_dimension_numbers<[1], [0], [0], [1], [0, 0, 1, 1], [], []>} : vector<8x32xf32>, vector<32x150xf32>, vector<8x150xf32> -> vector<8x150xf32>
    %903 = vector.extract_strided_slice %0 {offsets = [160, 0], sizes = [32, 150], strides = [1, 1]} : vector<320x150xf32> to vector<32x150xf32>
    %cst_297 = arith.constant dense<0.000000e+00> : vector<8x150xf32>
    %904 = tpu.matmul %880, %903, %cst_297 {dimension_numbers = #tpu.dot_dimension_numbers<[1], [0], [0], [1], [0, 0, 1, 1], [], []>} : vector<8x32xf32>, vector<32x150xf32>, vector<8x150xf32> -> vector<8x150xf32>
    %905 = vector.extract_strided_slice %0 {offsets = [192, 0], sizes = [32, 150], strides = [1, 1]} : vector<320x150xf32> to vector<32x150xf32>
    %cst_298 = arith.constant dense<0.000000e+00> : vector<8x150xf32>
    %906 = tpu.matmul %885, %905, %cst_298 {dimension_numbers = #tpu.dot_dimension_numbers<[1], [0], [0], [1], [0, 0, 1, 1], [], []>} : vector<8x32xf32>, vector<32x150xf32>, vector<8x150xf32> -> vector<8x150xf32>
    %907 = vector.extract_strided_slice %0 {offsets = [224, 0], sizes = [32, 150], strides = [1, 1]} : vector<320x150xf32> to vector<32x150xf32>
    %cst_299 = arith.constant dense<0.000000e+00> : vector<8x150xf32>
    %908 = tpu.matmul %886, %907, %cst_299 {dimension_numbers = #tpu.dot_dimension_numbers<[1], [0], [0], [1], [0, 0, 1, 1], [], []>} : vector<8x32xf32>, vector<32x150xf32>, vector<8x150xf32> -> vector<8x150xf32>
    %909 = vector.extract_strided_slice %0 {offsets = [256, 0], sizes = [32, 150], strides = [1, 1]} : vector<320x150xf32> to vector<32x150xf32>
    %cst_300 = arith.constant dense<0.000000e+00> : vector<8x150xf32>
    %910 = tpu.matmul %889, %909, %cst_300 {dimension_numbers = #tpu.dot_dimension_numbers<[1], [0], [0], [1], [0, 0, 1, 1], [], []>} : vector<8x32xf32>, vector<32x150xf32>, vector<8x150xf32> -> vector<8x150xf32>
    %911 = vector.extract_strided_slice %0 {offsets = [288, 0], sizes = [32, 150], strides = [1, 1]} : vector<320x150xf32> to vector<32x150xf32>
    %cst_301 = arith.constant dense<0.000000e+00> : vector<8x150xf32>
    %912 = tpu.matmul %892, %911, %cst_301 {dimension_numbers = #tpu.dot_dimension_numbers<[1], [0], [0], [1], [0, 0, 1, 1], [], []>} : vector<8x32xf32>, vector<32x150xf32>, vector<8x150xf32> -> vector<8x150xf32>
    %913 = arith.addf %894, %896 : vector<8x150xf32>
    %914 = arith.addf %898, %900 : vector<8x150xf32>
    %915 = arith.addf %902, %904 : vector<8x150xf32>
    %916 = arith.addf %906, %908 : vector<8x150xf32>
    %917 = arith.addf %910, %912 : vector<8x150xf32>
    %918 = arith.addf %913, %914 : vector<8x150xf32>
    %919 = arith.addf %915, %916 : vector<8x150xf32>
    %920 = arith.addf %918, %919 : vector<8x150xf32>
    %921 = arith.addf %920, %917 : vector<8x150xf32>
    %922 = vector.broadcast %1 : vector<1x150xf32> to vector<8x150xf32>
    %923 = arith.addf %921, %922 : vector<8x150xf32>
    %cst_302 = arith.constant dense<0.000000e+00> : vector<8x2xf32>
    %924 = tpu.matmul %923, %2, %cst_302 {dimension_numbers = #tpu.dot_dimension_numbers<[1], [0], [0], [1], [0, 0, 1, 1], [], []>} : vector<8x150xf32>, vector<150x2xf32>, vector<8x2xf32> -> vector<8x2xf32>
    %925 = vector.broadcast %3 : vector<1x2xf32> to vector<8x2xf32>
    %926 = arith.addf %924, %925 : vector<8x2xf32>
    %c0_303 = arith.constant 0 : index
    %c0_304 = arith.constant 0 : index
    %c0_305 = arith.constant 0 : index
    %927 = vector.load %arg24[%c0_303, %c0_304, %c0_305] : memref<1x8x2xf32, #tpu.memory_space<vmem>>, vector<1x8x2xf32>
    %928 = vector.shape_cast %927 : vector<1x8x2xf32> to vector<8x2xf32>
    %929 = vector.shape_cast %926 : vector<8x2xf32> to vector<1x8x2xf32>
    tpu.vector_store %arg24[%c0_303, %c0_304, %c0_305], %929 {strides = array<i32>} : memref<1x8x2xf32, #tpu.memory_space<vmem>>, vector<1x8x2xf32>,
    return
  }
  func.func @transform_0(%arg0: i32) -> (i32, i32, i32) {
    %c0_i32 = arith.constant 0 : i32
    %c0_i32_0 = arith.constant 0 : i32
    %c0_i32_1 = arith.constant 0 : i32
    return %arg0, %c0_i32, %c0_i32_0 : i32, i32, i32
  }
  func.func @transform_1(%arg0: i32) -> (i32, i32) {
    %c0_i32 = arith.constant 0 : i32
    %c0_i32_0 = arith.constant 0 : i32
    %c0_i32_1 = arith.constant 0 : i32
    return %c0_i32, %c0_i32_0 : i32, i32
  }
  func.func @transform_2(%arg0: i32) -> (i32, i32) {
    %c0_i32 = arith.constant 0 : i32
    %c0_i32_0 = arith.constant 0 : i32
    %c0_i32_1 = arith.constant 0 : i32
    return %c0_i32, %c0_i32_0 : i32, i32
  }
  func.func @transform_3(%arg0: i32) -> (i32, i32) {
    %c0_i32 = arith.constant 0 : i32
    %c0_i32_0 = arith.constant 0 : i32
    %c0_i32_1 = arith.constant 0 : i32
    return %c0_i32, %c0_i32_0 : i32, i32
  }
  func.func @transform_4(%arg0: i32) -> (i32, i32) {
    %c0_i32 = arith.constant 0 : i32
    %c0_i32_0 = arith.constant 0 : i32
    %c0_i32_1 = arith.constant 0 : i32
    return %c0_i32, %c0_i32_0 : i32, i32
  }
  func.func @transform_5(%arg0: i32) -> (i32, i32) {
    %c0_i32 = arith.constant 0 : i32
    %c0_i32_0 = arith.constant 0 : i32
    %c0_i32_1 = arith.constant 0 : i32
    return %c0_i32, %c0_i32_0 : i32, i32
  }
  func.func @transform_6(%arg0: i32) -> (i32, i32) {
    %c0_i32 = arith.constant 0 : i32
    %c0_i32_0 = arith.constant 0 : i32
    %c0_i32_1 = arith.constant 0 : i32
    return %c0_i32, %c0_i32_0 : i32, i32
  }
  func.func @transform_7(%arg0: i32) -> (i32, i32) {
    %c0_i32 = arith.constant 0 : i32
    %c0_i32_0 = arith.constant 0 : i32
    %c0_i32_1 = arith.constant 0 : i32
    return %c0_i32, %c0_i32_0 : i32, i32
  }
  func.func @transform_8(%arg0: i32) -> (i32, i32) {
    %c0_i32 = arith.constant 0 : i32
    %c0_i32_0 = arith.constant 0 : i32
    %c0_i32_1 = arith.constant 0 : i32
    return %c0_i32, %c0_i32_0 : i32, i32
  }
  func.func @transform_9(%arg0: i32) -> (i32, i32) {
    %c0_i32 = arith.constant 0 : i32
    %c0_i32_0 = arith.constant 0 : i32
    %c0_i32_1 = arith.constant 0 : i32
    return %c0_i32, %c0_i32_0 : i32, i32
  }
  func.func @transform_10(%arg0: i32) -> (i32, i32) {
    %c0_i32 = arith.constant 0 : i32
    %c0_i32_0 = arith.constant 0 : i32
    %c0_i32_1 = arith.constant 0 : i32
    return %c0_i32, %c0_i32_0 : i32, i32
  }
  func.func @transform_11(%arg0: i32) -> (i32, i32) {
    %c0_i32 = arith.constant 0 : i32
    %c0_i32_0 = arith.constant 0 : i32
    %c0_i32_1 = arith.constant 0 : i32
    return %c0_i32, %c0_i32_0 : i32, i32
  }
  func.func @transform_12(%arg0: i32) -> (i32, i32) {
    %c0_i32 = arith.constant 0 : i32
    %c0_i32_0 = arith.constant 0 : i32
    %c0_i32_1 = arith.constant 0 : i32
    return %c0_i32, %c0_i32_0 : i32, i32
  }
  func.func @transform_13(%arg0: i32) -> (i32, i32) {
    %c0_i32 = arith.constant 0 : i32
    %c0_i32_0 = arith.constant 0 : i32
    %c0_i32_1 = arith.constant 0 : i32
    return %c0_i32, %c0_i32_0 : i32, i32
  }
  func.func @transform_14(%arg0: i32) -> (i32, i32) {
    %c0_i32 = arith.constant 0 : i32
    %c0_i32_0 = arith.constant 0 : i32
    %c0_i32_1 = arith.constant 0 : i32
    return %c0_i32, %c0_i32_0 : i32, i32
  }
  func.func @transform_15(%arg0: i32) -> (i32, i32) {
    %c0_i32 = arith.constant 0 : i32
    %c0_i32_0 = arith.constant 0 : i32
    %c0_i32_1 = arith.constant 0 : i32
    return %c0_i32, %c0_i32_0 : i32, i32
  }
  func.func @transform_16(%arg0: i32) -> (i32, i32) {
    %c0_i32 = arith.constant 0 : i32
    %c0_i32_0 = arith.constant 0 : i32
    %c0_i32_1 = arith.constant 0 : i32
    return %c0_i32, %c0_i32_0 : i32, i32
  }
  func.func @transform_17(%arg0: i32) -> (i32, i32) {
    %c0_i32 = arith.constant 0 : i32
    %c0_i32_0 = arith.constant 0 : i32
    %c0_i32_1 = arith.constant 0 : i32
    return %c0_i32, %c0_i32_0 : i32, i32
  }
  func.func @transform_18(%arg0: i32) -> (i32, i32) {
    %c0_i32 = arith.constant 0 : i32
    %c0_i32_0 = arith.constant 0 : i32
    %c0_i32_1 = arith.constant 0 : i32
    return %c0_i32, %c0_i32_0 : i32, i32
  }
  func.func @transform_19(%arg0: i32) -> (i32, i32) {
    %c0_i32 = arith.constant 0 : i32
    %c0_i32_0 = arith.constant 0 : i32
    %c0_i32_1 = arith.constant 0 : i32
    return %c0_i32, %c0_i32_0 : i32, i32
  }
  func.func @transform_20(%arg0: i32) -> (i32, i32) {
    %c0_i32 = arith.constant 0 : i32
    %c0_i32_0 = arith.constant 0 : i32
    %c0_i32_1 = arith.constant 0 : i32
    return %c0_i32, %c0_i32_0 : i32, i32
  }
  func.func @transform_21(%arg0: i32) -> (i32, i32) {
    %c0_i32 = arith.constant 0 : i32
    %c0_i32_0 = arith.constant 0 : i32
    %c0_i32_1 = arith.constant 0 : i32
    return %c0_i32, %c0_i32_0 : i32, i32
  }
  func.func @transform_22(%arg0: i32) -> (i32, i32) {
    %c0_i32 = arith.constant 0 : i32
    %c0_i32_0 = arith.constant 0 : i32
    %c0_i32_1 = arith.constant 0 : i32
    return %c0_i32, %c0_i32_0 : i32, i32
  }
  func.func @transform_23(%arg0: i32) -> (i32, i32, i32) {
    %c0_i32 = arith.constant 0 : i32
    %c0_i32_0 = arith.constant 0 : i32
    %c0_i32_1 = arith.constant 0 : i32
    return %arg0, %c0_i32, %c0_i32_0 : i32, i32, i32
  }
}

</mosaic_0001>

<llo_original>
// kernel: tpu_custom_call.1
$region0: #{tpu_custom_call.1}
  #allocation0 [shape = 'u32[]', space=smem, size = 0x4, offset = 0x4, fixed_abs, tag = 'smem constant byte address 0x4 - core index']
  #allocation1 [shape = 'u32[72,128]{1,0:T(1,128)}', space=vmem, size = 0x9000, scoped, tag = 'internal scratch']
  #allocation2 [shape = 'f32[128,128]{1,0:T(8,128)}', space=vmem, size = 0x10000, scoped, tag = 'scratch operand']
  #allocation3 [shape = 'f32[128,128]{1,0:T(8,128)}', space=vmem, size = 0x10000, scoped, tag = 'scratch operand']
  #allocation4 [shape = 'f32[128,32]{1,0:T(8,128)}', space=vmem, size = 0x10000, scoped, tag = 'scratch operand']
  #allocation5 [shape = 'f32[128,32]{1,0:T(8,128)}', space=vmem, size = 0x10000, scoped, tag = 'scratch operand']
  %s0 = inlined_call_operand.vmem [shape: f32[1,128,128], index: 0, kind: input, shape index: {}]
  %s1 = inlined_call_operand.vmem [shape: f32[128,128], index: 1, kind: input, shape index: {}]
  %s2 = inlined_call_operand.vmem [shape: f32[32,128], index: 2, kind: input, shape index: {}]
  %s3 = inlined_call_operand.vmem [shape: f32[1,128], index: 3, kind: input, shape index: {}]
  %s4 = inlined_call_operand.vmem [shape: f32[128,128], index: 4, kind: input, shape index: {}]
  %s5 = inlined_call_operand.vmem [shape: f32[32,128], index: 5, kind: input, shape index: {}]
  %s6 = inlined_call_operand.vmem [shape: f32[1,128], index: 6, kind: input, shape index: {}]
  %s7 = inlined_call_operand.vmem [shape: f32[64,128], index: 7, kind: input, shape index: {}]
  %s8 = inlined_call_operand.vmem [shape: f32[32,128], index: 8, kind: input, shape index: {}]
  %s9 = inlined_call_operand.vmem [shape: f32[1,128], index: 9, kind: input, shape index: {}]
  %s10 = inlined_call_operand.vmem [shape: f32[64,128], index: 10, kind: input, shape index: {}]
  %s11 = inlined_call_operand.vmem [shape: f32[32,128], index: 11, kind: input, shape index: {}]
  %s12 = inlined_call_operand.vmem [shape: f32[1,128], index: 12, kind: input, shape index: {}]
  %s13 = inlined_call_operand.vmem [shape: f32[64,128], index: 13, kind: input, shape index: {}]
  %s14 = inlined_call_operand.vmem [shape: f32[32,128], index: 14, kind: input, shape index: {}]
  %s15 = inlined_call_operand.vmem [shape: f32[1,128], index: 15, kind: input, shape index: {}]
  %s16 = inlined_call_operand.vmem [shape: f32[64,128], index: 16, kind: input, shape index: {}]
  %s17 = inlined_call_operand.vmem [shape: f32[32,128], index: 17, kind: input, shape index: {}]
  %s18 = inlined_call_operand.vmem [shape: f32[1,128], index: 18, kind: input, shape index: {}]
  %s19 = inlined_call_operand.vmem [shape: f32[320,150], index: 19, kind: input, shape index: {}]
  %s20 = inlined_call_operand.vmem [shape: f32[1,150], index: 20, kind: input, shape index: {}]
  %s21 = inlined_call_operand.vmem [shape: f32[150,2], index: 21, kind: input, shape index: {}]
  %s22 = inlined_call_operand.vmem [shape: f32[1,2], index: 22, kind: input, shape index: {}]
  %s23 = inlined_call_operand.vmem [shape: f32[1,8,2], index: 23, kind: output, shape index: {}]
  %s24 = sld [smem:[#allocation0]]
  $region102: #{tpu_custom_call.1} parent=0
    _
  %s26 = ssub.s32 1, %s24
  %s27 = scalar_select 0, %s26, %s24
  // Predicated region
  $region2: #{tpu_custom_call.1} parent=0 // pred_check
    _
  $region3: #{tpu_custom_call.1} parent=0 // pred_check_branch
    %29 = sbr.rel (0) target = $region5
  $region4: #{tpu_custom_call.1} parent=0 // pred_region
    _
  $region5: #{tpu_custom_call.1} parent=0 // pred_fallthru
    _
  // Predicated region
  $region6: #{tpu_custom_call.1} parent=0 // pred_check
    _
  $region7: #{tpu_custom_call.1} parent=0 // pred_check_branch
    %31 = sbr.rel (0) target = $region9
  $region8: #{tpu_custom_call.1} parent=0 // pred_region
    _
  $region9: #{tpu_custom_call.1} parent=0 // pred_fallthru
    _
  // Predicated region
  $region10: #{tpu_custom_call.1} parent=0 // pred_check
    _
  $region11: #{tpu_custom_call.1} parent=0 // pred_check_branch
    %33 = sbr.rel (0) target = $region13
  $region12: #{tpu_custom_call.1} parent=0 // pred_region
    _
  $region13: #{tpu_custom_call.1} parent=0 // pred_fallthru
    _
  // Predicated region
  $region14: #{tpu_custom_call.1} parent=0 // pred_check
    _
  $region15: #{tpu_custom_call.1} parent=0 // pred_check_branch
    %35 = sbr.rel (0) target = $region17
  $region16: #{tpu_custom_call.1} parent=0 // pred_region
    _
  $region17: #{tpu_custom_call.1} parent=0 // pred_fallthru
    _
  // Predicated region
  $region18: #{tpu_custom_call.1} parent=0 // pred_check
    _
  $region19: #{tpu_custom_call.1} parent=0 // pred_check_branch
    %37 = sbr.rel (0) target = $region21
  $region20: #{tpu_custom_call.1} parent=0 // pred_region
    _
  $region21: #{tpu_custom_call.1} parent=0 // pred_fallthru
    _
  // Predicated region
  $region22: #{tpu_custom_call.1} parent=0 // pred_check
    _
  $region23: #{tpu_custom_call.1} parent=0 // pred_check_branch
    %39 = sbr.rel (0) target = $region25
  $region24: #{tpu_custom_call.1} parent=0 // pred_region
    _
  $region25: #{tpu_custom_call.1} parent=0 // pred_fallthru
    _
  // Predicated region
  $region26: #{tpu_custom_call.1} parent=0 // pred_check
    _
  $region27: #{tpu_custom_call.1} parent=0 // pred_check_branch
    %41 = sbr.rel (0) target = $region29
  $region28: #{tpu_custom_call.1} parent=0 // pred_region
    _
  $region29: #{tpu_custom_call.1} parent=0 // pred_fallthru
    _
  // Predicated region
  $region30: #{tpu_custom_call.1} parent=0 // pred_check
    _
  $region31: #{tpu_custom_call.1} parent=0 // pred_check_branch
    %43 = sbr.rel (0) target = $region33
  $region32: #{tpu_custom_call.1} parent=0 // pred_region
    _
  $region33: #{tpu_custom_call.1} parent=0 // pred_fallthru
    _
  // Predicated region
  $region34: #{tpu_custom_call.1} parent=0 // pred_check
    _
  $region35: #{tpu_custom_call.1} parent=0 // pred_check_branch
    %45 = sbr.rel (0) target = $region37
  $region36: #{tpu_custom_call.1} parent=0 // pred_region
    _
  $region37: #{tpu_custom_call.1} parent=0 // pred_fallthru
    _
  // Predicated region
  $region38: #{tpu_custom_call.1} parent=0 // pred_check
    _
  $region39: #{tpu_custom_call.1} parent=0 // pred_check_branch
    %47 = sbr.rel (0) target = $region41
  $region40: #{tpu_custom_call.1} parent=0 // pred_region
    _
  $region41: #{tpu_custom_call.1} parent=0 // pred_fallthru
    _
  // Predicated region
  $region42: #{tpu_custom_call.1} parent=0 // pred_check
    _
  $region43: #{tpu_custom_call.1} parent=0 // pred_check_branch
    %49 = sbr.rel (0) target = $region45
  $region44: #{tpu_custom_call.1} parent=0 // pred_region
    _
  $region45: #{tpu_custom_call.1} parent=0 // pred_fallthru
    _
  // Predicated region
  $region46: #{tpu_custom_call.1} parent=0 // pred_check
    _
  $region47: #{tpu_custom_call.1} parent=0 // pred_check_branch
    %51 = sbr.rel (0) target = $region49
  $region48: #{tpu_custom_call.1} parent=0 // pred_region
    _
  $region49: #{tpu_custom_call.1} parent=0 // pred_fallthru
    _
  // Predicated region
  $region50: #{tpu_custom_call.1} parent=0 // pred_check
    _
  $region51: #{tpu_custom_call.1} parent=0 // pred_check_branch
    %53 = sbr.rel (0) target = $region53
  $region52: #{tpu_custom_call.1} parent=0 // pred_region
    _
  $region53: #{tpu_custom_call.1} parent=0 // pred_fallthru
    _
  // Predicated region
  $region54: #{tpu_custom_call.1} parent=0 // pred_check
    _
  $region55: #{tpu_custom_call.1} parent=0 // pred_check_branch
    %55 = sbr.rel (0) target = $region57
  $region56: #{tpu_custom_call.1} parent=0 // pred_region
    _
  $region57: #{tpu_custom_call.1} parent=0 // pred_fallthru
    _
  // Predicated region
  $region58: #{tpu_custom_call.1} parent=0 // pred_check
    _
  $region59: #{tpu_custom_call.1} parent=0 // pred_check_branch
    %57 = sbr.rel (0) target = $region61
  $region60: #{tpu_custom_call.1} parent=0 // pred_region
    _
  $region61: #{tpu_custom_call.1} parent=0 // pred_fallthru
    _
  // Predicated region
  $region62: #{tpu_custom_call.1} parent=0 // pred_check
    _
  $region63: #{tpu_custom_call.1} parent=0 // pred_check_branch
    %59 = sbr.rel (0) target = $region65
  $region64: #{tpu_custom_call.1} parent=0 // pred_region
    _
  $region65: #{tpu_custom_call.1} parent=0 // pred_fallthru
    _
  // Predicated region
  $region66: #{tpu_custom_call.1} parent=0 // pred_check
    _
  $region67: #{tpu_custom_call.1} parent=0 // pred_check_branch
    %61 = sbr.rel (0) target = $region69
  $region68: #{tpu_custom_call.1} parent=0 // pred_region
    _
  $region69: #{tpu_custom_call.1} parent=0 // pred_fallthru
    _
  // Predicated region
  $region70: #{tpu_custom_call.1} parent=0 // pred_check
    _
  $region71: #{tpu_custom_call.1} parent=0 // pred_check_branch
    %63 = sbr.rel (0) target = $region73
  $region72: #{tpu_custom_call.1} parent=0 // pred_region
    _
  $region73: #{tpu_custom_call.1} parent=0 // pred_fallthru
    _
  // Predicated region
  $region74: #{tpu_custom_call.1} parent=0 // pred_check
    _
  $region75: #{tpu_custom_call.1} parent=0 // pred_check_branch
    %65 = sbr.rel (0) target = $region77
  $region76: #{tpu_custom_call.1} parent=0 // pred_region
    _
  $region77: #{tpu_custom_call.1} parent=0 // pred_fallthru
    _
  // Predicated region
  $region78: #{tpu_custom_call.1} parent=0 // pred_check
    _
  $region79: #{tpu_custom_call.1} parent=0 // pred_check_branch
    %67 = sbr.rel (0) target = $region81
  $region80: #{tpu_custom_call.1} parent=0 // pred_region
    _
  $region81: #{tpu_custom_call.1} parent=0 // pred_fallthru
    _
  // Predicated region
  $region82: #{tpu_custom_call.1} parent=0 // pred_check
    _
  $region83: #{tpu_custom_call.1} parent=0 // pred_check_branch
    %69 = sbr.rel (0) target = $region85
  $region84: #{tpu_custom_call.1} parent=0 // pred_region
    _
  $region85: #{tpu_custom_call.1} parent=0 // pred_fallthru
    _
  // Predicated region
  $region86: #{tpu_custom_call.1} parent=0 // pred_check
    _
  $region87: #{tpu_custom_call.1} parent=0 // pred_check_branch
    %71 = sbr.rel (0) target = $region89
  $region88: #{tpu_custom_call.1} parent=0 // pred_region
    _
  $region89: #{tpu_custom_call.1} parent=0 // pred_fallthru
    _
  // Predicated region
  $region90: #{tpu_custom_call.1} parent=0 // pred_check
    _
  $region91: #{tpu_custom_call.1} parent=0 // pred_check_branch
    %73 = sbr.rel (0) target = $region93
  $region92: #{tpu_custom_call.1} parent=0 // pred_region
    _
  $region93: #{tpu_custom_call.1} parent=0 // pred_fallthru
    _
  %v74 = vld [vmem:[%s19] sm:$0xff]
  %v75 = vld [vmem:[%s19 + $0x8] sm:$0xff]
  %v76 = vld [vmem:[%s19 + $0x10] sm:$0xff]
  %v77 = vld [vmem:[%s19 + $0x18] sm:$0xff]
  %v78 = vld [vmem:[%s19 + $0x20] sm:$0xff]
  %v79 = vld [vmem:[%s19 + $0x28] sm:$0xff]
  %v80 = vld [vmem:[%s19 + $0x30] sm:$0xff]
  %v81 = vld [vmem:[%s19 + $0x38] sm:$0xff]
  %v82 = vld [vmem:[%s19 + $0x40] sm:$0xff]
  %v83 = vld [vmem:[%s19 + $0x48] sm:$0xff]
  %v84 = vld [vmem:[%s19 + $0x50] sm:$0xff]
  %v85 = vld [vmem:[%s19 + $0x58] sm:$0xff]
  %v86 = vld [vmem:[%s19 + $0x60] sm:$0xff]
  %v87 = vld [vmem:[%s19 + $0x68] sm:$0xff]
  %v88 = vld [vmem:[%s19 + $0x70] sm:$0xff]
  %v89 = vld [vmem:[%s19 + $0x78] sm:$0xff]
  %v90 = vld [vmem:[%s19 + $0x80] sm:$0xff]
  %v91 = vld [vmem:[%s19 + $0x88] sm:$0xff]
  %v92 = vld [vmem:[%s19 + $0x90] sm:$0xff]
  %v93 = vld [vmem:[%s19 + $0x98] sm:$0xff]
  %v94 = vld [vmem:[%s19 + $0xa0] sm:$0xff]
  %v95 = vld [vmem:[%s19 + $0xa8] sm:$0xff]
  %v96 = vld [vmem:[%s19 + $0xb0] sm:$0xff]
  %v97 = vld [vmem:[%s19 + $0xb8] sm:$0xff]
  %v98 = vld [vmem:[%s19 + $0xc0] sm:$0xff]
  %v99 = vld [vmem:[%s19 + $0xc8] sm:$0xff]
  %v100 = vld [vmem:[%s19 + $0xd0] sm:$0xff]
  %v101 = vld [vmem:[%s19 + $0xd8] sm:$0xff]
  %v102 = vld [vmem:[%s19 + $0xe0] sm:$0xff]
  %v103 = vld [vmem:[%s19 + $0xe8] sm:$0xff]
  %v104 = vld [vmem:[%s19 + $0xf0] sm:$0xff]
  %v105 = vld [vmem:[%s19 + $0xf8] sm:$0xff]
  %v106 = vld [vmem:[%s19 + $0x100] sm:$0xff]
  %v107 = vld [vmem:[%s19 + $0x108] sm:$0xff]
  %v108 = vld [vmem:[%s19 + $0x110] sm:$0xff]
  %v109 = vld [vmem:[%s19 + $0x118] sm:$0xff]
  %v110 = vld [vmem:[%s19 + $0x120] sm:$0xff]
  %v111 = vld [vmem:[%s19 + $0x128] sm:$0xff]
  %v112 = vld [vmem:[%s19 + $0x130] sm:$0xff]
  %v113 = vld [vmem:[%s19 + $0x138] sm:$0xff]
  %v114 = vld [vmem:[%s19 + $0x140] sm:$0xff]
  %v115 = vld [vmem:[%s19 + $0x148] sm:$0xff]
  %v116 = vld [vmem:[%s19 + $0x150] sm:$0xff]
  %v117 = vld [vmem:[%s19 + $0x158] sm:$0xff]
  %v118 = vld [vmem:[%s19 + $0x160] sm:$0xff]
  %v119 = vld [vmem:[%s19 + $0x168] sm:$0xff]
  %v120 = vld [vmem:[%s19 + $0x170] sm:$0xff]
  %v121 = vld [vmem:[%s19 + $0x178] sm:$0xff]
  %v122 = vld [vmem:[%s19 + $0x180] sm:$0xff]
  %v123 = vld [vmem:[%s19 + $0x188] sm:$0xff]
  %v124 = vld [vmem:[%s19 + $0x190] sm:$0xff]
  %v125 = vld [vmem:[%s19 + $0x198] sm:$0xff]
  %v126 = vld [vmem:[%s19 + $0x1a0] sm:$0xff]
  %v127 = vld [vmem:[%s19 + $0x1a8] sm:$0xff]
  %v128 = vld [vmem:[%s19 + $0x1b0] sm:$0xff]
  %v129 = vld [vmem:[%s19 + $0x1b8] sm:$0xff]
  %v130 = vld [vmem:[%s19 + $0x1c0] sm:$0xff]
  %v131 = vld [vmem:[%s19 + $0x1c8] sm:$0xff]
  %v132 = vld [vmem:[%s19 + $0x1d0] sm:$0xff]
  %v133 = vld [vmem:[%s19 + $0x1d8] sm:$0xff]
  %v134 = vld [vmem:[%s19 + $0x1e0] sm:$0xff]
  %v135 = vld [vmem:[%s19 + $0x1e8] sm:$0xff]
  %v136 = vld [vmem:[%s19 + $0x1f0] sm:$0xff]
  %v137 = vld [vmem:[%s19 + $0x1f8] sm:$0xff]
  %v138 = vld [vmem:[%s19 + $0x200] sm:$0xff]
  %v139 = vld [vmem:[%s19 + $0x208] sm:$0xff]
  %v140 = vld [vmem:[%s19 + $0x210] sm:$0xff]
  %v141 = vld [vmem:[%s19 + $0x218] sm:$0xff]
  %v142 = vld [vmem:[%s19 + $0x220] sm:$0xff]
  %v143 = vld [vmem:[%s19 + $0x228] sm:$0xff]
  %v144 = vld [vmem:[%s19 + $0x230] sm:$0xff]
  %v145 = vld [vmem:[%s19 + $0x238] sm:$0xff]
  %v146 = vld [vmem:[%s19 + $0x240] sm:$0xff]
  %v147 = vld [vmem:[%s19 + $0x248] sm:$0xff]
  %v148 = vld [vmem:[%s19 + $0x250] sm:$0xff]
  %v149 = vld [vmem:[%s19 + $0x258] sm:$0xff]
  %v150 = vld [vmem:[%s19 + $0x260] sm:$0xff]
  %v151 = vld [vmem:[%s19 + $0x268] sm:$0xff]
  %v152 = vld [vmem:[%s19 + $0x270] sm:$0xff]
  %v153 = vld [vmem:[%s19 + $0x278] sm:$0xff]
  %v154 = vld [vmem:[%s20] sm:$0x3]
  %v155 = vld [vmem:[%s21] sm:$0xff]
  %v156 = vld [vmem:[%s21 + $0x8] sm:$0xff]
  %v157 = vld [vmem:[%s21 + $0x10] sm:$0xff]
  %v158 = vld [vmem:[%s21 + $0x18] sm:$0xff]
  %v159 = vld [vmem:[%s21 + $0x20] sm:$0xff]
  %v160 = vld [vmem:[%s21 + $0x28] sm:$0xff]
  %v161 = vld [vmem:[%s21 + $0x30] sm:$0xff]
  %v162 = vld [vmem:[%s21 + $0x38] sm:$0xff]
  %v163 = vld [vmem:[%s21 + $0x40] sm:$0xff]
  %v164 = vld [vmem:[%s21 + $0x48] sm:$0xff]
  %v165 = vld [vmem:[%s21 + $0x50] sm:$0xff]
  %v166 = vld [vmem:[%s21 + $0x58] sm:$0xff]
  %v167 = vld [vmem:[%s21 + $0x60] sm:$0xff]
  %v168 = vld [vmem:[%s21 + $0x68] sm:$0xff]
  %v169 = vld [vmem:[%s21 + $0x70] sm:$0xff]
  %v170 = vld [vmem:[%s21 + $0x78] sm:$0xff]
  %v171 = vld [vmem:[%s21 + $0x80] sm:$0xff]
  %v172 = vld [vmem:[%s21 + $0x88] sm:$0xff]
  %v173 = vld [vmem:[%s21 + $0x90] sm:$0x3f]
  %v174 = vld [vmem:[%s22] sm:$0x1]
  %v175 = vld [vmem:[%s0] sm:$0xff]
  %v176 = vld [vmem:[%s0 + $0x8] sm:$0xff]
  %v177 = vld [vmem:[%s0 + $0x10] sm:$0xff]
  %v178 = vld [vmem:[%s0 + $0x18] sm:$0xff]
  %v179 = vld [vmem:[%s0 + $0x20] sm:$0xff]
  %v180 = vld [vmem:[%s0 + $0x28] sm:$0xff]
  %v181 = vld [vmem:[%s0 + $0x30] sm:$0xff]
  %v182 = vld [vmem:[%s0 + $0x38] sm:$0xff]
  %v183 = vld [vmem:[%s0 + $0x40] sm:$0xff]
  %v184 = vld [vmem:[%s0 + $0x48] sm:$0xff]
  %v185 = vld [vmem:[%s0 + $0x50] sm:$0xff]
  %v186 = vld [vmem:[%s0 + $0x58] sm:$0xff]
  %v187 = vld [vmem:[%s0 + $0x60] sm:$0xff]
  %v188 = vld [vmem:[%s0 + $0x68] sm:$0xff]
  %v189 = vld [vmem:[%s0 + $0x70] sm:$0xff]
  %v190 = vld [vmem:[%s0 + $0x78] sm:$0xff]
  %v191 = vld [vmem:[%s1] sm:$0xff]
  %v192 = vld [vmem:[%s1 + $0x8] sm:$0xff]
  %v193 = vld [vmem:[%s1 + $0x10] sm:$0xff]
  %v194 = vld [vmem:[%s1 + $0x18] sm:$0xff]
  %v195 = vld [vmem:[%s1 + $0x20] sm:$0xff]
  %v196 = vld [vmem:[%s1 + $0x28] sm:$0xff]
  %v197 = vld [vmem:[%s1 + $0x30] sm:$0xff]
  %v198 = vld [vmem:[%s1 + $0x38] sm:$0xff]
  %v199 = vld [vmem:[%s1 + $0x40] sm:$0xff]
  %v200 = vld [vmem:[%s1 + $0x48] sm:$0xff]
  %v201 = vld [vmem:[%s1 + $0x50] sm:$0xff]
  %v202 = vld [vmem:[%s1 + $0x58] sm:$0xff]
  %v203 = vld [vmem:[%s1 + $0x60] sm:$0xff]
  %v204 = vld [vmem:[%s1 + $0x68] sm:$0xff]
  %v205 = vld [vmem:[%s1 + $0x70] sm:$0xff]
  %v206 = vld [vmem:[%s1 + $0x78] sm:$0xff]
  %v207 = vld [vmem:[%s3] sm:$0x1]
  %v209 = vperm.slane %v207, 0
  %211 = vmatpush.msra.mxu0 %v206
  %212 = vmatpush.msra.mxu0 %v205
  %213 = vmatpush.msra.mxu0 %v204
  %214 = vmatpush.msra.mxu0 %v203
  %215 = vmatpush.msra.mxu0 %v202
  %216 = vmatpush.msra.mxu0 %v201
  %217 = vmatpush.msra.mxu0 %v200
  %218 = vmatpush.msra.mxu0 %v199
  %219 = vmatpush.msra.mxu0 %v198
  %220 = vmatpush.msra.mxu0 %v197
  %221 = vmatpush.msra.mxu0 %v196
  %222 = vmatpush.msra.mxu0 %v195
  %223 = vmatpush.msra.mxu0 %v194
  %224 = vmatpush.msra.mxu0 %v193
  %225 = vmatpush.msra.mxu0 %v192
  %226 = vmatpush.msra.mxu0 %v191
  %227 = vmatmul.f32.gmra.mxu0 %v175
  %v228 = vpop.f32.mrf.mxu0
  %v229 = vadd.f32 %v209, %v228
  %230 = vmatmul.f32.gmra.mxu0 %v176
  %v231 = vpop.f32.mrf.mxu0
  %v232 = vadd.f32 %v209, %v231
  %233 = vmatmul.f32.gmra.mxu0 %v177
  %v234 = vpop.f32.mrf.mxu0
  %v235 = vadd.f32 %v209, %v234
  %236 = vmatmul.f32.gmra.mxu0 %v178
  %v237 = vpop.f32.mrf.mxu0
  %v238 = vadd.f32 %v209, %v237
  %239 = vmatmul.f32.gmra.mxu0 %v179
  %v240 = vpop.f32.mrf.mxu0
  %v241 = vadd.f32 %v209, %v240
  %242 = vmatmul.f32.gmra.mxu0 %v180
  %v243 = vpop.f32.mrf.mxu0
  %v244 = vadd.f32 %v209, %v243
  %245 = vmatmul.f32.gmra.mxu0 %v181
  %v246 = vpop.f32.mrf.mxu0
  %v247 = vadd.f32 %v209, %v246
  %248 = vmatmul.f32.gmra.mxu0 %v182
  %v249 = vpop.f32.mrf.mxu0
  %v250 = vadd.f32 %v209, %v249
  %251 = vmatmul.f32.gmra.mxu0 %v183
  %v252 = vpop.f32.mrf.mxu0
  %v253 = vadd.f32 %v209, %v252
  %254 = vmatmul.f32.gmra.mxu0 %v184
  %v255 = vpop.f32.mrf.mxu0
  %v256 = vadd.f32 %v209, %v255
  %257 = vmatmul.f32.gmra.mxu0 %v185
  %v258 = vpop.f32.mrf.mxu0
  %v259 = vadd.f32 %v209, %v258
  %260 = vmatmul.f32.gmra.mxu0 %v186
  %v261 = vpop.f32.mrf.mxu0
  %v262 = vadd.f32 %v209, %v261
  %263 = vmatmul.f32.gmra.mxu0 %v187
  %v264 = vpop.f32.mrf.mxu0
  %v265 = vadd.f32 %v209, %v264
  %266 = vmatmul.f32.gmra.mxu0 %v188
  %v267 = vpop.f32.mrf.mxu0
  %v268 = vadd.f32 %v209, %v267
  %269 = vmatmul.f32.gmra.mxu0 %v189
  %v270 = vpop.f32.mrf.mxu0
  %v271 = vadd.f32 %v209, %v270
  %272 = vmatmul.f32.gmra.mxu0 %v190
  %v273 = vpop.f32.mrf.mxu0
  %v274 = vadd.f32 %v209, %v273
  %275 = vdwg.mxu0
  %276 = vst [vmem:[#allocation2] sm:$0xff] %v229
  %277 = vst [vmem:[#allocation2 + $0x8] sm:$0xff] %v232
  %278 = vst [vmem:[#allocation2 + $0x10] sm:$0xff] %v235
  %279 = vst [vmem:[#allocation2 + $0x18] sm:$0xff] %v238
  %280 = vst [vmem:[#allocation2 + $0x20] sm:$0xff] %v241
  %281 = vst [vmem:[#allocation2 + $0x28] sm:$0xff] %v244
  %282 = vst [vmem:[#allocation2 + $0x30] sm:$0xff] %v247
  %283 = vst [vmem:[#allocation2 + $0x38] sm:$0xff] %v250
  %284 = vst [vmem:[#allocation2 + $0x40] sm:$0xff] %v253
  %285 = vst [vmem:[#allocation2 + $0x48] sm:$0xff] %v256
  %286 = vst [vmem:[#allocation2 + $0x50] sm:$0xff] %v259
  %287 = vst [vmem:[#allocation2 + $0x58] sm:$0xff] %v262
  %288 = vst [vmem:[#allocation2 + $0x60] sm:$0xff] %v265
  %289 = vst [vmem:[#allocation2 + $0x68] sm:$0xff] %v268
  %290 = vst [vmem:[#allocation2 + $0x70] sm:$0xff] %v271
  %291 = vst [vmem:[#allocation2 + $0x78] sm:$0xff] %v274
  %v292 = vld [vmem:[%s4] sm:$0xff]
  %v293 = vld [vmem:[%s4 + $0x8] sm:$0xff]
  %v294 = vld [vmem:[%s4 + $0x10] sm:$0xff]
  %v295 = vld [vmem:[%s4 + $0x18] sm:$0xff]
  %v296 = vld [vmem:[%s4 + $0x20] sm:$0xff]
  %v297 = vld [vmem:[%s4 + $0x28] sm:$0xff]
  %v298 = vld [vmem:[%s4 + $0x30] sm:$0xff]
  %v299 = vld [vmem:[%s4 + $0x38] sm:$0xff]
  %v300 = vld [vmem:[%s4 + $0x40] sm:$0xff]
  %v301 = vld [vmem:[%s4 + $0x48] sm:$0xff]
  %v302 = vld [vmem:[%s4 + $0x50] sm:$0xff]
  %v303 = vld [vmem:[%s4 + $0x58] sm:$0xff]
  %v304 = vld [vmem:[%s4 + $0x60] sm:$0xff]
  %v305 = vld [vmem:[%s4 + $0x68] sm:$0xff]
  %v306 = vld [vmem:[%s4 + $0x70] sm:$0xff]
  %v307 = vld [vmem:[%s4 + $0x78] sm:$0xff]
  %v308 = vld [vmem:[%s6] sm:$0x1]
  %v310 = vperm.slane %v308, 0
  %312 = vmatpush.msra.mxu0 %v307
  %313 = vmatpush.msra.mxu0 %v306
  %314 = vmatpush.msra.mxu0 %v305
  %315 = vmatpush.msra.mxu0 %v304
  %316 = vmatpush.msra.mxu0 %v303
  %317 = vmatpush.msra.mxu0 %v302
  %318 = vmatpush.msra.mxu0 %v301
  %319 = vmatpush.msra.mxu0 %v300
  %320 = vmatpush.msra.mxu0 %v299
  %321 = vmatpush.msra.mxu0 %v298
  %322 = vmatpush.msra.mxu0 %v297
  %323 = vmatpush.msra.mxu0 %v296
  %324 = vmatpush.msra.mxu0 %v295
  %325 = vmatpush.msra.mxu0 %v294
  %326 = vmatpush.msra.mxu0 %v293
  %327 = vmatpush.msra.mxu0 %v292
  %328 = vmatmul.f32.gmra.mxu0 %v175
  %v329 = vpop.f32.mrf.mxu0
  %v330 = vadd.f32 %v310, %v329
  %331 = vmatmul.f32.gmra.mxu0 %v176
  %v332 = vpop.f32.mrf.mxu0
  %v333 = vadd.f32 %v310, %v332
  %334 = vmatmul.f32.gmra.mxu0 %v177
  %v335 = vpop.f32.mrf.mxu0
  %v336 = vadd.f32 %v310, %v335
  %337 = vmatmul.f32.gmra.mxu0 %v178
  %v338 = vpop.f32.mrf.mxu0
  %v339 = vadd.f32 %v310, %v338
  %340 = vmatmul.f32.gmra.mxu0 %v179
  %v341 = vpop.f32.mrf.mxu0
  %v342 = vadd.f32 %v310, %v341
  %343 = vmatmul.f32.gmra.mxu0 %v180
  %v344 = vpop.f32.mrf.mxu0
  %v345 = vadd.f32 %v310, %v344
  %346 = vmatmul.f32.gmra.mxu0 %v181
  %v347 = vpop.f32.mrf.mxu0
  %v348 = vadd.f32 %v310, %v347
  %349 = vmatmul.f32.gmra.mxu0 %v182
  %v350 = vpop.f32.mrf.mxu0
  %v351 = vadd.f32 %v310, %v350
  %352 = vmatmul.f32.gmra.mxu0 %v183
  %v353 = vpop.f32.mrf.mxu0
  %v354 = vadd.f32 %v310, %v353
  %355 = vmatmul.f32.gmra.mxu0 %v184
  %v356 = vpop.f32.mrf.mxu0
  %v357 = vadd.f32 %v310, %v356
  %358 = vmatmul.f32.gmra.mxu0 %v185
  %v359 = vpop.f32.mrf.mxu0
  %v360 = vadd.f32 %v310, %v359
  %361 = vmatmul.f32.gmra.mxu0 %v186
  %v362 = vpop.f32.mrf.mxu0
  %v363 = vadd.f32 %v310, %v362
  %364 = vmatmul.f32.gmra.mxu0 %v187
  %v365 = vpop.f32.mrf.mxu0
  %v366 = vadd.f32 %v310, %v365
  %367 = vmatmul.f32.gmra.mxu0 %v188
  %v368 = vpop.f32.mrf.mxu0
  %v369 = vadd.f32 %v310, %v368
  %370 = vmatmul.f32.gmra.mxu0 %v189
  %v371 = vpop.f32.mrf.mxu0
  %v372 = vadd.f32 %v310, %v371
  %373 = vmatmul.f32.gmra.mxu0 %v190
  %v374 = vpop.f32.mrf.mxu0
  %v375 = vadd.f32 %v310, %v374
  %376 = vdwg.mxu0
  %377 = vst [vmem:[#allocation3] sm:$0xff] %v330
  %378 = vst [vmem:[#allocation3 + $0x8] sm:$0xff] %v333
  %379 = vst [vmem:[#allocation3 + $0x10] sm:$0xff] %v336
  %380 = vst [vmem:[#allocation3 + $0x18] sm:$0xff] %v339
  %381 = vst [vmem:[#allocation3 + $0x20] sm:$0xff] %v342
  %382 = vst [vmem:[#allocation3 + $0x28] sm:$0xff] %v345
  %383 = vst [vmem:[#allocation3 + $0x30] sm:$0xff] %v348
  %384 = vst [vmem:[#allocation3 + $0x38] sm:$0xff] %v351
  %385 = vst [vmem:[#allocation3 + $0x40] sm:$0xff] %v354
  %386 = vst [vmem:[#allocation3 + $0x48] sm:$0xff] %v357
  %387 = vst [vmem:[#allocation3 + $0x50] sm:$0xff] %v360
  %388 = vst [vmem:[#allocation3 + $0x58] sm:$0xff] %v363
  %389 = vst [vmem:[#allocation3 + $0x60] sm:$0xff] %v366
  %390 = vst [vmem:[#allocation3 + $0x68] sm:$0xff] %v369
  %391 = vst [vmem:[#allocation3 + $0x70] sm:$0xff] %v372
  %392 = vst [vmem:[#allocation3 + $0x78] sm:$0xff] %v375
  %v393 = vld [vmem:[%s2] sm:$0xff]
  %v394 = vld [vmem:[%s2 + $0x8] sm:$0xff]
  %v395 = vld [vmem:[%s2 + $0x10] sm:$0xff]
  %v396 = vld [vmem:[%s2 + $0x18] sm:$0xff]
  %v397 = vld [vmem:[%s5] sm:$0xff]
  %v398 = vld [vmem:[%s5 + $0x8] sm:$0xff]
  %v399 = vld [vmem:[%s5 + $0x10] sm:$0xff]
  %v400 = vld [vmem:[%s5 + $0x18] sm:$0xff]
  %v401 = vld [vmem:[#allocation2] sm:$0xff]
  %v402 = vld [vmem:[#allocation2 + $0x8] sm:$0xff]
  %vm403 = vcmask 261120
  %v405 = vsel %vm403, 0.0, 0
  %407 = vmatpush.msra.mxu0 0.0
  %408 = vmatpush.msra.mxu0 0.0
  %409 = vmatpush.msra.mxu0 0.0
  %410 = vmatpush.msra.mxu0 0.0
  %411 = vmatpush.msra.mxu0 0.0
  %412 = vmatpush.msra.mxu0 0.0
  %413 = vmatpush.msra.mxu0 0.0
  %414 = vmatpush.msra.mxu0 0.0
  %415 = vmatpush.msra.mxu0 0.0
  %416 = vmatpush.msra.mxu0 0.0
  %417 = vmatpush.msra.mxu0 0.0
  %418 = vmatpush.msra.mxu0 0.0
  %419 = vmatpush.msra.mxu0 %v396
  %420 = vmatpush.msra.mxu0 %v395
  %421 = vmatpush.msra.mxu0 %v394
  %422 = vmatpush.msra.mxu0 %v393
  %423 = vmatmul.f32.gmra.mxu0 %v405
  %v424 = vpop.f32.mrf.mxu0
  %v425 = vadd.f32 0.0, %v424
  %426 = vmatmul.f32.gmra.mxu0 %v405
  %v427 = vpop.f32.mrf.mxu0
  %v428 = vadd.f32 0.0, %v427
  %429 = vdwg.mxu0
  %v430 = vadd.f32 %v401, %v425
  %v431 = vadd.f32 %v402, %v428
  %v432 = vld [vmem:[#allocation3 + $0x70] sm:$0xff]
  %v433 = vld [vmem:[#allocation3 + $0x78] sm:$0xff]
  %434 = vmatpush.msra.mxu0 0.0
  %435 = vmatpush.msra.mxu0 0.0
  %436 = vmatpush.msra.mxu0 0.0
  %437 = vmatpush.msra.mxu0 0.0
  %438 = vmatpush.msra.mxu0 0.0
  %439 = vmatpush.msra.mxu0 0.0
  %440 = vmatpush.msra.mxu0 0.0
  %441 = vmatpush.msra.mxu0 0.0
  %442 = vmatpush.msra.mxu0 0.0
  %443 = vmatpush.msra.mxu0 0.0
  %444 = vmatpush.msra.mxu0 0.0
  %445 = vmatpush.msra.mxu0 0.0
  %446 = vmatpush.msra.mxu0 %v400
  %447 = vmatpush.msra.mxu0 %v399
  %448 = vmatpush.msra.mxu0 %v398
  %449 = vmatpush.msra.mxu0 %v397
  %450 = vmatmul.f32.gmra.mxu0 %v405
  %v451 = vpop.f32.mrf.mxu0
  %v452 = vadd.f32 0.0, %v451
  %453 = vmatmul.f32.gmra.mxu0 %v405
  %v454 = vpop.f32.mrf.mxu0
  %v455 = vadd.f32 0.0, %v454
  %456 = vdwg.mxu0
  %v457 = vadd.f32 %v432, %v452
  %v458 = vadd.f32 %v433, %v455
  %v459 = vxor.u32 %v430, 2147483648
  %v460 = vxor.u32 %v431, 2147483648
  %v461 = vmul.f32 %v459, 1.442695
  %v462 = vpow.pop %v461
  %v463 = vmul.f32 %v460, 1.442695
  %v464 = vpow.pop %v463
  %v465 = vadd.f32 %v462, 1.0
  %v466 = vadd.f32 %v464, 1.0
  %v467 = vrcp.pop %v465
  %v468 = vmul.f32 %v465, %v467
  %v469 = vsub.f32 1.0, %v468
  %v470 = vmul.f32 %v467, %v469
  %v471 = vadd.f32 %v467, %v470
  %vm472 = vweird.f32 %v465
  %vm473 = vweird.f32 %v467
  %vm474 = vmor %vm472, %vm473
  %v475 = vsel %vm474, %v467, %v471
  %v476 = vand.u32 2147483647, %v465
  %vm477 = vcmp.eq.f32.partialorder %v476, 8.507059e+37
  %v478 = vand.u32 %v465, 2147483648
  %v479 = vor.u32 1.1754944e-38, %v478
  %v480 = vsel %vm477, %v479, %v475
  %v481 = vmul.f32 1.0, %v480
  %v482 = vrcp.pop %v466
  %v483 = vmul.f32 %v466, %v482
  %v484 = vsub.f32 1.0, %v483
  %v485 = vmul.f32 %v482, %v484
  %v486 = vadd.f32 %v482, %v485
  %vm487 = vweird.f32 %v466
  %vm488 = vweird.f32 %v482
  %vm489 = vmor %vm487, %vm488
  %v490 = vsel %vm489, %v482, %v486
  %v491 = vand.u32 2147483647, %v466
  %vm492 = vcmp.eq.f32.partialorder %v491, 8.507059e+37
  %v493 = vand.u32 %v466, 2147483648
  %v494 = vor.u32 1.1754944e-38, %v493
  %v495 = vsel %vm492, %v494, %v490
  %v496 = vmul.f32 1.0, %v495
  %v497 = vtanh.pop %v430
  %v498 = vtanh.pop %v431
  %v499 = vmul.f32 %v481, 0.0
  %v500 = vmul.f32 %v496, 0.0
  %503 = vrot.lane.b32.xlu0 %v497, 32
  %v504 = vpop.permute.xlu0 %503
  %505 = vrot.lane.b32.xlu0 %v498, 32
  %v506 = vpop.permute.xlu0 %505
  %v509 = vmul.f32 %v481, %v504
  %v510 = vmul.f32 %v496, %v506
  %513 = vrot.lane.b32.xlu0 %v509, 32
  %v514 = vpop.permute.xlu0 %513
  %515 = vrot.lane.b32.xlu0 %v510, 32
  %v516 = vpop.permute.xlu0 %515
  %v519 = vadd.f32 %v499, %v514
  %v520 = vadd.f32 %v500, %v516
  %v521 = vtanh.pop %v519
  %v522 = vtanh.pop %v520
  %525 = vrot.lane.b32.xlu0 %v521, 32
  %v526 = vpop.permute.xlu0 %525
  %527 = vrot.lane.b32.xlu0 %v522, 32
  %v528 = vpop.permute.xlu0 %527
  %v531 = vmul.f32 %v481, %v526
  %v532 = vmul.f32 %v496, %v528
  %v533 = vxor.u32 %v457, 2147483648
  %v534 = vxor.u32 %v458, 2147483648
  %v535 = vmul.f32 %v533, 1.442695
  %v536 = vpow.pop %v535
  %v537 = vmul.f32 %v534, 1.442695
  %v538 = vpow.pop %v537
  %v539 = vadd.f32 %v536, 1.0
  %v540 = vadd.f32 %v538, 1.0
  %v541 = vrcp.pop %v539
  %v542 = vmul.f32 %v539, %v541
  %v543 = vsub.f32 1.0, %v542
  %v544 = vmul.f32 %v541, %v543
  %v545 = vadd.f32 %v541, %v544
  %vm546 = vweird.f32 %v539
  %vm547 = vweird.f32 %v541
  %vm548 = vmor %vm546, %vm547
  %v549 = vsel %vm548, %v541, %v545
  %v550 = vand.u32 2147483647, %v539
  %vm551 = vcmp.eq.f32.partialorder %v550, 8.507059e+37
  %v552 = vand.u32 %v539, 2147483648
  %v553 = vor.u32 1.1754944e-38, %v552
  %v554 = vsel %vm551, %v553, %v549
  %v555 = vmul.f32 1.0, %v554
  %v556 = vrcp.pop %v540
  %v557 = vmul.f32 %v540, %v556
  %v558 = vsub.f32 1.0, %v557
  %v559 = vmul.f32 %v556, %v558
  %v560 = vadd.f32 %v556, %v559
  %vm561 = vweird.f32 %v540
  %vm562 = vweird.f32 %v556
  %vm563 = vmor %vm561, %vm562
  %v564 = vsel %vm563, %v556, %v560
  %v565 = vand.u32 2147483647, %v540
  %vm566 = vcmp.eq.f32.partialorder %v565, 8.507059e+37
  %v567 = vand.u32 %v540, 2147483648
  %v568 = vor.u32 1.1754944e-38, %v567
  %v569 = vsel %vm566, %v568, %v564
  %v570 = vmul.f32 1.0, %v569
  %v571 = vtanh.pop %v457
  %v572 = vtanh.pop %v458
  %v573 = vmul.f32 %v555, 0.0
  %v574 = vmul.f32 %v570, 0.0
  %577 = vrot.lane.b32.xlu0 %v571, 32
  %v578 = vpop.permute.xlu0 %577
  %579 = vrot.lane.b32.xlu0 %v572, 32
  %v580 = vpop.permute.xlu0 %579
  %v583 = vmul.f32 %v555, %v578
  %v584 = vmul.f32 %v570, %v580
  %587 = vrot.lane.b32.xlu0 %v583, 32
  %v588 = vpop.permute.xlu0 %587
  %589 = vrot.lane.b32.xlu0 %v584, 32
  %v590 = vpop.permute.xlu0 %589
  %v593 = vadd.f32 %v573, %v588
  %v594 = vadd.f32 %v574, %v590
  %v595 = vtanh.pop %v593
  %v596 = vtanh.pop %v594
  %599 = vrot.lane.b32.xlu0 %v595, 32
  %v600 = vpop.permute.xlu0 %599
  %601 = vrot.lane.b32.xlu0 %v596, 32
  %v602 = vpop.permute.xlu0 %601
  %v605 = vmul.f32 %v555, %v600
  %v606 = vmul.f32 %v570, %v602
  %609 = vrot.lane.b32.xlu0 %v531, 64
  %v610 = vpop.permute.xlu0 %609
  %611 = vrot.lane.b32.xlu0 %v532, 64
  %v612 = vpop.permute.xlu0 %611
  %615 = vst.msk [vmem:[#allocation4] sm:$0xff] %vm403, %v610
  %616 = vst.msk [vmem:[#allocation4 + $0x8] sm:$0xff] %vm403, %v612
  %619 = vrot.lane.b32.xlu0 %v605, 64
  %v620 = vpop.permute.xlu0 %619
  %621 = vrot.lane.b32.xlu0 %v606, 64
  %v622 = vpop.permute.xlu0 %621
  %625 = vst.msk [vmem:[#allocation5 + $0x70] sm:$0xff] %vm403, %v620
  %626 = vst.msk [vmem:[#allocation5 + $0x78] sm:$0xff] %vm403, %v622
  %v627 = vld [vmem:[#allocation2 + $0x10] sm:$0xff]
  %v628 = vld [vmem:[#allocation2 + $0x18] sm:$0xff]
  %v629 = vsel %vm403, %v610, 0
  %v631 = vsel %vm403, %v612, 0
  %633 = vmatpush.msra.mxu0 0.0
  %634 = vmatpush.msra.mxu0 0.0
  %635 = vmatpush.msra.mxu0 0.0
  %636 = vmatpush.msra.mxu0 0.0
  %637 = vmatpush.msra.mxu0 0.0
  %638 = vmatpush.msra.mxu0 0.0
  %639 = vmatpush.msra.mxu0 0.0
  %640 = vmatpush.msra.mxu0 0.0
  %641 = vmatpush.msra.mxu0 0.0
  %642 = vmatpush.msra.mxu0 0.0
  %643 = vmatpush.msra.mxu0 0.0
  %644 = vmatpush.msra.mxu0 0.0
  %645 = vmatpush.msra.mxu0 %v396
  %646 = vmatpush.msra.mxu0 %v395
  %647 = vmatpush.msra.mxu0 %v394
  %648 = vmatpush.msra.mxu0 %v393
  %649 = vmatmul.f32.gmra.mxu0 %v629
  %v650 = vpop.f32.mrf.mxu0
  %v651 = vadd.f32 0.0, %v650
  %652 = vmatmul.f32.gmra.mxu0 %v631
  %v653 = vpop.f32.mrf.mxu0
  %v654 = vadd.f32 0.0, %v653
  %655 = vdwg.mxu0
  %v656 = vadd.f32 %v627, %v651
  %v657 = vadd.f32 %v628, %v654
  %v658 = vld [vmem:[#allocation3 + $0x60] sm:$0xff]
  %v659 = vld [vmem:[#allocation3 + $0x68] sm:$0xff]
  %v660 = vsel %vm403, %v620, 0
  %v662 = vsel %vm403, %v622, 0
  %664 = vmatpush.msra.mxu0 0.0
  %665 = vmatpush.msra.mxu0 0.0
  %666 = vmatpush.msra.mxu0 0.0
  %667 = vmatpush.msra.mxu0 0.0
  %668 = vmatpush.msra.mxu0 0.0
  %669 = vmatpush.msra.mxu0 0.0
  %670 = vmatpush.msra.mxu0 0.0
  %671 = vmatpush.msra.mxu0 0.0
  %672 = vmatpush.msra.mxu0 0.0
  %673 = vmatpush.msra.mxu0 0.0
  %674 = vmatpush.msra.mxu0 0.0
  %675 = vmatpush.msra.mxu0 0.0
  %676 = vmatpush.msra.mxu0 %v400
  %677 = vmatpush.msra.mxu0 %v399
  %678 = vmatpush.msra.mxu0 %v398
  %679 = vmatpush.msra.mxu0 %v397
  %680 = vmatmul.f32.gmra.mxu0 %v660
  %v681 = vpop.f32.mrf.mxu0
  %v682 = vadd.f32 0.0, %v681
  %683 = vmatmul.f32.gmra.mxu0 %v662
  %v684 = vpop.f32.mrf.mxu0
  %v685 = vadd.f32 0.0, %v684
  %686 = vdwg.mxu0
  %v687 = vadd.f32 %v658, %v682
  %v688 = vadd.f32 %v659, %v685
  %v689 = vxor.u32 %v656, 2147483648
  %v690 = vxor.u32 %v657, 2147483648
  %v691 = vmul.f32 %v689, 1.442695
  %v692 = vpow.pop %v691
  %v693 = vmul.f32 %v690, 1.442695
  %v694 = vpow.pop %v693
  %v695 = vadd.f32 %v692, 1.0
  %v696 = vadd.f32 %v694, 1.0
  %v697 = vrcp.pop %v695
  %v698 = vmul.f32 %v695, %v697
  %v699 = vsub.f32 1.0, %v698
  %v700 = vmul.f32 %v697, %v699
  %v701 = vadd.f32 %v697, %v700
  %vm702 = vweird.f32 %v695
  %vm703 = vweird.f32 %v697
  %vm704 = vmor %vm702, %vm703
  %v705 = vsel %vm704, %v697, %v701
  %v706 = vand.u32 2147483647, %v695
  %vm707 = vcmp.eq.f32.partialorder %v706, 8.507059e+37
  %v708 = vand.u32 %v695, 2147483648
  %v709 = vor.u32 1.1754944e-38, %v708
  %v710 = vsel %vm707, %v709, %v705
  %v711 = vmul.f32 1.0, %v710
  %v712 = vrcp.pop %v696
  %v713 = vmul.f32 %v696, %v712
  %v714 = vsub.f32 1.0, %v713
  %v715 = vmul.f32 %v712, %v714
  %v716 = vadd.f32 %v712, %v715
  %vm717 = vweird.f32 %v696
  %vm718 = vweird.f32 %v712
  %vm719 = vmor %vm717, %vm718
  %v720 = vsel %vm719, %v712, %v716
  %v721 = vand.u32 2147483647, %v696
  %vm722 = vcmp.eq.f32.partialorder %v721, 8.507059e+37
  %v723 = vand.u32 %v696, 2147483648
  %v724 = vor.u32 1.1754944e-38, %v723
  %v725 = vsel %vm722, %v724, %v720
  %v726 = vmul.f32 1.0, %v725
  %v727 = vtanh.pop %v656
  %v728 = vtanh.pop %v657
  %v729 = vmul.f32 %v711, %v519
  %v730 = vmul.f32 %v726, %v520
  %733 = vrot.lane.b32.xlu0 %v727, 32
  %v734 = vpop.permute.xlu0 %733
  %735 = vrot.lane.b32.xlu0 %v728, 32
  %v736 = vpop.permute.xlu0 %735
  %v739 = vmul.f32 %v711, %v734
  %v740 = vmul.f32 %v726, %v736
  %743 = vrot.lane.b32.xlu0 %v739, 32
  %v744 = vpop.permute.xlu0 %743
  %745 = vrot.lane.b32.xlu0 %v740, 32
  %v746 = vpop.permute.xlu0 %745
  %v749 = vadd.f32 %v729, %v744
  %v750 = vadd.f32 %v730, %v746
  %v751 = vtanh.pop %v749
  %v752 = vtanh.pop %v750
  %755 = vrot.lane.b32.xlu0 %v751, 32
  %v756 = vpop.permute.xlu0 %755
  %757 = vrot.lane.b32.xlu0 %v752, 32
  %v758 = vpop.permute.xlu0 %757
  %v761 = vmul.f32 %v711, %v756
  %v762 = vmul.f32 %v726, %v758
  %v763 = vxor.u32 %v687, 2147483648
  %v764 = vxor.u32 %v688, 2147483648
  %v765 = vmul.f32 %v763, 1.442695
  %v766 = vpow.pop %v765
  %v767 = vmul.f32 %v764, 1.442695
  %v768 = vpow.pop %v767
  %v769 = vadd.f32 %v766, 1.0
  %v770 = vadd.f32 %v768, 1.0
  %v771 = vrcp.pop %v769
  %v772 = vmul.f32 %v769, %v771
  %v773 = vsub.f32 1.0, %v772
  %v774 = vmul.f32 %v771, %v773
  %v775 = vadd.f32 %v771, %v774
  %vm776 = vweird.f32 %v769
  %vm777 = vweird.f32 %v771
  %vm778 = vmor %vm776, %vm777
  %v779 = vsel %vm778, %v771, %v775
  %v780 = vand.u32 2147483647, %v769
  %vm781 = vcmp.eq.f32.partialorder %v780, 8.507059e+37
  %v782 = vand.u32 %v769, 2147483648
  %v783 = vor.u32 1.1754944e-38, %v782
  %v784 = vsel %vm781, %v783, %v779
  %v785 = vmul.f32 1.0, %v784
  %v786 = vrcp.pop %v770
  %v787 = vmul.f32 %v770, %v786
  %v788 = vsub.f32 1.0, %v787
  %v789 = vmul.f32 %v786, %v788
  %v790 = vadd.f32 %v786, %v789
  %vm791 = vweird.f32 %v770
  %vm792 = vweird.f32 %v786
  %vm793 = vmor %vm791, %vm792
  %v794 = vsel %vm793, %v786, %v790
  %v795 = vand.u32 2147483647, %v770
  %vm796 = vcmp.eq.f32.partialorder %v795, 8.507059e+37
  %v797 = vand.u32 %v770, 2147483648
  %v798 = vor.u32 1.1754944e-38, %v797
  %v799 = vsel %vm796, %v798, %v794
  %v800 = vmul.f32 1.0, %v799
  %v801 = vtanh.pop %v687
  %v802 = vtanh.pop %v688
  %v803 = vmul.f32 %v785, %v593
  %v804 = vmul.f32 %v800, %v594
  %807 = vrot.lane.b32.xlu0 %v801, 32
  %v808 = vpop.permute.xlu0 %807
  %809 = vrot.lane.b32.xlu0 %v802, 32
  %v810 = vpop.permute.xlu0 %809
  %v813 = vmul.f32 %v785, %v808
  %v814 = vmul.f32 %v800, %v810
  %817 = vrot.lane.b32.xlu0 %v813, 32
  %v818 = vpop.permute.xlu0 %817
  %819 = vrot.lane.b32.xlu0 %v814, 32
  %v820 = vpop.permute.xlu0 %819
  %v823 = vadd.f32 %v803, %v818
  %v824 = vadd.f32 %v804, %v820
  %v825 = vtanh.pop %v823
  %v826 = vtanh.pop %v824
  %829 = vrot.lane.b32.xlu0 %v825, 32
  %v830 = vpop.permute.xlu0 %829
  %831 = vrot.lane.b32.xlu0 %v826, 32
  %v832 = vpop.permute.xlu0 %831
  %v835 = vmul.f32 %v785, %v830
  %v836 = vmul.f32 %v800, %v832
  %839 = vrot.lane.b32.xlu0 %v761, 64
  %v840 = vpop.permute.xlu0 %839
  %841 = vrot.lane.b32.xlu0 %v762, 64
  %v842 = vpop.permute.xlu0 %841
  %845 = vst.msk [vmem:[#allocation4 + $0x10] sm:$0xff] %vm403, %v840
  %846 = vst.msk [vmem:[#allocation4 + $0x18] sm:$0xff] %vm403, %v842
  %849 = vrot.lane.b32.xlu0 %v835, 64
  %v850 = vpop.permute.xlu0 %849
  %851 = vrot.lane.b32.xlu0 %v836, 64
  %v852 = vpop.permute.xlu0 %851
  %855 = vst.msk [vmem:[#allocation5 + $0x60] sm:$0xff] %vm403, %v850
  %856 = vst.msk [vmem:[#allocation5 + $0x68] sm:$0xff] %vm403, %v852
  %v857 = vld [vmem:[#allocation2 + $0x20] sm:$0xff]
  %v858 = vld [vmem:[#allocation2 + $0x28] sm:$0xff]
  %v859 = vsel %vm403, %v840, 0
  %v861 = vsel %vm403, %v842, 0
  %863 = vmatpush.msra.mxu0 0.0
  %864 = vmatpush.msra.mxu0 0.0
  %865 = vmatpush.msra.mxu0 0.0
  %866 = vmatpush.msra.mxu0 0.0
  %867 = vmatpush.msra.mxu0 0.0
  %868 = vmatpush.msra.mxu0 0.0
  %869 = vmatpush.msra.mxu0 0.0
  %870 = vmatpush.msra.mxu0 0.0
  %871 = vmatpush.msra.mxu0 0.0
  %872 = vmatpush.msra.mxu0 0.0
  %873 = vmatpush.msra.mxu0 0.0
  %874 = vmatpush.msra.mxu0 0.0
  %875 = vmatpush.msra.mxu0 %v396
  %876 = vmatpush.msra.mxu0 %v395
  %877 = vmatpush.msra.mxu0 %v394
  %878 = vmatpush.msra.mxu0 %v393
  %879 = vmatmul.f32.gmra.mxu0 %v859
  %v880 = vpop.f32.mrf.mxu0
  %v881 = vadd.f32 0.0, %v880
  %882 = vmatmul.f32.gmra.mxu0 %v861
  %v883 = vpop.f32.mrf.mxu0
  %v884 = vadd.f32 0.0, %v883
  %885 = vdwg.mxu0
  %v886 = vadd.f32 %v857, %v881
  %v887 = vadd.f32 %v858, %v884
  %v888 = vld [vmem:[#allocation3 + $0x50] sm:$0xff]
  %v889 = vld [vmem:[#allocation3 + $0x58] sm:$0xff]
  %v890 = vsel %vm403, %v850, 0
  %v892 = vsel %vm403, %v852, 0
  %894 = vmatpush.msra.mxu0 0.0
  %895 = vmatpush.msra.mxu0 0.0
  %896 = vmatpush.msra.mxu0 0.0
  %897 = vmatpush.msra.mxu0 0.0
  %898 = vmatpush.msra.mxu0 0.0
  %899 = vmatpush.msra.mxu0 0.0
  %900 = vmatpush.msra.mxu0 0.0
  %901 = vmatpush.msra.mxu0 0.0
  %902 = vmatpush.msra.mxu0 0.0
  %903 = vmatpush.msra.mxu0 0.0
  %904 = vmatpush.msra.mxu0 0.0
  %905 = vmatpush.msra.mxu0 0.0
  %906 = vmatpush.msra.mxu0 %v400
  %907 = vmatpush.msra.mxu0 %v399
  %908 = vmatpush.msra.mxu0 %v398
  %909 = vmatpush.msra.mxu0 %v397
  %910 = vmatmul.f32.gmra.mxu0 %v890
  %v911 = vpop.f32.mrf.mxu0
  %v912 = vadd.f32 0.0, %v911
  %913 = vmatmul.f32.gmra.mxu0 %v892
  %v914 = vpop.f32.mrf.mxu0
  %v915 = vadd.f32 0.0, %v914
  %916 = vdwg.mxu0
  %v917 = vadd.f32 %v888, %v912
  %v918 = vadd.f32 %v889, %v915
  %v919 = vxor.u32 %v886, 2147483648
  %v920 = vxor.u32 %v887, 2147483648
  %v921 = vmul.f32 %v919, 1.442695
  %v922 = vpow.pop %v921
  %v923 = vmul.f32 %v920, 1.442695
  %v924 = vpow.pop %v923
  %v925 = vadd.f32 %v922, 1.0
  %v926 = vadd.f32 %v924, 1.0
  %v927 = vrcp.pop %v925
  %v928 = vmul.f32 %v925, %v927
  %v929 = vsub.f32 1.0, %v928
  %v930 = vmul.f32 %v927, %v929
  %v931 = vadd.f32 %v927, %v930
  %vm932 = vweird.f32 %v925
  %vm933 = vweird.f32 %v927
  %vm934 = vmor %vm932, %vm933
  %v935 = vsel %vm934, %v927, %v931
  %v936 = vand.u32 2147483647, %v925
  %vm937 = vcmp.eq.f32.partialorder %v936, 8.507059e+37
  %v938 = vand.u32 %v925, 2147483648
  %v939 = vor.u32 1.1754944e-38, %v938
  %v940 = vsel %vm937, %v939, %v935
  %v941 = vmul.f32 1.0, %v940
  %v942 = vrcp.pop %v926
  %v943 = vmul.f32 %v926, %v942
  %v944 = vsub.f32 1.0, %v943
  %v945 = vmul.f32 %v942, %v944
  %v946 = vadd.f32 %v942, %v945
  %vm947 = vweird.f32 %v926
  %vm948 = vweird.f32 %v942
  %vm949 = vmor %vm947, %vm948
  %v950 = vsel %vm949, %v942, %v946
  %v951 = vand.u32 2147483647, %v926
  %vm952 = vcmp.eq.f32.partialorder %v951, 8.507059e+37
  %v953 = vand.u32 %v926, 2147483648
  %v954 = vor.u32 1.1754944e-38, %v953
  %v955 = vsel %vm952, %v954, %v950
  %v956 = vmul.f32 1.0, %v955
  %v957 = vtanh.pop %v886
  %v958 = vtanh.pop %v887
  %v959 = vmul.f32 %v941, %v749
  %v960 = vmul.f32 %v956, %v750
  %963 = vrot.lane.b32.xlu0 %v957, 32
  %v964 = vpop.permute.xlu0 %963
  %965 = vrot.lane.b32.xlu0 %v958, 32
  %v966 = vpop.permute.xlu0 %965
  %v969 = vmul.f32 %v941, %v964
  %v970 = vmul.f32 %v956, %v966
  %973 = vrot.lane.b32.xlu0 %v969, 32
  %v974 = vpop.permute.xlu0 %973
  %975 = vrot.lane.b32.xlu0 %v970, 32
  %v976 = vpop.permute.xlu0 %975
  %v979 = vadd.f32 %v959, %v974
  %v980 = vadd.f32 %v960, %v976
  %v981 = vtanh.pop %v979
  %v982 = vtanh.pop %v980
  %985 = vrot.lane.b32.xlu0 %v981, 32
  %v986 = vpop.permute.xlu0 %985
  %987 = vrot.lane.b32.xlu0 %v982, 32
  %v988 = vpop.permute.xlu0 %987
  %v991 = vmul.f32 %v941, %v986
  %v992 = vmul.f32 %v956, %v988
  %v993 = vxor.u32 %v917, 2147483648
  %v994 = vxor.u32 %v918, 2147483648
  %v995 = vmul.f32 %v993, 1.442695
  %v996 = vpow.pop %v995
  %v997 = vmul.f32 %v994, 1.442695
  %v998 = vpow.pop %v997
  %v999 = vadd.f32 %v996, 1.0
  %v1000 = vadd.f32 %v998, 1.0
  %v1001 = vrcp.pop %v999
  %v1002 = vmul.f32 %v999, %v1001
  %v1003 = vsub.f32 1.0, %v1002
  %v1004 = vmul.f32 %v1001, %v1003
  %v1005 = vadd.f32 %v1001, %v1004
  %vm1006 = vweird.f32 %v999
  %vm1007 = vweird.f32 %v1001
  %vm1008 = vmor %vm1006, %vm1007
  %v1009 = vsel %vm1008, %v1001, %v1005
  %v1010 = vand.u32 2147483647, %v999
  %vm1011 = vcmp.eq.f32.partialorder %v1010, 8.507059e+37
  %v1012 = vand.u32 %v999, 2147483648
  %v1013 = vor.u32 1.1754944e-38, %v1012
  %v1014 = vsel %vm1011, %v1013, %v1009
  %v1015 = vmul.f32 1.0, %v1014
  %v1016 = vrcp.pop %v1000
  %v1017 = vmul.f32 %v1000, %v1016
  %v1018 = vsub.f32 1.0, %v1017
  %v1019 = vmul.f32 %v1016, %v1018
  %v1020 = vadd.f32 %v1016, %v1019
  %vm1021 = vweird.f32 %v1000
  %vm1022 = vweird.f32 %v1016
  %vm1023 = vmor %vm1021, %vm1022
  %v1024 = vsel %vm1023, %v1016, %v1020
  %v1025 = vand.u32 2147483647, %v1000
  %vm1026 = vcmp.eq.f32.partialorder %v1025, 8.507059e+37
  %v1027 = vand.u32 %v1000, 2147483648
  %v1028 = vor.u32 1.1754944e-38, %v1027
  %v1029 = vsel %vm1026, %v1028, %v1024
  %v1030 = vmul.f32 1.0, %v1029
  %v1031 = vtanh.pop %v917
  %v1032 = vtanh.pop %v918
  %v1033 = vmul.f32 %v1015, %v823
  %v1034 = vmul.f32 %v1030, %v824
  %1037 = vrot.lane.b32.xlu0 %v1031, 32
  %v1038 = vpop.permute.xlu0 %1037
  %1039 = vrot.lane.b32.xlu0 %v1032, 32
  %v1040 = vpop.permute.xlu0 %1039
  %v1043 = vmul.f32 %v1015, %v1038
  %v1044 = vmul.f32 %v1030, %v1040
  %1047 = vrot.lane.b32.xlu0 %v1043, 32
  %v1048 = vpop.permute.xlu0 %1047
  %1049 = vrot.lane.b32.xlu0 %v1044, 32
  %v1050 = vpop.permute.xlu0 %1049
  %v1053 = vadd.f32 %v1033, %v1048
  %v1054 = vadd.f32 %v1034, %v1050
  %v1055 = vtanh.pop %v1053
  %v1056 = vtanh.pop %v1054
  %1059 = vrot.lane.b32.xlu0 %v1055, 32
  %v1060 = vpop.permute.xlu0 %1059
  %1061 = vrot.lane.b32.xlu0 %v1056, 32
  %v1062 = vpop.permute.xlu0 %1061
  %v1065 = vmul.f32 %v1015, %v1060
  %v1066 = vmul.f32 %v1030, %v1062
  %1069 = vrot.lane.b32.xlu0 %v991, 64
  %v1070 = vpop.permute.xlu0 %1069
  %1071 = vrot.lane.b32.xlu0 %v992, 64
  %v1072 = vpop.permute.xlu0 %1071
  %1075 = vst.msk [vmem:[#allocation4 + $0x20] sm:$0xff] %vm403, %v1070
  %1076 = vst.msk [vmem:[#allocation4 + $0x28] sm:$0xff] %vm403, %v1072
  %1079 = vrot.lane.b32.xlu0 %v1065, 64
  %v1080 = vpop.permute.xlu0 %1079
  %1081 = vrot.lane.b32.xlu0 %v1066, 64
  %v1082 = vpop.permute.xlu0 %1081
  %1085 = vst.msk [vmem:[#allocation5 + $0x50] sm:$0xff] %vm403, %v1080
  %1086 = vst.msk [vmem:[#allocation5 + $0x58] sm:$0xff] %vm403, %v1082
  %v1087 = vld [vmem:[#allocation2 + $0x30] sm:$0xff]
  %v1088 = vld [vmem:[#allocation2 + $0x38] sm:$0xff]
  %v1089 = vsel %vm403, %v1070, 0
  %v1091 = vsel %vm403, %v1072, 0
  %1093 = vmatpush.msra.mxu0 0.0
  %1094 = vmatpush.msra.mxu0 0.0
  %1095 = vmatpush.msra.mxu0 0.0
  %1096 = vmatpush.msra.mxu0 0.0
  %1097 = vmatpush.msra.mxu0 0.0
  %1098 = vmatpush.msra.mxu0 0.0
  %1099 = vmatpush.msra.mxu0 0.0
  %1100 = vmatpush.msra.mxu0 0.0
  %1101 = vmatpush.msra.mxu0 0.0
  %1102 = vmatpush.msra.mxu0 0.0
  %1103 = vmatpush.msra.mxu0 0.0
  %1104 = vmatpush.msra.mxu0 0.0
  %1105 = vmatpush.msra.mxu0 %v396
  %1106 = vmatpush.msra.mxu0 %v395
  %1107 = vmatpush.msra.mxu0 %v394
  %1108 = vmatpush.msra.mxu0 %v393
  %1109 = vmatmul.f32.gmra.mxu0 %v1089
  %v1110 = vpop.f32.mrf.mxu0
  %v1111 = vadd.f32 0.0, %v1110
  %1112 = vmatmul.f32.gmra.mxu0 %v1091
  %v1113 = vpop.f32.mrf.mxu0
  %v1114 = vadd.f32 0.0, %v1113
  %1115 = vdwg.mxu0
  %v1116 = vadd.f32 %v1087, %v1111
  %v1117 = vadd.f32 %v1088, %v1114
  %v1118 = vld [vmem:[#allocation3 + $0x40] sm:$0xff]
  %v1119 = vld [vmem:[#allocation3 + $0x48] sm:$0xff]
  %v1120 = vsel %vm403, %v1080, 0
  %v1122 = vsel %vm403, %v1082, 0
  %1124 = vmatpush.msra.mxu0 0.0
  %1125 = vmatpush.msra.mxu0 0.0
  %1126 = vmatpush.msra.mxu0 0.0
  %1127 = vmatpush.msra.mxu0 0.0
  %1128 = vmatpush.msra.mxu0 0.0
  %1129 = vmatpush.msra.mxu0 0.0
  %1130 = vmatpush.msra.mxu0 0.0
  %1131 = vmatpush.msra.mxu0 0.0
  %1132 = vmatpush.msra.mxu0 0.0
  %1133 = vmatpush.msra.mxu0 0.0
  %1134 = vmatpush.msra.mxu0 0.0
  %1135 = vmatpush.msra.mxu0 0.0
  %1136 = vmatpush.msra.mxu0 %v400
  %1137 = vmatpush.msra.mxu0 %v399
  %1138 = vmatpush.msra.mxu0 %v398
  %1139 = vmatpush.msra.mxu0 %v397
  %1140 = vmatmul.f32.gmra.mxu0 %v1120
  %v1141 = vpop.f32.mrf.mxu0
  %v1142 = vadd.f32 0.0, %v1141
  %1143 = vmatmul.f32.gmra.mxu0 %v1122
  %v1144 = vpop.f32.mrf.mxu0
  %v1145 = vadd.f32 0.0, %v1144
  %1146 = vdwg.mxu0
  %v1147 = vadd.f32 %v1118, %v1142
  %v1148 = vadd.f32 %v1119, %v1145
  %v1149 = vxor.u32 %v1116, 2147483648
  %v1150 = vxor.u32 %v1117, 2147483648
  %v1151 = vmul.f32 %v1149, 1.442695
  %v1152 = vpow.pop %v1151
  %v1153 = vmul.f32 %v1150, 1.442695
  %v1154 = vpow.pop %v1153
  %v1155 = vadd.f32 %v1152, 1.0
  %v1156 = vadd.f32 %v1154, 1.0
  %v1157 = vrcp.pop %v1155
  %v1158 = vmul.f32 %v1155, %v1157
  %v1159 = vsub.f32 1.0, %v1158
  %v1160 = vmul.f32 %v1157, %v1159
  %v1161 = vadd.f32 %v1157, %v1160
  %vm1162 = vweird.f32 %v1155
  %vm1163 = vweird.f32 %v1157
  %vm1164 = vmor %vm1162, %vm1163
  %v1165 = vsel %vm1164, %v1157, %v1161
  %v1166 = vand.u32 2147483647, %v1155
  %vm1167 = vcmp.eq.f32.partialorder %v1166, 8.507059e+37
  %v1168 = vand.u32 %v1155, 2147483648
  %v1169 = vor.u32 1.1754944e-38, %v1168
  %v1170 = vsel %vm1167, %v1169, %v1165
  %v1171 = vmul.f32 1.0, %v1170
  %v1172 = vrcp.pop %v1156
  %v1173 = vmul.f32 %v1156, %v1172
  %v1174 = vsub.f32 1.0, %v1173
  %v1175 = vmul.f32 %v1172, %v1174
  %v1176 = vadd.f32 %v1172, %v1175
  %vm1177 = vweird.f32 %v1156
  %vm1178 = vweird.f32 %v1172
  %vm1179 = vmor %vm1177, %vm1178
  %v1180 = vsel %vm1179, %v1172, %v1176
  %v1181 = vand.u32 2147483647, %v1156
  %vm1182 = vcmp.eq.f32.partialorder %v1181, 8.507059e+37
  %v1183 = vand.u32 %v1156, 2147483648
  %v1184 = vor.u32 1.1754944e-38, %v1183
  %v1185 = vsel %vm1182, %v1184, %v1180
  %v1186 = vmul.f32 1.0, %v1185
  %v1187 = vtanh.pop %v1116
  %v1188 = vtanh.pop %v1117
  %v1189 = vmul.f32 %v1171, %v979
  %v1190 = vmul.f32 %v1186, %v980
  %1193 = vrot.lane.b32.xlu0 %v1187, 32
  %v1194 = vpop.permute.xlu0 %1193
  %1195 = vrot.lane.b32.xlu0 %v1188, 32
  %v1196 = vpop.permute.xlu0 %1195
  %v1199 = vmul.f32 %v1171, %v1194
  %v1200 = vmul.f32 %v1186, %v1196
  %1203 = vrot.lane.b32.xlu0 %v1199, 32
  %v1204 = vpop.permute.xlu0 %1203
  %1205 = vrot.lane.b32.xlu0 %v1200, 32
  %v1206 = vpop.permute.xlu0 %1205
  %v1209 = vadd.f32 %v1189, %v1204
  %v1210 = vadd.f32 %v1190, %v1206
  %v1211 = vtanh.pop %v1209
  %v1212 = vtanh.pop %v1210
  %1215 = vrot.lane.b32.xlu0 %v1211, 32
  %v1216 = vpop.permute.xlu0 %1215
  %1217 = vrot.lane.b32.xlu0 %v1212, 32
  %v1218 = vpop.permute.xlu0 %1217
  %v1221 = vmul.f32 %v1171, %v1216
  %v1222 = vmul.f32 %v1186, %v1218
  %v1223 = vxor.u32 %v1147, 2147483648
  %v1224 = vxor.u32 %v1148, 2147483648
  %v1225 = vmul.f32 %v1223, 1.442695
  %v1226 = vpow.pop %v1225
  %v1227 = vmul.f32 %v1224, 1.442695
  %v1228 = vpow.pop %v1227
  %v1229 = vadd.f32 %v1226, 1.0
  %v1230 = vadd.f32 %v1228, 1.0
  %v1231 = vrcp.pop %v1229
  %v1232 = vmul.f32 %v1229, %v1231
  %v1233 = vsub.f32 1.0, %v1232
  %v1234 = vmul.f32 %v1231, %v1233
  %v1235 = vadd.f32 %v1231, %v1234
  %vm1236 = vweird.f32 %v1229
  %vm1237 = vweird.f32 %v1231
  %vm1238 = vmor %vm1236, %vm1237
  %v1239 = vsel %vm1238, %v1231, %v1235
  %v1240 = vand.u32 2147483647, %v1229
  %vm1241 = vcmp.eq.f32.partialorder %v1240, 8.507059e+37
  %v1242 = vand.u32 %v1229, 2147483648
  %v1243 = vor.u32 1.1754944e-38, %v1242
  %v1244 = vsel %vm1241, %v1243, %v1239
  %v1245 = vmul.f32 1.0, %v1244
  %v1246 = vrcp.pop %v1230
  %v1247 = vmul.f32 %v1230, %v1246
  %v1248 = vsub.f32 1.0, %v1247
  %v1249 = vmul.f32 %v1246, %v1248
  %v1250 = vadd.f32 %v1246, %v1249
  %vm1251 = vweird.f32 %v1230
  %vm1252 = vweird.f32 %v1246
  %vm1253 = vmor %vm1251, %vm1252
  %v1254 = vsel %vm1253, %v1246, %v1250
  %v1255 = vand.u32 2147483647, %v1230
  %vm1256 = vcmp.eq.f32.partialorder %v1255, 8.507059e+37
  %v1257 = vand.u32 %v1230, 2147483648
  %v1258 = vor.u32 1.1754944e-38, %v1257
  %v1259 = vsel %vm1256, %v1258, %v1254
  %v1260 = vmul.f32 1.0, %v1259
  %v1261 = vtanh.pop %v1147
  %v1262 = vtanh.pop %v1148
  %v1263 = vmul.f32 %v1245, %v1053
  %v1264 = vmul.f32 %v1260, %v1054
  %1267 = vrot.lane.b32.xlu0 %v1261, 32
  %v1268 = vpop.permute.xlu0 %1267
  %1269 = vrot.lane.b32.xlu0 %v1262, 32
  %v1270 = vpop.permute.xlu0 %1269
  %v1273 = vmul.f32 %v1245, %v1268
  %v1274 = vmul.f32 %v1260, %v1270
  %1277 = vrot.lane.b32.xlu0 %v1273, 32
  %v1278 = vpop.permute.xlu0 %1277
  %1279 = vrot.lane.b32.xlu0 %v1274, 32
  %v1280 = vpop.permute.xlu0 %1279
  %v1283 = vadd.f32 %v1263, %v1278
  %v1284 = vadd.f32 %v1264, %v1280
  %v1285 = vtanh.pop %v1283
  %v1286 = vtanh.pop %v1284
  %1289 = vrot.lane.b32.xlu0 %v1285, 32
  %v1290 = vpop.permute.xlu0 %1289
  %1291 = vrot.lane.b32.xlu0 %v1286, 32
  %v1292 = vpop.permute.xlu0 %1291
  %v1295 = vmul.f32 %v1245, %v1290
  %v1296 = vmul.f32 %v1260, %v1292
  %1299 = vrot.lane.b32.xlu0 %v1221, 64
  %v1300 = vpop.permute.xlu0 %1299
  %1301 = vrot.lane.b32.xlu0 %v1222, 64
  %v1302 = vpop.permute.xlu0 %1301
  %1305 = vst.msk [vmem:[#allocation4 + $0x30] sm:$0xff] %vm403, %v1300
  %1306 = vst.msk [vmem:[#allocation4 + $0x38] sm:$0xff] %vm403, %v1302
  %1309 = vrot.lane.b32.xlu0 %v1295, 64
  %v1310 = vpop.permute.xlu0 %1309
  %1311 = vrot.lane.b32.xlu0 %v1296, 64
  %v1312 = vpop.permute.xlu0 %1311
  %1315 = vst.msk [vmem:[#allocation5 + $0x40] sm:$0xff] %vm403, %v1310
  %1316 = vst.msk [vmem:[#allocation5 + $0x48] sm:$0xff] %vm403, %v1312
  %v1317 = vld [vmem:[#allocation2 + $0x40] sm:$0xff]
  %v1318 = vld [vmem:[#allocation2 + $0x48] sm:$0xff]
  %v1319 = vsel %vm403, %v1300, 0
  %v1321 = vsel %vm403, %v1302, 0
  %1323 = vmatpush.msra.mxu0 0.0
  %1324 = vmatpush.msra.mxu0 0.0
  %1325 = vmatpush.msra.mxu0 0.0
  %1326 = vmatpush.msra.mxu0 0.0
  %1327 = vmatpush.msra.mxu0 0.0
  %1328 = vmatpush.msra.mxu0 0.0
  %1329 = vmatpush.msra.mxu0 0.0
  %1330 = vmatpush.msra.mxu0 0.0
  %1331 = vmatpush.msra.mxu0 0.0
  %1332 = vmatpush.msra.mxu0 0.0
  %1333 = vmatpush.msra.mxu0 0.0
  %1334 = vmatpush.msra.mxu0 0.0
  %1335 = vmatpush.msra.mxu0 %v396
  %1336 = vmatpush.msra.mxu0 %v395
  %1337 = vmatpush.msra.mxu0 %v394
  %1338 = vmatpush.msra.mxu0 %v393
  %1339 = vmatmul.f32.gmra.mxu0 %v1319
  %v1340 = vpop.f32.mrf.mxu0
  %v1341 = vadd.f32 0.0, %v1340
  %1342 = vmatmul.f32.gmra.mxu0 %v1321
  %v1343 = vpop.f32.mrf.mxu0
  %v1344 = vadd.f32 0.0, %v1343
  %1345 = vdwg.mxu0
  %v1346 = vadd.f32 %v1317, %v1341
  %v1347 = vadd.f32 %v1318, %v1344
  %v1348 = vld [vmem:[#allocation3 + $0x30] sm:$0xff]
  %v1349 = vld [vmem:[#allocation3 + $0x38] sm:$0xff]
  %v1350 = vsel %vm403, %v1310, 0
  %v1352 = vsel %vm403, %v1312, 0
  %1354 = vmatpush.msra.mxu0 0.0
  %1355 = vmatpush.msra.mxu0 0.0
  %1356 = vmatpush.msra.mxu0 0.0
  %1357 = vmatpush.msra.mxu0 0.0
  %1358 = vmatpush.msra.mxu0 0.0
  %1359 = vmatpush.msra.mxu0 0.0
  %1360 = vmatpush.msra.mxu0 0.0
  %1361 = vmatpush.msra.mxu0 0.0
  %1362 = vmatpush.msra.mxu0 0.0
  %1363 = vmatpush.msra.mxu0 0.0
  %1364 = vmatpush.msra.mxu0 0.0
  %1365 = vmatpush.msra.mxu0 0.0
  %1366 = vmatpush.msra.mxu0 %v400
  %1367 = vmatpush.msra.mxu0 %v399
  %1368 = vmatpush.msra.mxu0 %v398
  %1369 = vmatpush.msra.mxu0 %v397
  %1370 = vmatmul.f32.gmra.mxu0 %v1350
  %v1371 = vpop.f32.mrf.mxu0
  %v1372 = vadd.f32 0.0, %v1371
  %1373 = vmatmul.f32.gmra.mxu0 %v1352
  %v1374 = vpop.f32.mrf.mxu0
  %v1375 = vadd.f32 0.0, %v1374
  %1376 = vdwg.mxu0
  %v1377 = vadd.f32 %v1348, %v1372
  %v1378 = vadd.f32 %v1349, %v1375
  %v1379 = vxor.u32 %v1346, 2147483648
  %v1380 = vxor.u32 %v1347, 2147483648
  %v1381 = vmul.f32 %v1379, 1.442695
  %v1382 = vpow.pop %v1381
  %v1383 = vmul.f32 %v1380, 1.442695
  %v1384 = vpow.pop %v1383
  %v1385 = vadd.f32 %v1382, 1.0
  %v1386 = vadd.f32 %v1384, 1.0
  %v1387 = vrcp.pop %v1385
  %v1388 = vmul.f32 %v1385, %v1387
  %v1389 = vsub.f32 1.0, %v1388
  %v1390 = vmul.f32 %v1387, %v1389
  %v1391 = vadd.f32 %v1387, %v1390
  %vm1392 = vweird.f32 %v1385
  %vm1393 = vweird.f32 %v1387
  %vm1394 = vmor %vm1392, %vm1393
  %v1395 = vsel %vm1394, %v1387, %v1391
  %v1396 = vand.u32 2147483647, %v1385
  %vm1397 = vcmp.eq.f32.partialorder %v1396, 8.507059e+37
  %v1398 = vand.u32 %v1385, 2147483648
  %v1399 = vor.u32 1.1754944e-38, %v1398
  %v1400 = vsel %vm1397, %v1399, %v1395
  %v1401 = vmul.f32 1.0, %v1400
  %v1402 = vrcp.pop %v1386
  %v1403 = vmul.f32 %v1386, %v1402
  %v1404 = vsub.f32 1.0, %v1403
  %v1405 = vmul.f32 %v1402, %v1404
  %v1406 = vadd.f32 %v1402, %v1405
  %vm1407 = vweird.f32 %v1386
  %vm1408 = vweird.f32 %v1402
  %vm1409 = vmor %vm1407, %vm1408
  %v1410 = vsel %vm1409, %v1402, %v1406
  %v1411 = vand.u32 2147483647, %v1386
  %vm1412 = vcmp.eq.f32.partialorder %v1411, 8.507059e+37
  %v1413 = vand.u32 %v1386, 2147483648
  %v1414 = vor.u32 1.1754944e-38, %v1413
  %v1415 = vsel %vm1412, %v1414, %v1410
  %v1416 = vmul.f32 1.0, %v1415
  %v1417 = vtanh.pop %v1346
  %v1418 = vtanh.pop %v1347
  %v1419 = vmul.f32 %v1401, %v1209
  %v1420 = vmul.f32 %v1416, %v1210
  %1423 = vrot.lane.b32.xlu0 %v1417, 32
  %v1424 = vpop.permute.xlu0 %1423
  %1425 = vrot.lane.b32.xlu0 %v1418, 32
  %v1426 = vpop.permute.xlu0 %1425
  %v1429 = vmul.f32 %v1401, %v1424
  %v1430 = vmul.f32 %v1416, %v1426
  %1433 = vrot.lane.b32.xlu0 %v1429, 32
  %v1434 = vpop.permute.xlu0 %1433
  %1435 = vrot.lane.b32.xlu0 %v1430, 32
  %v1436 = vpop.permute.xlu0 %1435
  %v1439 = vadd.f32 %v1419, %v1434
  %v1440 = vadd.f32 %v1420, %v1436
  %v1441 = vtanh.pop %v1439
  %v1442 = vtanh.pop %v1440
  %1445 = vrot.lane.b32.xlu0 %v1441, 32
  %v1446 = vpop.permute.xlu0 %1445
  %1447 = vrot.lane.b32.xlu0 %v1442, 32
  %v1448 = vpop.permute.xlu0 %1447
  %v1451 = vmul.f32 %v1401, %v1446
  %v1452 = vmul.f32 %v1416, %v1448
  %v1453 = vxor.u32 %v1377, 2147483648
  %v1454 = vxor.u32 %v1378, 2147483648
  %v1455 = vmul.f32 %v1453, 1.442695
  %v1456 = vpow.pop %v1455
  %v1457 = vmul.f32 %v1454, 1.442695
  %v1458 = vpow.pop %v1457
  %v1459 = vadd.f32 %v1456, 1.0
  %v1460 = vadd.f32 %v1458, 1.0
  %v1461 = vrcp.pop %v1459
  %v1462 = vmul.f32 %v1459, %v1461
  %v1463 = vsub.f32 1.0, %v1462
  %v1464 = vmul.f32 %v1461, %v1463
  %v1465 = vadd.f32 %v1461, %v1464
  %vm1466 = vweird.f32 %v1459
  %vm1467 = vweird.f32 %v1461
  %vm1468 = vmor %vm1466, %vm1467
  %v1469 = vsel %vm1468, %v1461, %v1465
  %v1470 = vand.u32 2147483647, %v1459
  %vm1471 = vcmp.eq.f32.partialorder %v1470, 8.507059e+37
  %v1472 = vand.u32 %v1459, 2147483648
  %v1473 = vor.u32 1.1754944e-38, %v1472
  %v1474 = vsel %vm1471, %v1473, %v1469
  %v1475 = vmul.f32 1.0, %v1474
  %v1476 = vrcp.pop %v1460
  %v1477 = vmul.f32 %v1460, %v1476
  %v1478 = vsub.f32 1.0, %v1477
  %v1479 = vmul.f32 %v1476, %v1478
  %v1480 = vadd.f32 %v1476, %v1479
  %vm1481 = vweird.f32 %v1460
  %vm1482 = vweird.f32 %v1476
  %vm1483 = vmor %vm1481, %vm1482
  %v1484 = vsel %vm1483, %v1476, %v1480
  %v1485 = vand.u32 2147483647, %v1460
  %vm1486 = vcmp.eq.f32.partialorder %v1485, 8.507059e+37
  %v1487 = vand.u32 %v1460, 2147483648
  %v1488 = vor.u32 1.1754944e-38, %v1487
  %v1489 = vsel %vm1486, %v1488, %v1484
  %v1490 = vmul.f32 1.0, %v1489
  %v1491 = vtanh.pop %v1377
  %v1492 = vtanh.pop %v1378
  %v1493 = vmul.f32 %v1475, %v1283
  %v1494 = vmul.f32 %v1490, %v1284
  %1497 = vrot.lane.b32.xlu0 %v1491, 32
  %v1498 = vpop.permute.xlu0 %1497
  %1499 = vrot.lane.b32.xlu0 %v1492, 32
  %v1500 = vpop.permute.xlu0 %1499
  %v1503 = vmul.f32 %v1475, %v1498
  %v1504 = vmul.f32 %v1490, %v1500
  %1507 = vrot.lane.b32.xlu0 %v1503, 32
  %v1508 = vpop.permute.xlu0 %1507
  %1509 = vrot.lane.b32.xlu0 %v1504, 32
  %v1510 = vpop.permute.xlu0 %1509
  %v1513 = vadd.f32 %v1493, %v1508
  %v1514 = vadd.f32 %v1494, %v1510
  %v1515 = vtanh.pop %v1513
  %v1516 = vtanh.pop %v1514
  %1519 = vrot.lane.b32.xlu0 %v1515, 32
  %v1520 = vpop.permute.xlu0 %1519
  %1521 = vrot.lane.b32.xlu0 %v1516, 32
  %v1522 = vpop.permute.xlu0 %1521
  %v1525 = vmul.f32 %v1475, %v1520
  %v1526 = vmul.f32 %v1490, %v1522
  %1529 = vrot.lane.b32.xlu0 %v1451, 64
  %v1530 = vpop.permute.xlu0 %1529
  %1531 = vrot.lane.b32.xlu0 %v1452, 64
  %v1532 = vpop.permute.xlu0 %1531
  %1535 = vst.msk [vmem:[#allocation4 + $0x40] sm:$0xff] %vm403, %v1530
  %1536 = vst.msk [vmem:[#allocation4 + $0x48] sm:$0xff] %vm403, %v1532
  %1539 = vrot.lane.b32.xlu0 %v1525, 64
  %v1540 = vpop.permute.xlu0 %1539
  %1541 = vrot.lane.b32.xlu0 %v1526, 64
  %v1542 = vpop.permute.xlu0 %1541
  %1545 = vst.msk [vmem:[#allocation5 + $0x30] sm:$0xff] %vm403, %v1540
  %1546 = vst.msk [vmem:[#allocation5 + $0x38] sm:$0xff] %vm403, %v1542
  %v1547 = vld [vmem:[#allocation2 + $0x50] sm:$0xff]
  %v1548 = vld [vmem:[#allocation2 + $0x58] sm:$0xff]
  %v1549 = vsel %vm403, %v1530, 0
  %v1551 = vsel %vm403, %v1532, 0
  %1553 = vmatpush.msra.mxu0 0.0
  %1554 = vmatpush.msra.mxu0 0.0
  %1555 = vmatpush.msra.mxu0 0.0
  %1556 = vmatpush.msra.mxu0 0.0
  %1557 = vmatpush.msra.mxu0 0.0
  %1558 = vmatpush.msra.mxu0 0.0
  %1559 = vmatpush.msra.mxu0 0.0
  %1560 = vmatpush.msra.mxu0 0.0
  %1561 = vmatpush.msra.mxu0 0.0
  %1562 = vmatpush.msra.mxu0 0.0
  %1563 = vmatpush.msra.mxu0 0.0
  %1564 = vmatpush.msra.mxu0 0.0
  %1565 = vmatpush.msra.mxu0 %v396
  %1566 = vmatpush.msra.mxu0 %v395
  %1567 = vmatpush.msra.mxu0 %v394
  %1568 = vmatpush.msra.mxu0 %v393
  %1569 = vmatmul.f32.gmra.mxu0 %v1549
  %v1570 = vpop.f32.mrf.mxu0
  %v1571 = vadd.f32 0.0, %v1570
  %1572 = vmatmul.f32.gmra.mxu0 %v1551
  %v1573 = vpop.f32.mrf.mxu0
  %v1574 = vadd.f32 0.0, %v1573
  %1575 = vdwg.mxu0
  %v1576 = vadd.f32 %v1547, %v1571
  %v1577 = vadd.f32 %v1548, %v1574
  %v1578 = vld [vmem:[#allocation3 + $0x20] sm:$0xff]
  %v1579 = vld [vmem:[#allocation3 + $0x28] sm:$0xff]
  %v1580 = vsel %vm403, %v1540, 0
  %v1582 = vsel %vm403, %v1542, 0
  %1584 = vmatpush.msra.mxu0 0.0
  %1585 = vmatpush.msra.mxu0 0.0
  %1586 = vmatpush.msra.mxu0 0.0
  %1587 = vmatpush.msra.mxu0 0.0
  %1588 = vmatpush.msra.mxu0 0.0
  %1589 = vmatpush.msra.mxu0 0.0
  %1590 = vmatpush.msra.mxu0 0.0
  %1591 = vmatpush.msra.mxu0 0.0
  %1592 = vmatpush.msra.mxu0 0.0
  %1593 = vmatpush.msra.mxu0 0.0
  %1594 = vmatpush.msra.mxu0 0.0
  %1595 = vmatpush.msra.mxu0 0.0
  %1596 = vmatpush.msra.mxu0 %v400
  %1597 = vmatpush.msra.mxu0 %v399
  %1598 = vmatpush.msra.mxu0 %v398
  %1599 = vmatpush.msra.mxu0 %v397
  %1600 = vmatmul.f32.gmra.mxu0 %v1580
  %v1601 = vpop.f32.mrf.mxu0
  %v1602 = vadd.f32 0.0, %v1601
  %1603 = vmatmul.f32.gmra.mxu0 %v1582
  %v1604 = vpop.f32.mrf.mxu0
  %v1605 = vadd.f32 0.0, %v1604
  %1606 = vdwg.mxu0
  %v1607 = vadd.f32 %v1578, %v1602
  %v1608 = vadd.f32 %v1579, %v1605
  %v1609 = vxor.u32 %v1576, 2147483648
  %v1610 = vxor.u32 %v1577, 2147483648
  %v1611 = vmul.f32 %v1609, 1.442695
  %v1612 = vpow.pop %v1611
  %v1613 = vmul.f32 %v1610, 1.442695
  %v1614 = vpow.pop %v1613
  %v1615 = vadd.f32 %v1612, 1.0
  %v1616 = vadd.f32 %v1614, 1.0
  %v1617 = vrcp.pop %v1615
  %v1618 = vmul.f32 %v1615, %v1617
  %v1619 = vsub.f32 1.0, %v1618
  %v1620 = vmul.f32 %v1617, %v1619
  %v1621 = vadd.f32 %v1617, %v1620
  %vm1622 = vweird.f32 %v1615
  %vm1623 = vweird.f32 %v1617
  %vm1624 = vmor %vm1622, %vm1623
  %v1625 = vsel %vm1624, %v1617, %v1621
  %v1626 = vand.u32 2147483647, %v1615
  %vm1627 = vcmp.eq.f32.partialorder %v1626, 8.507059e+37
  %v1628 = vand.u32 %v1615, 2147483648
  %v1629 = vor.u32 1.1754944e-38, %v1628
  %v1630 = vsel %vm1627, %v1629, %v1625
  %v1631 = vmul.f32 1.0, %v1630
  %v1632 = vrcp.pop %v1616
  %v1633 = vmul.f32 %v1616, %v1632
  %v1634 = vsub.f32 1.0, %v1633
  %v1635 = vmul.f32 %v1632, %v1634
  %v1636 = vadd.f32 %v1632, %v1635
  %vm1637 = vweird.f32 %v1616
  %vm1638 = vweird.f32 %v1632
  %vm1639 = vmor %vm1637, %vm1638
  %v1640 = vsel %vm1639, %v1632, %v1636
  %v1641 = vand.u32 2147483647, %v1616
  %vm1642 = vcmp.eq.f32.partialorder %v1641, 8.507059e+37
  %v1643 = vand.u32 %v1616, 2147483648
  %v1644 = vor.u32 1.1754944e-38, %v1643
  %v1645 = vsel %vm1642, %v1644, %v1640
  %v1646 = vmul.f32 1.0, %v1645
  %v1647 = vtanh.pop %v1576
  %v1648 = vtanh.pop %v1577
  %v1649 = vmul.f32 %v1631, %v1439
  %v1650 = vmul.f32 %v1646, %v1440
  %1653 = vrot.lane.b32.xlu0 %v1647, 32
  %v1654 = vpop.permute.xlu0 %1653
  %1655 = vrot.lane.b32.xlu0 %v1648, 32
  %v1656 = vpop.permute.xlu0 %1655
  %v1659 = vmul.f32 %v1631, %v1654
  %v1660 = vmul.f32 %v1646, %v1656
  %1663 = vrot.lane.b32.xlu0 %v1659, 32
  %v1664 = vpop.permute.xlu0 %1663
  %1665 = vrot.lane.b32.xlu0 %v1660, 32
  %v1666 = vpop.permute.xlu0 %1665
  %v1669 = vadd.f32 %v1649, %v1664
  %v1670 = vadd.f32 %v1650, %v1666
  %v1671 = vtanh.pop %v1669
  %v1672 = vtanh.pop %v1670
  %1675 = vrot.lane.b32.xlu0 %v1671, 32
  %v1676 = vpop.permute.xlu0 %1675
  %1677 = vrot.lane.b32.xlu0 %v1672, 32
  %v1678 = vpop.permute.xlu0 %1677
  %v1681 = vmul.f32 %v1631, %v1676
  %v1682 = vmul.f32 %v1646, %v1678
  %v1683 = vxor.u32 %v1607, 2147483648
  %v1684 = vxor.u32 %v1608, 2147483648
  %v1685 = vmul.f32 %v1683, 1.442695
  %v1686 = vpow.pop %v1685
  %v1687 = vmul.f32 %v1684, 1.442695
  %v1688 = vpow.pop %v1687
  %v1689 = vadd.f32 %v1686, 1.0
  %v1690 = vadd.f32 %v1688, 1.0
  %v1691 = vrcp.pop %v1689
  %v1692 = vmul.f32 %v1689, %v1691
  %v1693 = vsub.f32 1.0, %v1692
  %v1694 = vmul.f32 %v1691, %v1693
  %v1695 = vadd.f32 %v1691, %v1694
  %vm1696 = vweird.f32 %v1689
  %vm1697 = vweird.f32 %v1691
  %vm1698 = vmor %vm1696, %vm1697
  %v1699 = vsel %vm1698, %v1691, %v1695
  %v1700 = vand.u32 2147483647, %v1689
  %vm1701 = vcmp.eq.f32.partialorder %v1700, 8.507059e+37
  %v1702 = vand.u32 %v1689, 2147483648
  %v1703 = vor.u32 1.1754944e-38, %v1702
  %v1704 = vsel %vm1701, %v1703, %v1699
  %v1705 = vmul.f32 1.0, %v1704
  %v1706 = vrcp.pop %v1690
  %v1707 = vmul.f32 %v1690, %v1706
  %v1708 = vsub.f32 1.0, %v1707
  %v1709 = vmul.f32 %v1706, %v1708
  %v1710 = vadd.f32 %v1706, %v1709
  %vm1711 = vweird.f32 %v1690
  %vm1712 = vweird.f32 %v1706
  %vm1713 = vmor %vm1711, %vm1712
  %v1714 = vsel %vm1713, %v1706, %v1710
  %v1715 = vand.u32 2147483647, %v1690
  %vm1716 = vcmp.eq.f32.partialorder %v1715, 8.507059e+37
  %v1717 = vand.u32 %v1690, 2147483648
  %v1718 = vor.u32 1.1754944e-38, %v1717
  %v1719 = vsel %vm1716, %v1718, %v1714
  %v1720 = vmul.f32 1.0, %v1719
  %v1721 = vtanh.pop %v1607
  %v1722 = vtanh.pop %v1608
  %v1723 = vmul.f32 %v1705, %v1513
  %v1724 = vmul.f32 %v1720, %v1514
  %1727 = vrot.lane.b32.xlu0 %v1721, 32
  %v1728 = vpop.permute.xlu0 %1727
  %1729 = vrot.lane.b32.xlu0 %v1722, 32
  %v1730 = vpop.permute.xlu0 %1729
  %v1733 = vmul.f32 %v1705, %v1728
  %v1734 = vmul.f32 %v1720, %v1730
  %1737 = vrot.lane.b32.xlu0 %v1733, 32
  %v1738 = vpop.permute.xlu0 %1737
  %1739 = vrot.lane.b32.xlu0 %v1734, 32
  %v1740 = vpop.permute.xlu0 %1739
  %v1743 = vadd.f32 %v1723, %v1738
  %v1744 = vadd.f32 %v1724, %v1740
  %v1745 = vtanh.pop %v1743
  %v1746 = vtanh.pop %v1744
  %1749 = vrot.lane.b32.xlu0 %v1745, 32
  %v1750 = vpop.permute.xlu0 %1749
  %1751 = vrot.lane.b32.xlu0 %v1746, 32
  %v1752 = vpop.permute.xlu0 %1751
  %v1755 = vmul.f32 %v1705, %v1750
  %v1756 = vmul.f32 %v1720, %v1752
  %1759 = vrot.lane.b32.xlu0 %v1681, 64
  %v1760 = vpop.permute.xlu0 %1759
  %1761 = vrot.lane.b32.xlu0 %v1682, 64
  %v1762 = vpop.permute.xlu0 %1761
  %1765 = vst.msk [vmem:[#allocation4 + $0x50] sm:$0xff] %vm403, %v1760
  %1766 = vst.msk [vmem:[#allocation4 + $0x58] sm:$0xff] %vm403, %v1762
  %1769 = vrot.lane.b32.xlu0 %v1755, 64
  %v1770 = vpop.permute.xlu0 %1769
  %1771 = vrot.lane.b32.xlu0 %v1756, 64
  %v1772 = vpop.permute.xlu0 %1771
  %1775 = vst.msk [vmem:[#allocation5 + $0x20] sm:$0xff] %vm403, %v1770
  %1776 = vst.msk [vmem:[#allocation5 + $0x28] sm:$0xff] %vm403, %v1772
  %v1777 = vld [vmem:[#allocation2 + $0x60] sm:$0xff]
  %v1778 = vld [vmem:[#allocation2 + $0x68] sm:$0xff]
  %v1779 = vsel %vm403, %v1760, 0
  %v1781 = vsel %vm403, %v1762, 0
  %1783 = vmatpush.msra.mxu0 0.0
  %1784 = vmatpush.msra.mxu0 0.0
  %1785 = vmatpush.msra.mxu0 0.0
  %1786 = vmatpush.msra.mxu0 0.0
  %1787 = vmatpush.msra.mxu0 0.0
  %1788 = vmatpush.msra.mxu0 0.0
  %1789 = vmatpush.msra.mxu0 0.0
  %1790 = vmatpush.msra.mxu0 0.0
  %1791 = vmatpush.msra.mxu0 0.0
  %1792 = vmatpush.msra.mxu0 0.0
  %1793 = vmatpush.msra.mxu0 0.0
  %1794 = vmatpush.msra.mxu0 0.0
  %1795 = vmatpush.msra.mxu0 %v396
  %1796 = vmatpush.msra.mxu0 %v395
  %1797 = vmatpush.msra.mxu0 %v394
  %1798 = vmatpush.msra.mxu0 %v393
  %1799 = vmatmul.f32.gmra.mxu0 %v1779
  %v1800 = vpop.f32.mrf.mxu0
  %v1801 = vadd.f32 0.0, %v1800
  %1802 = vmatmul.f32.gmra.mxu0 %v1781
  %v1803 = vpop.f32.mrf.mxu0
  %v1804 = vadd.f32 0.0, %v1803
  %1805 = vdwg.mxu0
  %v1806 = vadd.f32 %v1777, %v1801
  %v1807 = vadd.f32 %v1778, %v1804
  %v1808 = vld [vmem:[#allocation3 + $0x10] sm:$0xff]
  %v1809 = vld [vmem:[#allocation3 + $0x18] sm:$0xff]
  %v1810 = vsel %vm403, %v1770, 0
  %v1812 = vsel %vm403, %v1772, 0
  %1814 = vmatpush.msra.mxu0 0.0
  %1815 = vmatpush.msra.mxu0 0.0
  %1816 = vmatpush.msra.mxu0 0.0
  %1817 = vmatpush.msra.mxu0 0.0
  %1818 = vmatpush.msra.mxu0 0.0
  %1819 = vmatpush.msra.mxu0 0.0
  %1820 = vmatpush.msra.mxu0 0.0
  %1821 = vmatpush.msra.mxu0 0.0
  %1822 = vmatpush.msra.mxu0 0.0
  %1823 = vmatpush.msra.mxu0 0.0
  %1824 = vmatpush.msra.mxu0 0.0
  %1825 = vmatpush.msra.mxu0 0.0
  %1826 = vmatpush.msra.mxu0 %v400
  %1827 = vmatpush.msra.mxu0 %v399
  %1828 = vmatpush.msra.mxu0 %v398
  %1829 = vmatpush.msra.mxu0 %v397
  %1830 = vmatmul.f32.gmra.mxu0 %v1810
  %v1831 = vpop.f32.mrf.mxu0
  %v1832 = vadd.f32 0.0, %v1831
  %1833 = vmatmul.f32.gmra.mxu0 %v1812
  %v1834 = vpop.f32.mrf.mxu0
  %v1835 = vadd.f32 0.0, %v1834
  %1836 = vdwg.mxu0
  %v1837 = vadd.f32 %v1808, %v1832
  %v1838 = vadd.f32 %v1809, %v1835
  %v1839 = vxor.u32 %v1806, 2147483648
  %v1840 = vxor.u32 %v1807, 2147483648
  %v1841 = vmul.f32 %v1839, 1.442695
  %v1842 = vpow.pop %v1841
  %v1843 = vmul.f32 %v1840, 1.442695
  %v1844 = vpow.pop %v1843
  %v1845 = vadd.f32 %v1842, 1.0
  %v1846 = vadd.f32 %v1844, 1.0
  %v1847 = vrcp.pop %v1845
  %v1848 = vmul.f32 %v1845, %v1847
  %v1849 = vsub.f32 1.0, %v1848
  %v1850 = vmul.f32 %v1847, %v1849
  %v1851 = vadd.f32 %v1847, %v1850
  %vm1852 = vweird.f32 %v1845
  %vm1853 = vweird.f32 %v1847
  %vm1854 = vmor %vm1852, %vm1853
  %v1855 = vsel %vm1854, %v1847, %v1851
  %v1856 = vand.u32 2147483647, %v1845
  %vm1857 = vcmp.eq.f32.partialorder %v1856, 8.507059e+37
  %v1858 = vand.u32 %v1845, 2147483648
  %v1859 = vor.u32 1.1754944e-38, %v1858
  %v1860 = vsel %vm1857, %v1859, %v1855
  %v1861 = vmul.f32 1.0, %v1860
  %v1862 = vrcp.pop %v1846
  %v1863 = vmul.f32 %v1846, %v1862
  %v1864 = vsub.f32 1.0, %v1863
  %v1865 = vmul.f32 %v1862, %v1864
  %v1866 = vadd.f32 %v1862, %v1865
  %vm1867 = vweird.f32 %v1846
  %vm1868 = vweird.f32 %v1862
  %vm1869 = vmor %vm1867, %vm1868
  %v1870 = vsel %vm1869, %v1862, %v1866
  %v1871 = vand.u32 2147483647, %v1846
  %vm1872 = vcmp.eq.f32.partialorder %v1871, 8.507059e+37
  %v1873 = vand.u32 %v1846, 2147483648
  %v1874 = vor.u32 1.1754944e-38, %v1873
  %v1875 = vsel %vm1872, %v1874, %v1870
  %v1876 = vmul.f32 1.0, %v1875
  %v1877 = vtanh.pop %v1806
  %v1878 = vtanh.pop %v1807
  %v1879 = vmul.f32 %v1861, %v1669
  %v1880 = vmul.f32 %v1876, %v1670
  %1883 = vrot.lane.b32.xlu0 %v1877, 32
  %v1884 = vpop.permute.xlu0 %1883
  %1885 = vrot.lane.b32.xlu0 %v1878, 32
  %v1886 = vpop.permute.xlu0 %1885
  %v1889 = vmul.f32 %v1861, %v1884
  %v1890 = vmul.f32 %v1876, %v1886
  %1893 = vrot.lane.b32.xlu0 %v1889, 32
  %v1894 = vpop.permute.xlu0 %1893
  %1895 = vrot.lane.b32.xlu0 %v1890, 32
  %v1896 = vpop.permute.xlu0 %1895
  %v1899 = vadd.f32 %v1879, %v1894
  %v1900 = vadd.f32 %v1880, %v1896
  %v1901 = vtanh.pop %v1899
  %v1902 = vtanh.pop %v1900
  %1905 = vrot.lane.b32.xlu0 %v1901, 32
  %v1906 = vpop.permute.xlu0 %1905
  %1907 = vrot.lane.b32.xlu0 %v1902, 32
  %v1908 = vpop.permute.xlu0 %1907
  %v1911 = vmul.f32 %v1861, %v1906
  %v1912 = vmul.f32 %v1876, %v1908
  %v1913 = vxor.u32 %v1837, 2147483648
  %v1914 = vxor.u32 %v1838, 2147483648
  %v1915 = vmul.f32 %v1913, 1.442695
  %v1916 = vpow.pop %v1915
  %v1917 = vmul.f32 %v1914, 1.442695
  %v1918 = vpow.pop %v1917
  %v1919 = vadd.f32 %v1916, 1.0
  %v1920 = vadd.f32 %v1918, 1.0
  %v1921 = vrcp.pop %v1919
  %v1922 = vmul.f32 %v1919, %v1921
  %v1923 = vsub.f32 1.0, %v1922
  %v1924 = vmul.f32 %v1921, %v1923
  %v1925 = vadd.f32 %v1921, %v1924
  %vm1926 = vweird.f32 %v1919
  %vm1927 = vweird.f32 %v1921
  %vm1928 = vmor %vm1926, %vm1927
  %v1929 = vsel %vm1928, %v1921, %v1925
  %v1930 = vand.u32 2147483647, %v1919
  %vm1931 = vcmp.eq.f32.partialorder %v1930, 8.507059e+37
  %v1932 = vand.u32 %v1919, 2147483648
  %v1933 = vor.u32 1.1754944e-38, %v1932
  %v1934 = vsel %vm1931, %v1933, %v1929
  %v1935 = vmul.f32 1.0, %v1934
  %v1936 = vrcp.pop %v1920
  %v1937 = vmul.f32 %v1920, %v1936
  %v1938 = vsub.f32 1.0, %v1937
  %v1939 = vmul.f32 %v1936, %v1938
  %v1940 = vadd.f32 %v1936, %v1939
  %vm1941 = vweird.f32 %v1920
  %vm1942 = vweird.f32 %v1936
  %vm1943 = vmor %vm1941, %vm1942
  %v1944 = vsel %vm1943, %v1936, %v1940
  %v1945 = vand.u32 2147483647, %v1920
  %vm1946 = vcmp.eq.f32.partialorder %v1945, 8.507059e+37
  %v1947 = vand.u32 %v1920, 2147483648
  %v1948 = vor.u32 1.1754944e-38, %v1947
  %v1949 = vsel %vm1946, %v1948, %v1944
  %v1950 = vmul.f32 1.0, %v1949
  %v1951 = vtanh.pop %v1837
  %v1952 = vtanh.pop %v1838
  %v1953 = vmul.f32 %v1935, %v1743
  %v1954 = vmul.f32 %v1950, %v1744
  %1957 = vrot.lane.b32.xlu0 %v1951, 32
  %v1958 = vpop.permute.xlu0 %1957
  %1959 = vrot.lane.b32.xlu0 %v1952, 32
  %v1960 = vpop.permute.xlu0 %1959
  %v1963 = vmul.f32 %v1935, %v1958
  %v1964 = vmul.f32 %v1950, %v1960
  %1967 = vrot.lane.b32.xlu0 %v1963, 32
  %v1968 = vpop.permute.xlu0 %1967
  %1969 = vrot.lane.b32.xlu0 %v1964, 32
  %v1970 = vpop.permute.xlu0 %1969
  %v1973 = vadd.f32 %v1953, %v1968
  %v1974 = vadd.f32 %v1954, %v1970
  %v1975 = vtanh.pop %v1973
  %v1976 = vtanh.pop %v1974
  %1979 = vrot.lane.b32.xlu0 %v1975, 32
  %v1980 = vpop.permute.xlu0 %1979
  %1981 = vrot.lane.b32.xlu0 %v1976, 32
  %v1982 = vpop.permute.xlu0 %1981
  %v1985 = vmul.f32 %v1935, %v1980
  %v1986 = vmul.f32 %v1950, %v1982
  %1989 = vrot.lane.b32.xlu0 %v1911, 64
  %v1990 = vpop.permute.xlu0 %1989
  %1991 = vrot.lane.b32.xlu0 %v1912, 64
  %v1992 = vpop.permute.xlu0 %1991
  %1995 = vst.msk [vmem:[#allocation4 + $0x60] sm:$0xff] %vm403, %v1990
  %1996 = vst.msk [vmem:[#allocation4 + $0x68] sm:$0xff] %vm403, %v1992
  %1999 = vrot.lane.b32.xlu0 %v1985, 64
  %v2000 = vpop.permute.xlu0 %1999
  %2001 = vrot.lane.b32.xlu0 %v1986, 64
  %v2002 = vpop.permute.xlu0 %2001
  %2005 = vst.msk [vmem:[#allocation5 + $0x10] sm:$0xff] %vm403, %v2000
  %2006 = vst.msk [vmem:[#allocation5 + $0x18] sm:$0xff] %vm403, %v2002
  %v2007 = vld [vmem:[#allocation2 + $0x70] sm:$0xff]
  %v2008 = vld [vmem:[#allocation2 + $0x78] sm:$0xff]
  %v2009 = vsel %vm403, %v1990, 0
  %v2011 = vsel %vm403, %v1992, 0
  %2013 = vmatpush.msra.mxu0 0.0
  %2014 = vmatpush.msra.mxu0 0.0
  %2015 = vmatpush.msra.mxu0 0.0
  %2016 = vmatpush.msra.mxu0 0.0
  %2017 = vmatpush.msra.mxu0 0.0
  %2018 = vmatpush.msra.mxu0 0.0
  %2019 = vmatpush.msra.mxu0 0.0
  %2020 = vmatpush.msra.mxu0 0.0
  %2021 = vmatpush.msra.mxu0 0.0
  %2022 = vmatpush.msra.mxu0 0.0
  %2023 = vmatpush.msra.mxu0 0.0
  %2024 = vmatpush.msra.mxu0 0.0
  %2025 = vmatpush.msra.mxu0 %v396
  %2026 = vmatpush.msra.mxu0 %v395
  %2027 = vmatpush.msra.mxu0 %v394
  %2028 = vmatpush.msra.mxu0 %v393
  %2029 = vmatmul.f32.gmra.mxu0 %v2009
  %v2030 = vpop.f32.mrf.mxu0
  %v2031 = vadd.f32 0.0, %v2030
  %2032 = vmatmul.f32.gmra.mxu0 %v2011
  %v2033 = vpop.f32.mrf.mxu0
  %v2034 = vadd.f32 0.0, %v2033
  %2035 = vdwg.mxu0
  %v2036 = vadd.f32 %v2007, %v2031
  %v2037 = vadd.f32 %v2008, %v2034
  %v2038 = vld [vmem:[#allocation3] sm:$0xff]
  %v2039 = vld [vmem:[#allocation3 + $0x8] sm:$0xff]
  %v2040 = vsel %vm403, %v2000, 0
  %v2042 = vsel %vm403, %v2002, 0
  %2044 = vmatpush.msra.mxu0 0.0
  %2045 = vmatpush.msra.mxu0 0.0
  %2046 = vmatpush.msra.mxu0 0.0
  %2047 = vmatpush.msra.mxu0 0.0
  %2048 = vmatpush.msra.mxu0 0.0
  %2049 = vmatpush.msra.mxu0 0.0
  %2050 = vmatpush.msra.mxu0 0.0
  %2051 = vmatpush.msra.mxu0 0.0
  %2052 = vmatpush.msra.mxu0 0.0
  %2053 = vmatpush.msra.mxu0 0.0
  %2054 = vmatpush.msra.mxu0 0.0
  %2055 = vmatpush.msra.mxu0 0.0
  %2056 = vmatpush.msra.mxu0 %v400
  %2057 = vmatpush.msra.mxu0 %v399
  %2058 = vmatpush.msra.mxu0 %v398
  %2059 = vmatpush.msra.mxu0 %v397
  %2060 = vmatmul.f32.gmra.mxu0 %v2040
  %v2061 = vpop.f32.mrf.mxu0
  %v2062 = vadd.f32 0.0, %v2061
  %2063 = vmatmul.f32.gmra.mxu0 %v2042
  %v2064 = vpop.f32.mrf.mxu0
  %v2065 = vadd.f32 0.0, %v2064
  %2066 = vdwg.mxu0
  %v2067 = vadd.f32 %v2038, %v2062
  %v2068 = vadd.f32 %v2039, %v2065
  %v2069 = vxor.u32 %v2036, 2147483648
  %v2070 = vxor.u32 %v2037, 2147483648
  %v2071 = vmul.f32 %v2069, 1.442695
  %v2072 = vpow.pop %v2071
  %v2073 = vmul.f32 %v2070, 1.442695
  %v2074 = vpow.pop %v2073
  %v2075 = vadd.f32 %v2072, 1.0
  %v2076 = vadd.f32 %v2074, 1.0
  %v2077 = vrcp.pop %v2075
  %v2078 = vmul.f32 %v2075, %v2077
  %v2079 = vsub.f32 1.0, %v2078
  %v2080 = vmul.f32 %v2077, %v2079
  %v2081 = vadd.f32 %v2077, %v2080
  %vm2082 = vweird.f32 %v2075
  %vm2083 = vweird.f32 %v2077
  %vm2084 = vmor %vm2082, %vm2083
  %v2085 = vsel %vm2084, %v2077, %v2081
  %v2086 = vand.u32 2147483647, %v2075
  %vm2087 = vcmp.eq.f32.partialorder %v2086, 8.507059e+37
  %v2088 = vand.u32 %v2075, 2147483648
  %v2089 = vor.u32 1.1754944e-38, %v2088
  %v2090 = vsel %vm2087, %v2089, %v2085
  %v2091 = vmul.f32 1.0, %v2090
  %v2092 = vrcp.pop %v2076
  %v2093 = vmul.f32 %v2076, %v2092
  %v2094 = vsub.f32 1.0, %v2093
  %v2095 = vmul.f32 %v2092, %v2094
  %v2096 = vadd.f32 %v2092, %v2095
  %vm2097 = vweird.f32 %v2076
  %vm2098 = vweird.f32 %v2092
  %vm2099 = vmor %vm2097, %vm2098
  %v2100 = vsel %vm2099, %v2092, %v2096
  %v2101 = vand.u32 2147483647, %v2076
  %vm2102 = vcmp.eq.f32.partialorder %v2101, 8.507059e+37
  %v2103 = vand.u32 %v2076, 2147483648
  %v2104 = vor.u32 1.1754944e-38, %v2103
  %v2105 = vsel %vm2102, %v2104, %v2100
  %v2106 = vmul.f32 1.0, %v2105
  %v2107 = vtanh.pop %v2036
  %v2108 = vtanh.pop %v2037
  %v2109 = vmul.f32 %v2091, %v1899
  %v2110 = vmul.f32 %v2106, %v1900
  %2113 = vrot.lane.b32.xlu0 %v2107, 32
  %v2114 = vpop.permute.xlu0 %2113
  %2115 = vrot.lane.b32.xlu0 %v2108, 32
  %v2116 = vpop.permute.xlu0 %2115
  %v2119 = vmul.f32 %v2091, %v2114
  %v2120 = vmul.f32 %v2106, %v2116
  %2123 = vrot.lane.b32.xlu0 %v2119, 32
  %v2124 = vpop.permute.xlu0 %2123
  %2125 = vrot.lane.b32.xlu0 %v2120, 32
  %v2126 = vpop.permute.xlu0 %2125
  %v2129 = vadd.f32 %v2109, %v2124
  %v2130 = vadd.f32 %v2110, %v2126
  %v2131 = vtanh.pop %v2129
  %v2132 = vtanh.pop %v2130
  %2135 = vrot.lane.b32.xlu0 %v2131, 32
  %v2136 = vpop.permute.xlu0 %2135
  %2137 = vrot.lane.b32.xlu0 %v2132, 32
  %v2138 = vpop.permute.xlu0 %2137
  %v2141 = vmul.f32 %v2091, %v2136
  %v2142 = vmul.f32 %v2106, %v2138
  %v2143 = vxor.u32 %v2067, 2147483648
  %v2144 = vxor.u32 %v2068, 2147483648
  %v2145 = vmul.f32 %v2143, 1.442695
  %v2146 = vpow.pop %v2145
  %v2147 = vmul.f32 %v2144, 1.442695
  %v2148 = vpow.pop %v2147
  %v2149 = vadd.f32 %v2146, 1.0
  %v2150 = vadd.f32 %v2148, 1.0
  %v2151 = vrcp.pop %v2149
  %v2152 = vmul.f32 %v2149, %v2151
  %v2153 = vsub.f32 1.0, %v2152
  %v2154 = vmul.f32 %v2151, %v2153
  %v2155 = vadd.f32 %v2151, %v2154
  %vm2156 = vweird.f32 %v2149
  %vm2157 = vweird.f32 %v2151
  %vm2158 = vmor %vm2156, %vm2157
  %v2159 = vsel %vm2158, %v2151, %v2155
  %v2160 = vand.u32 2147483647, %v2149
  %vm2161 = vcmp.eq.f32.partialorder %v2160, 8.507059e+37
  %v2162 = vand.u32 %v2149, 2147483648
  %v2163 = vor.u32 1.1754944e-38, %v2162
  %v2164 = vsel %vm2161, %v2163, %v2159
  %v2165 = vmul.f32 1.0, %v2164
  %v2166 = vrcp.pop %v2150
  %v2167 = vmul.f32 %v2150, %v2166
  %v2168 = vsub.f32 1.0, %v2167
  %v2169 = vmul.f32 %v2166, %v2168
  %v2170 = vadd.f32 %v2166, %v2169
  %vm2171 = vweird.f32 %v2150
  %vm2172 = vweird.f32 %v2166
  %vm2173 = vmor %vm2171, %vm2172
  %v2174 = vsel %vm2173, %v2166, %v2170
  %v2175 = vand.u32 2147483647, %v2150
  %vm2176 = vcmp.eq.f32.partialorder %v2175, 8.507059e+37
  %v2177 = vand.u32 %v2150, 2147483648
  %v2178 = vor.u32 1.1754944e-38, %v2177
  %v2179 = vsel %vm2176, %v2178, %v2174
  %v2180 = vmul.f32 1.0, %v2179
  %v2181 = vtanh.pop %v2067
  %v2182 = vtanh.pop %v2068
  %v2183 = vmul.f32 %v2165, %v1973
  %v2184 = vmul.f32 %v2180, %v1974
  %2187 = vrot.lane.b32.xlu0 %v2181, 32
  %v2188 = vpop.permute.xlu0 %2187
  %2189 = vrot.lane.b32.xlu0 %v2182, 32
  %v2190 = vpop.permute.xlu0 %2189
  %v2193 = vmul.f32 %v2165, %v2188
  %v2194 = vmul.f32 %v2180, %v2190
  %2197 = vrot.lane.b32.xlu0 %v2193, 32
  %v2198 = vpop.permute.xlu0 %2197
  %2199 = vrot.lane.b32.xlu0 %v2194, 32
  %v2200 = vpop.permute.xlu0 %2199
  %v2203 = vadd.f32 %v2183, %v2198
  %v2204 = vadd.f32 %v2184, %v2200
  %v2205 = vtanh.pop %v2203
  %v2206 = vtanh.pop %v2204
  %2209 = vrot.lane.b32.xlu0 %v2205, 32
  %v2210 = vpop.permute.xlu0 %2209
  %2211 = vrot.lane.b32.xlu0 %v2206, 32
  %v2212 = vpop.permute.xlu0 %2211
  %v2215 = vmul.f32 %v2165, %v2210
  %v2216 = vmul.f32 %v2180, %v2212
  %2219 = vrot.lane.b32.xlu0 %v2141, 64
  %v2220 = vpop.permute.xlu0 %2219
  %2221 = vrot.lane.b32.xlu0 %v2142, 64
  %v2222 = vpop.permute.xlu0 %2221
  %2225 = vst.msk [vmem:[#allocation4 + $0x70] sm:$0xff] %vm403, %v2220
  %2226 = vst.msk [vmem:[#allocation4 + $0x78] sm:$0xff] %vm403, %v2222
  %2229 = vrot.lane.b32.xlu0 %v2215, 64
  %v2230 = vpop.permute.xlu0 %2229
  %2231 = vrot.lane.b32.xlu0 %v2216, 64
  %v2232 = vpop.permute.xlu0 %2231
  %2235 = vst.msk [vmem:[#allocation5] sm:$0xff] %vm403, %v2230
  %2236 = vst.msk [vmem:[#allocation5 + $0x8] sm:$0xff] %vm403, %v2232
  %v2237 = vld [vmem:[%s7] sm:$0xff]
  %v2238 = vld [vmem:[%s7 + $0x8] sm:$0xff]
  %v2239 = vld [vmem:[%s7 + $0x10] sm:$0xff]
  %v2240 = vld [vmem:[%s7 + $0x18] sm:$0xff]
  %v2241 = vld [vmem:[%s7 + $0x20] sm:$0xff]
  %v2242 = vld [vmem:[%s7 + $0x28] sm:$0xff]
  %v2243 = vld [vmem:[%s7 + $0x30] sm:$0xff]
  %v2244 = vld [vmem:[%s7 + $0x38] sm:$0xff]
  %v2245 = vld [vmem:[%s10] sm:$0xff]
  %v2246 = vld [vmem:[%s10 + $0x8] sm:$0xff]
  %v2247 = vld [vmem:[%s10 + $0x10] sm:$0xff]
  %v2248 = vld [vmem:[%s10 + $0x18] sm:$0xff]
  %v2249 = vld [vmem:[%s10 + $0x20] sm:$0xff]
  %v2250 = vld [vmem:[%s10 + $0x28] sm:$0xff]
  %v2251 = vld [vmem:[%s10 + $0x30] sm:$0xff]
  %v2252 = vld [vmem:[%s10 + $0x38] sm:$0xff]
  %v2253 = vld [vmem:[#allocation4] sm:$0xff]
  %v2254 = vld [vmem:[#allocation4 + $0x8] sm:$0xff]
  %v2255 = vld [vmem:[#allocation4 + $0x10] sm:$0xff]
  %v2256 = vld [vmem:[#allocation4 + $0x18] sm:$0xff]
  %v2257 = vld [vmem:[#allocation4 + $0x20] sm:$0xff]
  %v2258 = vld [vmem:[#allocation4 + $0x28] sm:$0xff]
  %v2259 = vld [vmem:[#allocation4 + $0x30] sm:$0xff]
  %v2260 = vld [vmem:[#allocation4 + $0x38] sm:$0xff]
  %v2261 = vld [vmem:[#allocation4 + $0x40] sm:$0xff]
  %v2262 = vld [vmem:[#allocation4 + $0x48] sm:$0xff]
  %v2263 = vld [vmem:[#allocation4 + $0x50] sm:$0xff]
  %v2264 = vld [vmem:[#allocation4 + $0x58] sm:$0xff]
  %v2265 = vld [vmem:[#allocation4 + $0x60] sm:$0xff]
  %v2266 = vld [vmem:[#allocation4 + $0x68] sm:$0xff]
  %v2267 = vld [vmem:[#allocation4 + $0x70] sm:$0xff]
  %v2268 = vld [vmem:[#allocation4 + $0x78] sm:$0xff]
  %v2269 = vld [vmem:[#allocation5] sm:$0xff]
  %v2270 = vld [vmem:[#allocation5 + $0x8] sm:$0xff]
  %v2271 = vld [vmem:[#allocation5 + $0x10] sm:$0xff]
  %v2272 = vld [vmem:[#allocation5 + $0x18] sm:$0xff]
  %v2273 = vld [vmem:[#allocation5 + $0x20] sm:$0xff]
  %v2274 = vld [vmem:[#allocation5 + $0x28] sm:$0xff]
  %v2275 = vld [vmem:[#allocation5 + $0x30] sm:$0xff]
  %v2276 = vld [vmem:[#allocation5 + $0x38] sm:$0xff]
  %v2277 = vld [vmem:[#allocation5 + $0x40] sm:$0xff]
  %v2278 = vld [vmem:[#allocation5 + $0x48] sm:$0xff]
  %v2279 = vld [vmem:[#allocation5 + $0x50] sm:$0xff]
  %v2280 = vld [vmem:[#allocation5 + $0x58] sm:$0xff]
  %v2281 = vld [vmem:[#allocation5 + $0x60] sm:$0xff]
  %v2282 = vld [vmem:[#allocation5 + $0x68] sm:$0xff]
  %v2283 = vld [vmem:[#allocation5 + $0x70] sm:$0xff]
  %v2284 = vld [vmem:[#allocation5 + $0x78] sm:$0xff]
  %v2286 = vsel %vm403, %v2269, 0
  %v2289 = vsel %vm403, %v2270, 0
  %v2292 = vsel %vm403, %v2271, 0
  %v2295 = vsel %vm403, %v2272, 0
  %v2298 = vsel %vm403, %v2273, 0
  %v2301 = vsel %vm403, %v2274, 0
  %v2304 = vsel %vm403, %v2275, 0
  %v2307 = vsel %vm403, %v2276, 0
  %v2310 = vsel %vm403, %v2277, 0
  %v2313 = vsel %vm403, %v2278, 0
  %v2316 = vsel %vm403, %v2279, 0
  %v2319 = vsel %vm403, %v2280, 0
  %v2322 = vsel %vm403, %v2281, 0
  %v2325 = vsel %vm403, %v2282, 0
  %v2328 = vsel %vm403, %v2283, 0
  %v2331 = vsel %vm403, %v2284, 0
  %2333 = vmatpush.msra.mxu0 0.0
  %2334 = vmatpush.msra.mxu0 0.0
  %2335 = vmatpush.msra.mxu0 0.0
  %2336 = vmatpush.msra.mxu0 0.0
  %2337 = vmatpush.msra.mxu0 0.0
  %2338 = vmatpush.msra.mxu0 0.0
  %2339 = vmatpush.msra.mxu0 0.0
  %2340 = vmatpush.msra.mxu0 0.0
  %2341 = vmatpush.msra.mxu0 0.0
  %2342 = vmatpush.msra.mxu0 0.0
  %2343 = vmatpush.msra.mxu0 0.0
  %2344 = vmatpush.msra.mxu0 0.0
  %2345 = vmatpush.msra.mxu0 %v2244
  %2346 = vmatpush.msra.mxu0 %v2243
  %2347 = vmatpush.msra.mxu0 %v2242
  %2348 = vmatpush.msra.mxu0 %v2241
  %2349 = vmatmul.f32.gmra.mxu0 %v2286
  %v2350 = vpop.f32.mrf.mxu0
  %v2351 = vadd.f32 0.0, %v2350
  %2352 = vmatmul.f32.gmra.mxu0 %v2289
  %v2353 = vpop.f32.mrf.mxu0
  %v2354 = vadd.f32 0.0, %v2353
  %2355 = vmatmul.f32.gmra.mxu0 %v2292
  %v2356 = vpop.f32.mrf.mxu0
  %v2357 = vadd.f32 0.0, %v2356
  %2358 = vmatmul.f32.gmra.mxu0 %v2295
  %v2359 = vpop.f32.mrf.mxu0
  %v2360 = vadd.f32 0.0, %v2359
  %2361 = vmatmul.f32.gmra.mxu0 %v2298
  %v2362 = vpop.f32.mrf.mxu0
  %v2363 = vadd.f32 0.0, %v2362
  %2364 = vmatmul.f32.gmra.mxu0 %v2301
  %v2365 = vpop.f32.mrf.mxu0
  %v2366 = vadd.f32 0.0, %v2365
  %2367 = vmatmul.f32.gmra.mxu0 %v2304
  %v2368 = vpop.f32.mrf.mxu0
  %v2369 = vadd.f32 0.0, %v2368
  %2370 = vmatmul.f32.gmra.mxu0 %v2307
  %v2371 = vpop.f32.mrf.mxu0
  %v2372 = vadd.f32 0.0, %v2371
  %2373 = vmatmul.f32.gmra.mxu0 %v2310
  %v2374 = vpop.f32.mrf.mxu0
  %v2375 = vadd.f32 0.0, %v2374
  %2376 = vmatmul.f32.gmra.mxu0 %v2313
  %v2377 = vpop.f32.mrf.mxu0
  %v2378 = vadd.f32 0.0, %v2377
  %2379 = vmatmul.f32.gmra.mxu0 %v2316
  %v2380 = vpop.f32.mrf.mxu0
  %v2381 = vadd.f32 0.0, %v2380
  %2382 = vmatmul.f32.gmra.mxu0 %v2319
  %v2383 = vpop.f32.mrf.mxu0
  %v2384 = vadd.f32 0.0, %v2383
  %2385 = vmatmul.f32.gmra.mxu0 %v2322
  %v2386 = vpop.f32.mrf.mxu0
  %v2387 = vadd.f32 0.0, %v2386
  %2388 = vmatmul.f32.gmra.mxu0 %v2325
  %v2389 = vpop.f32.mrf.mxu0
  %v2390 = vadd.f32 0.0, %v2389
  %2391 = vmatmul.f32.gmra.mxu0 %v2328
  %v2392 = vpop.f32.mrf.mxu0
  %v2393 = vadd.f32 0.0, %v2392
  %2394 = vmatmul.f32.gmra.mxu0 %v2331
  %v2395 = vpop.f32.mrf.mxu0
  %v2396 = vadd.f32 0.0, %v2395
  %2397 = vdwg.mxu0
  %v2399 = vsel %vm403, %v2253, 0
  %v2402 = vsel %vm403, %v2254, 0
  %v2405 = vsel %vm403, %v2255, 0
  %v2408 = vsel %vm403, %v2256, 0
  %v2411 = vsel %vm403, %v2257, 0
  %v2414 = vsel %vm403, %v2258, 0
  %v2417 = vsel %vm403, %v2259, 0
  %v2420 = vsel %vm403, %v2260, 0
  %v2423 = vsel %vm403, %v2261, 0
  %v2426 = vsel %vm403, %v2262, 0
  %v2429 = vsel %vm403, %v2263, 0
  %v2432 = vsel %vm403, %v2264, 0
  %v2435 = vsel %vm403, %v2265, 0
  %v2438 = vsel %vm403, %v2266, 0
  %v2441 = vsel %vm403, %v2267, 0
  %v2444 = vsel %vm403, %v2268, 0
  %2446 = vmatpush.msra.mxu0 0.0
  %2447 = vmatpush.msra.mxu0 0.0
  %2448 = vmatpush.msra.mxu0 0.0
  %2449 = vmatpush.msra.mxu0 0.0
  %2450 = vmatpush.msra.mxu0 0.0
  %2451 = vmatpush.msra.mxu0 0.0
  %2452 = vmatpush.msra.mxu0 0.0
  %2453 = vmatpush.msra.mxu0 0.0
  %2454 = vmatpush.msra.mxu0 0.0
  %2455 = vmatpush.msra.mxu0 0.0
  %2456 = vmatpush.msra.mxu0 0.0
  %2457 = vmatpush.msra.mxu0 0.0
  %2458 = vmatpush.msra.mxu0 %v2240
  %2459 = vmatpush.msra.mxu0 %v2239
  %2460 = vmatpush.msra.mxu0 %v2238
  %2461 = vmatpush.msra.mxu0 %v2237
  %2462 = vmatmul.f32.gmra.mxu0 %v2399
  %v2463 = vpop.f32.mrf.mxu0
  %v2464 = vadd.f32 %v2351, %v2463
  %2465 = vmatmul.f32.gmra.mxu0 %v2402
  %v2466 = vpop.f32.mrf.mxu0
  %v2467 = vadd.f32 %v2354, %v2466
  %2468 = vmatmul.f32.gmra.mxu0 %v2405
  %v2469 = vpop.f32.mrf.mxu0
  %v2470 = vadd.f32 %v2357, %v2469
  %2471 = vmatmul.f32.gmra.mxu0 %v2408
  %v2472 = vpop.f32.mrf.mxu0
  %v2473 = vadd.f32 %v2360, %v2472
  %2474 = vmatmul.f32.gmra.mxu0 %v2411
  %v2475 = vpop.f32.mrf.mxu0
  %v2476 = vadd.f32 %v2363, %v2475
  %2477 = vmatmul.f32.gmra.mxu0 %v2414
  %v2478 = vpop.f32.mrf.mxu0
  %v2479 = vadd.f32 %v2366, %v2478
  %2480 = vmatmul.f32.gmra.mxu0 %v2417
  %v2481 = vpop.f32.mrf.mxu0
  %v2482 = vadd.f32 %v2369, %v2481
  %2483 = vmatmul.f32.gmra.mxu0 %v2420
  %v2484 = vpop.f32.mrf.mxu0
  %v2485 = vadd.f32 %v2372, %v2484
  %2486 = vmatmul.f32.gmra.mxu0 %v2423
  %v2487 = vpop.f32.mrf.mxu0
  %v2488 = vadd.f32 %v2375, %v2487
  %2489 = vmatmul.f32.gmra.mxu0 %v2426
  %v2490 = vpop.f32.mrf.mxu0
  %v2491 = vadd.f32 %v2378, %v2490
  %2492 = vmatmul.f32.gmra.mxu0 %v2429
  %v2493 = vpop.f32.mrf.mxu0
  %v2494 = vadd.f32 %v2381, %v2493
  %2495 = vmatmul.f32.gmra.mxu0 %v2432
  %v2496 = vpop.f32.mrf.mxu0
  %v2497 = vadd.f32 %v2384, %v2496
  %2498 = vmatmul.f32.gmra.mxu0 %v2435
  %v2499 = vpop.f32.mrf.mxu0
  %v2500 = vadd.f32 %v2387, %v2499
  %2501 = vmatmul.f32.gmra.mxu0 %v2438
  %v2502 = vpop.f32.mrf.mxu0
  %v2503 = vadd.f32 %v2390, %v2502
  %2504 = vmatmul.f32.gmra.mxu0 %v2441
  %v2505 = vpop.f32.mrf.mxu0
  %v2506 = vadd.f32 %v2393, %v2505
  %2507 = vmatmul.f32.gmra.mxu0 %v2444
  %v2508 = vpop.f32.mrf.mxu0
  %v2509 = vadd.f32 %v2396, %v2508
  %2510 = vdwg.mxu0
  %v2511 = vld [vmem:[%s9] sm:$0x1]
  %v2513 = vperm.slane %v2511, 0
  %v2515 = vadd.f32 %v2464, %v2513
  %v2516 = vadd.f32 %v2467, %v2513
  %v2517 = vadd.f32 %v2470, %v2513
  %v2518 = vadd.f32 %v2473, %v2513
  %v2519 = vadd.f32 %v2476, %v2513
  %v2520 = vadd.f32 %v2479, %v2513
  %v2521 = vadd.f32 %v2482, %v2513
  %v2522 = vadd.f32 %v2485, %v2513
  %v2523 = vadd.f32 %v2488, %v2513
  %v2524 = vadd.f32 %v2491, %v2513
  %v2525 = vadd.f32 %v2494, %v2513
  %v2526 = vadd.f32 %v2497, %v2513
  %v2527 = vadd.f32 %v2500, %v2513
  %v2528 = vadd.f32 %v2503, %v2513
  %v2529 = vadd.f32 %v2506, %v2513
  %v2530 = vadd.f32 %v2509, %v2513
  %2531 = vst [vmem:[#allocation2] sm:$0xff] %v2515
  %2532 = vst [vmem:[#allocation2 + $0x8] sm:$0xff] %v2516
  %2533 = vst [vmem:[#allocation2 + $0x10] sm:$0xff] %v2517
  %2534 = vst [vmem:[#allocation2 + $0x18] sm:$0xff] %v2518
  %2535 = vst [vmem:[#allocation2 + $0x20] sm:$0xff] %v2519
  %2536 = vst [vmem:[#allocation2 + $0x28] sm:$0xff] %v2520
  %2537 = vst [vmem:[#allocation2 + $0x30] sm:$0xff] %v2521
  %2538 = vst [vmem:[#allocation2 + $0x38] sm:$0xff] %v2522
  %2539 = vst [vmem:[#allocation2 + $0x40] sm:$0xff] %v2523
  %2540 = vst [vmem:[#allocation2 + $0x48] sm:$0xff] %v2524
  %2541 = vst [vmem:[#allocation2 + $0x50] sm:$0xff] %v2525
  %2542 = vst [vmem:[#allocation2 + $0x58] sm:$0xff] %v2526
  %2543 = vst [vmem:[#allocation2 + $0x60] sm:$0xff] %v2527
  %2544 = vst [vmem:[#allocation2 + $0x68] sm:$0xff] %v2528
  %2545 = vst [vmem:[#allocation2 + $0x70] sm:$0xff] %v2529
  %2546 = vst [vmem:[#allocation2 + $0x78] sm:$0xff] %v2530
  %2547 = vmatpush.msra.mxu0 0.0
  %2548 = vmatpush.msra.mxu0 0.0
  %2549 = vmatpush.msra.mxu0 0.0
  %2550 = vmatpush.msra.mxu0 0.0
  %2551 = vmatpush.msra.mxu0 0.0
  %2552 = vmatpush.msra.mxu0 0.0
  %2553 = vmatpush.msra.mxu0 0.0
  %2554 = vmatpush.msra.mxu0 0.0
  %2555 = vmatpush.msra.mxu0 0.0
  %2556 = vmatpush.msra.mxu0 0.0
  %2557 = vmatpush.msra.mxu0 0.0
  %2558 = vmatpush.msra.mxu0 0.0
  %2559 = vmatpush.msra.mxu0 %v2252
  %2560 = vmatpush.msra.mxu0 %v2251
  %2561 = vmatpush.msra.mxu0 %v2250
  %2562 = vmatpush.msra.mxu0 %v2249
  %2563 = vmatmul.f32.gmra.mxu0 %v2286
  %v2564 = vpop.f32.mrf.mxu0
  %v2565 = vadd.f32 0.0, %v2564
  %2566 = vmatmul.f32.gmra.mxu0 %v2289
  %v2567 = vpop.f32.mrf.mxu0
  %v2568 = vadd.f32 0.0, %v2567
  %2569 = vmatmul.f32.gmra.mxu0 %v2292
  %v2570 = vpop.f32.mrf.mxu0
  %v2571 = vadd.f32 0.0, %v2570
  %2572 = vmatmul.f32.gmra.mxu0 %v2295
  %v2573 = vpop.f32.mrf.mxu0
  %v2574 = vadd.f32 0.0, %v2573
  %2575 = vmatmul.f32.gmra.mxu0 %v2298
  %v2576 = vpop.f32.mrf.mxu0
  %v2577 = vadd.f32 0.0, %v2576
  %2578 = vmatmul.f32.gmra.mxu0 %v2301
  %v2579 = vpop.f32.mrf.mxu0
  %v2580 = vadd.f32 0.0, %v2579
  %2581 = vmatmul.f32.gmra.mxu0 %v2304
  %v2582 = vpop.f32.mrf.mxu0
  %v2583 = vadd.f32 0.0, %v2582
  %2584 = vmatmul.f32.gmra.mxu0 %v2307
  %v2585 = vpop.f32.mrf.mxu0
  %v2586 = vadd.f32 0.0, %v2585
  %2587 = vmatmul.f32.gmra.mxu0 %v2310
  %v2588 = vpop.f32.mrf.mxu0
  %v2589 = vadd.f32 0.0, %v2588
  %2590 = vmatmul.f32.gmra.mxu0 %v2313
  %v2591 = vpop.f32.mrf.mxu0
  %v2592 = vadd.f32 0.0, %v2591
  %2593 = vmatmul.f32.gmra.mxu0 %v2316
  %v2594 = vpop.f32.mrf.mxu0
  %v2595 = vadd.f32 0.0, %v2594
  %2596 = vmatmul.f32.gmra.mxu0 %v2319
  %v2597 = vpop.f32.mrf.mxu0
  %v2598 = vadd.f32 0.0, %v2597
  %2599 = vmatmul.f32.gmra.mxu0 %v2322
  %v2600 = vpop.f32.mrf.mxu0
  %v2601 = vadd.f32 0.0, %v2600
  %2602 = vmatmul.f32.gmra.mxu0 %v2325
  %v2603 = vpop.f32.mrf.mxu0
  %v2604 = vadd.f32 0.0, %v2603
  %2605 = vmatmul.f32.gmra.mxu0 %v2328
  %v2606 = vpop.f32.mrf.mxu0
  %v2607 = vadd.f32 0.0, %v2606
  %2608 = vmatmul.f32.gmra.mxu0 %v2331
  %v2609 = vpop.f32.mrf.mxu0
  %v2610 = vadd.f32 0.0, %v2609
  %2611 = vdwg.mxu0
  %2612 = vmatpush.msra.mxu0 0.0
  %2613 = vmatpush.msra.mxu0 0.0
  %2614 = vmatpush.msra.mxu0 0.0
  %2615 = vmatpush.msra.mxu0 0.0
  %2616 = vmatpush.msra.mxu0 0.0
  %2617 = vmatpush.msra.mxu0 0.0
  %2618 = vmatpush.msra.mxu0 0.0
  %2619 = vmatpush.msra.mxu0 0.0
  %2620 = vmatpush.msra.mxu0 0.0
  %2621 = vmatpush.msra.mxu0 0.0
  %2622 = vmatpush.msra.mxu0 0.0
  %2623 = vmatpush.msra.mxu0 0.0
  %2624 = vmatpush.msra.mxu0 %v2248
  %2625 = vmatpush.msra.mxu0 %v2247
  %2626 = vmatpush.msra.mxu0 %v2246
  %2627 = vmatpush.msra.mxu0 %v2245
  %2628 = vmatmul.f32.gmra.mxu0 %v2399
  %v2629 = vpop.f32.mrf.mxu0
  %v2630 = vadd.f32 %v2565, %v2629
  %2631 = vmatmul.f32.gmra.mxu0 %v2402
  %v2632 = vpop.f32.mrf.mxu0
  %v2633 = vadd.f32 %v2568, %v2632
  %2634 = vmatmul.f32.gmra.mxu0 %v2405
  %v2635 = vpop.f32.mrf.mxu0
  %v2636 = vadd.f32 %v2571, %v2635
  %2637 = vmatmul.f32.gmra.mxu0 %v2408
  %v2638 = vpop.f32.mrf.mxu0
  %v2639 = vadd.f32 %v2574, %v2638
  %2640 = vmatmul.f32.gmra.mxu0 %v2411
  %v2641 = vpop.f32.mrf.mxu0
  %v2642 = vadd.f32 %v2577, %v2641
  %2643 = vmatmul.f32.gmra.mxu0 %v2414
  %v2644 = vpop.f32.mrf.mxu0
  %v2645 = vadd.f32 %v2580, %v2644
  %2646 = vmatmul.f32.gmra.mxu0 %v2417
  %v2647 = vpop.f32.mrf.mxu0
  %v2648 = vadd.f32 %v2583, %v2647
  %2649 = vmatmul.f32.gmra.mxu0 %v2420
  %v2650 = vpop.f32.mrf.mxu0
  %v2651 = vadd.f32 %v2586, %v2650
  %2652 = vmatmul.f32.gmra.mxu0 %v2423
  %v2653 = vpop.f32.mrf.mxu0
  %v2654 = vadd.f32 %v2589, %v2653
  %2655 = vmatmul.f32.gmra.mxu0 %v2426
  %v2656 = vpop.f32.mrf.mxu0
  %v2657 = vadd.f32 %v2592, %v2656
  %2658 = vmatmul.f32.gmra.mxu0 %v2429
  %v2659 = vpop.f32.mrf.mxu0
  %v2660 = vadd.f32 %v2595, %v2659
  %2661 = vmatmul.f32.gmra.mxu0 %v2432
  %v2662 = vpop.f32.mrf.mxu0
  %v2663 = vadd.f32 %v2598, %v2662
  %2664 = vmatmul.f32.gmra.mxu0 %v2435
  %v2665 = vpop.f32.mrf.mxu0
  %v2666 = vadd.f32 %v2601, %v2665
  %2667 = vmatmul.f32.gmra.mxu0 %v2438
  %v2668 = vpop.f32.mrf.mxu0
  %v2669 = vadd.f32 %v2604, %v2668
  %2670 = vmatmul.f32.gmra.mxu0 %v2441
  %v2671 = vpop.f32.mrf.mxu0
  %v2672 = vadd.f32 %v2607, %v2671
  %2673 = vmatmul.f32.gmra.mxu0 %v2444
  %v2674 = vpop.f32.mrf.mxu0
  %v2675 = vadd.f32 %v2610, %v2674
  %2676 = vdwg.mxu0
  %v2677 = vld [vmem:[%s12] sm:$0x1]
  %v2679 = vperm.slane %v2677, 0
  %v2681 = vadd.f32 %v2630, %v2679
  %v2682 = vadd.f32 %v2633, %v2679
  %v2683 = vadd.f32 %v2636, %v2679
  %v2684 = vadd.f32 %v2639, %v2679
  %v2685 = vadd.f32 %v2642, %v2679
  %v2686 = vadd.f32 %v2645, %v2679
  %v2687 = vadd.f32 %v2648, %v2679
  %v2688 = vadd.f32 %v2651, %v2679
  %v2689 = vadd.f32 %v2654, %v2679
  %v2690 = vadd.f32 %v2657, %v2679
  %v2691 = vadd.f32 %v2660, %v2679
  %v2692 = vadd.f32 %v2663, %v2679
  %v2693 = vadd.f32 %v2666, %v2679
  %v2694 = vadd.f32 %v2669, %v2679
  %v2695 = vadd.f32 %v2672, %v2679
  %v2696 = vadd.f32 %v2675, %v2679
  %2697 = vst [vmem:[#allocation3] sm:$0xff] %v2681
  %2698 = vst [vmem:[#allocation3 + $0x8] sm:$0xff] %v2682
  %2699 = vst [vmem:[#allocation3 + $0x10] sm:$0xff] %v2683
  %2700 = vst [vmem:[#allocation3 + $0x18] sm:$0xff] %v2684
  %2701 = vst [vmem:[#allocation3 + $0x20] sm:$0xff] %v2685
  %2702 = vst [vmem:[#allocation3 + $0x28] sm:$0xff] %v2686
  %2703 = vst [vmem:[#allocation3 + $0x30] sm:$0xff] %v2687
  %2704 = vst [vmem:[#allocation3 + $0x38] sm:$0xff] %v2688
  %2705 = vst [vmem:[#allocation3 + $0x40] sm:$0xff] %v2689
  %2706 = vst [vmem:[#allocation3 + $0x48] sm:$0xff] %v2690
  %2707 = vst [vmem:[#allocation3 + $0x50] sm:$0xff] %v2691
  %2708 = vst [vmem:[#allocation3 + $0x58] sm:$0xff] %v2692
  %2709 = vst [vmem:[#allocation3 + $0x60] sm:$0xff] %v2693
  %2710 = vst [vmem:[#allocation3 + $0x68] sm:$0xff] %v2694
  %2711 = vst [vmem:[#allocation3 + $0x70] sm:$0xff] %v2695
  %2712 = vst [vmem:[#allocation3 + $0x78] sm:$0xff] %v2696
  %v2713 = vld [vmem:[%s8] sm:$0xff]
  %v2714 = vld [vmem:[%s8 + $0x8] sm:$0xff]
  %v2715 = vld [vmem:[%s8 + $0x10] sm:$0xff]
  %v2716 = vld [vmem:[%s8 + $0x18] sm:$0xff]
  %v2717 = vld [vmem:[%s11] sm:$0xff]
  %v2718 = vld [vmem:[%s11 + $0x8] sm:$0xff]
  %v2719 = vld [vmem:[%s11 + $0x10] sm:$0xff]
  %v2720 = vld [vmem:[%s11 + $0x18] sm:$0xff]
  %v2721 = vld [vmem:[#allocation2] sm:$0xff]
  %v2722 = vld [vmem:[#allocation2 + $0x8] sm:$0xff]
  %2723 = vmatpush.msra.mxu0 0.0
  %2724 = vmatpush.msra.mxu0 0.0
  %2725 = vmatpush.msra.mxu0 0.0
  %2726 = vmatpush.msra.mxu0 0.0
  %2727 = vmatpush.msra.mxu0 0.0
  %2728 = vmatpush.msra.mxu0 0.0
  %2729 = vmatpush.msra.mxu0 0.0
  %2730 = vmatpush.msra.mxu0 0.0
  %2731 = vmatpush.msra.mxu0 0.0
  %2732 = vmatpush.msra.mxu0 0.0
  %2733 = vmatpush.msra.mxu0 0.0
  %2734 = vmatpush.msra.mxu0 0.0
  %2735 = vmatpush.msra.mxu0 %v2716
  %2736 = vmatpush.msra.mxu0 %v2715
  %2737 = vmatpush.msra.mxu0 %v2714
  %2738 = vmatpush.msra.mxu0 %v2713
  %2739 = vmatmul.f32.gmra.mxu0 %v405
  %v2740 = vpop.f32.mrf.mxu0
  %v2741 = vadd.f32 0.0, %v2740
  %2742 = vmatmul.f32.gmra.mxu0 %v405
  %v2743 = vpop.f32.mrf.mxu0
  %v2744 = vadd.f32 0.0, %v2743
  %2745 = vdwg.mxu0
  %v2746 = vadd.f32 %v2721, %v2741
  %v2747 = vadd.f32 %v2722, %v2744
  %v2748 = vld [vmem:[#allocation3 + $0x70] sm:$0xff]
  %v2749 = vld [vmem:[#allocation3 + $0x78] sm:$0xff]
  %2750 = vmatpush.msra.mxu0 0.0
  %2751 = vmatpush.msra.mxu0 0.0
  %2752 = vmatpush.msra.mxu0 0.0
  %2753 = vmatpush.msra.mxu0 0.0
  %2754 = vmatpush.msra.mxu0 0.0
  %2755 = vmatpush.msra.mxu0 0.0
  %2756 = vmatpush.msra.mxu0 0.0
  %2757 = vmatpush.msra.mxu0 0.0
  %2758 = vmatpush.msra.mxu0 0.0
  %2759 = vmatpush.msra.mxu0 0.0
  %2760 = vmatpush.msra.mxu0 0.0
  %2761 = vmatpush.msra.mxu0 0.0
  %2762 = vmatpush.msra.mxu0 %v2720
  %2763 = vmatpush.msra.mxu0 %v2719
  %2764 = vmatpush.msra.mxu0 %v2718
  %2765 = vmatpush.msra.mxu0 %v2717
  %2766 = vmatmul.f32.gmra.mxu0 %v405
  %v2767 = vpop.f32.mrf.mxu0
  %v2768 = vadd.f32 0.0, %v2767
  %2769 = vmatmul.f32.gmra.mxu0 %v405
  %v2770 = vpop.f32.mrf.mxu0
  %v2771 = vadd.f32 0.0, %v2770
  %2772 = vdwg.mxu0
  %v2773 = vadd.f32 %v2748, %v2768
  %v2774 = vadd.f32 %v2749, %v2771
  %v2775 = vxor.u32 %v2746, 2147483648
  %v2776 = vxor.u32 %v2747, 2147483648
  %v2777 = vmul.f32 %v2775, 1.442695
  %v2778 = vpow.pop %v2777
  %v2779 = vmul.f32 %v2776, 1.442695
  %v2780 = vpow.pop %v2779
  %v2781 = vadd.f32 %v2778, 1.0
  %v2782 = vadd.f32 %v2780, 1.0
  %v2783 = vrcp.pop %v2781
  %v2784 = vmul.f32 %v2781, %v2783
  %v2785 = vsub.f32 1.0, %v2784
  %v2786 = vmul.f32 %v2783, %v2785
  %v2787 = vadd.f32 %v2783, %v2786
  %vm2788 = vweird.f32 %v2781
  %vm2789 = vweird.f32 %v2783
  %vm2790 = vmor %vm2788, %vm2789
  %v2791 = vsel %vm2790, %v2783, %v2787
  %v2792 = vand.u32 2147483647, %v2781
  %vm2793 = vcmp.eq.f32.partialorder %v2792, 8.507059e+37
  %v2794 = vand.u32 %v2781, 2147483648
  %v2795 = vor.u32 1.1754944e-38, %v2794
  %v2796 = vsel %vm2793, %v2795, %v2791
  %v2797 = vmul.f32 1.0, %v2796
  %v2798 = vrcp.pop %v2782
  %v2799 = vmul.f32 %v2782, %v2798
  %v2800 = vsub.f32 1.0, %v2799
  %v2801 = vmul.f32 %v2798, %v2800
  %v2802 = vadd.f32 %v2798, %v2801
  %vm2803 = vweird.f32 %v2782
  %vm2804 = vweird.f32 %v2798
  %vm2805 = vmor %vm2803, %vm2804
  %v2806 = vsel %vm2805, %v2798, %v2802
  %v2807 = vand.u32 2147483647, %v2782
  %vm2808 = vcmp.eq.f32.partialorder %v2807, 8.507059e+37
  %v2809 = vand.u32 %v2782, 2147483648
  %v2810 = vor.u32 1.1754944e-38, %v2809
  %v2811 = vsel %vm2808, %v2810, %v2806
  %v2812 = vmul.f32 1.0, %v2811
  %v2813 = vtanh.pop %v2746
  %v2814 = vtanh.pop %v2747
  %v2815 = vmul.f32 %v2797, 0.0
  %v2816 = vmul.f32 %v2812, 0.0
  %2819 = vrot.lane.b32.xlu0 %v2813, 32
  %v2820 = vpop.permute.xlu0 %2819
  %2821 = vrot.lane.b32.xlu0 %v2814, 32
  %v2822 = vpop.permute.xlu0 %2821
  %v2825 = vmul.f32 %v2797, %v2820
  %v2826 = vmul.f32 %v2812, %v2822
  %2829 = vrot.lane.b32.xlu0 %v2825, 32
  %v2830 = vpop.permute.xlu0 %2829
  %2831 = vrot.lane.b32.xlu0 %v2826, 32
  %v2832 = vpop.permute.xlu0 %2831
  %v2835 = vadd.f32 %v2815, %v2830
  %v2836 = vadd.f32 %v2816, %v2832
  %v2837 = vtanh.pop %v2835
  %v2838 = vtanh.pop %v2836
  %2841 = vrot.lane.b32.xlu0 %v2837, 32
  %v2842 = vpop.permute.xlu0 %2841
  %2843 = vrot.lane.b32.xlu0 %v2838, 32
  %v2844 = vpop.permute.xlu0 %2843
  %v2847 = vmul.f32 %v2797, %v2842
  %v2848 = vmul.f32 %v2812, %v2844
  %v2849 = vxor.u32 %v2773, 2147483648
  %v2850 = vxor.u32 %v2774, 2147483648
  %v2851 = vmul.f32 %v2849, 1.442695
  %v2852 = vpow.pop %v2851
  %v2853 = vmul.f32 %v2850, 1.442695
  %v2854 = vpow.pop %v2853
  %v2855 = vadd.f32 %v2852, 1.0
  %v2856 = vadd.f32 %v2854, 1.0
  %v2857 = vrcp.pop %v2855
  %v2858 = vmul.f32 %v2855, %v2857
  %v2859 = vsub.f32 1.0, %v2858
  %v2860 = vmul.f32 %v2857, %v2859
  %v2861 = vadd.f32 %v2857, %v2860
  %vm2862 = vweird.f32 %v2855
  %vm2863 = vweird.f32 %v2857
  %vm2864 = vmor %vm2862, %vm2863
  %v2865 = vsel %vm2864, %v2857, %v2861
  %v2866 = vand.u32 2147483647, %v2855
  %vm2867 = vcmp.eq.f32.partialorder %v2866, 8.507059e+37
  %v2868 = vand.u32 %v2855, 2147483648
  %v2869 = vor.u32 1.1754944e-38, %v2868
  %v2870 = vsel %vm2867, %v2869, %v2865
  %v2871 = vmul.f32 1.0, %v2870
  %v2872 = vrcp.pop %v2856
  %v2873 = vmul.f32 %v2856, %v2872
  %v2874 = vsub.f32 1.0, %v2873
  %v2875 = vmul.f32 %v2872, %v2874
  %v2876 = vadd.f32 %v2872, %v2875
  %vm2877 = vweird.f32 %v2856
  %vm2878 = vweird.f32 %v2872
  %vm2879 = vmor %vm2877, %vm2878
  %v2880 = vsel %vm2879, %v2872, %v2876
  %v2881 = vand.u32 2147483647, %v2856
  %vm2882 = vcmp.eq.f32.partialorder %v2881, 8.507059e+37
  %v2883 = vand.u32 %v2856, 2147483648
  %v2884 = vor.u32 1.1754944e-38, %v2883
  %v2885 = vsel %vm2882, %v2884, %v2880
  %v2886 = vmul.f32 1.0, %v2885
  %v2887 = vtanh.pop %v2773
  %v2888 = vtanh.pop %v2774
  %v2889 = vmul.f32 %v2871, 0.0
  %v2890 = vmul.f32 %v2886, 0.0
  %2893 = vrot.lane.b32.xlu0 %v2887, 32
  %v2894 = vpop.permute.xlu0 %2893
  %2895 = vrot.lane.b32.xlu0 %v2888, 32
  %v2896 = vpop.permute.xlu0 %2895
  %v2899 = vmul.f32 %v2871, %v2894
  %v2900 = vmul.f32 %v2886, %v2896
  %2903 = vrot.lane.b32.xlu0 %v2899, 32
  %v2904 = vpop.permute.xlu0 %2903
  %2905 = vrot.lane.b32.xlu0 %v2900, 32
  %v2906 = vpop.permute.xlu0 %2905
  %v2909 = vadd.f32 %v2889, %v2904
  %v2910 = vadd.f32 %v2890, %v2906
  %v2911 = vtanh.pop %v2909
  %v2912 = vtanh.pop %v2910
  %2915 = vrot.lane.b32.xlu0 %v2911, 32
  %v2916 = vpop.permute.xlu0 %2915
  %2917 = vrot.lane.b32.xlu0 %v2912, 32
  %v2918 = vpop.permute.xlu0 %2917
  %v2921 = vmul.f32 %v2871, %v2916
  %v2922 = vmul.f32 %v2886, %v2918
  %2925 = vrot.lane.b32.xlu0 %v2847, 64
  %v2926 = vpop.permute.xlu0 %2925
  %2927 = vrot.lane.b32.xlu0 %v2848, 64
  %v2928 = vpop.permute.xlu0 %2927
  %2931 = vst.msk [vmem:[#allocation4] sm:$0xff] %vm403, %v2926
  %2932 = vst.msk [vmem:[#allocation4 + $0x8] sm:$0xff] %vm403, %v2928
  %2935 = vrot.lane.b32.xlu0 %v2921, 64
  %v2936 = vpop.permute.xlu0 %2935
  %2937 = vrot.lane.b32.xlu0 %v2922, 64
  %v2938 = vpop.permute.xlu0 %2937
  %2941 = vst.msk [vmem:[#allocation5 + $0x70] sm:$0xff] %vm403, %v2936
  %2942 = vst.msk [vmem:[#allocation5 + $0x78] sm:$0xff] %vm403, %v2938
  %v2943 = vld [vmem:[#allocation2 + $0x10] sm:$0xff]
  %v2944 = vld [vmem:[#allocation2 + $0x18] sm:$0xff]
  %v2945 = vsel %vm403, %v2926, 0
  %v2947 = vsel %vm403, %v2928, 0
  %2949 = vmatpush.msra.mxu0 0.0
  %2950 = vmatpush.msra.mxu0 0.0
  %2951 = vmatpush.msra.mxu0 0.0
  %2952 = vmatpush.msra.mxu0 0.0
  %2953 = vmatpush.msra.mxu0 0.0
  %2954 = vmatpush.msra.mxu0 0.0
  %2955 = vmatpush.msra.mxu0 0.0
  %2956 = vmatpush.msra.mxu0 0.0
  %2957 = vmatpush.msra.mxu0 0.0
  %2958 = vmatpush.msra.mxu0 0.0
  %2959 = vmatpush.msra.mxu0 0.0
  %2960 = vmatpush.msra.mxu0 0.0
  %2961 = vmatpush.msra.mxu0 %v2716
  %2962 = vmatpush.msra.mxu0 %v2715
  %2963 = vmatpush.msra.mxu0 %v2714
  %2964 = vmatpush.msra.mxu0 %v2713
  %2965 = vmatmul.f32.gmra.mxu0 %v2945
  %v2966 = vpop.f32.mrf.mxu0
  %v2967 = vadd.f32 0.0, %v2966
  %2968 = vmatmul.f32.gmra.mxu0 %v2947
  %v2969 = vpop.f32.mrf.mxu0
  %v2970 = vadd.f32 0.0, %v2969
  %2971 = vdwg.mxu0
  %v2972 = vadd.f32 %v2943, %v2967
  %v2973 = vadd.f32 %v2944, %v2970
  %v2974 = vld [vmem:[#allocation3 + $0x60] sm:$0xff]
  %v2975 = vld [vmem:[#allocation3 + $0x68] sm:$0xff]
  %v2976 = vsel %vm403, %v2936, 0
  %v2978 = vsel %vm403, %v2938, 0
  %2980 = vmatpush.msra.mxu0 0.0
  %2981 = vmatpush.msra.mxu0 0.0
  %2982 = vmatpush.msra.mxu0 0.0
  %2983 = vmatpush.msra.mxu0 0.0
  %2984 = vmatpush.msra.mxu0 0.0
  %2985 = vmatpush.msra.mxu0 0.0
  %2986 = vmatpush.msra.mxu0 0.0
  %2987 = vmatpush.msra.mxu0 0.0
  %2988 = vmatpush.msra.mxu0 0.0
  %2989 = vmatpush.msra.mxu0 0.0
  %2990 = vmatpush.msra.mxu0 0.0
  %2991 = vmatpush.msra.mxu0 0.0
  %2992 = vmatpush.msra.mxu0 %v2720
  %2993 = vmatpush.msra.mxu0 %v2719
  %2994 = vmatpush.msra.mxu0 %v2718
  %2995 = vmatpush.msra.mxu0 %v2717
  %2996 = vmatmul.f32.gmra.mxu0 %v2976
  %v2997 = vpop.f32.mrf.mxu0
  %v2998 = vadd.f32 0.0, %v2997
  %2999 = vmatmul.f32.gmra.mxu0 %v2978
  %v3000 = vpop.f32.mrf.mxu0
  %v3001 = vadd.f32 0.0, %v3000
  %3002 = vdwg.mxu0
  %v3003 = vadd.f32 %v2974, %v2998
  %v3004 = vadd.f32 %v2975, %v3001
  %v3005 = vxor.u32 %v2972, 2147483648
  %v3006 = vxor.u32 %v2973, 2147483648
  %v3007 = vmul.f32 %v3005, 1.442695
  %v3008 = vpow.pop %v3007
  %v3009 = vmul.f32 %v3006, 1.442695
  %v3010 = vpow.pop %v3009
  %v3011 = vadd.f32 %v3008, 1.0
  %v3012 = vadd.f32 %v3010, 1.0
  %v3013 = vrcp.pop %v3011
  %v3014 = vmul.f32 %v3011, %v3013
  %v3015 = vsub.f32 1.0, %v3014
  %v3016 = vmul.f32 %v3013, %v3015
  %v3017 = vadd.f32 %v3013, %v3016
  %vm3018 = vweird.f32 %v3011
  %vm3019 = vweird.f32 %v3013
  %vm3020 = vmor %vm3018, %vm3019
  %v3021 = vsel %vm3020, %v3013, %v3017
  %v3022 = vand.u32 2147483647, %v3011
  %vm3023 = vcmp.eq.f32.partialorder %v3022, 8.507059e+37
  %v3024 = vand.u32 %v3011, 2147483648
  %v3025 = vor.u32 1.1754944e-38, %v3024
  %v3026 = vsel %vm3023, %v3025, %v3021
  %v3027 = vmul.f32 1.0, %v3026
  %v3028 = vrcp.pop %v3012
  %v3029 = vmul.f32 %v3012, %v3028
  %v3030 = vsub.f32 1.0, %v3029
  %v3031 = vmul.f32 %v3028, %v3030
  %v3032 = vadd.f32 %v3028, %v3031
  %vm3033 = vweird.f32 %v3012
  %vm3034 = vweird.f32 %v3028
  %vm3035 = vmor %vm3033, %vm3034
  %v3036 = vsel %vm3035, %v3028, %v3032
  %v3037 = vand.u32 2147483647, %v3012
  %vm3038 = vcmp.eq.f32.partialorder %v3037, 8.507059e+37
  %v3039 = vand.u32 %v3012, 2147483648
  %v3040 = vor.u32 1.1754944e-38, %v3039
  %v3041 = vsel %vm3038, %v3040, %v3036
  %v3042 = vmul.f32 1.0, %v3041
  %v3043 = vtanh.pop %v2972
  %v3044 = vtanh.pop %v2973
  %v3045 = vmul.f32 %v3027, %v2835
  %v3046 = vmul.f32 %v3042, %v2836
  %3049 = vrot.lane.b32.xlu0 %v3043, 32
  %v3050 = vpop.permute.xlu0 %3049
  %3051 = vrot.lane.b32.xlu0 %v3044, 32
  %v3052 = vpop.permute.xlu0 %3051
  %v3055 = vmul.f32 %v3027, %v3050
  %v3056 = vmul.f32 %v3042, %v3052
  %3059 = vrot.lane.b32.xlu0 %v3055, 32
  %v3060 = vpop.permute.xlu0 %3059
  %3061 = vrot.lane.b32.xlu0 %v3056, 32
  %v3062 = vpop.permute.xlu0 %3061
  %v3065 = vadd.f32 %v3045, %v3060
  %v3066 = vadd.f32 %v3046, %v3062
  %v3067 = vtanh.pop %v3065
  %v3068 = vtanh.pop %v3066
  %3071 = vrot.lane.b32.xlu0 %v3067, 32
  %v3072 = vpop.permute.xlu0 %3071
  %3073 = vrot.lane.b32.xlu0 %v3068, 32
  %v3074 = vpop.permute.xlu0 %3073
  %v3077 = vmul.f32 %v3027, %v3072
  %v3078 = vmul.f32 %v3042, %v3074
  %v3079 = vxor.u32 %v3003, 2147483648
  %v3080 = vxor.u32 %v3004, 2147483648
  %v3081 = vmul.f32 %v3079, 1.442695
  %v3082 = vpow.pop %v3081
  %v3083 = vmul.f32 %v3080, 1.442695
  %v3084 = vpow.pop %v3083
  %v3085 = vadd.f32 %v3082, 1.0
  %v3086 = vadd.f32 %v3084, 1.0
  %v3087 = vrcp.pop %v3085
  %v3088 = vmul.f32 %v3085, %v3087
  %v3089 = vsub.f32 1.0, %v3088
  %v3090 = vmul.f32 %v3087, %v3089
  %v3091 = vadd.f32 %v3087, %v3090
  %vm3092 = vweird.f32 %v3085
  %vm3093 = vweird.f32 %v3087
  %vm3094 = vmor %vm3092, %vm3093
  %v3095 = vsel %vm3094, %v3087, %v3091
  %v3096 = vand.u32 2147483647, %v3085
  %vm3097 = vcmp.eq.f32.partialorder %v3096, 8.507059e+37
  %v3098 = vand.u32 %v3085, 2147483648
  %v3099 = vor.u32 1.1754944e-38, %v3098
  %v3100 = vsel %vm3097, %v3099, %v3095
  %v3101 = vmul.f32 1.0, %v3100
  %v3102 = vrcp.pop %v3086
  %v3103 = vmul.f32 %v3086, %v3102
  %v3104 = vsub.f32 1.0, %v3103
  %v3105 = vmul.f32 %v3102, %v3104
  %v3106 = vadd.f32 %v3102, %v3105
  %vm3107 = vweird.f32 %v3086
  %vm3108 = vweird.f32 %v3102
  %vm3109 = vmor %vm3107, %vm3108
  %v3110 = vsel %vm3109, %v3102, %v3106
  %v3111 = vand.u32 2147483647, %v3086
  %vm3112 = vcmp.eq.f32.partialorder %v3111, 8.507059e+37
  %v3113 = vand.u32 %v3086, 2147483648
  %v3114 = vor.u32 1.1754944e-38, %v3113
  %v3115 = vsel %vm3112, %v3114, %v3110
  %v3116 = vmul.f32 1.0, %v3115
  %v3117 = vtanh.pop %v3003
  %v3118 = vtanh.pop %v3004
  %v3119 = vmul.f32 %v3101, %v2909
  %v3120 = vmul.f32 %v3116, %v2910
  %3123 = vrot.lane.b32.xlu0 %v3117, 32
  %v3124 = vpop.permute.xlu0 %3123
  %3125 = vrot.lane.b32.xlu0 %v3118, 32
  %v3126 = vpop.permute.xlu0 %3125
  %v3129 = vmul.f32 %v3101, %v3124
  %v3130 = vmul.f32 %v3116, %v3126
  %3133 = vrot.lane.b32.xlu0 %v3129, 32
  %v3134 = vpop.permute.xlu0 %3133
  %3135 = vrot.lane.b32.xlu0 %v3130, 32
  %v3136 = vpop.permute.xlu0 %3135
  %v3139 = vadd.f32 %v3119, %v3134
  %v3140 = vadd.f32 %v3120, %v3136
  %v3141 = vtanh.pop %v3139
  %v3142 = vtanh.pop %v3140
  %3145 = vrot.lane.b32.xlu0 %v3141, 32
  %v3146 = vpop.permute.xlu0 %3145
  %3147 = vrot.lane.b32.xlu0 %v3142, 32
  %v3148 = vpop.permute.xlu0 %3147
  %v3151 = vmul.f32 %v3101, %v3146
  %v3152 = vmul.f32 %v3116, %v3148
  %3155 = vrot.lane.b32.xlu0 %v3077, 64
  %v3156 = vpop.permute.xlu0 %3155
  %3157 = vrot.lane.b32.xlu0 %v3078, 64
  %v3158 = vpop.permute.xlu0 %3157
  %3161 = vst.msk [vmem:[#allocation4 + $0x10] sm:$0xff] %vm403, %v3156
  %3162 = vst.msk [vmem:[#allocation4 + $0x18] sm:$0xff] %vm403, %v3158
  %3165 = vrot.lane.b32.xlu0 %v3151, 64
  %v3166 = vpop.permute.xlu0 %3165
  %3167 = vrot.lane.b32.xlu0 %v3152, 64
  %v3168 = vpop.permute.xlu0 %3167
  %3171 = vst.msk [vmem:[#allocation5 + $0x60] sm:$0xff] %vm403, %v3166
  %3172 = vst.msk [vmem:[#allocation5 + $0x68] sm:$0xff] %vm403, %v3168
  %v3173 = vld [vmem:[#allocation2 + $0x20] sm:$0xff]
  %v3174 = vld [vmem:[#allocation2 + $0x28] sm:$0xff]
  %v3175 = vsel %vm403, %v3156, 0
  %v3177 = vsel %vm403, %v3158, 0
  %3179 = vmatpush.msra.mxu0 0.0
  %3180 = vmatpush.msra.mxu0 0.0
  %3181 = vmatpush.msra.mxu0 0.0
  %3182 = vmatpush.msra.mxu0 0.0
  %3183 = vmatpush.msra.mxu0 0.0
  %3184 = vmatpush.msra.mxu0 0.0
  %3185 = vmatpush.msra.mxu0 0.0
  %3186 = vmatpush.msra.mxu0 0.0
  %3187 = vmatpush.msra.mxu0 0.0
  %3188 = vmatpush.msra.mxu0 0.0
  %3189 = vmatpush.msra.mxu0 0.0
  %3190 = vmatpush.msra.mxu0 0.0
  %3191 = vmatpush.msra.mxu0 %v2716
  %3192 = vmatpush.msra.mxu0 %v2715
  %3193 = vmatpush.msra.mxu0 %v2714
  %3194 = vmatpush.msra.mxu0 %v2713
  %3195 = vmatmul.f32.gmra.mxu0 %v3175
  %v3196 = vpop.f32.mrf.mxu0
  %v3197 = vadd.f32 0.0, %v3196
  %3198 = vmatmul.f32.gmra.mxu0 %v3177
  %v3199 = vpop.f32.mrf.mxu0
  %v3200 = vadd.f32 0.0, %v3199
  %3201 = vdwg.mxu0
  %v3202 = vadd.f32 %v3173, %v3197
  %v3203 = vadd.f32 %v3174, %v3200
  %v3204 = vld [vmem:[#allocation3 + $0x50] sm:$0xff]
  %v3205 = vld [vmem:[#allocation3 + $0x58] sm:$0xff]
  %v3206 = vsel %vm403, %v3166, 0
  %v3208 = vsel %vm403, %v3168, 0
  %3210 = vmatpush.msra.mxu0 0.0
  %3211 = vmatpush.msra.mxu0 0.0
  %3212 = vmatpush.msra.mxu0 0.0
  %3213 = vmatpush.msra.mxu0 0.0
  %3214 = vmatpush.msra.mxu0 0.0
  %3215 = vmatpush.msra.mxu0 0.0
  %3216 = vmatpush.msra.mxu0 0.0
  %3217 = vmatpush.msra.mxu0 0.0
  %3218 = vmatpush.msra.mxu0 0.0
  %3219 = vmatpush.msra.mxu0 0.0
  %3220 = vmatpush.msra.mxu0 0.0
  %3221 = vmatpush.msra.mxu0 0.0
  %3222 = vmatpush.msra.mxu0 %v2720
  %3223 = vmatpush.msra.mxu0 %v2719
  %3224 = vmatpush.msra.mxu0 %v2718
  %3225 = vmatpush.msra.mxu0 %v2717
  %3226 = vmatmul.f32.gmra.mxu0 %v3206
  %v3227 = vpop.f32.mrf.mxu0
  %v3228 = vadd.f32 0.0, %v3227
  %3229 = vmatmul.f32.gmra.mxu0 %v3208
  %v3230 = vpop.f32.mrf.mxu0
  %v3231 = vadd.f32 0.0, %v3230
  %3232 = vdwg.mxu0
  %v3233 = vadd.f32 %v3204, %v3228
  %v3234 = vadd.f32 %v3205, %v3231
  %v3235 = vxor.u32 %v3202, 2147483648
  %v3236 = vxor.u32 %v3203, 2147483648
  %v3237 = vmul.f32 %v3235, 1.442695
  %v3238 = vpow.pop %v3237
  %v3239 = vmul.f32 %v3236, 1.442695
  %v3240 = vpow.pop %v3239
  %v3241 = vadd.f32 %v3238, 1.0
  %v3242 = vadd.f32 %v3240, 1.0
  %v3243 = vrcp.pop %v3241
  %v3244 = vmul.f32 %v3241, %v3243
  %v3245 = vsub.f32 1.0, %v3244
  %v3246 = vmul.f32 %v3243, %v3245
  %v3247 = vadd.f32 %v3243, %v3246
  %vm3248 = vweird.f32 %v3241
  %vm3249 = vweird.f32 %v3243
  %vm3250 = vmor %vm3248, %vm3249
  %v3251 = vsel %vm3250, %v3243, %v3247
  %v3252 = vand.u32 2147483647, %v3241
  %vm3253 = vcmp.eq.f32.partialorder %v3252, 8.507059e+37
  %v3254 = vand.u32 %v3241, 2147483648
  %v3255 = vor.u32 1.1754944e-38, %v3254
  %v3256 = vsel %vm3253, %v3255, %v3251
  %v3257 = vmul.f32 1.0, %v3256
  %v3258 = vrcp.pop %v3242
  %v3259 = vmul.f32 %v3242, %v3258
  %v3260 = vsub.f32 1.0, %v3259
  %v3261 = vmul.f32 %v3258, %v3260
  %v3262 = vadd.f32 %v3258, %v3261
  %vm3263 = vweird.f32 %v3242
  %vm3264 = vweird.f32 %v3258
  %vm3265 = vmor %vm3263, %vm3264
  %v3266 = vsel %vm3265, %v3258, %v3262
  %v3267 = vand.u32 2147483647, %v3242
  %vm3268 = vcmp.eq.f32.partialorder %v3267, 8.507059e+37
  %v3269 = vand.u32 %v3242, 2147483648
  %v3270 = vor.u32 1.1754944e-38, %v3269
  %v3271 = vsel %vm3268, %v3270, %v3266
  %v3272 = vmul.f32 1.0, %v3271
  %v3273 = vtanh.pop %v3202
  %v3274 = vtanh.pop %v3203
  %v3275 = vmul.f32 %v3257, %v3065
  %v3276 = vmul.f32 %v3272, %v3066
  %3279 = vrot.lane.b32.xlu0 %v3273, 32
  %v3280 = vpop.permute.xlu0 %3279
  %3281 = vrot.lane.b32.xlu0 %v3274, 32
  %v3282 = vpop.permute.xlu0 %3281
  %v3285 = vmul.f32 %v3257, %v3280
  %v3286 = vmul.f32 %v3272, %v3282
  %3289 = vrot.lane.b32.xlu0 %v3285, 32
  %v3290 = vpop.permute.xlu0 %3289
  %3291 = vrot.lane.b32.xlu0 %v3286, 32
  %v3292 = vpop.permute.xlu0 %3291
  %v3295 = vadd.f32 %v3275, %v3290
  %v3296 = vadd.f32 %v3276, %v3292
  %v3297 = vtanh.pop %v3295
  %v3298 = vtanh.pop %v3296
  %3301 = vrot.lane.b32.xlu0 %v3297, 32
  %v3302 = vpop.permute.xlu0 %3301
  %3303 = vrot.lane.b32.xlu0 %v3298, 32
  %v3304 = vpop.permute.xlu0 %3303
  %v3307 = vmul.f32 %v3257, %v3302
  %v3308 = vmul.f32 %v3272, %v3304
  %v3309 = vxor.u32 %v3233, 2147483648
  %v3310 = vxor.u32 %v3234, 2147483648
  %v3311 = vmul.f32 %v3309, 1.442695
  %v3312 = vpow.pop %v3311
  %v3313 = vmul.f32 %v3310, 1.442695
  %v3314 = vpow.pop %v3313
  %v3315 = vadd.f32 %v3312, 1.0
  %v3316 = vadd.f32 %v3314, 1.0
  %v3317 = vrcp.pop %v3315
  %v3318 = vmul.f32 %v3315, %v3317
  %v3319 = vsub.f32 1.0, %v3318
  %v3320 = vmul.f32 %v3317, %v3319
  %v3321 = vadd.f32 %v3317, %v3320
  %vm3322 = vweird.f32 %v3315
  %vm3323 = vweird.f32 %v3317
  %vm3324 = vmor %vm3322, %vm3323
  %v3325 = vsel %vm3324, %v3317, %v3321
  %v3326 = vand.u32 2147483647, %v3315
  %vm3327 = vcmp.eq.f32.partialorder %v3326, 8.507059e+37
  %v3328 = vand.u32 %v3315, 2147483648
  %v3329 = vor.u32 1.1754944e-38, %v3328
  %v3330 = vsel %vm3327, %v3329, %v3325
  %v3331 = vmul.f32 1.0, %v3330
  %v3332 = vrcp.pop %v3316
  %v3333 = vmul.f32 %v3316, %v3332
  %v3334 = vsub.f32 1.0, %v3333
  %v3335 = vmul.f32 %v3332, %v3334
  %v3336 = vadd.f32 %v3332, %v3335
  %vm3337 = vweird.f32 %v3316
  %vm3338 = vweird.f32 %v3332
  %vm3339 = vmor %vm3337, %vm3338
  %v3340 = vsel %vm3339, %v3332, %v3336
  %v3341 = vand.u32 2147483647, %v3316
  %vm3342 = vcmp.eq.f32.partialorder %v3341, 8.507059e+37
  %v3343 = vand.u32 %v3316, 2147483648
  %v3344 = vor.u32 1.1754944e-38, %v3343
  %v3345 = vsel %vm3342, %v3344, %v3340
  %v3346 = vmul.f32 1.0, %v3345
  %v3347 = vtanh.pop %v3233
  %v3348 = vtanh.pop %v3234
  %v3349 = vmul.f32 %v3331, %v3139
  %v3350 = vmul.f32 %v3346, %v3140
  %3353 = vrot.lane.b32.xlu0 %v3347, 32
  %v3354 = vpop.permute.xlu0 %3353
  %3355 = vrot.lane.b32.xlu0 %v3348, 32
  %v3356 = vpop.permute.xlu0 %3355
  %v3359 = vmul.f32 %v3331, %v3354
  %v3360 = vmul.f32 %v3346, %v3356
  %3363 = vrot.lane.b32.xlu0 %v3359, 32
  %v3364 = vpop.permute.xlu0 %3363
  %3365 = vrot.lane.b32.xlu0 %v3360, 32
  %v3366 = vpop.permute.xlu0 %3365
  %v3369 = vadd.f32 %v3349, %v3364
  %v3370 = vadd.f32 %v3350, %v3366
  %v3371 = vtanh.pop %v3369
  %v3372 = vtanh.pop %v3370
  %3375 = vrot.lane.b32.xlu0 %v3371, 32
  %v3376 = vpop.permute.xlu0 %3375
  %3377 = vrot.lane.b32.xlu0 %v3372, 32
  %v3378 = vpop.permute.xlu0 %3377
  %v3381 = vmul.f32 %v3331, %v3376
  %v3382 = vmul.f32 %v3346, %v3378
  %3385 = vrot.lane.b32.xlu0 %v3307, 64
  %v3386 = vpop.permute.xlu0 %3385
  %3387 = vrot.lane.b32.xlu0 %v3308, 64
  %v3388 = vpop.permute.xlu0 %3387
  %3391 = vst.msk [vmem:[#allocation4 + $0x20] sm:$0xff] %vm403, %v3386
  %3392 = vst.msk [vmem:[#allocation4 + $0x28] sm:$0xff] %vm403, %v3388
  %3395 = vrot.lane.b32.xlu0 %v3381, 64
  %v3396 = vpop.permute.xlu0 %3395
  %3397 = vrot.lane.b32.xlu0 %v3382, 64
  %v3398 = vpop.permute.xlu0 %3397
  %3401 = vst.msk [vmem:[#allocation5 + $0x50] sm:$0xff] %vm403, %v3396
  %3402 = vst.msk [vmem:[#allocation5 + $0x58] sm:$0xff] %vm403, %v3398
  %v3403 = vld [vmem:[#allocation2 + $0x30] sm:$0xff]
  %v3404 = vld [vmem:[#allocation2 + $0x38] sm:$0xff]
  %v3405 = vsel %vm403, %v3386, 0
  %v3407 = vsel %vm403, %v3388, 0
  %3409 = vmatpush.msra.mxu0 0.0
  %3410 = vmatpush.msra.mxu0 0.0
  %3411 = vmatpush.msra.mxu0 0.0
  %3412 = vmatpush.msra.mxu0 0.0
  %3413 = vmatpush.msra.mxu0 0.0
  %3414 = vmatpush.msra.mxu0 0.0
  %3415 = vmatpush.msra.mxu0 0.0
  %3416 = vmatpush.msra.mxu0 0.0
  %3417 = vmatpush.msra.mxu0 0.0
  %3418 = vmatpush.msra.mxu0 0.0
  %3419 = vmatpush.msra.mxu0 0.0
  %3420 = vmatpush.msra.mxu0 0.0
  %3421 = vmatpush.msra.mxu0 %v2716
  %3422 = vmatpush.msra.mxu0 %v2715
  %3423 = vmatpush.msra.mxu0 %v2714
  %3424 = vmatpush.msra.mxu0 %v2713
  %3425 = vmatmul.f32.gmra.mxu0 %v3405
  %v3426 = vpop.f32.mrf.mxu0
  %v3427 = vadd.f32 0.0, %v3426
  %3428 = vmatmul.f32.gmra.mxu0 %v3407
  %v3429 = vpop.f32.mrf.mxu0
  %v3430 = vadd.f32 0.0, %v3429
  %3431 = vdwg.mxu0
  %v3432 = vadd.f32 %v3403, %v3427
  %v3433 = vadd.f32 %v3404, %v3430
  %v3434 = vld [vmem:[#allocation3 + $0x40] sm:$0xff]
  %v3435 = vld [vmem:[#allocation3 + $0x48] sm:$0xff]
  %v3436 = vsel %vm403, %v3396, 0
  %v3438 = vsel %vm403, %v3398, 0
  %3440 = vmatpush.msra.mxu0 0.0
  %3441 = vmatpush.msra.mxu0 0.0
  %3442 = vmatpush.msra.mxu0 0.0
  %3443 = vmatpush.msra.mxu0 0.0
  %3444 = vmatpush.msra.mxu0 0.0
  %3445 = vmatpush.msra.mxu0 0.0
  %3446 = vmatpush.msra.mxu0 0.0
  %3447 = vmatpush.msra.mxu0 0.0
  %3448 = vmatpush.msra.mxu0 0.0
  %3449 = vmatpush.msra.mxu0 0.0
  %3450 = vmatpush.msra.mxu0 0.0
  %3451 = vmatpush.msra.mxu0 0.0
  %3452 = vmatpush.msra.mxu0 %v2720
  %3453 = vmatpush.msra.mxu0 %v2719
  %3454 = vmatpush.msra.mxu0 %v2718
  %3455 = vmatpush.msra.mxu0 %v2717
  %3456 = vmatmul.f32.gmra.mxu0 %v3436
  %v3457 = vpop.f32.mrf.mxu0
  %v3458 = vadd.f32 0.0, %v3457
  %3459 = vmatmul.f32.gmra.mxu0 %v3438
  %v3460 = vpop.f32.mrf.mxu0
  %v3461 = vadd.f32 0.0, %v3460
  %3462 = vdwg.mxu0
  %v3463 = vadd.f32 %v3434, %v3458
  %v3464 = vadd.f32 %v3435, %v3461
  %v3465 = vxor.u32 %v3432, 2147483648
  %v3466 = vxor.u32 %v3433, 2147483648
  %v3467 = vmul.f32 %v3465, 1.442695
  %v3468 = vpow.pop %v3467
  %v3469 = vmul.f32 %v3466, 1.442695
  %v3470 = vpow.pop %v3469
  %v3471 = vadd.f32 %v3468, 1.0
  %v3472 = vadd.f32 %v3470, 1.0
  %v3473 = vrcp.pop %v3471
  %v3474 = vmul.f32 %v3471, %v3473
  %v3475 = vsub.f32 1.0, %v3474
  %v3476 = vmul.f32 %v3473, %v3475
  %v3477 = vadd.f32 %v3473, %v3476
  %vm3478 = vweird.f32 %v3471
  %vm3479 = vweird.f32 %v3473
  %vm3480 = vmor %vm3478, %vm3479
  %v3481 = vsel %vm3480, %v3473, %v3477
  %v3482 = vand.u32 2147483647, %v3471
  %vm3483 = vcmp.eq.f32.partialorder %v3482, 8.507059e+37
  %v3484 = vand.u32 %v3471, 2147483648
  %v3485 = vor.u32 1.1754944e-38, %v3484
  %v3486 = vsel %vm3483, %v3485, %v3481
  %v3487 = vmul.f32 1.0, %v3486
  %v3488 = vrcp.pop %v3472
  %v3489 = vmul.f32 %v3472, %v3488
  %v3490 = vsub.f32 1.0, %v3489
  %v3491 = vmul.f32 %v3488, %v3490
  %v3492 = vadd.f32 %v3488, %v3491
  %vm3493 = vweird.f32 %v3472
  %vm3494 = vweird.f32 %v3488
  %vm3495 = vmor %vm3493, %vm3494
  %v3496 = vsel %vm3495, %v3488, %v3492
  %v3497 = vand.u32 2147483647, %v3472
  %vm3498 = vcmp.eq.f32.partialorder %v3497, 8.507059e+37
  %v3499 = vand.u32 %v3472, 2147483648
  %v3500 = vor.u32 1.1754944e-38, %v3499
  %v3501 = vsel %vm3498, %v3500, %v3496
  %v3502 = vmul.f32 1.0, %v3501
  %v3503 = vtanh.pop %v3432
  %v3504 = vtanh.pop %v3433
  %v3505 = vmul.f32 %v3487, %v3295
  %v3506 = vmul.f32 %v3502, %v3296
  %3509 = vrot.lane.b32.xlu0 %v3503, 32
  %v3510 = vpop.permute.xlu0 %3509
  %3511 = vrot.lane.b32.xlu0 %v3504, 32
  %v3512 = vpop.permute.xlu0 %3511
  %v3515 = vmul.f32 %v3487, %v3510
  %v3516 = vmul.f32 %v3502, %v3512
  %3519 = vrot.lane.b32.xlu0 %v3515, 32
  %v3520 = vpop.permute.xlu0 %3519
  %3521 = vrot.lane.b32.xlu0 %v3516, 32
  %v3522 = vpop.permute.xlu0 %3521
  %v3525 = vadd.f32 %v3505, %v3520
  %v3526 = vadd.f32 %v3506, %v3522
  %v3527 = vtanh.pop %v3525
  %v3528 = vtanh.pop %v3526
  %3531 = vrot.lane.b32.xlu0 %v3527, 32
  %v3532 = vpop.permute.xlu0 %3531
  %3533 = vrot.lane.b32.xlu0 %v3528, 32
  %v3534 = vpop.permute.xlu0 %3533
  %v3537 = vmul.f32 %v3487, %v3532
  %v3538 = vmul.f32 %v3502, %v3534
  %v3539 = vxor.u32 %v3463, 2147483648
  %v3540 = vxor.u32 %v3464, 2147483648
  %v3541 = vmul.f32 %v3539, 1.442695
  %v3542 = vpow.pop %v3541
  %v3543 = vmul.f32 %v3540, 1.442695
  %v3544 = vpow.pop %v3543
  %v3545 = vadd.f32 %v3542, 1.0
  %v3546 = vadd.f32 %v3544, 1.0
  %v3547 = vrcp.pop %v3545
  %v3548 = vmul.f32 %v3545, %v3547
  %v3549 = vsub.f32 1.0, %v3548
  %v3550 = vmul.f32 %v3547, %v3549
  %v3551 = vadd.f32 %v3547, %v3550
  %vm3552 = vweird.f32 %v3545
  %vm3553 = vweird.f32 %v3547
  %vm3554 = vmor %vm3552, %vm3553
  %v3555 = vsel %vm3554, %v3547, %v3551
  %v3556 = vand.u32 2147483647, %v3545
  %vm3557 = vcmp.eq.f32.partialorder %v3556, 8.507059e+37
  %v3558 = vand.u32 %v3545, 2147483648
  %v3559 = vor.u32 1.1754944e-38, %v3558
  %v3560 = vsel %vm3557, %v3559, %v3555
  %v3561 = vmul.f32 1.0, %v3560
  %v3562 = vrcp.pop %v3546
  %v3563 = vmul.f32 %v3546, %v3562
  %v3564 = vsub.f32 1.0, %v3563
  %v3565 = vmul.f32 %v3562, %v3564
  %v3566 = vadd.f32 %v3562, %v3565
  %vm3567 = vweird.f32 %v3546
  %vm3568 = vweird.f32 %v3562
  %vm3569 = vmor %vm3567, %vm3568
  %v3570 = vsel %vm3569, %v3562, %v3566
  %v3571 = vand.u32 2147483647, %v3546
  %vm3572 = vcmp.eq.f32.partialorder %v3571, 8.507059e+37
  %v3573 = vand.u32 %v3546, 2147483648
  %v3574 = vor.u32 1.1754944e-38, %v3573
  %v3575 = vsel %vm3572, %v3574, %v3570
  %v3576 = vmul.f32 1.0, %v3575
  %v3577 = vtanh.pop %v3463
  %v3578 = vtanh.pop %v3464
  %v3579 = vmul.f32 %v3561, %v3369
  %v3580 = vmul.f32 %v3576, %v3370
  %3583 = vrot.lane.b32.xlu0 %v3577, 32
  %v3584 = vpop.permute.xlu0 %3583
  %3585 = vrot.lane.b32.xlu0 %v3578, 32
  %v3586 = vpop.permute.xlu0 %3585
  %v3589 = vmul.f32 %v3561, %v3584
  %v3590 = vmul.f32 %v3576, %v3586
  %3593 = vrot.lane.b32.xlu0 %v3589, 32
  %v3594 = vpop.permute.xlu0 %3593
  %3595 = vrot.lane.b32.xlu0 %v3590, 32
  %v3596 = vpop.permute.xlu0 %3595
  %v3599 = vadd.f32 %v3579, %v3594
  %v3600 = vadd.f32 %v3580, %v3596
  %v3601 = vtanh.pop %v3599
  %v3602 = vtanh.pop %v3600
  %3605 = vrot.lane.b32.xlu0 %v3601, 32
  %v3606 = vpop.permute.xlu0 %3605
  %3607 = vrot.lane.b32.xlu0 %v3602, 32
  %v3608 = vpop.permute.xlu0 %3607
  %v3611 = vmul.f32 %v3561, %v3606
  %v3612 = vmul.f32 %v3576, %v3608
  %3615 = vrot.lane.b32.xlu0 %v3537, 64
  %v3616 = vpop.permute.xlu0 %3615
  %3617 = vrot.lane.b32.xlu0 %v3538, 64
  %v3618 = vpop.permute.xlu0 %3617
  %3621 = vst.msk [vmem:[#allocation4 + $0x30] sm:$0xff] %vm403, %v3616
  %3622 = vst.msk [vmem:[#allocation4 + $0x38] sm:$0xff] %vm403, %v3618
  %3625 = vrot.lane.b32.xlu0 %v3611, 64
  %v3626 = vpop.permute.xlu0 %3625
  %3627 = vrot.lane.b32.xlu0 %v3612, 64
  %v3628 = vpop.permute.xlu0 %3627
  %3631 = vst.msk [vmem:[#allocation5 + $0x40] sm:$0xff] %vm403, %v3626
  %3632 = vst.msk [vmem:[#allocation5 + $0x48] sm:$0xff] %vm403, %v3628
  %v3633 = vld [vmem:[#allocation2 + $0x40] sm:$0xff]
  %v3634 = vld [vmem:[#allocation2 + $0x48] sm:$0xff]
  %v3635 = vsel %vm403, %v3616, 0
  %v3637 = vsel %vm403, %v3618, 0
  %3639 = vmatpush.msra.mxu0 0.0
  %3640 = vmatpush.msra.mxu0 0.0
  %3641 = vmatpush.msra.mxu0 0.0
  %3642 = vmatpush.msra.mxu0 0.0
  %3643 = vmatpush.msra.mxu0 0.0
  %3644 = vmatpush.msra.mxu0 0.0
  %3645 = vmatpush.msra.mxu0 0.0
  %3646 = vmatpush.msra.mxu0 0.0
  %3647 = vmatpush.msra.mxu0 0.0
  %3648 = vmatpush.msra.mxu0 0.0
  %3649 = vmatpush.msra.mxu0 0.0
  %3650 = vmatpush.msra.mxu0 0.0
  %3651 = vmatpush.msra.mxu0 %v2716
  %3652 = vmatpush.msra.mxu0 %v2715
  %3653 = vmatpush.msra.mxu0 %v2714
  %3654 = vmatpush.msra.mxu0 %v2713
  %3655 = vmatmul.f32.gmra.mxu0 %v3635
  %v3656 = vpop.f32.mrf.mxu0
  %v3657 = vadd.f32 0.0, %v3656
  %3658 = vmatmul.f32.gmra.mxu0 %v3637
  %v3659 = vpop.f32.mrf.mxu0
  %v3660 = vadd.f32 0.0, %v3659
  %3661 = vdwg.mxu0
  %v3662 = vadd.f32 %v3633, %v3657
  %v3663 = vadd.f32 %v3634, %v3660
  %v3664 = vld [vmem:[#allocation3 + $0x30] sm:$0xff]
  %v3665 = vld [vmem:[#allocation3 + $0x38] sm:$0xff]
  %v3666 = vsel %vm403, %v3626, 0
  %v3668 = vsel %vm403, %v3628, 0
  %3670 = vmatpush.msra.mxu0 0.0
  %3671 = vmatpush.msra.mxu0 0.0
  %3672 = vmatpush.msra.mxu0 0.0
  %3673 = vmatpush.msra.mxu0 0.0
  %3674 = vmatpush.msra.mxu0 0.0
  %3675 = vmatpush.msra.mxu0 0.0
  %3676 = vmatpush.msra.mxu0 0.0
  %3677 = vmatpush.msra.mxu0 0.0
  %3678 = vmatpush.msra.mxu0 0.0
  %3679 = vmatpush.msra.mxu0 0.0
  %3680 = vmatpush.msra.mxu0 0.0
  %3681 = vmatpush.msra.mxu0 0.0
  %3682 = vmatpush.msra.mxu0 %v2720
  %3683 = vmatpush.msra.mxu0 %v2719
  %3684 = vmatpush.msra.mxu0 %v2718
  %3685 = vmatpush.msra.mxu0 %v2717
  %3686 = vmatmul.f32.gmra.mxu0 %v3666
  %v3687 = vpop.f32.mrf.mxu0
  %v3688 = vadd.f32 0.0, %v3687
  %3689 = vmatmul.f32.gmra.mxu0 %v3668
  %v3690 = vpop.f32.mrf.mxu0
  %v3691 = vadd.f32 0.0, %v3690
  %3692 = vdwg.mxu0
  %v3693 = vadd.f32 %v3664, %v3688
  %v3694 = vadd.f32 %v3665, %v3691
  %v3695 = vxor.u32 %v3662, 2147483648
  %v3696 = vxor.u32 %v3663, 2147483648
  %v3697 = vmul.f32 %v3695, 1.442695
  %v3698 = vpow.pop %v3697
  %v3699 = vmul.f32 %v3696, 1.442695
  %v3700 = vpow.pop %v3699
  %v3701 = vadd.f32 %v3698, 1.0
  %v3702 = vadd.f32 %v3700, 1.0
  %v3703 = vrcp.pop %v3701
  %v3704 = vmul.f32 %v3701, %v3703
  %v3705 = vsub.f32 1.0, %v3704
  %v3706 = vmul.f32 %v3703, %v3705
  %v3707 = vadd.f32 %v3703, %v3706
  %vm3708 = vweird.f32 %v3701
  %vm3709 = vweird.f32 %v3703
  %vm3710 = vmor %vm3708, %vm3709
  %v3711 = vsel %vm3710, %v3703, %v3707
  %v3712 = vand.u32 2147483647, %v3701
  %vm3713 = vcmp.eq.f32.partialorder %v3712, 8.507059e+37
  %v3714 = vand.u32 %v3701, 2147483648
  %v3715 = vor.u32 1.1754944e-38, %v3714
  %v3716 = vsel %vm3713, %v3715, %v3711
  %v3717 = vmul.f32 1.0, %v3716
  %v3718 = vrcp.pop %v3702
  %v3719 = vmul.f32 %v3702, %v3718
  %v3720 = vsub.f32 1.0, %v3719
  %v3721 = vmul.f32 %v3718, %v3720
  %v3722 = vadd.f32 %v3718, %v3721
  %vm3723 = vweird.f32 %v3702
  %vm3724 = vweird.f32 %v3718
  %vm3725 = vmor %vm3723, %vm3724
  %v3726 = vsel %vm3725, %v3718, %v3722
  %v3727 = vand.u32 2147483647, %v3702
  %vm3728 = vcmp.eq.f32.partialorder %v3727, 8.507059e+37
  %v3729 = vand.u32 %v3702, 2147483648
  %v3730 = vor.u32 1.1754944e-38, %v3729
  %v3731 = vsel %vm3728, %v3730, %v3726
  %v3732 = vmul.f32 1.0, %v3731
  %v3733 = vtanh.pop %v3662
  %v3734 = vtanh.pop %v3663
  %v3735 = vmul.f32 %v3717, %v3525
  %v3736 = vmul.f32 %v3732, %v3526
  %3739 = vrot.lane.b32.xlu0 %v3733, 32
  %v3740 = vpop.permute.xlu0 %3739
  %3741 = vrot.lane.b32.xlu0 %v3734, 32
  %v3742 = vpop.permute.xlu0 %3741
  %v3745 = vmul.f32 %v3717, %v3740
  %v3746 = vmul.f32 %v3732, %v3742
  %3749 = vrot.lane.b32.xlu0 %v3745, 32
  %v3750 = vpop.permute.xlu0 %3749
  %3751 = vrot.lane.b32.xlu0 %v3746, 32
  %v3752 = vpop.permute.xlu0 %3751
  %v3755 = vadd.f32 %v3735, %v3750
  %v3756 = vadd.f32 %v3736, %v3752
  %v3757 = vtanh.pop %v3755
  %v3758 = vtanh.pop %v3756
  %3761 = vrot.lane.b32.xlu0 %v3757, 32
  %v3762 = vpop.permute.xlu0 %3761
  %3763 = vrot.lane.b32.xlu0 %v3758, 32
  %v3764 = vpop.permute.xlu0 %3763
  %v3767 = vmul.f32 %v3717, %v3762
  %v3768 = vmul.f32 %v3732, %v3764
  %v3769 = vxor.u32 %v3693, 2147483648
  %v3770 = vxor.u32 %v3694, 2147483648
  %v3771 = vmul.f32 %v3769, 1.442695
  %v3772 = vpow.pop %v3771
  %v3773 = vmul.f32 %v3770, 1.442695
  %v3774 = vpow.pop %v3773
  %v3775 = vadd.f32 %v3772, 1.0
  %v3776 = vadd.f32 %v3774, 1.0
  %v3777 = vrcp.pop %v3775
  %v3778 = vmul.f32 %v3775, %v3777
  %v3779 = vsub.f32 1.0, %v3778
  %v3780 = vmul.f32 %v3777, %v3779
  %v3781 = vadd.f32 %v3777, %v3780
  %vm3782 = vweird.f32 %v3775
  %vm3783 = vweird.f32 %v3777
  %vm3784 = vmor %vm3782, %vm3783
  %v3785 = vsel %vm3784, %v3777, %v3781
  %v3786 = vand.u32 2147483647, %v3775
  %vm3787 = vcmp.eq.f32.partialorder %v3786, 8.507059e+37
  %v3788 = vand.u32 %v3775, 2147483648
  %v3789 = vor.u32 1.1754944e-38, %v3788
  %v3790 = vsel %vm3787, %v3789, %v3785
  %v3791 = vmul.f32 1.0, %v3790
  %v3792 = vrcp.pop %v3776
  %v3793 = vmul.f32 %v3776, %v3792
  %v3794 = vsub.f32 1.0, %v3793
  %v3795 = vmul.f32 %v3792, %v3794
  %v3796 = vadd.f32 %v3792, %v3795
  %vm3797 = vweird.f32 %v3776
  %vm3798 = vweird.f32 %v3792
  %vm3799 = vmor %vm3797, %vm3798
  %v3800 = vsel %vm3799, %v3792, %v3796
  %v3801 = vand.u32 2147483647, %v3776
  %vm3802 = vcmp.eq.f32.partialorder %v3801, 8.507059e+37
  %v3803 = vand.u32 %v3776, 2147483648
  %v3804 = vor.u32 1.1754944e-38, %v3803
  %v3805 = vsel %vm3802, %v3804, %v3800
  %v3806 = vmul.f32 1.0, %v3805
  %v3807 = vtanh.pop %v3693
  %v3808 = vtanh.pop %v3694
  %v3809 = vmul.f32 %v3791, %v3599
  %v3810 = vmul.f32 %v3806, %v3600
  %3813 = vrot.lane.b32.xlu0 %v3807, 32
  %v3814 = vpop.permute.xlu0 %3813
  %3815 = vrot.lane.b32.xlu0 %v3808, 32
  %v3816 = vpop.permute.xlu0 %3815
  %v3819 = vmul.f32 %v3791, %v3814
  %v3820 = vmul.f32 %v3806, %v3816
  %3823 = vrot.lane.b32.xlu0 %v3819, 32
  %v3824 = vpop.permute.xlu0 %3823
  %3825 = vrot.lane.b32.xlu0 %v3820, 32
  %v3826 = vpop.permute.xlu0 %3825
  %v3829 = vadd.f32 %v3809, %v3824
  %v3830 = vadd.f32 %v3810, %v3826
  %v3831 = vtanh.pop %v3829
  %v3832 = vtanh.pop %v3830
  %3835 = vrot.lane.b32.xlu0 %v3831, 32
  %v3836 = vpop.permute.xlu0 %3835
  %3837 = vrot.lane.b32.xlu0 %v3832, 32
  %v3838 = vpop.permute.xlu0 %3837
  %v3841 = vmul.f32 %v3791, %v3836
  %v3842 = vmul.f32 %v3806, %v3838
  %3845 = vrot.lane.b32.xlu0 %v3767, 64
  %v3846 = vpop.permute.xlu0 %3845
  %3847 = vrot.lane.b32.xlu0 %v3768, 64
  %v3848 = vpop.permute.xlu0 %3847
  %3851 = vst.msk [vmem:[#allocation4 + $0x40] sm:$0xff] %vm403, %v3846
  %3852 = vst.msk [vmem:[#allocation4 + $0x48] sm:$0xff] %vm403, %v3848
  %3855 = vrot.lane.b32.xlu0 %v3841, 64
  %v3856 = vpop.permute.xlu0 %3855
  %3857 = vrot.lane.b32.xlu0 %v3842, 64
  %v3858 = vpop.permute.xlu0 %3857
  %3861 = vst.msk [vmem:[#allocation5 + $0x30] sm:$0xff] %vm403, %v3856
  %3862 = vst.msk [vmem:[#allocation5 + $0x38] sm:$0xff] %vm403, %v3858
  %v3863 = vld [vmem:[#allocation2 + $0x50] sm:$0xff]
  %v3864 = vld [vmem:[#allocation2 + $0x58] sm:$0xff]
  %v3865 = vsel %vm403, %v3846, 0
  %v3867 = vsel %vm403, %v3848, 0
  %3869 = vmatpush.msra.mxu0 0.0
  %3870 = vmatpush.msra.mxu0 0.0
  %3871 = vmatpush.msra.mxu0 0.0
  %3872 = vmatpush.msra.mxu0 0.0
  %3873 = vmatpush.msra.mxu0 0.0
  %3874 = vmatpush.msra.mxu0 0.0
  %3875 = vmatpush.msra.mxu0 0.0
  %3876 = vmatpush.msra.mxu0 0.0
  %3877 = vmatpush.msra.mxu0 0.0
  %3878 = vmatpush.msra.mxu0 0.0
  %3879 = vmatpush.msra.mxu0 0.0
  %3880 = vmatpush.msra.mxu0 0.0
  %3881 = vmatpush.msra.mxu0 %v2716
  %3882 = vmatpush.msra.mxu0 %v2715
  %3883 = vmatpush.msra.mxu0 %v2714
  %3884 = vmatpush.msra.mxu0 %v2713
  %3885 = vmatmul.f32.gmra.mxu0 %v3865
  %v3886 = vpop.f32.mrf.mxu0
  %v3887 = vadd.f32 0.0, %v3886
  %3888 = vmatmul.f32.gmra.mxu0 %v3867
  %v3889 = vpop.f32.mrf.mxu0
  %v3890 = vadd.f32 0.0, %v3889
  %3891 = vdwg.mxu0
  %v3892 = vadd.f32 %v3863, %v3887
  %v3893 = vadd.f32 %v3864, %v3890
  %v3894 = vld [vmem:[#allocation3 + $0x20] sm:$0xff]
  %v3895 = vld [vmem:[#allocation3 + $0x28] sm:$0xff]
  %v3896 = vsel %vm403, %v3856, 0
  %v3898 = vsel %vm403, %v3858, 0
  %3900 = vmatpush.msra.mxu0 0.0
  %3901 = vmatpush.msra.mxu0 0.0
  %3902 = vmatpush.msra.mxu0 0.0
  %3903 = vmatpush.msra.mxu0 0.0
  %3904 = vmatpush.msra.mxu0 0.0
  %3905 = vmatpush.msra.mxu0 0.0
  %3906 = vmatpush.msra.mxu0 0.0
  %3907 = vmatpush.msra.mxu0 0.0
  %3908 = vmatpush.msra.mxu0 0.0
  %3909 = vmatpush.msra.mxu0 0.0
  %3910 = vmatpush.msra.mxu0 0.0
  %3911 = vmatpush.msra.mxu0 0.0
  %3912 = vmatpush.msra.mxu0 %v2720
  %3913 = vmatpush.msra.mxu0 %v2719
  %3914 = vmatpush.msra.mxu0 %v2718
  %3915 = vmatpush.msra.mxu0 %v2717
  %3916 = vmatmul.f32.gmra.mxu0 %v3896
  %v3917 = vpop.f32.mrf.mxu0
  %v3918 = vadd.f32 0.0, %v3917
  %3919 = vmatmul.f32.gmra.mxu0 %v3898
  %v3920 = vpop.f32.mrf.mxu0
  %v3921 = vadd.f32 0.0, %v3920
  %3922 = vdwg.mxu0
  %v3923 = vadd.f32 %v3894, %v3918
  %v3924 = vadd.f32 %v3895, %v3921
  %v3925 = vxor.u32 %v3892, 2147483648
  %v3926 = vxor.u32 %v3893, 2147483648
  %v3927 = vmul.f32 %v3925, 1.442695
  %v3928 = vpow.pop %v3927
  %v3929 = vmul.f32 %v3926, 1.442695
  %v3930 = vpow.pop %v3929
  %v3931 = vadd.f32 %v3928, 1.0
  %v3932 = vadd.f32 %v3930, 1.0
  %v3933 = vrcp.pop %v3931
  %v3934 = vmul.f32 %v3931, %v3933
  %v3935 = vsub.f32 1.0, %v3934
  %v3936 = vmul.f32 %v3933, %v3935
  %v3937 = vadd.f32 %v3933, %v3936
  %vm3938 = vweird.f32 %v3931
  %vm3939 = vweird.f32 %v3933
  %vm3940 = vmor %vm3938, %vm3939
  %v3941 = vsel %vm3940, %v3933, %v3937
  %v3942 = vand.u32 2147483647, %v3931
  %vm3943 = vcmp.eq.f32.partialorder %v3942, 8.507059e+37
  %v3944 = vand.u32 %v3931, 2147483648
  %v3945 = vor.u32 1.1754944e-38, %v3944
  %v3946 = vsel %vm3943, %v3945, %v3941
  %v3947 = vmul.f32 1.0, %v3946
  %v3948 = vrcp.pop %v3932
  %v3949 = vmul.f32 %v3932, %v3948
  %v3950 = vsub.f32 1.0, %v3949
  %v3951 = vmul.f32 %v3948, %v3950
  %v3952 = vadd.f32 %v3948, %v3951
  %vm3953 = vweird.f32 %v3932
  %vm3954 = vweird.f32 %v3948
  %vm3955 = vmor %vm3953, %vm3954
  %v3956 = vsel %vm3955, %v3948, %v3952
  %v3957 = vand.u32 2147483647, %v3932
  %vm3958 = vcmp.eq.f32.partialorder %v3957, 8.507059e+37
  %v3959 = vand.u32 %v3932, 2147483648
  %v3960 = vor.u32 1.1754944e-38, %v3959
  %v3961 = vsel %vm3958, %v3960, %v3956
  %v3962 = vmul.f32 1.0, %v3961
  %v3963 = vtanh.pop %v3892
  %v3964 = vtanh.pop %v3893
  %v3965 = vmul.f32 %v3947, %v3755
  %v3966 = vmul.f32 %v3962, %v3756
  %3969 = vrot.lane.b32.xlu0 %v3963, 32
  %v3970 = vpop.permute.xlu0 %3969
  %3971 = vrot.lane.b32.xlu0 %v3964, 32
  %v3972 = vpop.permute.xlu0 %3971
  %v3975 = vmul.f32 %v3947, %v3970
  %v3976 = vmul.f32 %v3962, %v3972
  %3979 = vrot.lane.b32.xlu0 %v3975, 32
  %v3980 = vpop.permute.xlu0 %3979
  %3981 = vrot.lane.b32.xlu0 %v3976, 32
  %v3982 = vpop.permute.xlu0 %3981
  %v3985 = vadd.f32 %v3965, %v3980
  %v3986 = vadd.f32 %v3966, %v3982
  %v3987 = vtanh.pop %v3985
  %v3988 = vtanh.pop %v3986
  %3991 = vrot.lane.b32.xlu0 %v3987, 32
  %v3992 = vpop.permute.xlu0 %3991
  %3993 = vrot.lane.b32.xlu0 %v3988, 32
  %v3994 = vpop.permute.xlu0 %3993
  %v3997 = vmul.f32 %v3947, %v3992
  %v3998 = vmul.f32 %v3962, %v3994
  %v3999 = vxor.u32 %v3923, 2147483648
  %v4000 = vxor.u32 %v3924, 2147483648
  %v4001 = vmul.f32 %v3999, 1.442695
  %v4002 = vpow.pop %v4001
  %v4003 = vmul.f32 %v4000, 1.442695
  %v4004 = vpow.pop %v4003
  %v4005 = vadd.f32 %v4002, 1.0
  %v4006 = vadd.f32 %v4004, 1.0
  %v4007 = vrcp.pop %v4005
  %v4008 = vmul.f32 %v4005, %v4007
  %v4009 = vsub.f32 1.0, %v4008
  %v4010 = vmul.f32 %v4007, %v4009
  %v4011 = vadd.f32 %v4007, %v4010
  %vm4012 = vweird.f32 %v4005
  %vm4013 = vweird.f32 %v4007
  %vm4014 = vmor %vm4012, %vm4013
  %v4015 = vsel %vm4014, %v4007, %v4011
  %v4016 = vand.u32 2147483647, %v4005
  %vm4017 = vcmp.eq.f32.partialorder %v4016, 8.507059e+37
  %v4018 = vand.u32 %v4005, 2147483648
  %v4019 = vor.u32 1.1754944e-38, %v4018
  %v4020 = vsel %vm4017, %v4019, %v4015
  %v4021 = vmul.f32 1.0, %v4020
  %v4022 = vrcp.pop %v4006
  %v4023 = vmul.f32 %v4006, %v4022
  %v4024 = vsub.f32 1.0, %v4023
  %v4025 = vmul.f32 %v4022, %v4024
  %v4026 = vadd.f32 %v4022, %v4025
  %vm4027 = vweird.f32 %v4006
  %vm4028 = vweird.f32 %v4022
  %vm4029 = vmor %vm4027, %vm4028
  %v4030 = vsel %vm4029, %v4022, %v4026
  %v4031 = vand.u32 2147483647, %v4006
  %vm4032 = vcmp.eq.f32.partialorder %v4031, 8.507059e+37
  %v4033 = vand.u32 %v4006, 2147483648
  %v4034 = vor.u32 1.1754944e-38, %v4033
  %v4035 = vsel %vm4032, %v4034, %v4030
  %v4036 = vmul.f32 1.0, %v4035
  %v4037 = vtanh.pop %v3923
  %v4038 = vtanh.pop %v3924
  %v4039 = vmul.f32 %v4021, %v3829
  %v4040 = vmul.f32 %v4036, %v3830
  %4043 = vrot.lane.b32.xlu0 %v4037, 32
  %v4044 = vpop.permute.xlu0 %4043
  %4045 = vrot.lane.b32.xlu0 %v4038, 32
  %v4046 = vpop.permute.xlu0 %4045
  %v4049 = vmul.f32 %v4021, %v4044
  %v4050 = vmul.f32 %v4036, %v4046
  %4053 = vrot.lane.b32.xlu0 %v4049, 32
  %v4054 = vpop.permute.xlu0 %4053
  %4055 = vrot.lane.b32.xlu0 %v4050, 32
  %v4056 = vpop.permute.xlu0 %4055
  %v4059 = vadd.f32 %v4039, %v4054
  %v4060 = vadd.f32 %v4040, %v4056
  %v4061 = vtanh.pop %v4059
  %v4062 = vtanh.pop %v4060
  %4065 = vrot.lane.b32.xlu0 %v4061, 32
  %v4066 = vpop.permute.xlu0 %4065
  %4067 = vrot.lane.b32.xlu0 %v4062, 32
  %v4068 = vpop.permute.xlu0 %4067
  %v4071 = vmul.f32 %v4021, %v4066
  %v4072 = vmul.f32 %v4036, %v4068
  %4075 = vrot.lane.b32.xlu0 %v3997, 64
  %v4076 = vpop.permute.xlu0 %4075
  %4077 = vrot.lane.b32.xlu0 %v3998, 64
  %v4078 = vpop.permute.xlu0 %4077
  %4081 = vst.msk [vmem:[#allocation4 + $0x50] sm:$0xff] %vm403, %v4076
  %4082 = vst.msk [vmem:[#allocation4 + $0x58] sm:$0xff] %vm403, %v4078
  %4085 = vrot.lane.b32.xlu0 %v4071, 64
  %v4086 = vpop.permute.xlu0 %4085
  %4087 = vrot.lane.b32.xlu0 %v4072, 64
  %v4088 = vpop.permute.xlu0 %4087
  %4091 = vst.msk [vmem:[#allocation5 + $0x20] sm:$0xff] %vm403, %v4086
  %4092 = vst.msk [vmem:[#allocation5 + $0x28] sm:$0xff] %vm403, %v4088
  %v4093 = vld [vmem:[#allocation2 + $0x60] sm:$0xff]
  %v4094 = vld [vmem:[#allocation2 + $0x68] sm:$0xff]
  %v4095 = vsel %vm403, %v4076, 0
  %v4097 = vsel %vm403, %v4078, 0
  %4099 = vmatpush.msra.mxu0 0.0
  %4100 = vmatpush.msra.mxu0 0.0
  %4101 = vmatpush.msra.mxu0 0.0
  %4102 = vmatpush.msra.mxu0 0.0
  %4103 = vmatpush.msra.mxu0 0.0
  %4104 = vmatpush.msra.mxu0 0.0
  %4105 = vmatpush.msra.mxu0 0.0
  %4106 = vmatpush.msra.mxu0 0.0
  %4107 = vmatpush.msra.mxu0 0.0
  %4108 = vmatpush.msra.mxu0 0.0
  %4109 = vmatpush.msra.mxu0 0.0
  %4110 = vmatpush.msra.mxu0 0.0
  %4111 = vmatpush.msra.mxu0 %v2716
  %4112 = vmatpush.msra.mxu0 %v2715
  %4113 = vmatpush.msra.mxu0 %v2714
  %4114 = vmatpush.msra.mxu0 %v2713
  %4115 = vmatmul.f32.gmra.mxu0 %v4095
  %v4116 = vpop.f32.mrf.mxu0
  %v4117 = vadd.f32 0.0, %v4116
  %4118 = vmatmul.f32.gmra.mxu0 %v4097
  %v4119 = vpop.f32.mrf.mxu0
  %v4120 = vadd.f32 0.0, %v4119
  %4121 = vdwg.mxu0
  %v4122 = vadd.f32 %v4093, %v4117
  %v4123 = vadd.f32 %v4094, %v4120
  %v4124 = vld [vmem:[#allocation3 + $0x10] sm:$0xff]
  %v4125 = vld [vmem:[#allocation3 + $0x18] sm:$0xff]
  %v4126 = vsel %vm403, %v4086, 0
  %v4128 = vsel %vm403, %v4088, 0
  %4130 = vmatpush.msra.mxu0 0.0
  %4131 = vmatpush.msra.mxu0 0.0
  %4132 = vmatpush.msra.mxu0 0.0
  %4133 = vmatpush.msra.mxu0 0.0
  %4134 = vmatpush.msra.mxu0 0.0
  %4135 = vmatpush.msra.mxu0 0.0
  %4136 = vmatpush.msra.mxu0 0.0
  %4137 = vmatpush.msra.mxu0 0.0
  %4138 = vmatpush.msra.mxu0 0.0
  %4139 = vmatpush.msra.mxu0 0.0
  %4140 = vmatpush.msra.mxu0 0.0
  %4141 = vmatpush.msra.mxu0 0.0
  %4142 = vmatpush.msra.mxu0 %v2720
  %4143 = vmatpush.msra.mxu0 %v2719
  %4144 = vmatpush.msra.mxu0 %v2718
  %4145 = vmatpush.msra.mxu0 %v2717
  %4146 = vmatmul.f32.gmra.mxu0 %v4126
  %v4147 = vpop.f32.mrf.mxu0
  %v4148 = vadd.f32 0.0, %v4147
  %4149 = vmatmul.f32.gmra.mxu0 %v4128
  %v4150 = vpop.f32.mrf.mxu0
  %v4151 = vadd.f32 0.0, %v4150
  %4152 = vdwg.mxu0
  %v4153 = vadd.f32 %v4124, %v4148
  %v4154 = vadd.f32 %v4125, %v4151
  %v4155 = vxor.u32 %v4122, 2147483648
  %v4156 = vxor.u32 %v4123, 2147483648
  %v4157 = vmul.f32 %v4155, 1.442695
  %v4158 = vpow.pop %v4157
  %v4159 = vmul.f32 %v4156, 1.442695
  %v4160 = vpow.pop %v4159
  %v4161 = vadd.f32 %v4158, 1.0
  %v4162 = vadd.f32 %v4160, 1.0
  %v4163 = vrcp.pop %v4161
  %v4164 = vmul.f32 %v4161, %v4163
  %v4165 = vsub.f32 1.0, %v4164
  %v4166 = vmul.f32 %v4163, %v4165
  %v4167 = vadd.f32 %v4163, %v4166
  %vm4168 = vweird.f32 %v4161
  %vm4169 = vweird.f32 %v4163
  %vm4170 = vmor %vm4168, %vm4169
  %v4171 = vsel %vm4170, %v4163, %v4167
  %v4172 = vand.u32 2147483647, %v4161
  %vm4173 = vcmp.eq.f32.partialorder %v4172, 8.507059e+37
  %v4174 = vand.u32 %v4161, 2147483648
  %v4175 = vor.u32 1.1754944e-38, %v4174
  %v4176 = vsel %vm4173, %v4175, %v4171
  %v4177 = vmul.f32 1.0, %v4176
  %v4178 = vrcp.pop %v4162
  %v4179 = vmul.f32 %v4162, %v4178
  %v4180 = vsub.f32 1.0, %v4179
  %v4181 = vmul.f32 %v4178, %v4180
  %v4182 = vadd.f32 %v4178, %v4181
  %vm4183 = vweird.f32 %v4162
  %vm4184 = vweird.f32 %v4178
  %vm4185 = vmor %vm4183, %vm4184
  %v4186 = vsel %vm4185, %v4178, %v4182
  %v4187 = vand.u32 2147483647, %v4162
  %vm4188 = vcmp.eq.f32.partialorder %v4187, 8.507059e+37
  %v4189 = vand.u32 %v4162, 2147483648
  %v4190 = vor.u32 1.1754944e-38, %v4189
  %v4191 = vsel %vm4188, %v4190, %v4186
  %v4192 = vmul.f32 1.0, %v4191
  %v4193 = vtanh.pop %v4122
  %v4194 = vtanh.pop %v4123
  %v4195 = vmul.f32 %v4177, %v3985
  %v4196 = vmul.f32 %v4192, %v3986
  %4199 = vrot.lane.b32.xlu0 %v4193, 32
  %v4200 = vpop.permute.xlu0 %4199
  %4201 = vrot.lane.b32.xlu0 %v4194, 32
  %v4202 = vpop.permute.xlu0 %4201
  %v4205 = vmul.f32 %v4177, %v4200
  %v4206 = vmul.f32 %v4192, %v4202
  %4209 = vrot.lane.b32.xlu0 %v4205, 32
  %v4210 = vpop.permute.xlu0 %4209
  %4211 = vrot.lane.b32.xlu0 %v4206, 32
  %v4212 = vpop.permute.xlu0 %4211
  %v4215 = vadd.f32 %v4195, %v4210
  %v4216 = vadd.f32 %v4196, %v4212
  %v4217 = vtanh.pop %v4215
  %v4218 = vtanh.pop %v4216
  %4221 = vrot.lane.b32.xlu0 %v4217, 32
  %v4222 = vpop.permute.xlu0 %4221
  %4223 = vrot.lane.b32.xlu0 %v4218, 32
  %v4224 = vpop.permute.xlu0 %4223
  %v4227 = vmul.f32 %v4177, %v4222
  %v4228 = vmul.f32 %v4192, %v4224
  %v4229 = vxor.u32 %v4153, 2147483648
  %v4230 = vxor.u32 %v4154, 2147483648
  %v4231 = vmul.f32 %v4229, 1.442695
  %v4232 = vpow.pop %v4231
  %v4233 = vmul.f32 %v4230, 1.442695
  %v4234 = vpow.pop %v4233
  %v4235 = vadd.f32 %v4232, 1.0
  %v4236 = vadd.f32 %v4234, 1.0
  %v4237 = vrcp.pop %v4235
  %v4238 = vmul.f32 %v4235, %v4237
  %v4239 = vsub.f32 1.0, %v4238
  %v4240 = vmul.f32 %v4237, %v4239
  %v4241 = vadd.f32 %v4237, %v4240
  %vm4242 = vweird.f32 %v4235
  %vm4243 = vweird.f32 %v4237
  %vm4244 = vmor %vm4242, %vm4243
  %v4245 = vsel %vm4244, %v4237, %v4241
  %v4246 = vand.u32 2147483647, %v4235
  %vm4247 = vcmp.eq.f32.partialorder %v4246, 8.507059e+37
  %v4248 = vand.u32 %v4235, 2147483648
  %v4249 = vor.u32 1.1754944e-38, %v4248
  %v4250 = vsel %vm4247, %v4249, %v4245
  %v4251 = vmul.f32 1.0, %v4250
  %v4252 = vrcp.pop %v4236
  %v4253 = vmul.f32 %v4236, %v4252
  %v4254 = vsub.f32 1.0, %v4253
  %v4255 = vmul.f32 %v4252, %v4254
  %v4256 = vadd.f32 %v4252, %v4255
  %vm4257 = vweird.f32 %v4236
  %vm4258 = vweird.f32 %v4252
  %vm4259 = vmor %vm4257, %vm4258
  %v4260 = vsel %vm4259, %v4252, %v4256
  %v4261 = vand.u32 2147483647, %v4236
  %vm4262 = vcmp.eq.f32.partialorder %v4261, 8.507059e+37
  %v4263 = vand.u32 %v4236, 2147483648
  %v4264 = vor.u32 1.1754944e-38, %v4263
  %v4265 = vsel %vm4262, %v4264, %v4260
  %v4266 = vmul.f32 1.0, %v4265
  %v4267 = vtanh.pop %v4153
  %v4268 = vtanh.pop %v4154
  %v4269 = vmul.f32 %v4251, %v4059
  %v4270 = vmul.f32 %v4266, %v4060
  %4273 = vrot.lane.b32.xlu0 %v4267, 32
  %v4274 = vpop.permute.xlu0 %4273
  %4275 = vrot.lane.b32.xlu0 %v4268, 32
  %v4276 = vpop.permute.xlu0 %4275
  %v4279 = vmul.f32 %v4251, %v4274
  %v4280 = vmul.f32 %v4266, %v4276
  %4283 = vrot.lane.b32.xlu0 %v4279, 32
  %v4284 = vpop.permute.xlu0 %4283
  %4285 = vrot.lane.b32.xlu0 %v4280, 32
  %v4286 = vpop.permute.xlu0 %4285
  %v4289 = vadd.f32 %v4269, %v4284
  %v4290 = vadd.f32 %v4270, %v4286
  %v4291 = vtanh.pop %v4289
  %v4292 = vtanh.pop %v4290
  %4295 = vrot.lane.b32.xlu0 %v4291, 32
  %v4296 = vpop.permute.xlu0 %4295
  %4297 = vrot.lane.b32.xlu0 %v4292, 32
  %v4298 = vpop.permute.xlu0 %4297
  %v4301 = vmul.f32 %v4251, %v4296
  %v4302 = vmul.f32 %v4266, %v4298
  %4305 = vrot.lane.b32.xlu0 %v4227, 64
  %v4306 = vpop.permute.xlu0 %4305
  %4307 = vrot.lane.b32.xlu0 %v4228, 64
  %v4308 = vpop.permute.xlu0 %4307
  %4311 = vst.msk [vmem:[#allocation4 + $0x60] sm:$0xff] %vm403, %v4306
  %4312 = vst.msk [vmem:[#allocation4 + $0x68] sm:$0xff] %vm403, %v4308
  %4315 = vrot.lane.b32.xlu0 %v4301, 64
  %v4316 = vpop.permute.xlu0 %4315
  %4317 = vrot.lane.b32.xlu0 %v4302, 64
  %v4318 = vpop.permute.xlu0 %4317
  %4321 = vst.msk [vmem:[#allocation5 + $0x10] sm:$0xff] %vm403, %v4316
  %4322 = vst.msk [vmem:[#allocation5 + $0x18] sm:$0xff] %vm403, %v4318
  %v4323 = vld [vmem:[#allocation2 + $0x70] sm:$0xff]
  %v4324 = vld [vmem:[#allocation2 + $0x78] sm:$0xff]
  %v4325 = vsel %vm403, %v4306, 0
  %v4327 = vsel %vm403, %v4308, 0
  %4329 = vmatpush.msra.mxu0 0.0
  %4330 = vmatpush.msra.mxu0 0.0
  %4331 = vmatpush.msra.mxu0 0.0
  %4332 = vmatpush.msra.mxu0 0.0
  %4333 = vmatpush.msra.mxu0 0.0
  %4334 = vmatpush.msra.mxu0 0.0
  %4335 = vmatpush.msra.mxu0 0.0
  %4336 = vmatpush.msra.mxu0 0.0
  %4337 = vmatpush.msra.mxu0 0.0
  %4338 = vmatpush.msra.mxu0 0.0
  %4339 = vmatpush.msra.mxu0 0.0
  %4340 = vmatpush.msra.mxu0 0.0
  %4341 = vmatpush.msra.mxu0 %v2716
  %4342 = vmatpush.msra.mxu0 %v2715
  %4343 = vmatpush.msra.mxu0 %v2714
  %4344 = vmatpush.msra.mxu0 %v2713
  %4345 = vmatmul.f32.gmra.mxu0 %v4325
  %v4346 = vpop.f32.mrf.mxu0
  %v4347 = vadd.f32 0.0, %v4346
  %4348 = vmatmul.f32.gmra.mxu0 %v4327
  %v4349 = vpop.f32.mrf.mxu0
  %v4350 = vadd.f32 0.0, %v4349
  %4351 = vdwg.mxu0
  %v4352 = vadd.f32 %v4323, %v4347
  %v4353 = vadd.f32 %v4324, %v4350
  %v4354 = vld [vmem:[#allocation3] sm:$0xff]
  %v4355 = vld [vmem:[#allocation3 + $0x8] sm:$0xff]
  %v4356 = vsel %vm403, %v4316, 0
  %v4358 = vsel %vm403, %v4318, 0
  %4360 = vmatpush.msra.mxu0 0.0
  %4361 = vmatpush.msra.mxu0 0.0
  %4362 = vmatpush.msra.mxu0 0.0
  %4363 = vmatpush.msra.mxu0 0.0
  %4364 = vmatpush.msra.mxu0 0.0
  %4365 = vmatpush.msra.mxu0 0.0
  %4366 = vmatpush.msra.mxu0 0.0
  %4367 = vmatpush.msra.mxu0 0.0
  %4368 = vmatpush.msra.mxu0 0.0
  %4369 = vmatpush.msra.mxu0 0.0
  %4370 = vmatpush.msra.mxu0 0.0
  %4371 = vmatpush.msra.mxu0 0.0
  %4372 = vmatpush.msra.mxu0 %v2720
  %4373 = vmatpush.msra.mxu0 %v2719
  %4374 = vmatpush.msra.mxu0 %v2718
  %4375 = vmatpush.msra.mxu0 %v2717
  %4376 = vmatmul.f32.gmra.mxu0 %v4356
  %v4377 = vpop.f32.mrf.mxu0
  %v4378 = vadd.f32 0.0, %v4377
  %4379 = vmatmul.f32.gmra.mxu0 %v4358
  %v4380 = vpop.f32.mrf.mxu0
  %v4381 = vadd.f32 0.0, %v4380
  %4382 = vdwg.mxu0
  %v4383 = vadd.f32 %v4354, %v4378
  %v4384 = vadd.f32 %v4355, %v4381
  %v4385 = vxor.u32 %v4352, 2147483648
  %v4386 = vxor.u32 %v4353, 2147483648
  %v4387 = vmul.f32 %v4385, 1.442695
  %v4388 = vpow.pop %v4387
  %v4389 = vmul.f32 %v4386, 1.442695
  %v4390 = vpow.pop %v4389
  %v4391 = vadd.f32 %v4388, 1.0
  %v4392 = vadd.f32 %v4390, 1.0
  %v4393 = vrcp.pop %v4391
  %v4394 = vmul.f32 %v4391, %v4393
  %v4395 = vsub.f32 1.0, %v4394
  %v4396 = vmul.f32 %v4393, %v4395
  %v4397 = vadd.f32 %v4393, %v4396
  %vm4398 = vweird.f32 %v4391
  %vm4399 = vweird.f32 %v4393
  %vm4400 = vmor %vm4398, %vm4399
  %v4401 = vsel %vm4400, %v4393, %v4397
  %v4402 = vand.u32 2147483647, %v4391
  %vm4403 = vcmp.eq.f32.partialorder %v4402, 8.507059e+37
  %v4404 = vand.u32 %v4391, 2147483648
  %v4405 = vor.u32 1.1754944e-38, %v4404
  %v4406 = vsel %vm4403, %v4405, %v4401
  %v4407 = vmul.f32 1.0, %v4406
  %v4408 = vrcp.pop %v4392
  %v4409 = vmul.f32 %v4392, %v4408
  %v4410 = vsub.f32 1.0, %v4409
  %v4411 = vmul.f32 %v4408, %v4410
  %v4412 = vadd.f32 %v4408, %v4411
  %vm4413 = vweird.f32 %v4392
  %vm4414 = vweird.f32 %v4408
  %vm4415 = vmor %vm4413, %vm4414
  %v4416 = vsel %vm4415, %v4408, %v4412
  %v4417 = vand.u32 2147483647, %v4392
  %vm4418 = vcmp.eq.f32.partialorder %v4417, 8.507059e+37
  %v4419 = vand.u32 %v4392, 2147483648
  %v4420 = vor.u32 1.1754944e-38, %v4419
  %v4421 = vsel %vm4418, %v4420, %v4416
  %v4422 = vmul.f32 1.0, %v4421
  %v4423 = vtanh.pop %v4352
  %v4424 = vtanh.pop %v4353
  %v4425 = vmul.f32 %v4407, %v4215
  %v4426 = vmul.f32 %v4422, %v4216
  %4429 = vrot.lane.b32.xlu0 %v4423, 32
  %v4430 = vpop.permute.xlu0 %4429
  %4431 = vrot.lane.b32.xlu0 %v4424, 32
  %v4432 = vpop.permute.xlu0 %4431
  %v4435 = vmul.f32 %v4407, %v4430
  %v4436 = vmul.f32 %v4422, %v4432
  %4439 = vrot.lane.b32.xlu0 %v4435, 32
  %v4440 = vpop.permute.xlu0 %4439
  %4441 = vrot.lane.b32.xlu0 %v4436, 32
  %v4442 = vpop.permute.xlu0 %4441
  %v4445 = vadd.f32 %v4425, %v4440
  %v4446 = vadd.f32 %v4426, %v4442
  %v4447 = vtanh.pop %v4445
  %v4448 = vtanh.pop %v4446
  %4451 = vrot.lane.b32.xlu0 %v4447, 32
  %v4452 = vpop.permute.xlu0 %4451
  %4453 = vrot.lane.b32.xlu0 %v4448, 32
  %v4454 = vpop.permute.xlu0 %4453
  %v4457 = vmul.f32 %v4407, %v4452
  %v4458 = vmul.f32 %v4422, %v4454
  %v4459 = vxor.u32 %v4383, 2147483648
  %v4460 = vxor.u32 %v4384, 2147483648
  %v4461 = vmul.f32 %v4459, 1.442695
  %v4462 = vpow.pop %v4461
  %v4463 = vmul.f32 %v4460, 1.442695
  %v4464 = vpow.pop %v4463
  %v4465 = vadd.f32 %v4462, 1.0
  %v4466 = vadd.f32 %v4464, 1.0
  %v4467 = vrcp.pop %v4465
  %v4468 = vmul.f32 %v4465, %v4467
  %v4469 = vsub.f32 1.0, %v4468
  %v4470 = vmul.f32 %v4467, %v4469
  %v4471 = vadd.f32 %v4467, %v4470
  %vm4472 = vweird.f32 %v4465
  %vm4473 = vweird.f32 %v4467
  %vm4474 = vmor %vm4472, %vm4473
  %v4475 = vsel %vm4474, %v4467, %v4471
  %v4476 = vand.u32 2147483647, %v4465
  %vm4477 = vcmp.eq.f32.partialorder %v4476, 8.507059e+37
  %v4478 = vand.u32 %v4465, 2147483648
  %v4479 = vor.u32 1.1754944e-38, %v4478
  %v4480 = vsel %vm4477, %v4479, %v4475
  %v4481 = vmul.f32 1.0, %v4480
  %v4482 = vrcp.pop %v4466
  %v4483 = vmul.f32 %v4466, %v4482
  %v4484 = vsub.f32 1.0, %v4483
  %v4485 = vmul.f32 %v4482, %v4484
  %v4486 = vadd.f32 %v4482, %v4485
  %vm4487 = vweird.f32 %v4466
  %vm4488 = vweird.f32 %v4482
  %vm4489 = vmor %vm4487, %vm4488
  %v4490 = vsel %vm4489, %v4482, %v4486
  %v4491 = vand.u32 2147483647, %v4466
  %vm4492 = vcmp.eq.f32.partialorder %v4491, 8.507059e+37
  %v4493 = vand.u32 %v4466, 2147483648
  %v4494 = vor.u32 1.1754944e-38, %v4493
  %v4495 = vsel %vm4492, %v4494, %v4490
  %v4496 = vmul.f32 1.0, %v4495
  %v4497 = vtanh.pop %v4383
  %v4498 = vtanh.pop %v4384
  %v4499 = vmul.f32 %v4481, %v4289
  %v4500 = vmul.f32 %v4496, %v4290
  %4503 = vrot.lane.b32.xlu0 %v4497, 32
  %v4504 = vpop.permute.xlu0 %4503
  %4505 = vrot.lane.b32.xlu0 %v4498, 32
  %v4506 = vpop.permute.xlu0 %4505
  %v4509 = vmul.f32 %v4481, %v4504
  %v4510 = vmul.f32 %v4496, %v4506
  %4513 = vrot.lane.b32.xlu0 %v4509, 32
  %v4514 = vpop.permute.xlu0 %4513
  %4515 = vrot.lane.b32.xlu0 %v4510, 32
  %v4516 = vpop.permute.xlu0 %4515
  %v4519 = vadd.f32 %v4499, %v4514
  %v4520 = vadd.f32 %v4500, %v4516
  %v4521 = vtanh.pop %v4519
  %v4522 = vtanh.pop %v4520
  %4525 = vrot.lane.b32.xlu0 %v4521, 32
  %v4526 = vpop.permute.xlu0 %4525
  %4527 = vrot.lane.b32.xlu0 %v4522, 32
  %v4528 = vpop.permute.xlu0 %4527
  %v4531 = vmul.f32 %v4481, %v4526
  %v4532 = vmul.f32 %v4496, %v4528
  %4535 = vrot.lane.b32.xlu0 %v4457, 64
  %v4536 = vpop.permute.xlu0 %4535
  %4537 = vrot.lane.b32.xlu0 %v4458, 64
  %v4538 = vpop.permute.xlu0 %4537
  %4541 = vst.msk [vmem:[#allocation4 + $0x70] sm:$0xff] %vm403, %v4536
  %4542 = vst.msk [vmem:[#allocation4 + $0x78] sm:$0xff] %vm403, %v4538
  %4545 = vrot.lane.b32.xlu0 %v4531, 64
  %v4546 = vpop.permute.xlu0 %4545
  %4547 = vrot.lane.b32.xlu0 %v4532, 64
  %v4548 = vpop.permute.xlu0 %4547
  %4551 = vst.msk [vmem:[#allocation5] sm:$0xff] %vm403, %v4546
  %4552 = vst.msk [vmem:[#allocation5 + $0x8] sm:$0xff] %vm403, %v4548
  %v4553 = vld [vmem:[%s13] sm:$0xff]
  %v4554 = vld [vmem:[%s13 + $0x8] sm:$0xff]
  %v4555 = vld [vmem:[%s13 + $0x10] sm:$0xff]
  %v4556 = vld [vmem:[%s13 + $0x18] sm:$0xff]
  %v4557 = vld [vmem:[%s13 + $0x20] sm:$0xff]
  %v4558 = vld [vmem:[%s13 + $0x28] sm:$0xff]
  %v4559 = vld [vmem:[%s13 + $0x30] sm:$0xff]
  %v4560 = vld [vmem:[%s13 + $0x38] sm:$0xff]
  %v4561 = vld [vmem:[%s16] sm:$0xff]
  %v4562 = vld [vmem:[%s16 + $0x8] sm:$0xff]
  %v4563 = vld [vmem:[%s16 + $0x10] sm:$0xff]
  %v4564 = vld [vmem:[%s16 + $0x18] sm:$0xff]
  %v4565 = vld [vmem:[%s16 + $0x20] sm:$0xff]
  %v4566 = vld [vmem:[%s16 + $0x28] sm:$0xff]
  %v4567 = vld [vmem:[%s16 + $0x30] sm:$0xff]
  %v4568 = vld [vmem:[%s16 + $0x38] sm:$0xff]
  %v4569 = vld [vmem:[#allocation4] sm:$0xff]
  %v4570 = vld [vmem:[#allocation4 + $0x8] sm:$0xff]
  %v4571 = vld [vmem:[#allocation4 + $0x10] sm:$0xff]
  %v4572 = vld [vmem:[#allocation4 + $0x18] sm:$0xff]
  %v4573 = vld [vmem:[#allocation4 + $0x20] sm:$0xff]
  %v4574 = vld [vmem:[#allocation4 + $0x28] sm:$0xff]
  %v4575 = vld [vmem:[#allocation4 + $0x30] sm:$0xff]
  %v4576 = vld [vmem:[#allocation4 + $0x38] sm:$0xff]
  %v4577 = vld [vmem:[#allocation4 + $0x40] sm:$0xff]
  %v4578 = vld [vmem:[#allocation4 + $0x48] sm:$0xff]
  %v4579 = vld [vmem:[#allocation4 + $0x50] sm:$0xff]
  %v4580 = vld [vmem:[#allocation4 + $0x58] sm:$0xff]
  %v4581 = vld [vmem:[#allocation4 + $0x60] sm:$0xff]
  %v4582 = vld [vmem:[#allocation4 + $0x68] sm:$0xff]
  %v4583 = vld [vmem:[#allocation4 + $0x70] sm:$0xff]
  %v4584 = vld [vmem:[#allocation4 + $0x78] sm:$0xff]
  %v4585 = vld [vmem:[#allocation5] sm:$0xff]
  %v4586 = vld [vmem:[#allocation5 + $0x8] sm:$0xff]
  %v4587 = vld [vmem:[#allocation5 + $0x10] sm:$0xff]
  %v4588 = vld [vmem:[#allocation5 + $0x18] sm:$0xff]
  %v4589 = vld [vmem:[#allocation5 + $0x20] sm:$0xff]
  %v4590 = vld [vmem:[#allocation5 + $0x28] sm:$0xff]
  %v4591 = vld [vmem:[#allocation5 + $0x30] sm:$0xff]
  %v4592 = vld [vmem:[#allocation5 + $0x38] sm:$0xff]
  %v4593 = vld [vmem:[#allocation5 + $0x40] sm:$0xff]
  %v4594 = vld [vmem:[#allocation5 + $0x48] sm:$0xff]
  %v4595 = vld [vmem:[#allocation5 + $0x50] sm:$0xff]
  %v4596 = vld [vmem:[#allocation5 + $0x58] sm:$0xff]
  %v4597 = vld [vmem:[#allocation5 + $0x60] sm:$0xff]
  %v4598 = vld [vmem:[#allocation5 + $0x68] sm:$0xff]
  %v4599 = vld [vmem:[#allocation5 + $0x70] sm:$0xff]
  %v4600 = vld [vmem:[#allocation5 + $0x78] sm:$0xff]
  %v4602 = vsel %vm403, %v4585, 0
  %v4605 = vsel %vm403, %v4586, 0
  %v4608 = vsel %vm403, %v4587, 0
  %v4611 = vsel %vm403, %v4588, 0
  %v4614 = vsel %vm403, %v4589, 0
  %v4617 = vsel %vm403, %v4590, 0
  %v4620 = vsel %vm403, %v4591, 0
  %v4623 = vsel %vm403, %v4592, 0
  %v4626 = vsel %vm403, %v4593, 0
  %v4629 = vsel %vm403, %v4594, 0
  %v4632 = vsel %vm403, %v4595, 0
  %v4635 = vsel %vm403, %v4596, 0
  %v4638 = vsel %vm403, %v4597, 0
  %v4641 = vsel %vm403, %v4598, 0
  %v4644 = vsel %vm403, %v4599, 0
  %v4647 = vsel %vm403, %v4600, 0
  %4649 = vmatpush.msra.mxu0 0.0
  %4650 = vmatpush.msra.mxu0 0.0
  %4651 = vmatpush.msra.mxu0 0.0
  %4652 = vmatpush.msra.mxu0 0.0
  %4653 = vmatpush.msra.mxu0 0.0
  %4654 = vmatpush.msra.mxu0 0.0
  %4655 = vmatpush.msra.mxu0 0.0
  %4656 = vmatpush.msra.mxu0 0.0
  %4657 = vmatpush.msra.mxu0 0.0
  %4658 = vmatpush.msra.mxu0 0.0
  %4659 = vmatpush.msra.mxu0 0.0
  %4660 = vmatpush.msra.mxu0 0.0
  %4661 = vmatpush.msra.mxu0 %v4560
  %4662 = vmatpush.msra.mxu0 %v4559
  %4663 = vmatpush.msra.mxu0 %v4558
  %4664 = vmatpush.msra.mxu0 %v4557
  %4665 = vmatmul.f32.gmra.mxu0 %v4602
  %v4666 = vpop.f32.mrf.mxu0
  %v4667 = vadd.f32 0.0, %v4666
  %4668 = vmatmul.f32.gmra.mxu0 %v4605
  %v4669 = vpop.f32.mrf.mxu0
  %v4670 = vadd.f32 0.0, %v4669
  %4671 = vmatmul.f32.gmra.mxu0 %v4608
  %v4672 = vpop.f32.mrf.mxu0
  %v4673 = vadd.f32 0.0, %v4672
  %4674 = vmatmul.f32.gmra.mxu0 %v4611
  %v4675 = vpop.f32.mrf.mxu0
  %v4676 = vadd.f32 0.0, %v4675
  %4677 = vmatmul.f32.gmra.mxu0 %v4614
  %v4678 = vpop.f32.mrf.mxu0
  %v4679 = vadd.f32 0.0, %v4678
  %4680 = vmatmul.f32.gmra.mxu0 %v4617
  %v4681 = vpop.f32.mrf.mxu0
  %v4682 = vadd.f32 0.0, %v4681
  %4683 = vmatmul.f32.gmra.mxu0 %v4620
  %v4684 = vpop.f32.mrf.mxu0
  %v4685 = vadd.f32 0.0, %v4684
  %4686 = vmatmul.f32.gmra.mxu0 %v4623
  %v4687 = vpop.f32.mrf.mxu0
  %v4688 = vadd.f32 0.0, %v4687
  %4689 = vmatmul.f32.gmra.mxu0 %v4626
  %v4690 = vpop.f32.mrf.mxu0
  %v4691 = vadd.f32 0.0, %v4690
  %4692 = vmatmul.f32.gmra.mxu0 %v4629
  %v4693 = vpop.f32.mrf.mxu0
  %v4694 = vadd.f32 0.0, %v4693
  %4695 = vmatmul.f32.gmra.mxu0 %v4632
  %v4696 = vpop.f32.mrf.mxu0
  %v4697 = vadd.f32 0.0, %v4696
  %4698 = vmatmul.f32.gmra.mxu0 %v4635
  %v4699 = vpop.f32.mrf.mxu0
  %v4700 = vadd.f32 0.0, %v4699
  %4701 = vmatmul.f32.gmra.mxu0 %v4638
  %v4702 = vpop.f32.mrf.mxu0
  %v4703 = vadd.f32 0.0, %v4702
  %4704 = vmatmul.f32.gmra.mxu0 %v4641
  %v4705 = vpop.f32.mrf.mxu0
  %v4706 = vadd.f32 0.0, %v4705
  %4707 = vmatmul.f32.gmra.mxu0 %v4644
  %v4708 = vpop.f32.mrf.mxu0
  %v4709 = vadd.f32 0.0, %v4708
  %4710 = vmatmul.f32.gmra.mxu0 %v4647
  %v4711 = vpop.f32.mrf.mxu0
  %v4712 = vadd.f32 0.0, %v4711
  %4713 = vdwg.mxu0
  %v4715 = vsel %vm403, %v4569, 0
  %v4718 = vsel %vm403, %v4570, 0
  %v4721 = vsel %vm403, %v4571, 0
  %v4724 = vsel %vm403, %v4572, 0
  %v4727 = vsel %vm403, %v4573, 0
  %v4730 = vsel %vm403, %v4574, 0
  %v4733 = vsel %vm403, %v4575, 0
  %v4736 = vsel %vm403, %v4576, 0
  %v4739 = vsel %vm403, %v4577, 0
  %v4742 = vsel %vm403, %v4578, 0
  %v4745 = vsel %vm403, %v4579, 0
  %v4748 = vsel %vm403, %v4580, 0
  %v4751 = vsel %vm403, %v4581, 0
  %v4754 = vsel %vm403, %v4582, 0
  %v4757 = vsel %vm403, %v4583, 0
  %v4760 = vsel %vm403, %v4584, 0
  %4762 = vmatpush.msra.mxu0 0.0
  %4763 = vmatpush.msra.mxu0 0.0
  %4764 = vmatpush.msra.mxu0 0.0
  %4765 = vmatpush.msra.mxu0 0.0
  %4766 = vmatpush.msra.mxu0 0.0
  %4767 = vmatpush.msra.mxu0 0.0
  %4768 = vmatpush.msra.mxu0 0.0
  %4769 = vmatpush.msra.mxu0 0.0
  %4770 = vmatpush.msra.mxu0 0.0
  %4771 = vmatpush.msra.mxu0 0.0
  %4772 = vmatpush.msra.mxu0 0.0
  %4773 = vmatpush.msra.mxu0 0.0
  %4774 = vmatpush.msra.mxu0 %v4556
  %4775 = vmatpush.msra.mxu0 %v4555
  %4776 = vmatpush.msra.mxu0 %v4554
  %4777 = vmatpush.msra.mxu0 %v4553
  %4778 = vmatmul.f32.gmra.mxu0 %v4715
  %v4779 = vpop.f32.mrf.mxu0
  %v4780 = vadd.f32 %v4667, %v4779
  %4781 = vmatmul.f32.gmra.mxu0 %v4718
  %v4782 = vpop.f32.mrf.mxu0
  %v4783 = vadd.f32 %v4670, %v4782
  %4784 = vmatmul.f32.gmra.mxu0 %v4721
  %v4785 = vpop.f32.mrf.mxu0
  %v4786 = vadd.f32 %v4673, %v4785
  %4787 = vmatmul.f32.gmra.mxu0 %v4724
  %v4788 = vpop.f32.mrf.mxu0
  %v4789 = vadd.f32 %v4676, %v4788
  %4790 = vmatmul.f32.gmra.mxu0 %v4727
  %v4791 = vpop.f32.mrf.mxu0
  %v4792 = vadd.f32 %v4679, %v4791
  %4793 = vmatmul.f32.gmra.mxu0 %v4730
  %v4794 = vpop.f32.mrf.mxu0
  %v4795 = vadd.f32 %v4682, %v4794
  %4796 = vmatmul.f32.gmra.mxu0 %v4733
  %v4797 = vpop.f32.mrf.mxu0
  %v4798 = vadd.f32 %v4685, %v4797
  %4799 = vmatmul.f32.gmra.mxu0 %v4736
  %v4800 = vpop.f32.mrf.mxu0
  %v4801 = vadd.f32 %v4688, %v4800
  %4802 = vmatmul.f32.gmra.mxu0 %v4739
  %v4803 = vpop.f32.mrf.mxu0
  %v4804 = vadd.f32 %v4691, %v4803
  %4805 = vmatmul.f32.gmra.mxu0 %v4742
  %v4806 = vpop.f32.mrf.mxu0
  %v4807 = vadd.f32 %v4694, %v4806
  %4808 = vmatmul.f32.gmra.mxu0 %v4745
  %v4809 = vpop.f32.mrf.mxu0
  %v4810 = vadd.f32 %v4697, %v4809
  %4811 = vmatmul.f32.gmra.mxu0 %v4748
  %v4812 = vpop.f32.mrf.mxu0
  %v4813 = vadd.f32 %v4700, %v4812
  %4814 = vmatmul.f32.gmra.mxu0 %v4751
  %v4815 = vpop.f32.mrf.mxu0
  %v4816 = vadd.f32 %v4703, %v4815
  %4817 = vmatmul.f32.gmra.mxu0 %v4754
  %v4818 = vpop.f32.mrf.mxu0
  %v4819 = vadd.f32 %v4706, %v4818
  %4820 = vmatmul.f32.gmra.mxu0 %v4757
  %v4821 = vpop.f32.mrf.mxu0
  %v4822 = vadd.f32 %v4709, %v4821
  %4823 = vmatmul.f32.gmra.mxu0 %v4760
  %v4824 = vpop.f32.mrf.mxu0
  %v4825 = vadd.f32 %v4712, %v4824
  %4826 = vdwg.mxu0
  %v4827 = vld [vmem:[%s15] sm:$0x1]
  %v4829 = vperm.slane %v4827, 0
  %v4831 = vadd.f32 %v4780, %v4829
  %v4832 = vadd.f32 %v4783, %v4829
  %v4833 = vadd.f32 %v4786, %v4829
  %v4834 = vadd.f32 %v4789, %v4829
  %v4835 = vadd.f32 %v4792, %v4829
  %v4836 = vadd.f32 %v4795, %v4829
  %v4837 = vadd.f32 %v4798, %v4829
  %v4838 = vadd.f32 %v4801, %v4829
  %v4839 = vadd.f32 %v4804, %v4829
  %v4840 = vadd.f32 %v4807, %v4829
  %v4841 = vadd.f32 %v4810, %v4829
  %v4842 = vadd.f32 %v4813, %v4829
  %v4843 = vadd.f32 %v4816, %v4829
  %v4844 = vadd.f32 %v4819, %v4829
  %v4845 = vadd.f32 %v4822, %v4829
  %v4846 = vadd.f32 %v4825, %v4829
  %4847 = vst [vmem:[#allocation2] sm:$0xff] %v4831
  %4848 = vst [vmem:[#allocation2 + $0x8] sm:$0xff] %v4832
  %4849 = vst [vmem:[#allocation2 + $0x10] sm:$0xff] %v4833
  %4850 = vst [vmem:[#allocation2 + $0x18] sm:$0xff] %v4834
  %4851 = vst [vmem:[#allocation2 + $0x20] sm:$0xff] %v4835
  %4852 = vst [vmem:[#allocation2 + $0x28] sm:$0xff] %v4836
  %4853 = vst [vmem:[#allocation2 + $0x30] sm:$0xff] %v4837
  %4854 = vst [vmem:[#allocation2 + $0x38] sm:$0xff] %v4838
  %4855 = vst [vmem:[#allocation2 + $0x40] sm:$0xff] %v4839
  %4856 = vst [vmem:[#allocation2 + $0x48] sm:$0xff] %v4840
  %4857 = vst [vmem:[#allocation2 + $0x50] sm:$0xff] %v4841
  %4858 = vst [vmem:[#allocation2 + $0x58] sm:$0xff] %v4842
  %4859 = vst [vmem:[#allocation2 + $0x60] sm:$0xff] %v4843
  %4860 = vst [vmem:[#allocation2 + $0x68] sm:$0xff] %v4844
  %4861 = vst [vmem:[#allocation2 + $0x70] sm:$0xff] %v4845
  %4862 = vst [vmem:[#allocation2 + $0x78] sm:$0xff] %v4846
  %4863 = vmatpush.msra.mxu0 0.0
  %4864 = vmatpush.msra.mxu0 0.0
  %4865 = vmatpush.msra.mxu0 0.0
  %4866 = vmatpush.msra.mxu0 0.0
  %4867 = vmatpush.msra.mxu0 0.0
  %4868 = vmatpush.msra.mxu0 0.0
  %4869 = vmatpush.msra.mxu0 0.0
  %4870 = vmatpush.msra.mxu0 0.0
  %4871 = vmatpush.msra.mxu0 0.0
  %4872 = vmatpush.msra.mxu0 0.0
  %4873 = vmatpush.msra.mxu0 0.0
  %4874 = vmatpush.msra.mxu0 0.0
  %4875 = vmatpush.msra.mxu0 %v4568
  %4876 = vmatpush.msra.mxu0 %v4567
  %4877 = vmatpush.msra.mxu0 %v4566
  %4878 = vmatpush.msra.mxu0 %v4565
  %4879 = vmatmul.f32.gmra.mxu0 %v4644
  %v4880 = vpop.f32.mrf.mxu0
  %v4881 = vadd.f32 0.0, %v4880
  %4882 = vmatmul.f32.gmra.mxu0 %v4647
  %v4883 = vpop.f32.mrf.mxu0
  %v4884 = vadd.f32 0.0, %v4883
  %4885 = vdwg.mxu0
  %4886 = vmatpush.msra.mxu0 0.0
  %4887 = vmatpush.msra.mxu0 0.0
  %4888 = vmatpush.msra.mxu0 0.0
  %4889 = vmatpush.msra.mxu0 0.0
  %4890 = vmatpush.msra.mxu0 0.0
  %4891 = vmatpush.msra.mxu0 0.0
  %4892 = vmatpush.msra.mxu0 0.0
  %4893 = vmatpush.msra.mxu0 0.0
  %4894 = vmatpush.msra.mxu0 0.0
  %4895 = vmatpush.msra.mxu0 0.0
  %4896 = vmatpush.msra.mxu0 0.0
  %4897 = vmatpush.msra.mxu0 0.0
  %4898 = vmatpush.msra.mxu0 %v4564
  %4899 = vmatpush.msra.mxu0 %v4563
  %4900 = vmatpush.msra.mxu0 %v4562
  %4901 = vmatpush.msra.mxu0 %v4561
  %4902 = vmatmul.f32.gmra.mxu0 %v4757
  %v4903 = vpop.f32.mrf.mxu0
  %v4904 = vadd.f32 %v4881, %v4903
  %4905 = vmatmul.f32.gmra.mxu0 %v4760
  %v4906 = vpop.f32.mrf.mxu0
  %v4907 = vadd.f32 %v4884, %v4906
  %4908 = vdwg.mxu0
  %v4909 = vld [vmem:[%s18] sm:$0x1]
  %v4911 = vperm.slane %v4909, 0
  %v4913 = vadd.f32 %v4904, %v4911
  %v4914 = vadd.f32 %v4907, %v4911
  %v4915 = vxor.u32 %v4913, 2147483648
  %v4916 = vxor.u32 %v4914, 2147483648
  %v4917 = vmul.f32 %v4915, 1.442695
  %v4918 = vpow.pop %v4917
  %v4919 = vmul.f32 %v4916, 1.442695
  %v4920 = vpow.pop %v4919
  %v4921 = vadd.f32 %v4918, 1.0
  %v4922 = vadd.f32 %v4920, 1.0
  %v4923 = vrcp.pop %v4921
  %v4924 = vmul.f32 %v4921, %v4923
  %v4925 = vsub.f32 1.0, %v4924
  %v4926 = vmul.f32 %v4923, %v4925
  %v4927 = vadd.f32 %v4923, %v4926
  %vm4928 = vweird.f32 %v4921
  %vm4929 = vweird.f32 %v4923
  %vm4930 = vmor %vm4928, %vm4929
  %v4931 = vsel %vm4930, %v4923, %v4927
  %v4932 = vand.u32 2147483647, %v4921
  %vm4933 = vcmp.eq.f32.partialorder %v4932, 8.507059e+37
  %v4934 = vand.u32 %v4921, 2147483648
  %v4935 = vor.u32 1.1754944e-38, %v4934
  %v4936 = vsel %vm4933, %v4935, %v4931
  %v4937 = vmul.f32 1.0, %v4936
  %v4938 = vrcp.pop %v4922
  %v4939 = vmul.f32 %v4922, %v4938
  %v4940 = vsub.f32 1.0, %v4939
  %v4941 = vmul.f32 %v4938, %v4940
  %v4942 = vadd.f32 %v4938, %v4941
  %vm4943 = vweird.f32 %v4922
  %vm4944 = vweird.f32 %v4938
  %vm4945 = vmor %vm4943, %vm4944
  %v4946 = vsel %vm4945, %v4938, %v4942
  %v4947 = vand.u32 2147483647, %v4922
  %vm4948 = vcmp.eq.f32.partialorder %v4947, 8.507059e+37
  %v4949 = vand.u32 %v4922, 2147483648
  %v4950 = vor.u32 1.1754944e-38, %v4949
  %v4951 = vsel %vm4948, %v4950, %v4946
  %v4952 = vmul.f32 1.0, %v4951
  %v4953 = vtanh.pop %v4913
  %v4954 = vtanh.pop %v4914
  %v4955 = vmul.f32 %v4937, 0.0
  %v4956 = vmul.f32 %v4952, 0.0
  %4959 = vrot.lane.b32.xlu0 %v4953, 32
  %v4960 = vpop.permute.xlu0 %4959
  %4961 = vrot.lane.b32.xlu0 %v4954, 32
  %v4962 = vpop.permute.xlu0 %4961
  %v4965 = vmul.f32 %v4937, %v4960
  %v4966 = vmul.f32 %v4952, %v4962
  %4969 = vrot.lane.b32.xlu0 %v4965, 32
  %v4970 = vpop.permute.xlu0 %4969
  %4971 = vrot.lane.b32.xlu0 %v4966, 32
  %v4972 = vpop.permute.xlu0 %4971
  %v4975 = vadd.f32 %v4955, %v4970
  %v4976 = vadd.f32 %v4956, %v4972
  %v4977 = vtanh.pop %v4975
  %v4978 = vtanh.pop %v4976
  %4981 = vrot.lane.b32.xlu0 %v4977, 32
  %v4982 = vpop.permute.xlu0 %4981
  %4983 = vrot.lane.b32.xlu0 %v4978, 32
  %v4984 = vpop.permute.xlu0 %4983
  %v4987 = vmul.f32 %v4937, %v4982
  %v4988 = vmul.f32 %v4952, %v4984
  %v4989 = vld [vmem:[%s14] sm:$0xff]
  %v4990 = vld [vmem:[%s14 + $0x8] sm:$0xff]
  %v4991 = vld [vmem:[%s14 + $0x10] sm:$0xff]
  %v4992 = vld [vmem:[%s14 + $0x18] sm:$0xff]
  %v4993 = vld [vmem:[#allocation2] sm:$0xff]
  %v4994 = vld [vmem:[#allocation2 + $0x8] sm:$0xff]
  %4995 = vmatpush.msra.mxu0 0.0
  %4996 = vmatpush.msra.mxu0 0.0
  %4997 = vmatpush.msra.mxu0 0.0
  %4998 = vmatpush.msra.mxu0 0.0
  %4999 = vmatpush.msra.mxu0 0.0
  %5000 = vmatpush.msra.mxu0 0.0
  %5001 = vmatpush.msra.mxu0 0.0
  %5002 = vmatpush.msra.mxu0 0.0
  %5003 = vmatpush.msra.mxu0 0.0
  %5004 = vmatpush.msra.mxu0 0.0
  %5005 = vmatpush.msra.mxu0 0.0
  %5006 = vmatpush.msra.mxu0 0.0
  %5007 = vmatpush.msra.mxu0 %v4992
  %5008 = vmatpush.msra.mxu0 %v4991
  %5009 = vmatpush.msra.mxu0 %v4990
  %5010 = vmatpush.msra.mxu0 %v4989
  %5011 = vmatmul.f32.gmra.mxu0 %v405
  %v5012 = vpop.f32.mrf.mxu0
  %v5013 = vadd.f32 0.0, %v5012
  %5014 = vmatmul.f32.gmra.mxu0 %v405
  %v5015 = vpop.f32.mrf.mxu0
  %v5016 = vadd.f32 0.0, %v5015
  %5017 = vdwg.mxu0
  %v5018 = vadd.f32 %v4993, %v5013
  %v5019 = vadd.f32 %v4994, %v5016
  %v5020 = vxor.u32 %v5018, 2147483648
  %v5021 = vxor.u32 %v5019, 2147483648
  %v5022 = vmul.f32 %v5020, 1.442695
  %v5023 = vpow.pop %v5022
  %v5024 = vmul.f32 %v5021, 1.442695
  %v5025 = vpow.pop %v5024
  %v5026 = vadd.f32 %v5023, 1.0
  %v5027 = vadd.f32 %v5025, 1.0
  %v5028 = vrcp.pop %v5026
  %v5029 = vmul.f32 %v5026, %v5028
  %v5030 = vsub.f32 1.0, %v5029
  %v5031 = vmul.f32 %v5028, %v5030
  %v5032 = vadd.f32 %v5028, %v5031
  %vm5033 = vweird.f32 %v5026
  %vm5034 = vweird.f32 %v5028
  %vm5035 = vmor %vm5033, %vm5034
  %v5036 = vsel %vm5035, %v5028, %v5032
  %v5037 = vand.u32 2147483647, %v5026
  %vm5038 = vcmp.eq.f32.partialorder %v5037, 8.507059e+37
  %v5039 = vand.u32 %v5026, 2147483648
  %v5040 = vor.u32 1.1754944e-38, %v5039
  %v5041 = vsel %vm5038, %v5040, %v5036
  %v5042 = vmul.f32 1.0, %v5041
  %v5043 = vrcp.pop %v5027
  %v5044 = vmul.f32 %v5027, %v5043
  %v5045 = vsub.f32 1.0, %v5044
  %v5046 = vmul.f32 %v5043, %v5045
  %v5047 = vadd.f32 %v5043, %v5046
  %vm5048 = vweird.f32 %v5027
  %vm5049 = vweird.f32 %v5043
  %vm5050 = vmor %vm5048, %vm5049
  %v5051 = vsel %vm5050, %v5043, %v5047
  %v5052 = vand.u32 2147483647, %v5027
  %vm5053 = vcmp.eq.f32.partialorder %v5052, 8.507059e+37
  %v5054 = vand.u32 %v5027, 2147483648
  %v5055 = vor.u32 1.1754944e-38, %v5054
  %v5056 = vsel %vm5053, %v5055, %v5051
  %v5057 = vmul.f32 1.0, %v5056
  %v5058 = vtanh.pop %v5018
  %v5059 = vtanh.pop %v5019
  %v5060 = vmul.f32 %v5042, 0.0
  %v5061 = vmul.f32 %v5057, 0.0
  %5064 = vrot.lane.b32.xlu0 %v5058, 32
  %v5065 = vpop.permute.xlu0 %5064
  %5066 = vrot.lane.b32.xlu0 %v5059, 32
  %v5067 = vpop.permute.xlu0 %5066
  %v5070 = vmul.f32 %v5042, %v5065
  %v5071 = vmul.f32 %v5057, %v5067
  %5074 = vrot.lane.b32.xlu0 %v5070, 32
  %v5075 = vpop.permute.xlu0 %5074
  %5076 = vrot.lane.b32.xlu0 %v5071, 32
  %v5077 = vpop.permute.xlu0 %5076
  %v5080 = vadd.f32 %v5060, %v5075
  %v5081 = vadd.f32 %v5061, %v5077
  %v5082 = vtanh.pop %v5080
  %v5083 = vtanh.pop %v5081
  %5086 = vrot.lane.b32.xlu0 %v5082, 32
  %v5087 = vpop.permute.xlu0 %5086
  %5088 = vrot.lane.b32.xlu0 %v5083, 32
  %v5089 = vpop.permute.xlu0 %5088
  %v5092 = vmul.f32 %v5042, %v5087
  %v5093 = vmul.f32 %v5057, %v5089
  %v5094 = vld [vmem:[#allocation2 + $0x10] sm:$0xff]
  %v5095 = vld [vmem:[#allocation2 + $0x18] sm:$0xff]
  %5098 = vrot.lane.b32.xlu0 %v5092, 64
  %v5099 = vpop.permute.xlu0 %5098
  %5100 = vrot.lane.b32.xlu0 %v5093, 64
  %v5101 = vpop.permute.xlu0 %5100
  %v5102 = vsel %vm403, %v5099, 0
  %v5104 = vsel %vm403, %v5101, 0
  %5106 = vmatpush.msra.mxu0 0.0
  %5107 = vmatpush.msra.mxu0 0.0
  %5108 = vmatpush.msra.mxu0 0.0
  %5109 = vmatpush.msra.mxu0 0.0
  %5110 = vmatpush.msra.mxu0 0.0
  %5111 = vmatpush.msra.mxu0 0.0
  %5112 = vmatpush.msra.mxu0 0.0
  %5113 = vmatpush.msra.mxu0 0.0
  %5114 = vmatpush.msra.mxu0 0.0
  %5115 = vmatpush.msra.mxu0 0.0
  %5116 = vmatpush.msra.mxu0 0.0
  %5117 = vmatpush.msra.mxu0 0.0
  %5118 = vmatpush.msra.mxu0 %v4992
  %5119 = vmatpush.msra.mxu0 %v4991
  %5120 = vmatpush.msra.mxu0 %v4990
  %5121 = vmatpush.msra.mxu0 %v4989
  %5122 = vmatmul.f32.gmra.mxu0 %v5102
  %v5123 = vpop.f32.mrf.mxu0
  %v5124 = vadd.f32 0.0, %v5123
  %5125 = vmatmul.f32.gmra.mxu0 %v5104
  %v5126 = vpop.f32.mrf.mxu0
  %v5127 = vadd.f32 0.0, %v5126
  %5128 = vdwg.mxu0
  %v5129 = vadd.f32 %v5094, %v5124
  %v5130 = vadd.f32 %v5095, %v5127
  %v5131 = vxor.u32 %v5129, 2147483648
  %v5132 = vxor.u32 %v5130, 2147483648
  %v5133 = vmul.f32 %v5131, 1.442695
  %v5134 = vpow.pop %v5133
  %v5135 = vmul.f32 %v5132, 1.442695
  %v5136 = vpow.pop %v5135
  %v5137 = vadd.f32 %v5134, 1.0
  %v5138 = vadd.f32 %v5136, 1.0
  %v5139 = vrcp.pop %v5137
  %v5140 = vmul.f32 %v5137, %v5139
  %v5141 = vsub.f32 1.0, %v5140
  %v5142 = vmul.f32 %v5139, %v5141
  %v5143 = vadd.f32 %v5139, %v5142
  %vm5144 = vweird.f32 %v5137
  %vm5145 = vweird.f32 %v5139
  %vm5146 = vmor %vm5144, %vm5145
  %v5147 = vsel %vm5146, %v5139, %v5143
  %v5148 = vand.u32 2147483647, %v5137
  %vm5149 = vcmp.eq.f32.partialorder %v5148, 8.507059e+37
  %v5150 = vand.u32 %v5137, 2147483648
  %v5151 = vor.u32 1.1754944e-38, %v5150
  %v5152 = vsel %vm5149, %v5151, %v5147
  %v5153 = vmul.f32 1.0, %v5152
  %v5154 = vrcp.pop %v5138
  %v5155 = vmul.f32 %v5138, %v5154
  %v5156 = vsub.f32 1.0, %v5155
  %v5157 = vmul.f32 %v5154, %v5156
  %v5158 = vadd.f32 %v5154, %v5157
  %vm5159 = vweird.f32 %v5138
  %vm5160 = vweird.f32 %v5154
  %vm5161 = vmor %vm5159, %vm5160
  %v5162 = vsel %vm5161, %v5154, %v5158
  %v5163 = vand.u32 2147483647, %v5138
  %vm5164 = vcmp.eq.f32.partialorder %v5163, 8.507059e+37
  %v5165 = vand.u32 %v5138, 2147483648
  %v5166 = vor.u32 1.1754944e-38, %v5165
  %v5167 = vsel %vm5164, %v5166, %v5162
  %v5168 = vmul.f32 1.0, %v5167
  %v5169 = vtanh.pop %v5129
  %v5170 = vtanh.pop %v5130
  %v5171 = vmul.f32 %v5153, %v5080
  %v5172 = vmul.f32 %v5168, %v5081
  %5175 = vrot.lane.b32.xlu0 %v5169, 32
  %v5176 = vpop.permute.xlu0 %5175
  %5177 = vrot.lane.b32.xlu0 %v5170, 32
  %v5178 = vpop.permute.xlu0 %5177
  %v5181 = vmul.f32 %v5153, %v5176
  %v5182 = vmul.f32 %v5168, %v5178
  %5185 = vrot.lane.b32.xlu0 %v5181, 32
  %v5186 = vpop.permute.xlu0 %5185
  %5187 = vrot.lane.b32.xlu0 %v5182, 32
  %v5188 = vpop.permute.xlu0 %5187
  %v5191 = vadd.f32 %v5171, %v5186
  %v5192 = vadd.f32 %v5172, %v5188
  %v5193 = vtanh.pop %v5191
  %v5194 = vtanh.pop %v5192
  %5197 = vrot.lane.b32.xlu0 %v5193, 32
  %v5198 = vpop.permute.xlu0 %5197
  %5199 = vrot.lane.b32.xlu0 %v5194, 32
  %v5200 = vpop.permute.xlu0 %5199
  %v5203 = vmul.f32 %v5153, %v5198
  %v5204 = vmul.f32 %v5168, %v5200
  %v5205 = vld [vmem:[#allocation2 + $0x20] sm:$0xff]
  %v5206 = vld [vmem:[#allocation2 + $0x28] sm:$0xff]
  %5209 = vrot.lane.b32.xlu0 %v5203, 64
  %v5210 = vpop.permute.xlu0 %5209
  %5211 = vrot.lane.b32.xlu0 %v5204, 64
  %v5212 = vpop.permute.xlu0 %5211
  %v5213 = vsel %vm403, %v5210, 0
  %v5215 = vsel %vm403, %v5212, 0
  %5217 = vmatpush.msra.mxu0 0.0
  %5218 = vmatpush.msra.mxu0 0.0
  %5219 = vmatpush.msra.mxu0 0.0
  %5220 = vmatpush.msra.mxu0 0.0
  %5221 = vmatpush.msra.mxu0 0.0
  %5222 = vmatpush.msra.mxu0 0.0
  %5223 = vmatpush.msra.mxu0 0.0
  %5224 = vmatpush.msra.mxu0 0.0
  %5225 = vmatpush.msra.mxu0 0.0
  %5226 = vmatpush.msra.mxu0 0.0
  %5227 = vmatpush.msra.mxu0 0.0
  %5228 = vmatpush.msra.mxu0 0.0
  %5229 = vmatpush.msra.mxu0 %v4992
  %5230 = vmatpush.msra.mxu0 %v4991
  %5231 = vmatpush.msra.mxu0 %v4990
  %5232 = vmatpush.msra.mxu0 %v4989
  %5233 = vmatmul.f32.gmra.mxu0 %v5213
  %v5234 = vpop.f32.mrf.mxu0
  %v5235 = vadd.f32 0.0, %v5234
  %5236 = vmatmul.f32.gmra.mxu0 %v5215
  %v5237 = vpop.f32.mrf.mxu0
  %v5238 = vadd.f32 0.0, %v5237
  %5239 = vdwg.mxu0
  %v5240 = vadd.f32 %v5205, %v5235
  %v5241 = vadd.f32 %v5206, %v5238
  %v5242 = vxor.u32 %v5240, 2147483648
  %v5243 = vxor.u32 %v5241, 2147483648
  %v5244 = vmul.f32 %v5242, 1.442695
  %v5245 = vpow.pop %v5244
  %v5246 = vmul.f32 %v5243, 1.442695
  %v5247 = vpow.pop %v5246
  %v5248 = vadd.f32 %v5245, 1.0
  %v5249 = vadd.f32 %v5247, 1.0
  %v5250 = vrcp.pop %v5248
  %v5251 = vmul.f32 %v5248, %v5250
  %v5252 = vsub.f32 1.0, %v5251
  %v5253 = vmul.f32 %v5250, %v5252
  %v5254 = vadd.f32 %v5250, %v5253
  %vm5255 = vweird.f32 %v5248
  %vm5256 = vweird.f32 %v5250
  %vm5257 = vmor %vm5255, %vm5256
  %v5258 = vsel %vm5257, %v5250, %v5254
  %v5259 = vand.u32 2147483647, %v5248
  %vm5260 = vcmp.eq.f32.partialorder %v5259, 8.507059e+37
  %v5261 = vand.u32 %v5248, 2147483648
  %v5262 = vor.u32 1.1754944e-38, %v5261
  %v5263 = vsel %vm5260, %v5262, %v5258
  %v5264 = vmul.f32 1.0, %v5263
  %v5265 = vrcp.pop %v5249
  %v5266 = vmul.f32 %v5249, %v5265
  %v5267 = vsub.f32 1.0, %v5266
  %v5268 = vmul.f32 %v5265, %v5267
  %v5269 = vadd.f32 %v5265, %v5268
  %vm5270 = vweird.f32 %v5249
  %vm5271 = vweird.f32 %v5265
  %vm5272 = vmor %vm5270, %vm5271
  %v5273 = vsel %vm5272, %v5265, %v5269
  %v5274 = vand.u32 2147483647, %v5249
  %vm5275 = vcmp.eq.f32.partialorder %v5274, 8.507059e+37
  %v5276 = vand.u32 %v5249, 2147483648
  %v5277 = vor.u32 1.1754944e-38, %v5276
  %v5278 = vsel %vm5275, %v5277, %v5273
  %v5279 = vmul.f32 1.0, %v5278
  %v5280 = vtanh.pop %v5240
  %v5281 = vtanh.pop %v5241
  %v5282 = vmul.f32 %v5264, %v5191
  %v5283 = vmul.f32 %v5279, %v5192
  %5286 = vrot.lane.b32.xlu0 %v5280, 32
  %v5287 = vpop.permute.xlu0 %5286
  %5288 = vrot.lane.b32.xlu0 %v5281, 32
  %v5289 = vpop.permute.xlu0 %5288
  %v5292 = vmul.f32 %v5264, %v5287
  %v5293 = vmul.f32 %v5279, %v5289
  %5296 = vrot.lane.b32.xlu0 %v5292, 32
  %v5297 = vpop.permute.xlu0 %5296
  %5298 = vrot.lane.b32.xlu0 %v5293, 32
  %v5299 = vpop.permute.xlu0 %5298
  %v5302 = vadd.f32 %v5282, %v5297
  %v5303 = vadd.f32 %v5283, %v5299
  %v5304 = vtanh.pop %v5302
  %v5305 = vtanh.pop %v5303
  %5308 = vrot.lane.b32.xlu0 %v5304, 32
  %v5309 = vpop.permute.xlu0 %5308
  %5310 = vrot.lane.b32.xlu0 %v5305, 32
  %v5311 = vpop.permute.xlu0 %5310
  %v5314 = vmul.f32 %v5264, %v5309
  %v5315 = vmul.f32 %v5279, %v5311
  %v5316 = vld [vmem:[#allocation2 + $0x30] sm:$0xff]
  %v5317 = vld [vmem:[#allocation2 + $0x38] sm:$0xff]
  %5320 = vrot.lane.b32.xlu0 %v5314, 64
  %v5321 = vpop.permute.xlu0 %5320
  %5322 = vrot.lane.b32.xlu0 %v5315, 64
  %v5323 = vpop.permute.xlu0 %5322
  %v5324 = vsel %vm403, %v5321, 0
  %v5326 = vsel %vm403, %v5323, 0
  %5328 = vmatpush.msra.mxu0 0.0
  %5329 = vmatpush.msra.mxu0 0.0
  %5330 = vmatpush.msra.mxu0 0.0
  %5331 = vmatpush.msra.mxu0 0.0
  %5332 = vmatpush.msra.mxu0 0.0
  %5333 = vmatpush.msra.mxu0 0.0
  %5334 = vmatpush.msra.mxu0 0.0
  %5335 = vmatpush.msra.mxu0 0.0
  %5336 = vmatpush.msra.mxu0 0.0
  %5337 = vmatpush.msra.mxu0 0.0
  %5338 = vmatpush.msra.mxu0 0.0
  %5339 = vmatpush.msra.mxu0 0.0
  %5340 = vmatpush.msra.mxu0 %v4992
  %5341 = vmatpush.msra.mxu0 %v4991
  %5342 = vmatpush.msra.mxu0 %v4990
  %5343 = vmatpush.msra.mxu0 %v4989
  %5344 = vmatmul.f32.gmra.mxu0 %v5324
  %v5345 = vpop.f32.mrf.mxu0
  %v5346 = vadd.f32 0.0, %v5345
  %5347 = vmatmul.f32.gmra.mxu0 %v5326
  %v5348 = vpop.f32.mrf.mxu0
  %v5349 = vadd.f32 0.0, %v5348
  %5350 = vdwg.mxu0
  %v5351 = vadd.f32 %v5316, %v5346
  %v5352 = vadd.f32 %v5317, %v5349
  %v5353 = vxor.u32 %v5351, 2147483648
  %v5354 = vxor.u32 %v5352, 2147483648
  %v5355 = vmul.f32 %v5353, 1.442695
  %v5356 = vpow.pop %v5355
  %v5357 = vmul.f32 %v5354, 1.442695
  %v5358 = vpow.pop %v5357
  %v5359 = vadd.f32 %v5356, 1.0
  %v5360 = vadd.f32 %v5358, 1.0
  %v5361 = vrcp.pop %v5359
  %v5362 = vmul.f32 %v5359, %v5361
  %v5363 = vsub.f32 1.0, %v5362
  %v5364 = vmul.f32 %v5361, %v5363
  %v5365 = vadd.f32 %v5361, %v5364
  %vm5366 = vweird.f32 %v5359
  %vm5367 = vweird.f32 %v5361
  %vm5368 = vmor %vm5366, %vm5367
  %v5369 = vsel %vm5368, %v5361, %v5365
  %v5370 = vand.u32 2147483647, %v5359
  %vm5371 = vcmp.eq.f32.partialorder %v5370, 8.507059e+37
  %v5372 = vand.u32 %v5359, 2147483648
  %v5373 = vor.u32 1.1754944e-38, %v5372
  %v5374 = vsel %vm5371, %v5373, %v5369
  %v5375 = vmul.f32 1.0, %v5374
  %v5376 = vrcp.pop %v5360
  %v5377 = vmul.f32 %v5360, %v5376
  %v5378 = vsub.f32 1.0, %v5377
  %v5379 = vmul.f32 %v5376, %v5378
  %v5380 = vadd.f32 %v5376, %v5379
  %vm5381 = vweird.f32 %v5360
  %vm5382 = vweird.f32 %v5376
  %vm5383 = vmor %vm5381, %vm5382
  %v5384 = vsel %vm5383, %v5376, %v5380
  %v5385 = vand.u32 2147483647, %v5360
  %vm5386 = vcmp.eq.f32.partialorder %v5385, 8.507059e+37
  %v5387 = vand.u32 %v5360, 2147483648
  %v5388 = vor.u32 1.1754944e-38, %v5387
  %v5389 = vsel %vm5386, %v5388, %v5384
  %v5390 = vmul.f32 1.0, %v5389
  %v5391 = vtanh.pop %v5351
  %v5392 = vtanh.pop %v5352
  %v5393 = vmul.f32 %v5375, %v5302
  %v5394 = vmul.f32 %v5390, %v5303
  %5397 = vrot.lane.b32.xlu0 %v5391, 32
  %v5398 = vpop.permute.xlu0 %5397
  %5399 = vrot.lane.b32.xlu0 %v5392, 32
  %v5400 = vpop.permute.xlu0 %5399
  %v5403 = vmul.f32 %v5375, %v5398
  %v5404 = vmul.f32 %v5390, %v5400
  %5407 = vrot.lane.b32.xlu0 %v5403, 32
  %v5408 = vpop.permute.xlu0 %5407
  %5409 = vrot.lane.b32.xlu0 %v5404, 32
  %v5410 = vpop.permute.xlu0 %5409
  %v5413 = vadd.f32 %v5393, %v5408
  %v5414 = vadd.f32 %v5394, %v5410
  %v5415 = vtanh.pop %v5413
  %v5416 = vtanh.pop %v5414
  %5419 = vrot.lane.b32.xlu0 %v5415, 32
  %v5420 = vpop.permute.xlu0 %5419
  %5421 = vrot.lane.b32.xlu0 %v5416, 32
  %v5422 = vpop.permute.xlu0 %5421
  %v5425 = vmul.f32 %v5375, %v5420
  %v5426 = vmul.f32 %v5390, %v5422
  %v5427 = vld [vmem:[#allocation2 + $0x40] sm:$0xff]
  %v5428 = vld [vmem:[#allocation2 + $0x48] sm:$0xff]
  %5431 = vrot.lane.b32.xlu0 %v5425, 64
  %v5432 = vpop.permute.xlu0 %5431
  %5433 = vrot.lane.b32.xlu0 %v5426, 64
  %v5434 = vpop.permute.xlu0 %5433
  %v5435 = vsel %vm403, %v5432, 0
  %v5437 = vsel %vm403, %v5434, 0
  %5439 = vmatpush.msra.mxu0 0.0
  %5440 = vmatpush.msra.mxu0 0.0
  %5441 = vmatpush.msra.mxu0 0.0
  %5442 = vmatpush.msra.mxu0 0.0
  %5443 = vmatpush.msra.mxu0 0.0
  %5444 = vmatpush.msra.mxu0 0.0
  %5445 = vmatpush.msra.mxu0 0.0
  %5446 = vmatpush.msra.mxu0 0.0
  %5447 = vmatpush.msra.mxu0 0.0
  %5448 = vmatpush.msra.mxu0 0.0
  %5449 = vmatpush.msra.mxu0 0.0
  %5450 = vmatpush.msra.mxu0 0.0
  %5451 = vmatpush.msra.mxu0 %v4992
  %5452 = vmatpush.msra.mxu0 %v4991
  %5453 = vmatpush.msra.mxu0 %v4990
  %5454 = vmatpush.msra.mxu0 %v4989
  %5455 = vmatmul.f32.gmra.mxu0 %v5435
  %v5456 = vpop.f32.mrf.mxu0
  %v5457 = vadd.f32 0.0, %v5456
  %5458 = vmatmul.f32.gmra.mxu0 %v5437
  %v5459 = vpop.f32.mrf.mxu0
  %v5460 = vadd.f32 0.0, %v5459
  %5461 = vdwg.mxu0
  %v5462 = vadd.f32 %v5427, %v5457
  %v5463 = vadd.f32 %v5428, %v5460
  %v5464 = vxor.u32 %v5462, 2147483648
  %v5465 = vxor.u32 %v5463, 2147483648
  %v5466 = vmul.f32 %v5464, 1.442695
  %v5467 = vpow.pop %v5466
  %v5468 = vmul.f32 %v5465, 1.442695
  %v5469 = vpow.pop %v5468
  %v5470 = vadd.f32 %v5467, 1.0
  %v5471 = vadd.f32 %v5469, 1.0
  %v5472 = vrcp.pop %v5470
  %v5473 = vmul.f32 %v5470, %v5472
  %v5474 = vsub.f32 1.0, %v5473
  %v5475 = vmul.f32 %v5472, %v5474
  %v5476 = vadd.f32 %v5472, %v5475
  %vm5477 = vweird.f32 %v5470
  %vm5478 = vweird.f32 %v5472
  %vm5479 = vmor %vm5477, %vm5478
  %v5480 = vsel %vm5479, %v5472, %v5476
  %v5481 = vand.u32 2147483647, %v5470
  %vm5482 = vcmp.eq.f32.partialorder %v5481, 8.507059e+37
  %v5483 = vand.u32 %v5470, 2147483648
  %v5484 = vor.u32 1.1754944e-38, %v5483
  %v5485 = vsel %vm5482, %v5484, %v5480
  %v5486 = vmul.f32 1.0, %v5485
  %v5487 = vrcp.pop %v5471
  %v5488 = vmul.f32 %v5471, %v5487
  %v5489 = vsub.f32 1.0, %v5488
  %v5490 = vmul.f32 %v5487, %v5489
  %v5491 = vadd.f32 %v5487, %v5490
  %vm5492 = vweird.f32 %v5471
  %vm5493 = vweird.f32 %v5487
  %vm5494 = vmor %vm5492, %vm5493
  %v5495 = vsel %vm5494, %v5487, %v5491
  %v5496 = vand.u32 2147483647, %v5471
  %vm5497 = vcmp.eq.f32.partialorder %v5496, 8.507059e+37
  %v5498 = vand.u32 %v5471, 2147483648
  %v5499 = vor.u32 1.1754944e-38, %v5498
  %v5500 = vsel %vm5497, %v5499, %v5495
  %v5501 = vmul.f32 1.0, %v5500
  %v5502 = vtanh.pop %v5462
  %v5503 = vtanh.pop %v5463
  %v5504 = vmul.f32 %v5486, %v5413
  %v5505 = vmul.f32 %v5501, %v5414
  %5508 = vrot.lane.b32.xlu0 %v5502, 32
  %v5509 = vpop.permute.xlu0 %5508
  %5510 = vrot.lane.b32.xlu0 %v5503, 32
  %v5511 = vpop.permute.xlu0 %5510
  %v5514 = vmul.f32 %v5486, %v5509
  %v5515 = vmul.f32 %v5501, %v5511
  %5518 = vrot.lane.b32.xlu0 %v5514, 32
  %v5519 = vpop.permute.xlu0 %5518
  %5520 = vrot.lane.b32.xlu0 %v5515, 32
  %v5521 = vpop.permute.xlu0 %5520
  %v5524 = vadd.f32 %v5504, %v5519
  %v5525 = vadd.f32 %v5505, %v5521
  %v5526 = vtanh.pop %v5524
  %v5527 = vtanh.pop %v5525
  %5530 = vrot.lane.b32.xlu0 %v5526, 32
  %v5531 = vpop.permute.xlu0 %5530
  %5532 = vrot.lane.b32.xlu0 %v5527, 32
  %v5533 = vpop.permute.xlu0 %5532
  %v5536 = vmul.f32 %v5486, %v5531
  %v5537 = vmul.f32 %v5501, %v5533
  %v5538 = vld [vmem:[#allocation2 + $0x50] sm:$0xff]
  %v5539 = vld [vmem:[#allocation2 + $0x58] sm:$0xff]
  %5542 = vrot.lane.b32.xlu0 %v5536, 64
  %v5543 = vpop.permute.xlu0 %5542
  %5544 = vrot.lane.b32.xlu0 %v5537, 64
  %v5545 = vpop.permute.xlu0 %5544
  %v5546 = vsel %vm403, %v5543, 0
  %v5548 = vsel %vm403, %v5545, 0
  %5550 = vmatpush.msra.mxu0 0.0
  %5551 = vmatpush.msra.mxu0 0.0
  %5552 = vmatpush.msra.mxu0 0.0
  %5553 = vmatpush.msra.mxu0 0.0
  %5554 = vmatpush.msra.mxu0 0.0
  %5555 = vmatpush.msra.mxu0 0.0
  %5556 = vmatpush.msra.mxu0 0.0
  %5557 = vmatpush.msra.mxu0 0.0
  %5558 = vmatpush.msra.mxu0 0.0
  %5559 = vmatpush.msra.mxu0 0.0
  %5560 = vmatpush.msra.mxu0 0.0
  %5561 = vmatpush.msra.mxu0 0.0
  %5562 = vmatpush.msra.mxu0 %v4992
  %5563 = vmatpush.msra.mxu0 %v4991
  %5564 = vmatpush.msra.mxu0 %v4990
  %5565 = vmatpush.msra.mxu0 %v4989
  %5566 = vmatmul.f32.gmra.mxu0 %v5546
  %v5567 = vpop.f32.mrf.mxu0
  %v5568 = vadd.f32 0.0, %v5567
  %5569 = vmatmul.f32.gmra.mxu0 %v5548
  %v5570 = vpop.f32.mrf.mxu0
  %v5571 = vadd.f32 0.0, %v5570
  %5572 = vdwg.mxu0
  %v5573 = vadd.f32 %v5538, %v5568
  %v5574 = vadd.f32 %v5539, %v5571
  %v5575 = vxor.u32 %v5573, 2147483648
  %v5576 = vxor.u32 %v5574, 2147483648
  %v5577 = vmul.f32 %v5575, 1.442695
  %v5578 = vpow.pop %v5577
  %v5579 = vmul.f32 %v5576, 1.442695
  %v5580 = vpow.pop %v5579
  %v5581 = vadd.f32 %v5578, 1.0
  %v5582 = vadd.f32 %v5580, 1.0
  %v5583 = vrcp.pop %v5581
  %v5584 = vmul.f32 %v5581, %v5583
  %v5585 = vsub.f32 1.0, %v5584
  %v5586 = vmul.f32 %v5583, %v5585
  %v5587 = vadd.f32 %v5583, %v5586
  %vm5588 = vweird.f32 %v5581
  %vm5589 = vweird.f32 %v5583
  %vm5590 = vmor %vm5588, %vm5589
  %v5591 = vsel %vm5590, %v5583, %v5587
  %v5592 = vand.u32 2147483647, %v5581
  %vm5593 = vcmp.eq.f32.partialorder %v5592, 8.507059e+37
  %v5594 = vand.u32 %v5581, 2147483648
  %v5595 = vor.u32 1.1754944e-38, %v5594
  %v5596 = vsel %vm5593, %v5595, %v5591
  %v5597 = vmul.f32 1.0, %v5596
  %v5598 = vrcp.pop %v5582
  %v5599 = vmul.f32 %v5582, %v5598
  %v5600 = vsub.f32 1.0, %v5599
  %v5601 = vmul.f32 %v5598, %v5600
  %v5602 = vadd.f32 %v5598, %v5601
  %vm5603 = vweird.f32 %v5582
  %vm5604 = vweird.f32 %v5598
  %vm5605 = vmor %vm5603, %vm5604
  %v5606 = vsel %vm5605, %v5598, %v5602
  %v5607 = vand.u32 2147483647, %v5582
  %vm5608 = vcmp.eq.f32.partialorder %v5607, 8.507059e+37
  %v5609 = vand.u32 %v5582, 2147483648
  %v5610 = vor.u32 1.1754944e-38, %v5609
  %v5611 = vsel %vm5608, %v5610, %v5606
  %v5612 = vmul.f32 1.0, %v5611
  %v5613 = vtanh.pop %v5573
  %v5614 = vtanh.pop %v5574
  %v5615 = vmul.f32 %v5597, %v5524
  %v5616 = vmul.f32 %v5612, %v5525
  %5619 = vrot.lane.b32.xlu0 %v5613, 32
  %v5620 = vpop.permute.xlu0 %5619
  %5621 = vrot.lane.b32.xlu0 %v5614, 32
  %v5622 = vpop.permute.xlu0 %5621
  %v5625 = vmul.f32 %v5597, %v5620
  %v5626 = vmul.f32 %v5612, %v5622
  %5629 = vrot.lane.b32.xlu0 %v5625, 32
  %v5630 = vpop.permute.xlu0 %5629
  %5631 = vrot.lane.b32.xlu0 %v5626, 32
  %v5632 = vpop.permute.xlu0 %5631
  %v5635 = vadd.f32 %v5615, %v5630
  %v5636 = vadd.f32 %v5616, %v5632
  %v5637 = vtanh.pop %v5635
  %v5638 = vtanh.pop %v5636
  %5641 = vrot.lane.b32.xlu0 %v5637, 32
  %v5642 = vpop.permute.xlu0 %5641
  %5643 = vrot.lane.b32.xlu0 %v5638, 32
  %v5644 = vpop.permute.xlu0 %5643
  %v5647 = vmul.f32 %v5597, %v5642
  %v5648 = vmul.f32 %v5612, %v5644
  %v5649 = vld [vmem:[#allocation2 + $0x60] sm:$0xff]
  %v5650 = vld [vmem:[#allocation2 + $0x68] sm:$0xff]
  %5653 = vrot.lane.b32.xlu0 %v5647, 64
  %v5654 = vpop.permute.xlu0 %5653
  %5655 = vrot.lane.b32.xlu0 %v5648, 64
  %v5656 = vpop.permute.xlu0 %5655
  %v5657 = vsel %vm403, %v5654, 0
  %v5659 = vsel %vm403, %v5656, 0
  %5661 = vmatpush.msra.mxu0 0.0
  %5662 = vmatpush.msra.mxu0 0.0
  %5663 = vmatpush.msra.mxu0 0.0
  %5664 = vmatpush.msra.mxu0 0.0
  %5665 = vmatpush.msra.mxu0 0.0
  %5666 = vmatpush.msra.mxu0 0.0
  %5667 = vmatpush.msra.mxu0 0.0
  %5668 = vmatpush.msra.mxu0 0.0
  %5669 = vmatpush.msra.mxu0 0.0
  %5670 = vmatpush.msra.mxu0 0.0
  %5671 = vmatpush.msra.mxu0 0.0
  %5672 = vmatpush.msra.mxu0 0.0
  %5673 = vmatpush.msra.mxu0 %v4992
  %5674 = vmatpush.msra.mxu0 %v4991
  %5675 = vmatpush.msra.mxu0 %v4990
  %5676 = vmatpush.msra.mxu0 %v4989
  %5677 = vmatmul.f32.gmra.mxu0 %v5657
  %v5678 = vpop.f32.mrf.mxu0
  %v5679 = vadd.f32 0.0, %v5678
  %5680 = vmatmul.f32.gmra.mxu0 %v5659
  %v5681 = vpop.f32.mrf.mxu0
  %v5682 = vadd.f32 0.0, %v5681
  %5683 = vdwg.mxu0
  %v5684 = vadd.f32 %v5649, %v5679
  %v5685 = vadd.f32 %v5650, %v5682
  %v5686 = vxor.u32 %v5684, 2147483648
  %v5687 = vxor.u32 %v5685, 2147483648
  %v5688 = vmul.f32 %v5686, 1.442695
  %v5689 = vpow.pop %v5688
  %v5690 = vmul.f32 %v5687, 1.442695
  %v5691 = vpow.pop %v5690
  %v5692 = vadd.f32 %v5689, 1.0
  %v5693 = vadd.f32 %v5691, 1.0
  %v5694 = vrcp.pop %v5692
  %v5695 = vmul.f32 %v5692, %v5694
  %v5696 = vsub.f32 1.0, %v5695
  %v5697 = vmul.f32 %v5694, %v5696
  %v5698 = vadd.f32 %v5694, %v5697
  %vm5699 = vweird.f32 %v5692
  %vm5700 = vweird.f32 %v5694
  %vm5701 = vmor %vm5699, %vm5700
  %v5702 = vsel %vm5701, %v5694, %v5698
  %v5703 = vand.u32 2147483647, %v5692
  %vm5704 = vcmp.eq.f32.partialorder %v5703, 8.507059e+37
  %v5705 = vand.u32 %v5692, 2147483648
  %v5706 = vor.u32 1.1754944e-38, %v5705
  %v5707 = vsel %vm5704, %v5706, %v5702
  %v5708 = vmul.f32 1.0, %v5707
  %v5709 = vrcp.pop %v5693
  %v5710 = vmul.f32 %v5693, %v5709
  %v5711 = vsub.f32 1.0, %v5710
  %v5712 = vmul.f32 %v5709, %v5711
  %v5713 = vadd.f32 %v5709, %v5712
  %vm5714 = vweird.f32 %v5693
  %vm5715 = vweird.f32 %v5709
  %vm5716 = vmor %vm5714, %vm5715
  %v5717 = vsel %vm5716, %v5709, %v5713
  %v5718 = vand.u32 2147483647, %v5693
  %vm5719 = vcmp.eq.f32.partialorder %v5718, 8.507059e+37
  %v5720 = vand.u32 %v5693, 2147483648
  %v5721 = vor.u32 1.1754944e-38, %v5720
  %v5722 = vsel %vm5719, %v5721, %v5717
  %v5723 = vmul.f32 1.0, %v5722
  %v5724 = vtanh.pop %v5684
  %v5725 = vtanh.pop %v5685
  %v5726 = vmul.f32 %v5708, %v5635
  %v5727 = vmul.f32 %v5723, %v5636
  %5730 = vrot.lane.b32.xlu0 %v5724, 32
  %v5731 = vpop.permute.xlu0 %5730
  %5732 = vrot.lane.b32.xlu0 %v5725, 32
  %v5733 = vpop.permute.xlu0 %5732
  %v5736 = vmul.f32 %v5708, %v5731
  %v5737 = vmul.f32 %v5723, %v5733
  %5740 = vrot.lane.b32.xlu0 %v5736, 32
  %v5741 = vpop.permute.xlu0 %5740
  %5742 = vrot.lane.b32.xlu0 %v5737, 32
  %v5743 = vpop.permute.xlu0 %5742
  %v5746 = vadd.f32 %v5726, %v5741
  %v5747 = vadd.f32 %v5727, %v5743
  %v5748 = vtanh.pop %v5746
  %v5749 = vtanh.pop %v5747
  %5752 = vrot.lane.b32.xlu0 %v5748, 32
  %v5753 = vpop.permute.xlu0 %5752
  %5754 = vrot.lane.b32.xlu0 %v5749, 32
  %v5755 = vpop.permute.xlu0 %5754
  %v5758 = vmul.f32 %v5708, %v5753
  %v5759 = vmul.f32 %v5723, %v5755
  %v5760 = vld [vmem:[#allocation2 + $0x70] sm:$0xff]
  %v5761 = vld [vmem:[#allocation2 + $0x78] sm:$0xff]
  %5764 = vrot.lane.b32.xlu0 %v5758, 64
  %v5765 = vpop.permute.xlu0 %5764
  %5766 = vrot.lane.b32.xlu0 %v5759, 64
  %v5767 = vpop.permute.xlu0 %5766
  %v5768 = vsel %vm403, %v5765, 0
  %v5770 = vsel %vm403, %v5767, 0
  %5772 = vmatpush.msra.mxu0 0.0
  %5773 = vmatpush.msra.mxu0 0.0
  %5774 = vmatpush.msra.mxu0 0.0
  %5775 = vmatpush.msra.mxu0 0.0
  %5776 = vmatpush.msra.mxu0 0.0
  %5777 = vmatpush.msra.mxu0 0.0
  %5778 = vmatpush.msra.mxu0 0.0
  %5779 = vmatpush.msra.mxu0 0.0
  %5780 = vmatpush.msra.mxu0 0.0
  %5781 = vmatpush.msra.mxu0 0.0
  %5782 = vmatpush.msra.mxu0 0.0
  %5783 = vmatpush.msra.mxu0 0.0
  %5784 = vmatpush.msra.mxu0 %v4992
  %5785 = vmatpush.msra.mxu0 %v4991
  %5786 = vmatpush.msra.mxu0 %v4990
  %5787 = vmatpush.msra.mxu0 %v4989
  %5788 = vmatmul.f32.gmra.mxu0 %v5768
  %v5789 = vpop.f32.mrf.mxu0
  %v5790 = vadd.f32 0.0, %v5789
  %5791 = vmatmul.f32.gmra.mxu0 %v5770
  %v5792 = vpop.f32.mrf.mxu0
  %v5793 = vadd.f32 0.0, %v5792
  %5794 = vdwg.mxu0
  %v5795 = vadd.f32 %v5760, %v5790
  %v5796 = vadd.f32 %v5761, %v5793
  %v5797 = vxor.u32 %v5795, 2147483648
  %v5798 = vxor.u32 %v5796, 2147483648
  %v5799 = vmul.f32 %v5797, 1.442695
  %v5800 = vpow.pop %v5799
  %v5801 = vmul.f32 %v5798, 1.442695
  %v5802 = vpow.pop %v5801
  %v5803 = vadd.f32 %v5800, 1.0
  %v5804 = vadd.f32 %v5802, 1.0
  %v5805 = vrcp.pop %v5803
  %v5806 = vmul.f32 %v5803, %v5805
  %v5807 = vsub.f32 1.0, %v5806
  %v5808 = vmul.f32 %v5805, %v5807
  %v5809 = vadd.f32 %v5805, %v5808
  %vm5810 = vweird.f32 %v5803
  %vm5811 = vweird.f32 %v5805
  %vm5812 = vmor %vm5810, %vm5811
  %v5813 = vsel %vm5812, %v5805, %v5809
  %v5814 = vand.u32 2147483647, %v5803
  %vm5815 = vcmp.eq.f32.partialorder %v5814, 8.507059e+37
  %v5816 = vand.u32 %v5803, 2147483648
  %v5817 = vor.u32 1.1754944e-38, %v5816
  %v5818 = vsel %vm5815, %v5817, %v5813
  %v5819 = vmul.f32 1.0, %v5818
  %v5820 = vrcp.pop %v5804
  %v5821 = vmul.f32 %v5804, %v5820
  %v5822 = vsub.f32 1.0, %v5821
  %v5823 = vmul.f32 %v5820, %v5822
  %v5824 = vadd.f32 %v5820, %v5823
  %vm5825 = vweird.f32 %v5804
  %vm5826 = vweird.f32 %v5820
  %vm5827 = vmor %vm5825, %vm5826
  %v5828 = vsel %vm5827, %v5820, %v5824
  %v5829 = vand.u32 2147483647, %v5804
  %vm5830 = vcmp.eq.f32.partialorder %v5829, 8.507059e+37
  %v5831 = vand.u32 %v5804, 2147483648
  %v5832 = vor.u32 1.1754944e-38, %v5831
  %v5833 = vsel %vm5830, %v5832, %v5828
  %v5834 = vmul.f32 1.0, %v5833
  %v5835 = vtanh.pop %v5795
  %v5836 = vtanh.pop %v5796
  %v5837 = vmul.f32 %v5819, %v5746
  %v5838 = vmul.f32 %v5834, %v5747
  %5841 = vrot.lane.b32.xlu0 %v5835, 32
  %v5842 = vpop.permute.xlu0 %5841
  %5843 = vrot.lane.b32.xlu0 %v5836, 32
  %v5844 = vpop.permute.xlu0 %5843
  %v5847 = vmul.f32 %v5819, %v5842
  %v5848 = vmul.f32 %v5834, %v5844
  %5851 = vrot.lane.b32.xlu0 %v5847, 32
  %v5852 = vpop.permute.xlu0 %5851
  %5853 = vrot.lane.b32.xlu0 %v5848, 32
  %v5854 = vpop.permute.xlu0 %5853
  %v5857 = vadd.f32 %v5837, %v5852
  %v5858 = vadd.f32 %v5838, %v5854
  %v5859 = vtanh.pop %v5857
  %v5860 = vtanh.pop %v5858
  %5863 = vrot.lane.b32.xlu0 %v5859, 32
  %v5864 = vpop.permute.xlu0 %5863
  %5865 = vrot.lane.b32.xlu0 %v5860, 32
  %v5866 = vpop.permute.xlu0 %5865
  %v5869 = vmul.f32 %v5819, %v5864
  %v5870 = vmul.f32 %v5834, %v5866
  %v5871 = vsub.f32 %v5869, %v5870
  %v5872 = vand.u32 2147483647, %v5871
  %v5873 = vsub.f32 %v4987, %v4988
  %v5874 = vand.u32 2147483647, %v5873
  %v5875 = vmul.f32 %v5869, %v5870
  %v5876 = vmul.f32 %v4987, %v4988
  %v5877 = vadd.f32 %v5869, %v5870
  %v5878 = vmul.f32 %v5877, 0.5
  %v5879 = vadd.f32 %v4987, %v4988
  %v5880 = vmul.f32 %v5879, 0.5
  %5882 = vrot.lane.b32.xlu0 %v4987, 64
  %v5883 = vpop.permute.xlu0 %5882
  %v5884 = vsel %vm403, %v5883, 0
  %5886 = vmatpush.msra.mxu0 0.0
  %5887 = vmatpush.msra.mxu0 0.0
  %5888 = vmatpush.msra.mxu0 0.0
  %5889 = vmatpush.msra.mxu0 0.0
  %5890 = vmatpush.msra.mxu0 0.0
  %5891 = vmatpush.msra.mxu0 0.0
  %5892 = vmatpush.msra.mxu0 0.0
  %5893 = vmatpush.msra.mxu0 0.0
  %5894 = vmatpush.msra.mxu0 0.0
  %5895 = vmatpush.msra.mxu0 0.0
  %5896 = vmatpush.msra.mxu0 0.0
  %5897 = vmatpush.msra.mxu0 0.0
  %5898 = vmatpush.msra.mxu0 %v88
  %5899 = vmatpush.msra.mxu0 %v86
  %5900 = vmatpush.msra.mxu0 %v84
  %5901 = vmatpush.msra.mxu0 %v82
  %5902 = vmatmul.f32.gmra.mxu0 %v5884
  %v5903 = vpop.f32.mrf.mxu0
  %v5904 = vadd.f32 0.0, %v5903
  %5905 = vdwg.mxu0
  %5906 = vmatpush.msra.mxu0 0.0
  %5907 = vmatpush.msra.mxu0 0.0
  %5908 = vmatpush.msra.mxu0 0.0
  %5909 = vmatpush.msra.mxu0 0.0
  %5910 = vmatpush.msra.mxu0 0.0
  %5911 = vmatpush.msra.mxu0 0.0
  %5912 = vmatpush.msra.mxu0 0.0
  %5913 = vmatpush.msra.mxu0 0.0
  %5914 = vmatpush.msra.mxu0 0.0
  %5915 = vmatpush.msra.mxu0 0.0
  %5916 = vmatpush.msra.mxu0 0.0
  %5917 = vmatpush.msra.mxu0 0.0
  %5918 = vmatpush.msra.mxu0 %v89
  %5919 = vmatpush.msra.mxu0 %v87
  %5920 = vmatpush.msra.mxu0 %v85
  %5921 = vmatpush.msra.mxu0 %v83
  %5922 = vmatmul.f32.gmra.mxu0 %v5884
  %v5923 = vpop.f32.mrf.mxu0
  %v5924 = vadd.f32 0.0, %v5923
  %5925 = vdwg.mxu0
  %5927 = vrot.lane.b32.xlu0 %v5874, 64
  %v5928 = vpop.permute.xlu0 %5927
  %v5929 = vsel %vm403, %v5928, 0
  %5931 = vmatpush.msra.mxu0 0.0
  %5932 = vmatpush.msra.mxu0 0.0
  %5933 = vmatpush.msra.mxu0 0.0
  %5934 = vmatpush.msra.mxu0 0.0
  %5935 = vmatpush.msra.mxu0 0.0
  %5936 = vmatpush.msra.mxu0 0.0
  %5937 = vmatpush.msra.mxu0 0.0
  %5938 = vmatpush.msra.mxu0 0.0
  %5939 = vmatpush.msra.mxu0 0.0
  %5940 = vmatpush.msra.mxu0 0.0
  %5941 = vmatpush.msra.mxu0 0.0
  %5942 = vmatpush.msra.mxu0 0.0
  %5943 = vmatpush.msra.mxu0 %v104
  %5944 = vmatpush.msra.mxu0 %v102
  %5945 = vmatpush.msra.mxu0 %v100
  %5946 = vmatpush.msra.mxu0 %v98
  %5947 = vmatmul.f32.gmra.mxu0 %v5929
  %v5948 = vpop.f32.mrf.mxu0
  %v5949 = vadd.f32 0.0, %v5948
  %5950 = vdwg.mxu0
  %5951 = vmatpush.msra.mxu0 0.0
  %5952 = vmatpush.msra.mxu0 0.0
  %5953 = vmatpush.msra.mxu0 0.0
  %5954 = vmatpush.msra.mxu0 0.0
  %5955 = vmatpush.msra.mxu0 0.0
  %5956 = vmatpush.msra.mxu0 0.0
  %5957 = vmatpush.msra.mxu0 0.0
  %5958 = vmatpush.msra.mxu0 0.0
  %5959 = vmatpush.msra.mxu0 0.0
  %5960 = vmatpush.msra.mxu0 0.0
  %5961 = vmatpush.msra.mxu0 0.0
  %5962 = vmatpush.msra.mxu0 0.0
  %5963 = vmatpush.msra.mxu0 %v105
  %5964 = vmatpush.msra.mxu0 %v103
  %5965 = vmatpush.msra.mxu0 %v101
  %5966 = vmatpush.msra.mxu0 %v99
  %5967 = vmatmul.f32.gmra.mxu0 %v5929
  %v5968 = vpop.f32.mrf.mxu0
  %v5969 = vadd.f32 0.0, %v5968
  %5970 = vdwg.mxu0
  %5972 = vrot.lane.b32.xlu0 %v4988, 64
  %v5973 = vpop.permute.xlu0 %5972
  %v5974 = vsel %vm403, %v5973, 0
  %5976 = vmatpush.msra.mxu0 0.0
  %5977 = vmatpush.msra.mxu0 0.0
  %5978 = vmatpush.msra.mxu0 0.0
  %5979 = vmatpush.msra.mxu0 0.0
  %5980 = vmatpush.msra.mxu0 0.0
  %5981 = vmatpush.msra.mxu0 0.0
  %5982 = vmatpush.msra.mxu0 0.0
  %5983 = vmatpush.msra.mxu0 0.0
  %5984 = vmatpush.msra.mxu0 0.0
  %5985 = vmatpush.msra.mxu0 0.0
  %5986 = vmatpush.msra.mxu0 0.0
  %5987 = vmatpush.msra.mxu0 0.0
  %5988 = vmatpush.msra.mxu0 %v120
  %5989 = vmatpush.msra.mxu0 %v118
  %5990 = vmatpush.msra.mxu0 %v116
  %5991 = vmatpush.msra.mxu0 %v114
  %5992 = vmatmul.f32.gmra.mxu0 %v5974
  %v5993 = vpop.f32.mrf.mxu0
  %v5994 = vadd.f32 0.0, %v5993
  %5995 = vdwg.mxu0
  %5996 = vmatpush.msra.mxu0 0.0
  %5997 = vmatpush.msra.mxu0 0.0
  %5998 = vmatpush.msra.mxu0 0.0
  %5999 = vmatpush.msra.mxu0 0.0
  %6000 = vmatpush.msra.mxu0 0.0
  %6001 = vmatpush.msra.mxu0 0.0
  %6002 = vmatpush.msra.mxu0 0.0
  %6003 = vmatpush.msra.mxu0 0.0
  %6004 = vmatpush.msra.mxu0 0.0
  %6005 = vmatpush.msra.mxu0 0.0
  %6006 = vmatpush.msra.mxu0 0.0
  %6007 = vmatpush.msra.mxu0 0.0
  %6008 = vmatpush.msra.mxu0 %v121
  %6009 = vmatpush.msra.mxu0 %v119
  %6010 = vmatpush.msra.mxu0 %v117
  %6011 = vmatpush.msra.mxu0 %v115
  %6012 = vmatmul.f32.gmra.mxu0 %v5974
  %v6013 = vpop.f32.mrf.mxu0
  %v6014 = vadd.f32 0.0, %v6013
  %6015 = vdwg.mxu0
  %6017 = vrot.lane.b32.xlu0 %v5876, 64
  %v6018 = vpop.permute.xlu0 %6017
  %v6019 = vsel %vm403, %v6018, 0
  %6021 = vmatpush.msra.mxu0 0.0
  %6022 = vmatpush.msra.mxu0 0.0
  %6023 = vmatpush.msra.mxu0 0.0
  %6024 = vmatpush.msra.mxu0 0.0
  %6025 = vmatpush.msra.mxu0 0.0
  %6026 = vmatpush.msra.mxu0 0.0
  %6027 = vmatpush.msra.mxu0 0.0
  %6028 = vmatpush.msra.mxu0 0.0
  %6029 = vmatpush.msra.mxu0 0.0
  %6030 = vmatpush.msra.mxu0 0.0
  %6031 = vmatpush.msra.mxu0 0.0
  %6032 = vmatpush.msra.mxu0 0.0
  %6033 = vmatpush.msra.mxu0 %v136
  %6034 = vmatpush.msra.mxu0 %v134
  %6035 = vmatpush.msra.mxu0 %v132
  %6036 = vmatpush.msra.mxu0 %v130
  %6037 = vmatmul.f32.gmra.mxu0 %v6019
  %v6038 = vpop.f32.mrf.mxu0
  %v6039 = vadd.f32 0.0, %v6038
  %6040 = vdwg.mxu0
  %6041 = vmatpush.msra.mxu0 0.0
  %6042 = vmatpush.msra.mxu0 0.0
  %6043 = vmatpush.msra.mxu0 0.0
  %6044 = vmatpush.msra.mxu0 0.0
  %6045 = vmatpush.msra.mxu0 0.0
  %6046 = vmatpush.msra.mxu0 0.0
  %6047 = vmatpush.msra.mxu0 0.0
  %6048 = vmatpush.msra.mxu0 0.0
  %6049 = vmatpush.msra.mxu0 0.0
  %6050 = vmatpush.msra.mxu0 0.0
  %6051 = vmatpush.msra.mxu0 0.0
  %6052 = vmatpush.msra.mxu0 0.0
  %6053 = vmatpush.msra.mxu0 %v137
  %6054 = vmatpush.msra.mxu0 %v135
  %6055 = vmatpush.msra.mxu0 %v133
  %6056 = vmatpush.msra.mxu0 %v131
  %6057 = vmatmul.f32.gmra.mxu0 %v6019
  %v6058 = vpop.f32.mrf.mxu0
  %v6059 = vadd.f32 0.0, %v6058
  %6060 = vdwg.mxu0
  %6062 = vrot.lane.b32.xlu0 %v5880, 64
  %v6063 = vpop.permute.xlu0 %6062
  %v6064 = vsel %vm403, %v6063, 0
  %6066 = vmatpush.msra.mxu0 0.0
  %6067 = vmatpush.msra.mxu0 0.0
  %6068 = vmatpush.msra.mxu0 0.0
  %6069 = vmatpush.msra.mxu0 0.0
  %6070 = vmatpush.msra.mxu0 0.0
  %6071 = vmatpush.msra.mxu0 0.0
  %6072 = vmatpush.msra.mxu0 0.0
  %6073 = vmatpush.msra.mxu0 0.0
  %6074 = vmatpush.msra.mxu0 0.0
  %6075 = vmatpush.msra.mxu0 0.0
  %6076 = vmatpush.msra.mxu0 0.0
  %6077 = vmatpush.msra.mxu0 0.0
  %6078 = vmatpush.msra.mxu0 %v152
  %6079 = vmatpush.msra.mxu0 %v150
  %6080 = vmatpush.msra.mxu0 %v148
  %6081 = vmatpush.msra.mxu0 %v146
  %6082 = vmatmul.f32.gmra.mxu0 %v6064
  %v6083 = vpop.f32.mrf.mxu0
  %v6084 = vadd.f32 0.0, %v6083
  %6085 = vdwg.mxu0
  %6086 = vmatpush.msra.mxu0 0.0
  %6087 = vmatpush.msra.mxu0 0.0
  %6088 = vmatpush.msra.mxu0 0.0
  %6089 = vmatpush.msra.mxu0 0.0
  %6090 = vmatpush.msra.mxu0 0.0
  %6091 = vmatpush.msra.mxu0 0.0
  %6092 = vmatpush.msra.mxu0 0.0
  %6093 = vmatpush.msra.mxu0 0.0
  %6094 = vmatpush.msra.mxu0 0.0
  %6095 = vmatpush.msra.mxu0 0.0
  %6096 = vmatpush.msra.mxu0 0.0
  %6097 = vmatpush.msra.mxu0 0.0
  %6098 = vmatpush.msra.mxu0 %v153
  %6099 = vmatpush.msra.mxu0 %v151
  %6100 = vmatpush.msra.mxu0 %v149
  %6101 = vmatpush.msra.mxu0 %v147
  %6102 = vmatmul.f32.gmra.mxu0 %v6064
  %v6103 = vpop.f32.mrf.mxu0
  %v6104 = vadd.f32 0.0, %v6103
  %6105 = vdwg.mxu0
  %6107 = vrot.lane.b32.xlu0 %v5869, 64
  %v6108 = vpop.permute.xlu0 %6107
  %v6109 = vsel %vm403, %v6108, 0
  %6111 = vmatpush.msra.mxu0 0.0
  %6112 = vmatpush.msra.mxu0 0.0
  %6113 = vmatpush.msra.mxu0 0.0
  %6114 = vmatpush.msra.mxu0 0.0
  %6115 = vmatpush.msra.mxu0 0.0
  %6116 = vmatpush.msra.mxu0 0.0
  %6117 = vmatpush.msra.mxu0 0.0
  %6118 = vmatpush.msra.mxu0 0.0
  %6119 = vmatpush.msra.mxu0 0.0
  %6120 = vmatpush.msra.mxu0 0.0
  %6121 = vmatpush.msra.mxu0 0.0
  %6122 = vmatpush.msra.mxu0 0.0
  %6123 = vmatpush.msra.mxu0 %v80
  %6124 = vmatpush.msra.mxu0 %v78
  %6125 = vmatpush.msra.mxu0 %v76
  %6126 = vmatpush.msra.mxu0 %v74
  %6127 = vmatmul.f32.gmra.mxu0 %v6109
  %v6128 = vpop.f32.mrf.mxu0
  %v6129 = vadd.f32 %v5904, %v6128
  %6130 = vdwg.mxu0
  %6131 = vmatpush.msra.mxu0 0.0
  %6132 = vmatpush.msra.mxu0 0.0
  %6133 = vmatpush.msra.mxu0 0.0
  %6134 = vmatpush.msra.mxu0 0.0
  %6135 = vmatpush.msra.mxu0 0.0
  %6136 = vmatpush.msra.mxu0 0.0
  %6137 = vmatpush.msra.mxu0 0.0
  %6138 = vmatpush.msra.mxu0 0.0
  %6139 = vmatpush.msra.mxu0 0.0
  %6140 = vmatpush.msra.mxu0 0.0
  %6141 = vmatpush.msra.mxu0 0.0
  %6142 = vmatpush.msra.mxu0 0.0
  %6143 = vmatpush.msra.mxu0 %v81
  %6144 = vmatpush.msra.mxu0 %v79
  %6145 = vmatpush.msra.mxu0 %v77
  %6146 = vmatpush.msra.mxu0 %v75
  %6147 = vmatmul.f32.gmra.mxu0 %v6109
  %v6148 = vpop.f32.mrf.mxu0
  %v6149 = vadd.f32 %v5924, %v6148
  %6150 = vdwg.mxu0
  %6152 = vrot.lane.b32.xlu0 %v5872, 64
  %v6153 = vpop.permute.xlu0 %6152
  %v6154 = vsel %vm403, %v6153, 0
  %6156 = vmatpush.msra.mxu0 0.0
  %6157 = vmatpush.msra.mxu0 0.0
  %6158 = vmatpush.msra.mxu0 0.0
  %6159 = vmatpush.msra.mxu0 0.0
  %6160 = vmatpush.msra.mxu0 0.0
  %6161 = vmatpush.msra.mxu0 0.0
  %6162 = vmatpush.msra.mxu0 0.0
  %6163 = vmatpush.msra.mxu0 0.0
  %6164 = vmatpush.msra.mxu0 0.0
  %6165 = vmatpush.msra.mxu0 0.0
  %6166 = vmatpush.msra.mxu0 0.0
  %6167 = vmatpush.msra.mxu0 0.0
  %6168 = vmatpush.msra.mxu0 %v96
  %6169 = vmatpush.msra.mxu0 %v94
  %6170 = vmatpush.msra.mxu0 %v92
  %6171 = vmatpush.msra.mxu0 %v90
  %6172 = vmatmul.f32.gmra.mxu0 %v6154
  %v6173 = vpop.f32.mrf.mxu0
  %v6174 = vadd.f32 %v5949, %v6173
  %6175 = vdwg.mxu0
  %6176 = vmatpush.msra.mxu0 0.0
  %6177 = vmatpush.msra.mxu0 0.0
  %6178 = vmatpush.msra.mxu0 0.0
  %6179 = vmatpush.msra.mxu0 0.0
  %6180 = vmatpush.msra.mxu0 0.0
  %6181 = vmatpush.msra.mxu0 0.0
  %6182 = vmatpush.msra.mxu0 0.0
  %6183 = vmatpush.msra.mxu0 0.0
  %6184 = vmatpush.msra.mxu0 0.0
  %6185 = vmatpush.msra.mxu0 0.0
  %6186 = vmatpush.msra.mxu0 0.0
  %6187 = vmatpush.msra.mxu0 0.0
  %6188 = vmatpush.msra.mxu0 %v97
  %6189 = vmatpush.msra.mxu0 %v95
  %6190 = vmatpush.msra.mxu0 %v93
  %6191 = vmatpush.msra.mxu0 %v91
  %6192 = vmatmul.f32.gmra.mxu0 %v6154
  %v6193 = vpop.f32.mrf.mxu0
  %v6194 = vadd.f32 %v5969, %v6193
  %6195 = vdwg.mxu0
  %6197 = vrot.lane.b32.xlu0 %v5870, 64
  %v6198 = vpop.permute.xlu0 %6197
  %v6199 = vsel %vm403, %v6198, 0
  %6201 = vmatpush.msra.mxu0 0.0
  %6202 = vmatpush.msra.mxu0 0.0
  %6203 = vmatpush.msra.mxu0 0.0
  %6204 = vmatpush.msra.mxu0 0.0
  %6205 = vmatpush.msra.mxu0 0.0
  %6206 = vmatpush.msra.mxu0 0.0
  %6207 = vmatpush.msra.mxu0 0.0
  %6208 = vmatpush.msra.mxu0 0.0
  %6209 = vmatpush.msra.mxu0 0.0
  %6210 = vmatpush.msra.mxu0 0.0
  %6211 = vmatpush.msra.mxu0 0.0
  %6212 = vmatpush.msra.mxu0 0.0
  %6213 = vmatpush.msra.mxu0 %v112
  %6214 = vmatpush.msra.mxu0 %v110
  %6215 = vmatpush.msra.mxu0 %v108
  %6216 = vmatpush.msra.mxu0 %v106
  %6217 = vmatmul.f32.gmra.mxu0 %v6199
  %v6218 = vpop.f32.mrf.mxu0
  %v6219 = vadd.f32 %v5994, %v6218
  %6220 = vdwg.mxu0
  %6221 = vmatpush.msra.mxu0 0.0
  %6222 = vmatpush.msra.mxu0 0.0
  %6223 = vmatpush.msra.mxu0 0.0
  %6224 = vmatpush.msra.mxu0 0.0
  %6225 = vmatpush.msra.mxu0 0.0
  %6226 = vmatpush.msra.mxu0 0.0
  %6227 = vmatpush.msra.mxu0 0.0
  %6228 = vmatpush.msra.mxu0 0.0
  %6229 = vmatpush.msra.mxu0 0.0
  %6230 = vmatpush.msra.mxu0 0.0
  %6231 = vmatpush.msra.mxu0 0.0
  %6232 = vmatpush.msra.mxu0 0.0
  %6233 = vmatpush.msra.mxu0 %v113
  %6234 = vmatpush.msra.mxu0 %v111
  %6235 = vmatpush.msra.mxu0 %v109
  %6236 = vmatpush.msra.mxu0 %v107
  %6237 = vmatmul.f32.gmra.mxu0 %v6199
  %v6238 = vpop.f32.mrf.mxu0
  %v6239 = vadd.f32 %v6014, %v6238
  %6240 = vdwg.mxu0
  %6242 = vrot.lane.b32.xlu0 %v5875, 64
  %v6243 = vpop.permute.xlu0 %6242
  %v6244 = vsel %vm403, %v6243, 0
  %6246 = vmatpush.msra.mxu0 0.0
  %6247 = vmatpush.msra.mxu0 0.0
  %6248 = vmatpush.msra.mxu0 0.0
  %6249 = vmatpush.msra.mxu0 0.0
  %6250 = vmatpush.msra.mxu0 0.0
  %6251 = vmatpush.msra.mxu0 0.0
  %6252 = vmatpush.msra.mxu0 0.0
  %6253 = vmatpush.msra.mxu0 0.0
  %6254 = vmatpush.msra.mxu0 0.0
  %6255 = vmatpush.msra.mxu0 0.0
  %6256 = vmatpush.msra.mxu0 0.0
  %6257 = vmatpush.msra.mxu0 0.0
  %6258 = vmatpush.msra.mxu0 %v128
  %6259 = vmatpush.msra.mxu0 %v126
  %6260 = vmatpush.msra.mxu0 %v124
  %6261 = vmatpush.msra.mxu0 %v122
  %6262 = vmatmul.f32.gmra.mxu0 %v6244
  %v6263 = vpop.f32.mrf.mxu0
  %v6264 = vadd.f32 %v6039, %v6263
  %6265 = vdwg.mxu0
  %6266 = vmatpush.msra.mxu0 0.0
  %6267 = vmatpush.msra.mxu0 0.0
  %6268 = vmatpush.msra.mxu0 0.0
  %6269 = vmatpush.msra.mxu0 0.0
  %6270 = vmatpush.msra.mxu0 0.0
  %6271 = vmatpush.msra.mxu0 0.0
  %6272 = vmatpush.msra.mxu0 0.0
  %6273 = vmatpush.msra.mxu0 0.0
  %6274 = vmatpush.msra.mxu0 0.0
  %6275 = vmatpush.msra.mxu0 0.0
  %6276 = vmatpush.msra.mxu0 0.0
  %6277 = vmatpush.msra.mxu0 0.0
  %6278 = vmatpush.msra.mxu0 %v129
  %6279 = vmatpush.msra.mxu0 %v127
  %6280 = vmatpush.msra.mxu0 %v125
  %6281 = vmatpush.msra.mxu0 %v123
  %6282 = vmatmul.f32.gmra.mxu0 %v6244
  %v6283 = vpop.f32.mrf.mxu0
  %v6284 = vadd.f32 %v6059, %v6283
  %6285 = vdwg.mxu0
  %6287 = vrot.lane.b32.xlu0 %v5878, 64
  %v6288 = vpop.permute.xlu0 %6287
  %v6289 = vsel %vm403, %v6288, 0
  %6291 = vmatpush.msra.mxu0 0.0
  %6292 = vmatpush.msra.mxu0 0.0
  %6293 = vmatpush.msra.mxu0 0.0
  %6294 = vmatpush.msra.mxu0 0.0
  %6295 = vmatpush.msra.mxu0 0.0
  %6296 = vmatpush.msra.mxu0 0.0
  %6297 = vmatpush.msra.mxu0 0.0
  %6298 = vmatpush.msra.mxu0 0.0
  %6299 = vmatpush.msra.mxu0 0.0
  %6300 = vmatpush.msra.mxu0 0.0
  %6301 = vmatpush.msra.mxu0 0.0
  %6302 = vmatpush.msra.mxu0 0.0
  %6303 = vmatpush.msra.mxu0 %v144
  %6304 = vmatpush.msra.mxu0 %v142
  %6305 = vmatpush.msra.mxu0 %v140
  %6306 = vmatpush.msra.mxu0 %v138
  %6307 = vmatmul.f32.gmra.mxu0 %v6289
  %v6308 = vpop.f32.mrf.mxu0
  %v6309 = vadd.f32 %v6084, %v6308
  %6310 = vdwg.mxu0
  %6311 = vmatpush.msra.mxu0 0.0
  %6312 = vmatpush.msra.mxu0 0.0
  %6313 = vmatpush.msra.mxu0 0.0
  %6314 = vmatpush.msra.mxu0 0.0
  %6315 = vmatpush.msra.mxu0 0.0
  %6316 = vmatpush.msra.mxu0 0.0
  %6317 = vmatpush.msra.mxu0 0.0
  %6318 = vmatpush.msra.mxu0 0.0
  %6319 = vmatpush.msra.mxu0 0.0
  %6320 = vmatpush.msra.mxu0 0.0
  %6321 = vmatpush.msra.mxu0 0.0
  %6322 = vmatpush.msra.mxu0 0.0
  %6323 = vmatpush.msra.mxu0 %v145
  %6324 = vmatpush.msra.mxu0 %v143
  %6325 = vmatpush.msra.mxu0 %v141
  %6326 = vmatpush.msra.mxu0 %v139
  %6327 = vmatmul.f32.gmra.mxu0 %v6289
  %v6328 = vpop.f32.mrf.mxu0
  %v6329 = vadd.f32 %v6104, %v6328
  %6330 = vdwg.mxu0
  %v6331 = vadd.f32 %v6129, %v6174
  %v6332 = vadd.f32 %v6149, %v6194
  %v6333 = vadd.f32 %v6219, %v6264
  %v6334 = vadd.f32 %v6239, %v6284
  %v6335 = vadd.f32 %v6331, %v6333
  %v6336 = vadd.f32 %v6332, %v6334
  %v6337 = vadd.f32 %v6335, %v6309
  %v6338 = vadd.f32 %v6336, %v6329
  %v6340 = vperm.slane %v154, 0
  %v6341 = vperm.slane %v154, 1
  %v6344 = vadd.f32 %v6337, %v6340
  %v6345 = vadd.f32 %v6338, %v6341
  %v6347 = vperm.slane %v174, 0
  %vm6349 = vcmask 179200
  %v6351 = vsel %vm6349, %v6345, 0
  %vm6353 = vcmask 1045504
  %v6355 = vsel %vm6353, %v173, 0
  %6357 = vmatpush.msra.mxu0 %v170
  %6358 = vmatpush.msra.mxu0 %v169
  %6359 = vmatpush.msra.mxu0 %v168
  %6360 = vmatpush.msra.mxu0 %v167
  %6361 = vmatpush.msra.mxu0 %v166
  %6362 = vmatpush.msra.mxu0 %v165
  %6363 = vmatpush.msra.mxu0 %v164
  %6364 = vmatpush.msra.mxu0 %v163
  %6365 = vmatpush.msra.mxu0 %v162
  %6366 = vmatpush.msra.mxu0 %v161
  %6367 = vmatpush.msra.mxu0 %v160
  %6368 = vmatpush.msra.mxu0 %v159
  %6369 = vmatpush.msra.mxu0 %v158
  %6370 = vmatpush.msra.mxu0 %v157
  %6371 = vmatpush.msra.mxu0 %v156
  %6372 = vmatpush.msra.mxu0 %v155
  %6373 = vmatmul.f32.gmra.mxu0 %v6344
  %v6374 = vpop.f32.mrf.mxu0
  %v6375 = vadd.f32 %v6347, %v6374
  %6376 = vdwg.mxu0
  %6377 = vmatpush.msra.mxu0 0.0
  %6378 = vmatpush.msra.mxu0 0.0
  %6379 = vmatpush.msra.mxu0 0.0
  %6380 = vmatpush.msra.mxu0 0.0
  %6381 = vmatpush.msra.mxu0 0.0
  %6382 = vmatpush.msra.mxu0 0.0
  %6383 = vmatpush.msra.mxu0 0.0
  %6384 = vmatpush.msra.mxu0 0.0
  %6385 = vmatpush.msra.mxu0 0.0
  %6386 = vmatpush.msra.mxu0 0.0
  %6387 = vmatpush.msra.mxu0 0.0
  %6388 = vmatpush.msra.mxu0 0.0
  %6389 = vmatpush.msra.mxu0 0.0
  %6390 = vmatpush.msra.mxu0 %v6355
  %6391 = vmatpush.msra.mxu0 %v172
  %6392 = vmatpush.msra.mxu0 %v171
  %6393 = vmatmul.f32.gmra.mxu0 %v6351
  %v6394 = vpop.f32.mrf.mxu0
  %v6395 = vadd.f32 %v6375, %v6394
  %6396 = vdwg.mxu0
  %vm6397 = vcmask 15360
  %6398 = vst.msk [vmem:[%s23] sm:$0xff] %vm6397, %v6395
  // Predicated region
  $region94: #{tpu_custom_call.1} parent=0 // pred_check
    _
  $region95: #{tpu_custom_call.1} parent=0 // pred_check_branch
    %6400 = sbr.rel (0) target = $region97
  $region96: #{tpu_custom_call.1} parent=0 // pred_region
    _
  $region97: #{tpu_custom_call.1} parent=0 // pred_fallthru
    _
  // Predicated region
  $region98: #{tpu_custom_call.1} parent=0 // pred_check
    _
  $region99: #{tpu_custom_call.1} parent=0 // pred_check_branch
    %6402 = sbr.rel (0) target = $region101
  $region100: #{tpu_custom_call.1} parent=0 // pred_region
    _
  $region101: #{tpu_custom_call.1} parent=0 // pred_fallthru
    _

</llo_original>
